<compile_context>
chip_gen: v5e
topology: v5e:2x2
jax: 0.10.0
libtpu: 0.0.40
codegen_flags: <defaults>
</compile_context>

<pallas_src>
import jax
import jax.numpy as jnp
import numpy as np
from jax import lax
from jax.experimental import pallas as pl
from jax.experimental.pallas import tpu as pltpu


# --------------------------------------------------------------------------
# Small helpers
# --------------------------------------------------------------------------
def _round_up(x, m):
    return (x + m - 1) // m * m


def _pick_tile(m, cap):
    """Largest tile <= cap that divides m (multiple of 8 unless it's all of m)."""
    if m <= cap:
        return m
    for cand in range(cap - cap % 8, 7, -8):
        if m % cand == 0:
            return cand
    return m


def _pick_tk(input_dim, max_tk):
    """Contraction tile: must divide input_dim (no OOB in the reduction) and be
    a multiple of 128 (lane alignment)."""
    assert max_tk % 128 == 0
    if input_dim <= max_tk:
        return input_dim
    for cand in range(max_tk, 0, -128):
        if input_dim % cand == 0:
            return cand
    return input_dim


def _extract_patches_nhwc(x):
    """(N,H,W,C) -> (N,H,W,9*C); 3x3 neighborhood, zero padding, tap-major."""
    n, h, w, c = x.shape
    xp = jnp.pad(x, ((0, 0), (1, 1), (1, 1), (0, 0)))
    taps = [xp[:, dy:dy + h, dx:dx + w, :] for dy in range(3) for dx in range(3)]
    return jnp.concatenate(taps, axis=-1)


def _sigmoid(x):
    return 0.5 * (jnp.tanh(0.5 * x) + 1.0)


# --------------------------------------------------------------------------
# Kernels
# --------------------------------------------------------------------------
def encoder_conv_kernel(x_ref, w_ref, scale_ref, bias_ref, o_ref):
    # x_ref:    (1, 4, TM, 9*Cin) f32 im2col patches (4 = 2x2 pool positions)
    # w_ref:    (9*Cin, Cout)     f32
    # scale_ref/bias_ref: (1, Cout) f32  (BatchNorm + conv bias folded)
    # o_ref:    (1, TM, Cout)     f32  (pooled output)
    scale = scale_ref[...]
    bias = bias_ref[...]

    def act(p):
        y = jnp.dot(x_ref[0, p], w_ref[...], preferred_element_type=jnp.float32)
        return jnp.maximum(y * scale + bias, 0.0)       # BN + ReLU

    pooled = jnp.maximum(jnp.maximum(act(0), act(1)),
                         jnp.maximum(act(2), act(3)))    # 2x2 max-pool
    o_ref[0] = pooled


def convlstm_cell_kernel(xp_ref, hp_ref, c_ref, wx_ref, wh_ref, b_ref,
                         h_out_ref, c_out_ref):
    # xp_ref: (1, TM, 9*C) patches of x_t     hp_ref: (1, TM, 9*C) patches of h
    # c_ref:  (1, TM, C)   current cell state
    # wx_ref/wh_ref: (4, 9*C, C)   b_ref: (4, 1, C)   (gate order: i, f, o, g)
    xp = xp_ref[0]
    hp = hp_ref[0]

    def gate(g):
        return (jnp.dot(xp, wx_ref[g], preferred_element_type=jnp.float32)
                + jnp.dot(hp, wh_ref[g], preferred_element_type=jnp.float32)
                + b_ref[g])

    i = _sigmoid(gate(0))
    f = _sigmoid(gate(1))
    o = _sigmoid(gate(2))
    g = jnp.tanh(gate(3))
    c_next = f * c_ref[0] + i * g
    h_next = o * jnp.tanh(c_next)
    c_out_ref[0] = c_next
    h_out_ref[0] = h_next


def decoder_kernel(x_ref, w1_ref, b1_ref, w2_ref, b2_ref, o_ref, acc_ref):
    # Grid: (batch tiles [parallel], K tiles over input_dim [arbitrary]).
    # x_ref: (TB, tk) bf16   w1_ref: (tk, 512) bf16   b1_ref: (1, 512) f32
    # w2_ref: (512, out_pad) bf16   b2_ref: (1, out_pad) f32
    # o_ref: (TB, out_pad) f32      acc_ref: (TB, 512) f32 scratch
    k = pl.program_id(1)

    @pl.when(k == 0)
    def _init():
        acc_ref[...] = jnp.zeros_like(acc_ref)

    acc_ref[...] += jnp.dot(x_ref[...], w1_ref[...],
                            preferred_element_type=jnp.float32)

    @pl.when(k == pl.num_programs(1) - 1)
    def _finalize():
        h = jnp.maximum(acc_ref[...] + b1_ref[...], 0.0)   # bias + ReLU
        # Dropout(0.5) is identity at inference time.
        h = h.astype(jnp.bfloat16)
        y = jnp.dot(h, w2_ref[...],
                    preferred_element_type=jnp.float32) + b2_ref[...]
        o_ref[...] = y.astype(o_ref.dtype)


# --------------------------------------------------------------------------
# Stage wrappers
# --------------------------------------------------------------------------
def encoder_block(x_nhwc, w_mat, scale, bias, *, max_tm=2048):
    """Fused conv3x3 + BN + ReLU + maxpool2x2.  (N,H,W,Cin) -> (N,H/2,W/2,Cout)."""
    n, h, w, cin = x_nhwc.shape
    assert h % 2 == 0 and w % 2 == 0
    k = 9 * cin
    cout = w_mat.shape[1]
    hp, wp = h // 2, w // 2
    m = hp * wp

    patches = _extract_patches_nhwc(x_nhwc)                       # (N,H,W,K)
    patches = patches.reshape(n, hp, 2, wp, 2, k)
    patches = patches.transpose(0, 2, 4, 1, 3, 5).reshape(n, 4, m, k)

    tm = _pick_tile(m, max_tm)
    grid = (n, m // tm)
    out = pl.pallas_call(
        encoder_conv_kernel,
        out_shape=jax.ShapeDtypeStruct((n, m, cout), jnp.float32),
        grid_spec=pltpu.PrefetchScalarGridSpec(
            num_scalar_prefetch=0,
            grid=grid,
            in_specs=[
                pl.BlockSpec((1, 4, tm, k), lambda ni, mi: (ni, 0, mi, 0)),
                pl.BlockSpec((k, cout), lambda ni, mi: (0, 0)),
                pl.BlockSpec((1, cout), lambda ni, mi: (0, 0)),
                pl.BlockSpec((1, cout), lambda ni, mi: (0, 0)),
            ],
            out_specs=pl.BlockSpec((1, tm, cout), lambda ni, mi: (ni, mi, 0)),
        ),
        compiler_params=pltpu.CompilerParams(
            dimension_semantics=("parallel", "parallel")),
    )(patches, w_mat, scale, bias)
    return out.reshape(n, hp, wp, cout)


def convlstm_forward(x_seq, wx, wh, b, *, max_tm=2048):
    """x_seq: (B,T,Hq,Wq,C).  Returns last hidden state (B,Hq,Wq,C)."""
    bsz, t_len, hq, wq, c = x_seq.shape
    m = hq * wq
    kp = 9 * c

    xp_all = _extract_patches_nhwc(x_seq.reshape(bsz * t_len, hq, wq, c))
    xp_all = xp_all.reshape(bsz, t_len, m, kp)

    h = jnp.zeros((bsz, hq, wq, c), jnp.float32)
    c_state = jnp.zeros((bsz, m, c), jnp.float32)

    tm = _pick_tile(m, max_tm)
    grid = (bsz, m // tm)
    cell = pl.pallas_call(
        convlstm_cell_kernel,
        out_shape=(jax.ShapeDtypeStruct((bsz, m, c), jnp.float32),
                   jax.ShapeDtypeStruct((bsz, m, c), jnp.float32)),
        grid_spec=pltpu.PrefetchScalarGridSpec(
            num_scalar_prefetch=0,
            grid=grid,
            in_specs=[
                pl.BlockSpec((1, tm, kp), lambda bi, mi: (bi, mi, 0)),  # x patches
                pl.BlockSpec((1, tm, kp), lambda bi, mi: (bi, mi, 0)),  # h patches
                pl.BlockSpec((1, tm, c), lambda bi, mi: (bi, mi, 0)),   # c state
                pl.BlockSpec((4, kp, c), lambda bi, mi: (0, 0, 0)),     # wx (resident)
                pl.BlockSpec((4, kp, c), lambda bi, mi: (0, 0, 0)),     # wh (resident)
                pl.BlockSpec((4, 1, c), lambda bi, mi: (0, 0, 0)),      # bias
            ],
            out_specs=(pl.BlockSpec((1, tm, c), lambda bi, mi: (bi, mi, 0)),
                       pl.BlockSpec((1, tm, c), lambda bi, mi: (bi, mi, 0))),
        ),
        compiler_params=pltpu.CompilerParams(
            dimension_semantics=("parallel", "parallel")),
    )

    for t in range(t_len):
        hp = _extract_patches_nhwc(h).reshape(bsz, m, kp)
        h_flat, c_state = cell(xp_all[:, t], hp, c_state, wx, wh, b)
        h = h_flat.reshape(bsz, hq, wq, c)
    return h


def decoder_forward(x_flat, dec, *, tb=256, max_tk=2048):
    """x_flat: (B, input_dim) -> (B, num_points, 2)."""
    w1, b1, w2, b2 = dec["w1"], dec["b1"], dec["w2"], dec["b2"]
    out_dim = dec["out_dim"]

    bsz, input_dim = x_flat.shape
    x2d = x_flat.astype(jnp.bfloat16)
    assert w1.shape[0] == input_dim
    hidden = w1.shape[1]          # 512
    out_pad = w2.shape[1]         # 2*num_points rounded up to 128

    tb_eff = bsz if bsz <= tb else tb
    tk = _pick_tk(input_dim, max_tk)
    grid = (pl.cdiv(bsz, tb_eff), pl.cdiv(input_dim, tk))

    vmem_bytes = (2 * tb_eff * tk * 2
                  + 2 * tk * hidden * 2
                  + 2 * hidden * out_pad * 2
                  + 2 * tb_eff * out_pad * 4
                  + tb_eff * hidden * 4
                  + 2 * (hidden + out_pad) * 4)
    vmem_limit = int(min(64 * 1024 * 1024, 2 * vmem_bytes + (4 << 20)))

    cost = pl.CostEstimate(
        flops=2 * bsz * (input_dim * hidden + hidden * out_pad),
        transcendentals=0,
        bytes_accessed=(x2d.size * 2 + w1.size * 2 + w2.size * 2
                        + b1.size * 4 + b2.size * 4 + bsz * out_pad * 4),
    )

    out = pl.pallas_call(
        decoder_kernel,
        out_shape=jax.ShapeDtypeStruct((bsz, out_pad), jnp.float32),
        grid_spec=pltpu.PrefetchScalarGridSpec(
            num_scalar_prefetch=0,
            grid=grid,
            in_specs=[
                pl.BlockSpec((tb_eff, tk), lambda i, k: (i, k)),         # x
                pl.BlockSpec((tk, hidden), lambda i, k: (k, 0)),         # w1
                pl.BlockSpec((1, hidden), lambda i, k: (0, 0)),          # b1
                pl.BlockSpec((hidden, out_pad), lambda i, k: (0, 0)),    # w2
                pl.BlockSpec((1, out_pad), lambda i, k: (0, 0)),         # b2
            ],
            out_specs=pl.BlockSpec((tb_eff, out_pad), lambda i, k: (i, 0)),
            scratch_shapes=[pltpu.VMEM((tb_eff, hidden), jnp.float32)],
        ),
        compiler_params=pltpu.CompilerParams(
            dimension_semantics=("parallel", "arbitrary"),
            vmem_limit_bytes=vmem_limit,
        ),
        cost_estimate=cost,
    )(x2d, w1, b1, w2, b2)

    return out[:, :out_dim].reshape(bsz, -1, 2)


def microtubule_forward(x, kp, *, max_tk=2048):
    """x: (B, T, 1, H, W) f32 -> (B, num_points, 2)."""
    bsz, t_len, c0, h, w = x.shape
    z = x.reshape(bsz * t_len, c0, h, w).transpose(0, 2, 3, 1)    # NHWC
    z = encoder_block(z, kp["enc1_w"], kp["enc1_scale"], kp["enc1_bias"])
    z = encoder_block(z, kp["enc2_w"], kp["enc2_scale"], kp["enc2_bias"])
    hq, wq = h // 4, w // 4
    z = z.reshape(bsz, t_len, hq, wq, 16)
    h_last = convlstm_forward(z, kp["lstm_wx"], kp["lstm_wh"], kp["lstm_b"])
    # PyTorch flattens the NCHW hidden state: (B, C, Hq, Wq) -> (B, -1).
    flat = h_last.transpose(0, 3, 1, 2).reshape(bsz, -1)
    return decoder_forward(flat, kp["dec"], max_tk=max_tk)


# --------------------------------------------------------------------------
# Parameters (PyTorch layout) + conversion to kernel layout
# --------------------------------------------------------------------------
def init_model_params(key, h, w, num_points=300):
    hq, wq = h // 4, w // 4
    input_dim = 16 * hq * wq
    ks = jax.random.split(key, 20)

    def u(k, shape, fan_in):
        lim = 1.0 / np.sqrt(fan_in)
        return jax.random.uniform(k, shape, jnp.float32, -lim, lim)

    return dict(
        conv1_w=u(ks[0], (8, 1, 3, 3), 9), conv1_b=u(ks[1], (8,), 9),
        bn1_gamma=jax.random.uniform(ks[2], (8,), jnp.float32, 0.8, 1.2),
        bn1_beta=jax.random.uniform(ks[3], (8,), jnp.float32, -0.1, 0.1),
        bn1_mean=0.1 * jax.random.normal(ks[4], (8,), jnp.float32),
        bn1_var=jax.random.uniform(ks[5], (8,), jnp.float32, 0.5, 1.5),
        conv2_w=u(ks[6], (16, 8, 3, 3), 72), conv2_b=u(ks[7], (16,), 72),
        bn2_gamma=jax.random.uniform(ks[8], (16,), jnp.float32, 0.8, 1.2),
        bn2_beta=jax.random.uniform(ks[9], (16,), jnp.float32, -0.1, 0.1),
        bn2_mean=0.1 * jax.random.normal(ks[10], (16,), jnp.float32),
        bn2_var=jax.random.uniform(ks[11], (16,), jnp.float32, 0.5, 1.5),
        lstm_w=u(ks[12], (64, 32, 3, 3), 32 * 9), lstm_b=u(ks[13], (64,), 32 * 9),
        fc1_w=u(ks[14], (512, input_dim), input_dim),
        fc1_b=u(ks[15], (512,), input_dim),
        fc2_w=u(ks[16], (2 * num_points, 512), 512),
        fc2_b=u(ks[17], (2 * num_points,), 512),
    )


def _conv_to_mat(w_oihw):
    cout, cin, kh, kw = w_oihw.shape
    return jnp.transpose(w_oihw, (2, 3, 1, 0)).reshape(kh * kw * cin, cout)


def prepare_kernel_params(p, num_points=300):
    eps = 1e-5

    def fold_bn(conv_b, gamma, beta, mean, var):
        scale = gamma / jnp.sqrt(var + eps)
        bias = (conv_b - mean) * scale + beta
        return scale.reshape(1, -1), bias.reshape(1, -1)

    s1, b1 = fold_bn(p["conv1_b"], p["bn1_gamma"], p["bn1_beta"],
                     p["bn1_mean"], p["bn1_var"])
    s2, b2 = fold_bn(p["conv2_b"], p["bn2_gamma"], p["bn2_beta"],
                     p["bn2_mean"], p["bn2_var"])

    hidden = 16
    wx_g, wh_g = [], []
    for g in range(4):                               # gate order i, f, o, g
        wg = p["lstm_w"][g * hidden:(g + 1) * hidden]     # (16, 32, 3, 3)
        wx_g.append(_conv_to_mat(wg[:, :hidden]))         # x half of channels
        wh_g.append(_conv_to_mat(wg[:, hidden:]))         # h half of channels

    out_dim = 2 * num_points
    out_pad = _round_up(out_dim, 128)
    pad = out_pad - out_dim
    return dict(
        enc1_w=_conv_to_mat(p["conv1_w"]), enc1_scale=s1, enc1_bias=b1,
        enc2_w=_conv_to_mat(p["conv2_w"]), enc2_scale=s2, enc2_bias=b2,
        lstm_wx=jnp.stack(wx_g, 0), lstm_wh=jnp.stack(wh_g, 0),
        lstm_b=p["lstm_b"].reshape(4, 1, hidden),
        dec=dict(
            w1=jnp.transpose(p["fc1_w"]).astype(jnp.bfloat16),
            b1=p["fc1_b"].astype(jnp.float32).reshape(1, -1),
            w2=jnp.pad(jnp.transpose(p["fc2_w"]), ((0, 0), (0, pad))).astype(jnp.bfloat16),
            b2=jnp.pad(p["fc2_b"], (0, pad)).astype(jnp.float32).reshape(1, -1),
            out_dim=out_dim,
        ),
    )


# --------------------------------------------------------------------------
# Pure-JAX reference (mirrors the PyTorch eval-mode forward)
# --------------------------------------------------------------------------
def ref_forward(x, p, num_points):
    bsz, t_len, c0, h, w = x.shape
    eps = 1e-5

    def conv(z, wgt, b):
        out = lax.conv_general_dilated(z, wgt, (1, 1), "SAME",
                                       dimension_numbers=("NCHW", "OIHW", "NCHW"))
        return out + b[None, :, None, None]

    def bn(z, g, bt, m, v):
        return ((z - m[None, :, None, None])
                * (g / jnp.sqrt(v + eps))[None, :, None, None]
                + bt[None, :, None, None])

    def pool(z):
        return lax.reduce_window(z, -jnp.inf, lax.max,
                                 (1, 1, 2, 2), (1, 1, 2, 2), "VALID")

    z = x.reshape(bsz * t_len, c0, h, w)
    z = pool(jnp.maximum(bn(conv(z, p["conv1_w"], p["conv1_b"]), p["bn1_gamma"],
                            p["bn1_beta"], p["bn1_mean"], p["bn1_var"]), 0.0))
    z = pool(jnp.maximum(bn(conv(z, p["conv2_w"], p["conv2_b"]), p["bn2_gamma"],
                            p["bn2_beta"], p["bn2_mean"], p["bn2_var"]), 0.0))
    hq, wq = h // 4, w // 4
    z = z.reshape(bsz, t_len, 16, hq, wq)

    hs = jnp.zeros((bsz, 16, hq, wq), jnp.float32)
    cs = jnp.zeros_like(hs)
    for t in range(t_len):
        comb = jnp.concatenate([z[:, t], hs], axis=1)
        cc = conv(comb, p["lstm_w"], p["lstm_b"])
        ci, cf, co, cg = jnp.split(cc, 4, axis=1)
        i = jax.nn.sigmoid(ci)
        f = jax.nn.sigmoid(cf)
        o = jax.nn.sigmoid(co)
        g = jnp.tanh(cg)
        cs = f * cs + i * g
        hs = o * jnp.tanh(cs)

    flat = hs.reshape(bsz, -1)
    hid = jnp.maximum(flat @ p["fc1_w"].T + p["fc1_b"], 0.0)
    y = hid @ p["fc2_w"].T + p["fc2_b"]
    return y.reshape(bsz, num_points, 2)


# --------------------------------------------------------------------------
if __name__ == "__main__":
    # Small shapes consistent with the module: (B, seq, 1, H, W) with H=W=32
    # -> encoder output (B*T, 16, 8, 8), decoder input_dim = 16*8*8 = 1024,
    # num_points = 300 (output 600, lane-padded to 640 inside the decoder).
    B, T, H, W, num_points = 2, 4, 32, 32, 300
    key = jax.random.PRNGKey(0)
    kx, kp = jax.random.split(key)
    x = jax.random.normal(kx, (B, T, 1, H, W), jnp.float32)

    params = init_model_params(kp, H, W, num_points)
    kparams = prepare_kernel_params(params, num_points)

    # max_tk=512 -> two contraction tiles, exercising the decoder K-grid path.
    fwd = jax.jit(lambda xx: microtubule_forward(xx, kparams, max_tk=512))
    out = jax.block_until_ready(fwd(x))
    assert out.shape == (B, num_points, 2), out.shape

    ref = jax.block_until_ready(ref_forward(x, params, num_points))
    # Encoder/ConvLSTM kernels are f32; only the decoder uses bf16 inputs with
    # f32 accumulation, so a 2e-2 tolerance is comfortably loose.
    np.testing.assert_allclose(np.asarray(out), np.asarray(ref),
                               rtol=2e-2, atol=2e-2)

    print("KERNEL_OK")
</pallas_src>

<mosaic_0001>
module attributes {stable_mosaic.version = 11 : i64} {
  func.func @encoder_conv_kernel(%arg0: i32, %arg1: i32, %arg2: memref<1x4x256x9xf32, #tpu.memory_space<vmem>>, %arg3: memref<9x8xf32, #tpu.memory_space<vmem>>, %arg4: memref<1x8xf32, #tpu.memory_space<vmem>>, %arg5: memref<1x8xf32, #tpu.memory_space<vmem>>, %arg6: memref<1x256x8xf32, #tpu.memory_space<vmem>>) attributes {dimension_semantics = [#tpu.dimension_semantics<parallel>, #tpu.dimension_semantics<parallel>], iteration_bounds = array<i64: 8, 1>, scalar_prefetch = 0 : i64, scratch_operands = 0 : i64, tpu.core_type = #tpu.core_type<tc>, window_params = [{transform_indices = @transform_0, window_bounds = array<i64: 1, 4, 256, 9>}, {pipeline_mode = #tpu.pipeline_mode<synchronous>, transform_indices = @transform_1, window_bounds = array<i64: 9, 8>}, {pipeline_mode = #tpu.pipeline_mode<synchronous>, transform_indices = @transform_2, window_bounds = array<i64: 1, 8>}, {pipeline_mode = #tpu.pipeline_mode<synchronous>, transform_indices = @transform_3, window_bounds = array<i64: 1, 8>}, {transform_indices = @transform_4, window_bounds = array<i64: 1, 256, 8>}]} {
    %c0 = arith.constant 0 : index
    %c0_0 = arith.constant 0 : index
    %0 = vector.load %arg4[%c0, %c0_0] : memref<1x8xf32, #tpu.memory_space<vmem>>, vector<1x8xf32>
    %c0_1 = arith.constant 0 : index
    %c0_2 = arith.constant 0 : index
    %1 = vector.load %arg5[%c0_1, %c0_2] : memref<1x8xf32, #tpu.memory_space<vmem>>, vector<1x8xf32>
    %c0_3 = arith.constant 0 : index
    %c0_4 = arith.constant 0 : index
    %c0_5 = arith.constant 0 : index
    %c0_6 = arith.constant 0 : index
    %2 = vector.load %arg2[%c0_3, %c0_4, %c0_5, %c0_6] : memref<1x4x256x9xf32, #tpu.memory_space<vmem>>, vector<1x1x256x9xf32>
    %3 = vector.shape_cast %2 : vector<1x1x256x9xf32> to vector<256x9xf32>
    %c0_7 = arith.constant 0 : index
    %c0_8 = arith.constant 0 : index
    %4 = vector.load %arg3[%c0_7, %c0_8] : memref<9x8xf32, #tpu.memory_space<vmem>>, vector<9x8xf32>
    %cst = arith.constant dense<0.000000e+00> : vector<256x8xf32>
    %5 = tpu.matmul %3, %4, %cst {dimension_numbers = #tpu.dot_dimension_numbers<[1], [0], [0], [1], [0, 0, 1, 1], [], []>} : vector<256x9xf32>, vector<9x8xf32>, vector<256x8xf32> -> vector<256x8xf32>
    %6 = vector.broadcast %0 : vector<1x8xf32> to vector<256x8xf32>
    %7 = arith.mulf %5, %6 : vector<256x8xf32>
    %8 = vector.broadcast %1 : vector<1x8xf32> to vector<256x8xf32>
    %9 = arith.addf %7, %8 : vector<256x8xf32>
    %cst_9 = arith.constant 0.000000e+00 : f32
    %10 = vector.broadcast %cst_9 : f32 to vector<256x8xf32>
    %11 = arith.maximumf %9, %10 : vector<256x8xf32>
    %c0_10 = arith.constant 0 : index
    %c1 = arith.constant 1 : index
    %c0_11 = arith.constant 0 : index
    %c0_12 = arith.constant 0 : index
    %12 = vector.load %arg2[%c0_10, %c1, %c0_11, %c0_12] : memref<1x4x256x9xf32, #tpu.memory_space<vmem>>, vector<1x1x256x9xf32>
    %13 = vector.shape_cast %12 : vector<1x1x256x9xf32> to vector<256x9xf32>
    %c0_13 = arith.constant 0 : index
    %c0_14 = arith.constant 0 : index
    %14 = vector.load %arg3[%c0_13, %c0_14] : memref<9x8xf32, #tpu.memory_space<vmem>>, vector<9x8xf32>
    %cst_15 = arith.constant dense<0.000000e+00> : vector<256x8xf32>
    %15 = tpu.matmul %13, %14, %cst_15 {dimension_numbers = #tpu.dot_dimension_numbers<[1], [0], [0], [1], [0, 0, 1, 1], [], []>} : vector<256x9xf32>, vector<9x8xf32>, vector<256x8xf32> -> vector<256x8xf32>
    %16 = vector.broadcast %0 : vector<1x8xf32> to vector<256x8xf32>
    %17 = arith.mulf %15, %16 : vector<256x8xf32>
    %18 = vector.broadcast %1 : vector<1x8xf32> to vector<256x8xf32>
    %19 = arith.addf %17, %18 : vector<256x8xf32>
    %cst_16 = arith.constant 0.000000e+00 : f32
    %20 = vector.broadcast %cst_16 : f32 to vector<256x8xf32>
    %21 = arith.maximumf %19, %20 : vector<256x8xf32>
    %22 = arith.maximumf %11, %21 : vector<256x8xf32>
    %c0_17 = arith.constant 0 : index
    %c2 = arith.constant 2 : index
    %c0_18 = arith.constant 0 : index
    %c0_19 = arith.constant 0 : index
    %23 = vector.load %arg2[%c0_17, %c2, %c0_18, %c0_19] : memref<1x4x256x9xf32, #tpu.memory_space<vmem>>, vector<1x1x256x9xf32>
    %24 = vector.shape_cast %23 : vector<1x1x256x9xf32> to vector<256x9xf32>
    %c0_20 = arith.constant 0 : index
    %c0_21 = arith.constant 0 : index
    %25 = vector.load %arg3[%c0_20, %c0_21] : memref<9x8xf32, #tpu.memory_space<vmem>>, vector<9x8xf32>
    %cst_22 = arith.constant dense<0.000000e+00> : vector<256x8xf32>
    %26 = tpu.matmul %24, %25, %cst_22 {dimension_numbers = #tpu.dot_dimension_numbers<[1], [0], [0], [1], [0, 0, 1, 1], [], []>} : vector<256x9xf32>, vector<9x8xf32>, vector<256x8xf32> -> vector<256x8xf32>
    %27 = vector.broadcast %0 : vector<1x8xf32> to vector<256x8xf32>
    %28 = arith.mulf %26, %27 : vector<256x8xf32>
    %29 = vector.broadcast %1 : vector<1x8xf32> to vector<256x8xf32>
    %30 = arith.addf %28, %29 : vector<256x8xf32>
    %cst_23 = arith.constant 0.000000e+00 : f32
    %31 = vector.broadcast %cst_23 : f32 to vector<256x8xf32>
    %32 = arith.maximumf %30, %31 : vector<256x8xf32>
    %c0_24 = arith.constant 0 : index
    %c3 = arith.constant 3 : index
    %c0_25 = arith.constant 0 : index
    %c0_26 = arith.constant 0 : index
    %33 = vector.load %arg2[%c0_24, %c3, %c0_25, %c0_26] : memref<1x4x256x9xf32, #tpu.memory_space<vmem>>, vector<1x1x256x9xf32>
    %34 = vector.shape_cast %33 : vector<1x1x256x9xf32> to vector<256x9xf32>
    %c0_27 = arith.constant 0 : index
    %c0_28 = arith.constant 0 : index
    %35 = vector.load %arg3[%c0_27, %c0_28] : memref<9x8xf32, #tpu.memory_space<vmem>>, vector<9x8xf32>
    %cst_29 = arith.constant dense<0.000000e+00> : vector<256x8xf32>
    %36 = tpu.matmul %34, %35, %cst_29 {dimension_numbers = #tpu.dot_dimension_numbers<[1], [0], [0], [1], [0, 0, 1, 1], [], []>} : vector<256x9xf32>, vector<9x8xf32>, vector<256x8xf32> -> vector<256x8xf32>
    %37 = vector.broadcast %0 : vector<1x8xf32> to vector<256x8xf32>
    %38 = arith.mulf %36, %37 : vector<256x8xf32>
    %39 = vector.broadcast %1 : vector<1x8xf32> to vector<256x8xf32>
    %40 = arith.addf %38, %39 : vector<256x8xf32>
    %cst_30 = arith.constant 0.000000e+00 : f32
    %41 = vector.broadcast %cst_30 : f32 to vector<256x8xf32>
    %42 = arith.maximumf %40, %41 : vector<256x8xf32>
    %43 = arith.maximumf %32, %42 : vector<256x8xf32>
    %44 = arith.maximumf %22, %43 : vector<256x8xf32>
    %c0_31 = arith.constant 0 : index
    %c0_32 = arith.constant 0 : index
    %c0_33 = arith.constant 0 : index
    %45 = vector.load %arg6[%c0_31, %c0_32, %c0_33] : memref<1x256x8xf32, #tpu.memory_space<vmem>>, vector<1x256x8xf32>
    %46 = vector.shape_cast %45 : vector<1x256x8xf32> to vector<256x8xf32>
    %47 = vector.shape_cast %44 : vector<256x8xf32> to vector<1x256x8xf32>
    tpu.vector_store %arg6[%c0_31, %c0_32, %c0_33], %47 {strides = array<i32>} : memref<1x256x8xf32, #tpu.memory_space<vmem>>, vector<1x256x8xf32>,
    return
  }
  func.func @transform_0(%arg0: i32, %arg1: i32) -> (i32, i32, i32, i32) {
    %c0_i32 = arith.constant 0 : i32
    %c0_i32_0 = arith.constant 0 : i32
    %c0_i32_1 = arith.constant 0 : i32
    return %arg0, %c0_i32, %arg1, %c0_i32_0 : i32, i32, i32, i32
  }
  func.func @transform_1(%arg0: i32, %arg1: i32) -> (i32, i32) {
    %c0_i32 = arith.constant 0 : i32
    %c0_i32_0 = arith.constant 0 : i32
    %c0_i32_1 = arith.constant 0 : i32
    return %c0_i32, %c0_i32_0 : i32, i32
  }
  func.func @transform_2(%arg0: i32, %arg1: i32) -> (i32, i32) {
    %c0_i32 = arith.constant 0 : i32
    %c0_i32_0 = arith.constant 0 : i32
    %c0_i32_1 = arith.constant 0 : i32
    return %c0_i32, %c0_i32_0 : i32, i32
  }
  func.func @transform_3(%arg0: i32, %arg1: i32) -> (i32, i32) {
    %c0_i32 = arith.constant 0 : i32
    %c0_i32_0 = arith.constant 0 : i32
    %c0_i32_1 = arith.constant 0 : i32
    return %c0_i32, %c0_i32_0 : i32, i32
  }
  func.func @transform_4(%arg0: i32, %arg1: i32) -> (i32, i32, i32) {
    %c0_i32 = arith.constant 0 : i32
    %c0_i32_0 = arith.constant 0 : i32
    return %arg0, %arg1, %c0_i32 : i32, i32, i32
  }
}

module attributes {stable_mosaic.version = 11 : i64} {
  func.func @encoder_conv_kernel(%arg0: i32, %arg1: i32, %arg2: memref<1x4x64x72xf32, #tpu.memory_space<vmem>>, %arg3: memref<72x16xf32, #tpu.memory_space<vmem>>, %arg4: memref<1x16xf32, #tpu.memory_space<vmem>>, %arg5: memref<1x16xf32, #tpu.memory_space<vmem>>, %arg6: memref<1x64x16xf32, #tpu.memory_space<vmem>>) attributes {dimension_semantics = [#tpu.dimension_semantics<parallel>, #tpu.dimension_semantics<parallel>], iteration_bounds = array<i64: 8, 1>, scalar_prefetch = 0 : i64, scratch_operands = 0 : i64, tpu.core_type = #tpu.core_type<tc>, window_params = [{transform_indices = @transform_0, window_bounds = array<i64: 1, 4, 64, 72>}, {pipeline_mode = #tpu.pipeline_mode<synchronous>, transform_indices = @transform_1, window_bounds = array<i64: 72, 16>}, {pipeline_mode = #tpu.pipeline_mode<synchronous>, transform_indices = @transform_2, window_bounds = array<i64: 1, 16>}, {pipeline_mode = #tpu.pipeline_mode<synchronous>, transform_indices = @transform_3, window_bounds = array<i64: 1, 16>}, {transform_indices = @transform_4, window_bounds = array<i64: 1, 64, 16>}]} {
    %c0 = arith.constant 0 : index
    %c0_0 = arith.constant 0 : index
    %0 = vector.load %arg4[%c0, %c0_0] : memref<1x16xf32, #tpu.memory_space<vmem>>, vector<1x16xf32>
    %c0_1 = arith.constant 0 : index
    %c0_2 = arith.constant 0 : index
    %1 = vector.load %arg5[%c0_1, %c0_2] : memref<1x16xf32, #tpu.memory_space<vmem>>, vector<1x16xf32>
    %c0_3 = arith.constant 0 : index
    %c0_4 = arith.constant 0 : index
    %c0_5 = arith.constant 0 : index
    %c0_6 = arith.constant 0 : index
    %2 = vector.load %arg2[%c0_3, %c0_4, %c0_5, %c0_6] : memref<1x4x64x72xf32, #tpu.memory_space<vmem>>, vector<1x1x64x72xf32>
    %3 = vector.shape_cast %2 : vector<1x1x64x72xf32> to vector<64x72xf32>
    %c0_7 = arith.constant 0 : index
    %c0_8 = arith.constant 0 : index
    %4 = vector.load %arg3[%c0_7, %c0_8] : memref<72x16xf32, #tpu.memory_space<vmem>>, vector<72x16xf32>
    %cst = arith.constant dense<0.000000e+00> : vector<64x16xf32>
    %5 = tpu.matmul %3, %4, %cst {dimension_numbers = #tpu.dot_dimension_numbers<[1], [0], [0], [1], [0, 0, 1, 1], [], []>} : vector<64x72xf32>, vector<72x16xf32>, vector<64x16xf32> -> vector<64x16xf32>
    %6 = vector.broadcast %0 : vector<1x16xf32> to vector<64x16xf32>
    %7 = arith.mulf %5, %6 : vector<64x16xf32>
    %8 = vector.broadcast %1 : vector<1x16xf32> to vector<64x16xf32>
    %9 = arith.addf %7, %8 : vector<64x16xf32>
    %cst_9 = arith.constant 0.000000e+00 : f32
    %10 = vector.broadcast %cst_9 : f32 to vector<64x16xf32>
    %11 = arith.maximumf %9, %10 : vector<64x16xf32>
    %c0_10 = arith.constant 0 : index
    %c1 = arith.constant 1 : index
    %c0_11 = arith.constant 0 : index
    %c0_12 = arith.constant 0 : index
    %12 = vector.load %arg2[%c0_10, %c1, %c0_11, %c0_12] : memref<1x4x64x72xf32, #tpu.memory_space<vmem>>, vector<1x1x64x72xf32>
    %13 = vector.shape_cast %12 : vector<1x1x64x72xf32> to vector<64x72xf32>
    %c0_13 = arith.constant 0 : index
    %c0_14 = arith.constant 0 : index
    %14 = vector.load %arg3[%c0_13, %c0_14] : memref<72x16xf32, #tpu.memory_space<vmem>>, vector<72x16xf32>
    %cst_15 = arith.constant dense<0.000000e+00> : vector<64x16xf32>
    %15 = tpu.matmul %13, %14, %cst_15 {dimension_numbers = #tpu.dot_dimension_numbers<[1], [0], [0], [1], [0, 0, 1, 1], [], []>} : vector<64x72xf32>, vector<72x16xf32>, vector<64x16xf32> -> vector<64x16xf32>
    %16 = vector.broadcast %0 : vector<1x16xf32> to vector<64x16xf32>
    %17 = arith.mulf %15, %16 : vector<64x16xf32>
    %18 = vector.broadcast %1 : vector<1x16xf32> to vector<64x16xf32>
    %19 = arith.addf %17, %18 : vector<64x16xf32>
    %cst_16 = arith.constant 0.000000e+00 : f32
    %20 = vector.broadcast %cst_16 : f32 to vector<64x16xf32>
    %21 = arith.maximumf %19, %20 : vector<64x16xf32>
    %22 = arith.maximumf %11, %21 : vector<64x16xf32>
    %c0_17 = arith.constant 0 : index
    %c2 = arith.constant 2 : index
    %c0_18 = arith.constant 0 : index
    %c0_19 = arith.constant 0 : index
    %23 = vector.load %arg2[%c0_17, %c2, %c0_18, %c0_19] : memref<1x4x64x72xf32, #tpu.memory_space<vmem>>, vector<1x1x64x72xf32>
    %24 = vector.shape_cast %23 : vector<1x1x64x72xf32> to vector<64x72xf32>
    %c0_20 = arith.constant 0 : index
    %c0_21 = arith.constant 0 : index
    %25 = vector.load %arg3[%c0_20, %c0_21] : memref<72x16xf32, #tpu.memory_space<vmem>>, vector<72x16xf32>
    %cst_22 = arith.constant dense<0.000000e+00> : vector<64x16xf32>
    %26 = tpu.matmul %24, %25, %cst_22 {dimension_numbers = #tpu.dot_dimension_numbers<[1], [0], [0], [1], [0, 0, 1, 1], [], []>} : vector<64x72xf32>, vector<72x16xf32>, vector<64x16xf32> -> vector<64x16xf32>
    %27 = vector.broadcast %0 : vector<1x16xf32> to vector<64x16xf32>
    %28 = arith.mulf %26, %27 : vector<64x16xf32>
    %29 = vector.broadcast %1 : vector<1x16xf32> to vector<64x16xf32>
    %30 = arith.addf %28, %29 : vector<64x16xf32>
    %cst_23 = arith.constant 0.000000e+00 : f32
    %31 = vector.broadcast %cst_23 : f32 to vector<64x16xf32>
    %32 = arith.maximumf %30, %31 : vector<64x16xf32>
    %c0_24 = arith.constant 0 : index
    %c3 = arith.constant 3 : index
    %c0_25 = arith.constant 0 : index
    %c0_26 = arith.constant 0 : index
    %33 = vector.load %arg2[%c0_24, %c3, %c0_25, %c0_26] : memref<1x4x64x72xf32, #tpu.memory_space<vmem>>, vector<1x1x64x72xf32>
    %34 = vector.shape_cast %33 : vector<1x1x64x72xf32> to vector<64x72xf32>
    %c0_27 = arith.constant 0 : index
    %c0_28 = arith.constant 0 : index
    %35 = vector.load %arg3[%c0_27, %c0_28] : memref<72x16xf32, #tpu.memory_space<vmem>>, vector<72x16xf32>
    %cst_29 = arith.constant dense<0.000000e+00> : vector<64x16xf32>
    %36 = tpu.matmul %34, %35, %cst_29 {dimension_numbers = #tpu.dot_dimension_numbers<[1], [0], [0], [1], [0, 0, 1, 1], [], []>} : vector<64x72xf32>, vector<72x16xf32>, vector<64x16xf32> -> vector<64x16xf32>
    %37 = vector.broadcast %0 : vector<1x16xf32> to vector<64x16xf32>
    %38 = arith.mulf %36, %37 : vector<64x16xf32>
    %39 = vector.broadcast %1 : vector<1x16xf32> to vector<64x16xf32>
    %40 = arith.addf %38, %39 : vector<64x16xf32>
    %cst_30 = arith.constant 0.000000e+00 : f32
    %41 = vector.broadcast %cst_30 : f32 to vector<64x16xf32>
    %42 = arith.maximumf %40, %41 : vector<64x16xf32>
    %43 = arith.maximumf %32, %42 : vector<64x16xf32>
    %44 = arith.maximumf %22, %43 : vector<64x16xf32>
    %c0_31 = arith.constant 0 : index
    %c0_32 = arith.constant 0 : index
    %c0_33 = arith.constant 0 : index
    %45 = vector.load %arg6[%c0_31, %c0_32, %c0_33] : memref<1x64x16xf32, #tpu.memory_space<vmem>>, vector<1x64x16xf32>
    %46 = vector.shape_cast %45 : vector<1x64x16xf32> to vector<64x16xf32>
    %47 = vector.shape_cast %44 : vector<64x16xf32> to vector<1x64x16xf32>
    tpu.vector_store %arg6[%c0_31, %c0_32, %c0_33], %47 {strides = array<i32>} : memref<1x64x16xf32, #tpu.memory_space<vmem>>, vector<1x64x16xf32>,
    return
  }
  func.func @transform_0(%arg0: i32, %arg1: i32) -> (i32, i32, i32, i32) {
    %c0_i32 = arith.constant 0 : i32
    %c0_i32_0 = arith.constant 0 : i32
    %c0_i32_1 = arith.constant 0 : i32
    return %arg0, %c0_i32, %arg1, %c0_i32_0 : i32, i32, i32, i32
  }
  func.func @transform_1(%arg0: i32, %arg1: i32) -> (i32, i32) {
    %c0_i32 = arith.constant 0 : i32
    %c0_i32_0 = arith.constant 0 : i32
    %c0_i32_1 = arith.constant 0 : i32
    return %c0_i32, %c0_i32_0 : i32, i32
  }
  func.func @transform_2(%arg0: i32, %arg1: i32) -> (i32, i32) {
    %c0_i32 = arith.constant 0 : i32
    %c0_i32_0 = arith.constant 0 : i32
    %c0_i32_1 = arith.constant 0 : i32
    return %c0_i32, %c0_i32_0 : i32, i32
  }
  func.func @transform_3(%arg0: i32, %arg1: i32) -> (i32, i32) {
    %c0_i32 = arith.constant 0 : i32
    %c0_i32_0 = arith.constant 0 : i32
    %c0_i32_1 = arith.constant 0 : i32
    return %c0_i32, %c0_i32_0 : i32, i32
  }
  func.func @transform_4(%arg0: i32, %arg1: i32) -> (i32, i32, i32) {
    %c0_i32 = arith.constant 0 : i32
    %c0_i32_0 = arith.constant 0 : i32
    return %arg0, %arg1, %c0_i32 : i32, i32, i32
  }
}

module attributes {stable_mosaic.version = 11 : i64} {
  func.func @convlstm_cell_kernel(%arg0: i32, %arg1: i32, %arg2: memref<1x64x144xf32, #tpu.memory_space<vmem>>, %arg3: memref<1x64x144xf32, #tpu.memory_space<vmem>>, %arg4: memref<1x64x16xf32, #tpu.memory_space<vmem>>, %arg5: memref<4x144x16xf32, #tpu.memory_space<vmem>>, %arg6: memref<4x144x16xf32, #tpu.memory_space<vmem>>, %arg7: memref<4x1x16xf32, #tpu.memory_space<vmem>>, %arg8: memref<1x64x16xf32, #tpu.memory_space<vmem>>, %arg9: memref<1x64x16xf32, #tpu.memory_space<vmem>>) attributes {dimension_semantics = [#tpu.dimension_semantics<parallel>, #tpu.dimension_semantics<parallel>], iteration_bounds = array<i64: 2, 1>, scalar_prefetch = 0 : i64, scratch_operands = 0 : i64, tpu.core_type = #tpu.core_type<tc>, window_params = [{transform_indices = @transform_0, window_bounds = array<i64: 1, 64, 144>}, {transform_indices = @transform_1, window_bounds = array<i64: 1, 64, 144>}, {transform_indices = @transform_2, window_bounds = array<i64: 1, 64, 16>}, {pipeline_mode = #tpu.pipeline_mode<synchronous>, transform_indices = @transform_3, window_bounds = array<i64: 4, 144, 16>}, {pipeline_mode = #tpu.pipeline_mode<synchronous>, transform_indices = @transform_4, window_bounds = array<i64: 4, 144, 16>}, {pipeline_mode = #tpu.pipeline_mode<synchronous>, transform_indices = @transform_5, window_bounds = array<i64: 4, 1, 16>}, {transform_indices = @transform_6, window_bounds = array<i64: 1, 64, 16>}, {transform_indices = @transform_7, window_bounds = array<i64: 1, 64, 16>}]} {
    %c0 = arith.constant 0 : index
    %c0_0 = arith.constant 0 : index
    %c0_1 = arith.constant 0 : index
    %0 = vector.load %arg2[%c0, %c0_0, %c0_1] : memref<1x64x144xf32, #tpu.memory_space<vmem>>, vector<1x64x144xf32>
    %1 = vector.shape_cast %0 : vector<1x64x144xf32> to vector<64x144xf32>
    %c0_2 = arith.constant 0 : index
    %c0_3 = arith.constant 0 : index
    %c0_4 = arith.constant 0 : index
    %2 = vector.load %arg3[%c0_2, %c0_3, %c0_4] : memref<1x64x144xf32, #tpu.memory_space<vmem>>, vector<1x64x144xf32>
    %3 = vector.shape_cast %2 : vector<1x64x144xf32> to vector<64x144xf32>
    %c0_5 = arith.constant 0 : index
    %c0_6 = arith.constant 0 : index
    %c0_7 = arith.constant 0 : index
    %4 = vector.load %arg5[%c0_5, %c0_6, %c0_7] : memref<4x144x16xf32, #tpu.memory_space<vmem>>, vector<1x144x16xf32>
    %5 = vector.shape_cast %4 : vector<1x144x16xf32> to vector<144x16xf32>
    %cst = arith.constant dense<0.000000e+00> : vector<64x16xf32>
    %6 = tpu.matmul %1, %5, %cst {dimension_numbers = #tpu.dot_dimension_numbers<[1], [0], [0], [1], [0, 0, 1, 1], [], []>} : vector<64x144xf32>, vector<144x16xf32>, vector<64x16xf32> -> vector<64x16xf32>
    %c0_8 = arith.constant 0 : index
    %c0_9 = arith.constant 0 : index
    %c0_10 = arith.constant 0 : index
    %7 = vector.load %arg6[%c0_8, %c0_9, %c0_10] : memref<4x144x16xf32, #tpu.memory_space<vmem>>, vector<1x144x16xf32>
    %8 = vector.shape_cast %7 : vector<1x144x16xf32> to vector<144x16xf32>
    %cst_11 = arith.constant dense<0.000000e+00> : vector<64x16xf32>
    %9 = tpu.matmul %3, %8, %cst_11 {dimension_numbers = #tpu.dot_dimension_numbers<[1], [0], [0], [1], [0, 0, 1, 1], [], []>} : vector<64x144xf32>, vector<144x16xf32>, vector<64x16xf32> -> vector<64x16xf32>
    %10 = arith.addf %6, %9 : vector<64x16xf32>
    %c0_12 = arith.constant 0 : index
    %c0_13 = arith.constant 0 : index
    %c0_14 = arith.constant 0 : index
    %11 = vector.load %arg7[%c0_12, %c0_13, %c0_14] : memref<4x1x16xf32, #tpu.memory_space<vmem>>, vector<1x1x16xf32>
    %12 = vector.shape_cast %11 : vector<1x1x16xf32> to vector<1x16xf32>
    %13 = vector.broadcast %12 : vector<1x16xf32> to vector<64x16xf32>
    %14 = arith.addf %10, %13 : vector<64x16xf32>
    %cst_15 = arith.constant 5.000000e-01 : f32
    %15 = vector.broadcast %cst_15 : f32 to vector<64x16xf32>
    %16 = arith.mulf %15, %14 : vector<64x16xf32>
    %17 = math.tanh %16 : vector<64x16xf32>
    %cst_16 = arith.constant 1.000000e+00 : f32
    %18 = vector.broadcast %cst_16 : f32 to vector<64x16xf32>
    %19 = arith.addf %17, %18 : vector<64x16xf32>
    %cst_17 = arith.constant 5.000000e-01 : f32
    %20 = vector.broadcast %cst_17 : f32 to vector<64x16xf32>
    %21 = arith.mulf %20, %19 : vector<64x16xf32>
    %c1 = arith.constant 1 : index
    %c0_18 = arith.constant 0 : index
    %c0_19 = arith.constant 0 : index
    %22 = vector.load %arg5[%c1, %c0_18, %c0_19] : memref<4x144x16xf32, #tpu.memory_space<vmem>>, vector<1x144x16xf32>
    %23 = vector.shape_cast %22 : vector<1x144x16xf32> to vector<144x16xf32>
    %cst_20 = arith.constant dense<0.000000e+00> : vector<64x16xf32>
    %24 = tpu.matmul %1, %23, %cst_20 {dimension_numbers = #tpu.dot_dimension_numbers<[1], [0], [0], [1], [0, 0, 1, 1], [], []>} : vector<64x144xf32>, vector<144x16xf32>, vector<64x16xf32> -> vector<64x16xf32>
    %c1_21 = arith.constant 1 : index
    %c0_22 = arith.constant 0 : index
    %c0_23 = arith.constant 0 : index
    %25 = vector.load %arg6[%c1_21, %c0_22, %c0_23] : memref<4x144x16xf32, #tpu.memory_space<vmem>>, vector<1x144x16xf32>
    %26 = vector.shape_cast %25 : vector<1x144x16xf32> to vector<144x16xf32>
    %cst_24 = arith.constant dense<0.000000e+00> : vector<64x16xf32>
    %27 = tpu.matmul %3, %26, %cst_24 {dimension_numbers = #tpu.dot_dimension_numbers<[1], [0], [0], [1], [0, 0, 1, 1], [], []>} : vector<64x144xf32>, vector<144x16xf32>, vector<64x16xf32> -> vector<64x16xf32>
    %28 = arith.addf %24, %27 : vector<64x16xf32>
    %c1_25 = arith.constant 1 : index
    %c0_26 = arith.constant 0 : index
    %c0_27 = arith.constant 0 : index
    %29 = vector.load %arg7[%c1_25, %c0_26, %c0_27] : memref<4x1x16xf32, #tpu.memory_space<vmem>>, vector<1x1x16xf32>
    %30 = vector.shape_cast %29 : vector<1x1x16xf32> to vector<1x16xf32>
    %31 = vector.broadcast %30 : vector<1x16xf32> to vector<64x16xf32>
    %32 = arith.addf %28, %31 : vector<64x16xf32>
    %cst_28 = arith.constant 5.000000e-01 : f32
    %33 = vector.broadcast %cst_28 : f32 to vector<64x16xf32>
    %34 = arith.mulf %33, %32 : vector<64x16xf32>
    %35 = math.tanh %34 : vector<64x16xf32>
    %cst_29 = arith.constant 1.000000e+00 : f32
    %36 = vector.broadcast %cst_29 : f32 to vector<64x16xf32>
    %37 = arith.addf %35, %36 : vector<64x16xf32>
    %cst_30 = arith.constant 5.000000e-01 : f32
    %38 = vector.broadcast %cst_30 : f32 to vector<64x16xf32>
    %39 = arith.mulf %38, %37 : vector<64x16xf32>
    %c2 = arith.constant 2 : index
    %c0_31 = arith.constant 0 : index
    %c0_32 = arith.constant 0 : index
    %40 = vector.load %arg5[%c2, %c0_31, %c0_32] : memref<4x144x16xf32, #tpu.memory_space<vmem>>, vector<1x144x16xf32>
    %41 = vector.shape_cast %40 : vector<1x144x16xf32> to vector<144x16xf32>
    %cst_33 = arith.constant dense<0.000000e+00> : vector<64x16xf32>
    %42 = tpu.matmul %1, %41, %cst_33 {dimension_numbers = #tpu.dot_dimension_numbers<[1], [0], [0], [1], [0, 0, 1, 1], [], []>} : vector<64x144xf32>, vector<144x16xf32>, vector<64x16xf32> -> vector<64x16xf32>
    %c2_34 = arith.constant 2 : index
    %c0_35 = arith.constant 0 : index
    %c0_36 = arith.constant 0 : index
    %43 = vector.load %arg6[%c2_34, %c0_35, %c0_36] : memref<4x144x16xf32, #tpu.memory_space<vmem>>, vector<1x144x16xf32>
    %44 = vector.shape_cast %43 : vector<1x144x16xf32> to vector<144x16xf32>
    %cst_37 = arith.constant dense<0.000000e+00> : vector<64x16xf32>
    %45 = tpu.matmul %3, %44, %cst_37 {dimension_numbers = #tpu.dot_dimension_numbers<[1], [0], [0], [1], [0, 0, 1, 1], [], []>} : vector<64x144xf32>, vector<144x16xf32>, vector<64x16xf32> -> vector<64x16xf32>
    %46 = arith.addf %42, %45 : vector<64x16xf32>
    %c2_38 = arith.constant 2 : index
    %c0_39 = arith.constant 0 : index
    %c0_40 = arith.constant 0 : index
    %47 = vector.load %arg7[%c2_38, %c0_39, %c0_40] : memref<4x1x16xf32, #tpu.memory_space<vmem>>, vector<1x1x16xf32>
    %48 = vector.shape_cast %47 : vector<1x1x16xf32> to vector<1x16xf32>
    %49 = vector.broadcast %48 : vector<1x16xf32> to vector<64x16xf32>
    %50 = arith.addf %46, %49 : vector<64x16xf32>
    %cst_41 = arith.constant 5.000000e-01 : f32
    %51 = vector.broadcast %cst_41 : f32 to vector<64x16xf32>
    %52 = arith.mulf %51, %50 : vector<64x16xf32>
    %53 = math.tanh %52 : vector<64x16xf32>
    %cst_42 = arith.constant 1.000000e+00 : f32
    %54 = vector.broadcast %cst_42 : f32 to vector<64x16xf32>
    %55 = arith.addf %53, %54 : vector<64x16xf32>
    %cst_43 = arith.constant 5.000000e-01 : f32
    %56 = vector.broadcast %cst_43 : f32 to vector<64x16xf32>
    %57 = arith.mulf %56, %55 : vector<64x16xf32>
    %c3 = arith.constant 3 : index
    %c0_44 = arith.constant 0 : index
    %c0_45 = arith.constant 0 : index
    %58 = vector.load %arg5[%c3, %c0_44, %c0_45] : memref<4x144x16xf32, #tpu.memory_space<vmem>>, vector<1x144x16xf32>
    %59 = vector.shape_cast %58 : vector<1x144x16xf32> to vector<144x16xf32>
    %cst_46 = arith.constant dense<0.000000e+00> : vector<64x16xf32>
    %60 = tpu.matmul %1, %59, %cst_46 {dimension_numbers = #tpu.dot_dimension_numbers<[1], [0], [0], [1], [0, 0, 1, 1], [], []>} : vector<64x144xf32>, vector<144x16xf32>, vector<64x16xf32> -> vector<64x16xf32>
    %c3_47 = arith.constant 3 : index
    %c0_48 = arith.constant 0 : index
    %c0_49 = arith.constant 0 : index
    %61 = vector.load %arg6[%c3_47, %c0_48, %c0_49] : memref<4x144x16xf32, #tpu.memory_space<vmem>>, vector<1x144x16xf32>
    %62 = vector.shape_cast %61 : vector<1x144x16xf32> to vector<144x16xf32>
    %cst_50 = arith.constant dense<0.000000e+00> : vector<64x16xf32>
    %63 = tpu.matmul %3, %62, %cst_50 {dimension_numbers = #tpu.dot_dimension_numbers<[1], [0], [0], [1], [0, 0, 1, 1], [], []>} : vector<64x144xf32>, vector<144x16xf32>, vector<64x16xf32> -> vector<64x16xf32>
    %64 = arith.addf %60, %63 : vector<64x16xf32>
    %c3_51 = arith.constant 3 : index
    %c0_52 = arith.constant 0 : index
    %c0_53 = arith.constant 0 : index
    %65 = vector.load %arg7[%c3_51, %c0_52, %c0_53] : memref<4x1x16xf32, #tpu.memory_space<vmem>>, vector<1x1x16xf32>
    %66 = vector.shape_cast %65 : vector<1x1x16xf32> to vector<1x16xf32>
    %67 = vector.broadcast %66 : vector<1x16xf32> to vector<64x16xf32>
    %68 = arith.addf %64, %67 : vector<64x16xf32>
    %69 = math.tanh %68 : vector<64x16xf32>
    %c0_54 = arith.constant 0 : index
    %c0_55 = arith.constant 0 : index
    %c0_56 = arith.constant 0 : index
    %70 = vector.load %arg4[%c0_54, %c0_55, %c0_56] : memref<1x64x16xf32, #tpu.memory_space<vmem>>, vector<1x64x16xf32>
    %71 = vector.shape_cast %70 : vector<1x64x16xf32> to vector<64x16xf32>
    %72 = arith.mulf %39, %71 : vector<64x16xf32>
    %73 = arith.mulf %21, %69 : vector<64x16xf32>
    %74 = arith.addf %72, %73 : vector<64x16xf32>
    %75 = math.tanh %74 : vector<64x16xf32>
    %76 = arith.mulf %57, %75 : vector<64x16xf32>
    %c0_57 = arith.constant 0 : index
    %c0_58 = arith.constant 0 : index
    %c0_59 = arith.constant 0 : index
    %77 = vector.load %arg9[%c0_57, %c0_58, %c0_59] : memref<1x64x16xf32, #tpu.memory_space<vmem>>, vector<1x64x16xf32>
    %78 = vector.shape_cast %77 : vector<1x64x16xf32> to vector<64x16xf32>
    %79 = vector.shape_cast %74 : vector<64x16xf32> to vector<1x64x16xf32>
    tpu.vector_store %arg9[%c0_57, %c0_58, %c0_59], %79 {strides = array<i32>} : memref<1x64x16xf32, #tpu.memory_space<vmem>>, vector<1x64x16xf32>,
    %c0_60 = arith.constant 0 : index
    %c0_61 = arith.constant 0 : index
    %c0_62 = arith.constant 0 : index
    %80 = vector.load %arg8[%c0_60, %c0_61, %c0_62] : memref<1x64x16xf32, #tpu.memory_space<vmem>>, vector<1x64x16xf32>
    %81 = vector.shape_cast %80 : vector<1x64x16xf32> to vector<64x16xf32>
    %82 = vector.shape_cast %76 : vector<64x16xf32> to vector<1x64x16xf32>
    tpu.vector_store %arg8[%c0_60, %c0_61, %c0_62], %82 {strides = array<i32>} : memref<1x64x16xf32, #tpu.memory_space<vmem>>, vector<1x64x16xf32>,
    return
  }
  func.func @transform_0(%arg0: i32, %arg1: i32) -> (i32, i32, i32) {
    %c0_i32 = arith.constant 0 : i32
    %c0_i32_0 = arith.constant 0 : i32
    return %arg0, %arg1, %c0_i32 : i32, i32, i32
  }
  func.func @transform_1(%arg0: i32, %arg1: i32) -> (i32, i32, i32) {
    %c0_i32 = arith.constant 0 : i32
    %c0_i32_0 = arith.constant 0 : i32
    return %arg0, %arg1, %c0_i32 : i32, i32, i32
  }
  func.func @transform_2(%arg0: i32, %arg1: i32) -> (i32, i32, i32) {
    %c0_i32 = arith.constant 0 : i32
    %c0_i32_0 = arith.constant 0 : i32
    return %arg0, %arg1, %c0_i32 : i32, i32, i32
  }
  func.func @transform_3(%arg0: i32, %arg1: i32) -> (i32, i32, i32) {
    %c0_i32 = arith.constant 0 : i32
    %c0_i32_0 = arith.constant 0 : i32
    %c0_i32_1 = arith.constant 0 : i32
    %c0_i32_2 = arith.constant 0 : i32
    return %c0_i32, %c0_i32_0, %c0_i32_1 : i32, i32, i32
  }
  func.func @transform_4(%arg0: i32, %arg1: i32) -> (i32, i32, i32) {
    %c0_i32 = arith.constant 0 : i32
    %c0_i32_0 = arith.constant 0 : i32
    %c0_i32_1 = arith.constant 0 : i32
    %c0_i32_2 = arith.constant 0 : i32
    return %c0_i32, %c0_i32_0, %c0_i32_1 : i32, i32, i32
  }
  func.func @transform_5(%arg0: i32, %arg1: i32) -> (i32, i32, i32) {
    %c0_i32 = arith.constant 0 : i32
    %c0_i32_0 = arith.constant 0 : i32
    %c0_i32_1 = arith.constant 0 : i32
    %c0_i32_2 = arith.constant 0 : i32
    return %c0_i32, %c0_i32_0, %c0_i32_1 : i32, i32, i32
  }
  func.func @transform_6(%arg0: i32, %arg1: i32) -> (i32, i32, i32) {
    %c0_i32 = arith.constant 0 : i32
    %c0_i32_0 = arith.constant 0 : i32
    return %arg0, %arg1, %c0_i32 : i32, i32, i32
  }
  func.func @transform_7(%arg0: i32, %arg1: i32) -> (i32, i32, i32) {
    %c0_i32 = arith.constant 0 : i32
    %c0_i32_0 = arith.constant 0 : i32
    return %arg0, %arg1, %c0_i32 : i32, i32, i32
  }
}

module attributes {stable_mosaic.version = 11 : i64} {
  func.func @convlstm_cell_kernel(%arg0: i32, %arg1: i32, %arg2: memref<1x64x144xf32, #tpu.memory_space<vmem>>, %arg3: memref<1x64x144xf32, #tpu.memory_space<vmem>>, %arg4: memref<1x64x16xf32, #tpu.memory_space<vmem>>, %arg5: memref<4x144x16xf32, #tpu.memory_space<vmem>>, %arg6: memref<4x144x16xf32, #tpu.memory_space<vmem>>, %arg7: memref<4x1x16xf32, #tpu.memory_space<vmem>>, %arg8: memref<1x64x16xf32, #tpu.memory_space<vmem>>, %arg9: memref<1x64x16xf32, #tpu.memory_space<vmem>>) attributes {dimension_semantics = [#tpu.dimension_semantics<parallel>, #tpu.dimension_semantics<parallel>], iteration_bounds = array<i64: 2, 1>, scalar_prefetch = 0 : i64, scratch_operands = 0 : i64, tpu.core_type = #tpu.core_type<tc>, window_params = [{transform_indices = @transform_0, window_bounds = array<i64: 1, 64, 144>}, {transform_indices = @transform_1, window_bounds = array<i64: 1, 64, 144>}, {transform_indices = @transform_2, window_bounds = array<i64: 1, 64, 16>}, {pipeline_mode = #tpu.pipeline_mode<synchronous>, transform_indices = @transform_3, window_bounds = array<i64: 4, 144, 16>}, {pipeline_mode = #tpu.pipeline_mode<synchronous>, transform_indices = @transform_4, window_bounds = array<i64: 4, 144, 16>}, {pipeline_mode = #tpu.pipeline_mode<synchronous>, transform_indices = @transform_5, window_bounds = array<i64: 4, 1, 16>}, {transform_indices = @transform_6, window_bounds = array<i64: 1, 64, 16>}, {transform_indices = @transform_7, window_bounds = array<i64: 1, 64, 16>}]} {
    %c0 = arith.constant 0 : index
    %c0_0 = arith.constant 0 : index
    %c0_1 = arith.constant 0 : index
    %0 = vector.load %arg2[%c0, %c0_0, %c0_1] : memref<1x64x144xf32, #tpu.memory_space<vmem>>, vector<1x64x144xf32>
    %1 = vector.shape_cast %0 : vector<1x64x144xf32> to vector<64x144xf32>
    %c0_2 = arith.constant 0 : index
    %c0_3 = arith.constant 0 : index
    %c0_4 = arith.constant 0 : index
    %2 = vector.load %arg3[%c0_2, %c0_3, %c0_4] : memref<1x64x144xf32, #tpu.memory_space<vmem>>, vector<1x64x144xf32>
    %3 = vector.shape_cast %2 : vector<1x64x144xf32> to vector<64x144xf32>
    %c0_5 = arith.constant 0 : index
    %c0_6 = arith.constant 0 : index
    %c0_7 = arith.constant 0 : index
    %4 = vector.load %arg5[%c0_5, %c0_6, %c0_7] : memref<4x144x16xf32, #tpu.memory_space<vmem>>, vector<1x144x16xf32>
    %5 = vector.shape_cast %4 : vector<1x144x16xf32> to vector<144x16xf32>
    %cst = arith.constant dense<0.000000e+00> : vector<64x16xf32>
    %6 = tpu.matmul %1, %5, %cst {dimension_numbers = #tpu.dot_dimension_numbers<[1], [0], [0], [1], [0, 0, 1, 1], [], []>} : vector<64x144xf32>, vector<144x16xf32>, vector<64x16xf32> -> vector<64x16xf32>
    %c0_8 = arith.constant 0 : index
    %c0_9 = arith.constant 0 : index
    %c0_10 = arith.constant 0 : index
    %7 = vector.load %arg6[%c0_8, %c0_9, %c0_10] : memref<4x144x16xf32, #tpu.memory_space<vmem>>, vector<1x144x16xf32>
    %8 = vector.shape_cast %7 : vector<1x144x16xf32> to vector<144x16xf32>
    %cst_11 = arith.constant dense<0.000000e+00> : vector<64x16xf32>
    %9 = tpu.matmul %3, %8, %cst_11 {dimension_numbers = #tpu.dot_dimension_numbers<[1], [0], [0], [1], [0, 0, 1, 1], [], []>} : vector<64x144xf32>, vector<144x16xf32>, vector<64x16xf32> -> vector<64x16xf32>
    %10 = arith.addf %6, %9 : vector<64x16xf32>
    %c0_12 = arith.constant 0 : index
    %c0_13 = arith.constant 0 : index
    %c0_14 = arith.constant 0 : index
    %11 = vector.load %arg7[%c0_12, %c0_13, %c0_14] : memref<4x1x16xf32, #tpu.memory_space<vmem>>, vector<1x1x16xf32>
    %12 = vector.shape_cast %11 : vector<1x1x16xf32> to vector<1x16xf32>
    %13 = vector.broadcast %12 : vector<1x16xf32> to vector<64x16xf32>
    %14 = arith.addf %10, %13 : vector<64x16xf32>
    %cst_15 = arith.constant 5.000000e-01 : f32
    %15 = vector.broadcast %cst_15 : f32 to vector<64x16xf32>
    %16 = arith.mulf %15, %14 : vector<64x16xf32>
    %17 = math.tanh %16 : vector<64x16xf32>
    %cst_16 = arith.constant 1.000000e+00 : f32
    %18 = vector.broadcast %cst_16 : f32 to vector<64x16xf32>
    %19 = arith.addf %17, %18 : vector<64x16xf32>
    %cst_17 = arith.constant 5.000000e-01 : f32
    %20 = vector.broadcast %cst_17 : f32 to vector<64x16xf32>
    %21 = arith.mulf %20, %19 : vector<64x16xf32>
    %c1 = arith.constant 1 : index
    %c0_18 = arith.constant 0 : index
    %c0_19 = arith.constant 0 : index
    %22 = vector.load %arg5[%c1, %c0_18, %c0_19] : memref<4x144x16xf32, #tpu.memory_space<vmem>>, vector<1x144x16xf32>
    %23 = vector.shape_cast %22 : vector<1x144x16xf32> to vector<144x16xf32>
    %cst_20 = arith.constant dense<0.000000e+00> : vector<64x16xf32>
    %24 = tpu.matmul %1, %23, %cst_20 {dimension_numbers = #tpu.dot_dimension_numbers<[1], [0], [0], [1], [0, 0, 1, 1], [], []>} : vector<64x144xf32>, vector<144x16xf32>, vector<64x16xf32> -> vector<64x16xf32>
    %c1_21 = arith.constant 1 : index
    %c0_22 = arith.constant 0 : index
    %c0_23 = arith.constant 0 : index
    %25 = vector.load %arg6[%c1_21, %c0_22, %c0_23] : memref<4x144x16xf32, #tpu.memory_space<vmem>>, vector<1x144x16xf32>
    %26 = vector.shape_cast %25 : vector<1x144x16xf32> to vector<144x16xf32>
    %cst_24 = arith.constant dense<0.000000e+00> : vector<64x16xf32>
    %27 = tpu.matmul %3, %26, %cst_24 {dimension_numbers = #tpu.dot_dimension_numbers<[1], [0], [0], [1], [0, 0, 1, 1], [], []>} : vector<64x144xf32>, vector<144x16xf32>, vector<64x16xf32> -> vector<64x16xf32>
    %28 = arith.addf %24, %27 : vector<64x16xf32>
    %c1_25 = arith.constant 1 : index
    %c0_26 = arith.constant 0 : index
    %c0_27 = arith.constant 0 : index
    %29 = vector.load %arg7[%c1_25, %c0_26, %c0_27] : memref<4x1x16xf32, #tpu.memory_space<vmem>>, vector<1x1x16xf32>
    %30 = vector.shape_cast %29 : vector<1x1x16xf32> to vector<1x16xf32>
    %31 = vector.broadcast %30 : vector<1x16xf32> to vector<64x16xf32>
    %32 = arith.addf %28, %31 : vector<64x16xf32>
    %cst_28 = arith.constant 5.000000e-01 : f32
    %33 = vector.broadcast %cst_28 : f32 to vector<64x16xf32>
    %34 = arith.mulf %33, %32 : vector<64x16xf32>
    %35 = math.tanh %34 : vector<64x16xf32>
    %cst_29 = arith.constant 1.000000e+00 : f32
    %36 = vector.broadcast %cst_29 : f32 to vector<64x16xf32>
    %37 = arith.addf %35, %36 : vector<64x16xf32>
    %cst_30 = arith.constant 5.000000e-01 : f32
    %38 = vector.broadcast %cst_30 : f32 to vector<64x16xf32>
    %39 = arith.mulf %38, %37 : vector<64x16xf32>
    %c2 = arith.constant 2 : index
    %c0_31 = arith.constant 0 : index
    %c0_32 = arith.constant 0 : index
    %40 = vector.load %arg5[%c2, %c0_31, %c0_32] : memref<4x144x16xf32, #tpu.memory_space<vmem>>, vector<1x144x16xf32>
    %41 = vector.shape_cast %40 : vector<1x144x16xf32> to vector<144x16xf32>
    %cst_33 = arith.constant dense<0.000000e+00> : vector<64x16xf32>
    %42 = tpu.matmul %1, %41, %cst_33 {dimension_numbers = #tpu.dot_dimension_numbers<[1], [0], [0], [1], [0, 0, 1, 1], [], []>} : vector<64x144xf32>, vector<144x16xf32>, vector<64x16xf32> -> vector<64x16xf32>
    %c2_34 = arith.constant 2 : index
    %c0_35 = arith.constant 0 : index
    %c0_36 = arith.constant 0 : index
    %43 = vector.load %arg6[%c2_34, %c0_35, %c0_36] : memref<4x144x16xf32, #tpu.memory_space<vmem>>, vector<1x144x16xf32>
    %44 = vector.shape_cast %43 : vector<1x144x16xf32> to vector<144x16xf32>
    %cst_37 = arith.constant dense<0.000000e+00> : vector<64x16xf32>
    %45 = tpu.matmul %3, %44, %cst_37 {dimension_numbers = #tpu.dot_dimension_numbers<[1], [0], [0], [1], [0, 0, 1, 1], [], []>} : vector<64x144xf32>, vector<144x16xf32>, vector<64x16xf32> -> vector<64x16xf32>
    %46 = arith.addf %42, %45 : vector<64x16xf32>
    %c2_38 = arith.constant 2 : index
    %c0_39 = arith.constant 0 : index
    %c0_40 = arith.constant 0 : index
    %47 = vector.load %arg7[%c2_38, %c0_39, %c0_40] : memref<4x1x16xf32, #tpu.memory_space<vmem>>, vector<1x1x16xf32>
    %48 = vector.shape_cast %47 : vector<1x1x16xf32> to vector<1x16xf32>
    %49 = vector.broadcast %48 : vector<1x16xf32> to vector<64x16xf32>
    %50 = arith.addf %46, %49 : vector<64x16xf32>
    %cst_41 = arith.constant 5.000000e-01 : f32
    %51 = vector.broadcast %cst_41 : f32 to vector<64x16xf32>
    %52 = arith.mulf %51, %50 : vector<64x16xf32>
    %53 = math.tanh %52 : vector<64x16xf32>
    %cst_42 = arith.constant 1.000000e+00 : f32
    %54 = vector.broadcast %cst_42 : f32 to vector<64x16xf32>
    %55 = arith.addf %53, %54 : vector<64x16xf32>
    %cst_43 = arith.constant 5.000000e-01 : f32
    %56 = vector.broadcast %cst_43 : f32 to vector<64x16xf32>
    %57 = arith.mulf %56, %55 : vector<64x16xf32>
    %c3 = arith.constant 3 : index
    %c0_44 = arith.constant 0 : index
    %c0_45 = arith.constant 0 : index
    %58 = vector.load %arg5[%c3, %c0_44, %c0_45] : memref<4x144x16xf32, #tpu.memory_space<vmem>>, vector<1x144x16xf32>
    %59 = vector.shape_cast %58 : vector<1x144x16xf32> to vector<144x16xf32>
    %cst_46 = arith.constant dense<0.000000e+00> : vector<64x16xf32>
    %60 = tpu.matmul %1, %59, %cst_46 {dimension_numbers = #tpu.dot_dimension_numbers<[1], [0], [0], [1], [0, 0, 1, 1], [], []>} : vector<64x144xf32>, vector<144x16xf32>, vector<64x16xf32> -> vector<64x16xf32>
    %c3_47 = arith.constant 3 : index
    %c0_48 = arith.constant 0 : index
    %c0_49 = arith.constant 0 : index
    %61 = vector.load %arg6[%c3_47, %c0_48, %c0_49] : memref<4x144x16xf32, #tpu.memory_space<vmem>>, vector<1x144x16xf32>
    %62 = vector.shape_cast %61 : vector<1x144x16xf32> to vector<144x16xf32>
    %cst_50 = arith.constant dense<0.000000e+00> : vector<64x16xf32>
    %63 = tpu.matmul %3, %62, %cst_50 {dimension_numbers = #tpu.dot_dimension_numbers<[1], [0], [0], [1], [0, 0, 1, 1], [], []>} : vector<64x144xf32>, vector<144x16xf32>, vector<64x16xf32> -> vector<64x16xf32>
    %64 = arith.addf %60, %63 : vector<64x16xf32>
    %c3_51 = arith.constant 3 : index
    %c0_52 = arith.constant 0 : index
    %c0_53 = arith.constant 0 : index
    %65 = vector.load %arg7[%c3_51, %c0_52, %c0_53] : memref<4x1x16xf32, #tpu.memory_space<vmem>>, vector<1x1x16xf32>
    %66 = vector.shape_cast %65 : vector<1x1x16xf32> to vector<1x16xf32>
    %67 = vector.broadcast %66 : vector<1x16xf32> to vector<64x16xf32>
    %68 = arith.addf %64, %67 : vector<64x16xf32>
    %69 = math.tanh %68 : vector<64x16xf32>
    %c0_54 = arith.constant 0 : index
    %c0_55 = arith.constant 0 : index
    %c0_56 = arith.constant 0 : index
    %70 = vector.load %arg4[%c0_54, %c0_55, %c0_56] : memref<1x64x16xf32, #tpu.memory_space<vmem>>, vector<1x64x16xf32>
    %71 = vector.shape_cast %70 : vector<1x64x16xf32> to vector<64x16xf32>
    %72 = arith.mulf %39, %71 : vector<64x16xf32>
    %73 = arith.mulf %21, %69 : vector<64x16xf32>
    %74 = arith.addf %72, %73 : vector<64x16xf32>
    %75 = math.tanh %74 : vector<64x16xf32>
    %76 = arith.mulf %57, %75 : vector<64x16xf32>
    %c0_57 = arith.constant 0 : index
    %c0_58 = arith.constant 0 : index
    %c0_59 = arith.constant 0 : index
    %77 = vector.load %arg9[%c0_57, %c0_58, %c0_59] : memref<1x64x16xf32, #tpu.memory_space<vmem>>, vector<1x64x16xf32>
    %78 = vector.shape_cast %77 : vector<1x64x16xf32> to vector<64x16xf32>
    %79 = vector.shape_cast %74 : vector<64x16xf32> to vector<1x64x16xf32>
    tpu.vector_store %arg9[%c0_57, %c0_58, %c0_59], %79 {strides = array<i32>} : memref<1x64x16xf32, #tpu.memory_space<vmem>>, vector<1x64x16xf32>,
    %c0_60 = arith.constant 0 : index
    %c0_61 = arith.constant 0 : index
    %c0_62 = arith.constant 0 : index
    %80 = vector.load %arg8[%c0_60, %c0_61, %c0_62] : memref<1x64x16xf32, #tpu.memory_space<vmem>>, vector<1x64x16xf32>
    %81 = vector.shape_cast %80 : vector<1x64x16xf32> to vector<64x16xf32>
    %82 = vector.shape_cast %76 : vector<64x16xf32> to vector<1x64x16xf32>
    tpu.vector_store %arg8[%c0_60, %c0_61, %c0_62], %82 {strides = array<i32>} : memref<1x64x16xf32, #tpu.memory_space<vmem>>, vector<1x64x16xf32>,
    return
  }
  func.func @transform_0(%arg0: i32, %arg1: i32) -> (i32, i32, i32) {
    %c0_i32 = arith.constant 0 : i32
    %c0_i32_0 = arith.constant 0 : i32
    return %arg0, %arg1, %c0_i32 : i32, i32, i32
  }
  func.func @transform_1(%arg0: i32, %arg1: i32) -> (i32, i32, i32) {
    %c0_i32 = arith.constant 0 : i32
    %c0_i32_0 = arith.constant 0 : i32
    return %arg0, %arg1, %c0_i32 : i32, i32, i32
  }
  func.func @transform_2(%arg0: i32, %arg1: i32) -> (i32, i32, i32) {
    %c0_i32 = arith.constant 0 : i32
    %c0_i32_0 = arith.constant 0 : i32
    return %arg0, %arg1, %c0_i32 : i32, i32, i32
  }
  func.func @transform_3(%arg0: i32, %arg1: i32) -> (i32, i32, i32) {
    %c0_i32 = arith.constant 0 : i32
    %c0_i32_0 = arith.constant 0 : i32
    %c0_i32_1 = arith.constant 0 : i32
    %c0_i32_2 = arith.constant 0 : i32
    return %c0_i32, %c0_i32_0, %c0_i32_1 : i32, i32, i32
  }
  func.func @transform_4(%arg0: i32, %arg1: i32) -> (i32, i32, i32) {
    %c0_i32 = arith.constant 0 : i32
    %c0_i32_0 = arith.constant 0 : i32
    %c0_i32_1 = arith.constant 0 : i32
    %c0_i32_2 = arith.constant 0 : i32
    return %c0_i32, %c0_i32_0, %c0_i32_1 : i32, i32, i32
  }
  func.func @transform_5(%arg0: i32, %arg1: i32) -> (i32, i32, i32) {
    %c0_i32 = arith.constant 0 : i32
    %c0_i32_0 = arith.constant 0 : i32
    %c0_i32_1 = arith.constant 0 : i32
    %c0_i32_2 = arith.constant 0 : i32
    return %c0_i32, %c0_i32_0, %c0_i32_1 : i32, i32, i32
  }
  func.func @transform_6(%arg0: i32, %arg1: i32) -> (i32, i32, i32) {
    %c0_i32 = arith.constant 0 : i32
    %c0_i32_0 = arith.constant 0 : i32
    return %arg0, %arg1, %c0_i32 : i32, i32, i32
  }
  func.func @transform_7(%arg0: i32, %arg1: i32) -> (i32, i32, i32) {
    %c0_i32 = arith.constant 0 : i32
    %c0_i32_0 = arith.constant 0 : i32
    return %arg0, %arg1, %c0_i32 : i32, i32, i32
  }
}

module attributes {stable_mosaic.version = 11 : i64} {
  func.func @decoder_kernel(%arg0: i32, %arg1: i32, %arg2: memref<2x512xbf16, #tpu.memory_space<vmem>>, %arg3: memref<512x512xbf16, #tpu.memory_space<vmem>>, %arg4: memref<1x512xf32, #tpu.memory_space<vmem>>, %arg5: memref<512x640xbf16, #tpu.memory_space<vmem>>, %arg6: memref<1x640xf32, #tpu.memory_space<vmem>>, %arg7: memref<2x640xf32, #tpu.memory_space<vmem>>, %arg8: memref<2x512xf32, #tpu.memory_space<vmem>>) attributes {dimension_semantics = [#tpu.dimension_semantics<parallel>, #tpu.dimension_semantics<arbitrary>], iteration_bounds = array<i64: 1, 2>, scalar_prefetch = 0 : i64, scratch_operands = 1 : i64, tpu.core_type = #tpu.core_type<tc>, window_params = [{transform_indices = @transform_0, window_bounds = array<i64: 2, 512>}, {transform_indices = @transform_1, window_bounds = array<i64: 512, 512>}, {pipeline_mode = #tpu.pipeline_mode<synchronous>, transform_indices = @transform_2, window_bounds = array<i64: 1, 512>}, {pipeline_mode = #tpu.pipeline_mode<synchronous>, transform_indices = @transform_3, window_bounds = array<i64: 512, 640>}, {pipeline_mode = #tpu.pipeline_mode<synchronous>, transform_indices = @transform_4, window_bounds = array<i64: 1, 640>}, {transform_indices = @transform_5, window_bounds = array<i64: 2, 640>}]} {
    %c0_i32 = arith.constant 0 : i32
    %0 = arith.cmpi eq, %arg1, %c0_i32 : i32
    %1 = arith.extui %0 : i1 to i32
    %c0_i32_0 = arith.constant 0 : i32
    %2 = arith.cmpi ne, %1, %c0_i32_0 : i32
    scf.if %2 {
      %cst_9 = arith.constant 0.000000e+00 : f32
      %12 = vector.broadcast %cst_9 : f32 to vector<2x512xf32>
      %c0_10 = arith.constant 0 : index
      %c0_11 = arith.constant 0 : index
      %13 = vector.load %arg8[%c0_10, %c0_11] : memref<2x512xf32, #tpu.memory_space<vmem>>, vector<2x512xf32>
      tpu.vector_store %arg8[%c0_10, %c0_11], %12 {strides = array<i32>} : memref<2x512xf32, #tpu.memory_space<vmem>>, vector<2x512xf32>,
    } else {
    }
    %c0 = arith.constant 0 : index
    %c0_1 = arith.constant 0 : index
    %3 = vector.load %arg8[%c0, %c0_1] : memref<2x512xf32, #tpu.memory_space<vmem>>, vector<2x512xf32>
    %c0_2 = arith.constant 0 : index
    %c0_3 = arith.constant 0 : index
    %4 = vector.load %arg2[%c0_2, %c0_3] : memref<2x512xbf16, #tpu.memory_space<vmem>>, vector<2x512xbf16>
    %c0_4 = arith.constant 0 : index
    %c0_5 = arith.constant 0 : index
    %5 = vector.load %arg3[%c0_4, %c0_5] : memref<512x512xbf16, #tpu.memory_space<vmem>>, vector<512x512xbf16>
    %cst = arith.constant dense<0.000000e+00> : vector<2x512xf32>
    %6 = tpu.matmul %4, %5, %cst {dimension_numbers = #tpu.dot_dimension_numbers<[1], [0], [0], [1], [0, 0, 1, 1], [], []>} : vector<2x512xbf16>, vector<512x512xbf16>, vector<2x512xf32> -> vector<2x512xf32>
    %7 = arith.addf %3, %6 : vector<2x512xf32>
    %c0_6 = arith.constant 0 : index
    %c0_7 = arith.constant 0 : index
    %8 = vector.load %arg8[%c0_6, %c0_7] : memref<2x512xf32, #tpu.memory_space<vmem>>, vector<2x512xf32>
    tpu.vector_store %arg8[%c0_6, %c0_7], %7 {strides = array<i32>} : memref<2x512xf32, #tpu.memory_space<vmem>>, vector<2x512xf32>,
    %c1_i32 = arith.constant 1 : i32
    %9 = arith.cmpi eq, %arg1, %c1_i32 : i32
    %10 = arith.extui %9 : i1 to i32
    %c0_i32_8 = arith.constant 0 : i32
    %11 = arith.cmpi ne, %10, %c0_i32_8 : i32
    scf.if %11 {
      %c0_9 = arith.constant 0 : index
      %c0_10 = arith.constant 0 : index
      %12 = vector.load %arg8[%c0_9, %c0_10] : memref<2x512xf32, #tpu.memory_space<vmem>>, vector<2x512xf32>
      %c0_11 = arith.constant 0 : index
      %c0_12 = arith.constant 0 : index
      %13 = vector.load %arg4[%c0_11, %c0_12] : memref<1x512xf32, #tpu.memory_space<vmem>>, vector<1x512xf32>
      %14 = vector.broadcast %13 : vector<1x512xf32> to vector<2x512xf32>
      %15 = arith.addf %12, %14 : vector<2x512xf32>
      %cst_13 = arith.constant 0.000000e+00 : f32
      %16 = vector.broadcast %cst_13 : f32 to vector<2x512xf32>
      %17 = arith.maximumf %15, %16 : vector<2x512xf32>
      %18 = arith.truncf %17 : vector<2x512xf32> to vector<2x512xbf16>
      %c0_14 = arith.constant 0 : index
      %c0_15 = arith.constant 0 : index
      %19 = vector.load %arg5[%c0_14, %c0_15] : memref<512x640xbf16, #tpu.memory_space<vmem>>, vector<512x640xbf16>
      %cst_16 = arith.constant dense<0.000000e+00> : vector<2x640xf32>
      %20 = tpu.matmul %18, %19, %cst_16 {dimension_numbers = #tpu.dot_dimension_numbers<[1], [0], [0], [1], [0, 0, 1, 1], [], []>} : vector<2x512xbf16>, vector<512x640xbf16>, vector<2x640xf32> -> vector<2x640xf32>
      %c0_17 = arith.constant 0 : index
      %c0_18 = arith.constant 0 : index
      %21 = vector.load %arg6[%c0_17, %c0_18] : memref<1x640xf32, #tpu.memory_space<vmem>>, vector<1x640xf32>
      %22 = vector.broadcast %21 : vector<1x640xf32> to vector<2x640xf32>
      %23 = arith.addf %20, %22 : vector<2x640xf32>
      %c0_19 = arith.constant 0 : index
      %c0_20 = arith.constant 0 : index
      %24 = vector.load %arg7[%c0_19, %c0_20] : memref<2x640xf32, #tpu.memory_space<vmem>>, vector<2x640xf32>
      tpu.vector_store %arg7[%c0_19, %c0_20], %23 {strides = array<i32>} : memref<2x640xf32, #tpu.memory_space<vmem>>, vector<2x640xf32>,
    } else {
    }
    return
  }
  func.func @transform_0(%arg0: i32, %arg1: i32) -> (i32, i32) {
    %c0_i32 = arith.constant 0 : i32
    return %arg0, %arg1 : i32, i32
  }
  func.func @transform_1(%arg0: i32, %arg1: i32) -> (i32, i32) {
    %c0_i32 = arith.constant 0 : i32
    %c0_i32_0 = arith.constant 0 : i32
    return %arg1, %c0_i32 : i32, i32
  }
  func.func @transform_2(%arg0: i32, %arg1: i32) -> (i32, i32) {
    %c0_i32 = arith.constant 0 : i32
    %c0_i32_0 = arith.constant 0 : i32
    %c0_i32_1 = arith.constant 0 : i32
    return %c0_i32, %c0_i32_0 : i32, i32
  }
  func.func @transform_3(%arg0: i32, %arg1: i32) -> (i32, i32) {
    %c0_i32 = arith.constant 0 : i32
    %c0_i32_0 = arith.constant 0 : i32
    %c0_i32_1 = arith.constant 0 : i32
    return %c0_i32, %c0_i32_0 : i32, i32
  }
  func.func @transform_4(%arg0: i32, %arg1: i32) -> (i32, i32) {
    %c0_i32 = arith.constant 0 : i32
    %c0_i32_0 = arith.constant 0 : i32
    %c0_i32_1 = arith.constant 0 : i32
    return %c0_i32, %c0_i32_0 : i32, i32
  }
  func.func @transform_5(%arg0: i32, %arg1: i32) -> (i32, i32) {
    %c0_i32 = arith.constant 0 : i32
    %c0_i32_0 = arith.constant 0 : i32
    return %arg0, %c0_i32 : i32, i32
  }
}

</mosaic_0001>

<llo_original>
// kernel: _lambda_.7
$region0: #{_lambda_.7}
  #allocation0 [shape = 'u32[]', space=smem, size = 0x4, offset = 0x4, fixed_abs, tag = 'smem constant byte address 0x4 - core index']
  #allocation1 [shape = 'u32[72,128]{1,0:T(1,128)}', space=vmem, size = 0x9000, scoped, tag = 'internal scratch']
  %s0 = inlined_call_operand.vmem [shape: f32[8,4,256,9], index: 0, kind: input, shape index: {}]
  %s1 = inlined_call_operand.vmem [shape: f32[9,8], index: 1, kind: input, shape index: {}]
  %s2 = inlined_call_operand.vmem [shape: f32[1,8], index: 2, kind: input, shape index: {}]
  %s3 = inlined_call_operand.vmem [shape: f32[1,8], index: 3, kind: input, shape index: {}]
  %s4 = inlined_call_operand.vmem [shape: f32[8,256,8], index: 4, kind: output, shape index: {}]
  %s5 = sld [smem:[#allocation0]]
  $region49: #{_lambda_.7} parent=0
    _
  %s7 = ssub.s32 1, %s5
  %s8 = scalar_select 0, %s7, %s5
  loop: start=0, step=1, limit=10
  $region2: #{_lambda_.7} parent=0 // loop_pre_header
    _
  $region3: #{_lambda_.7} parent=0 // loop_header
    %s10 = sphi 0, %s14
    %p11 = scmp.ge.s32.totalorder %s10, 10
    %s17 = sphi 0, %s29
    %s18 = sphi 0, %s25
    %s19 = sphi 0, %s17
    %s20 = sphi 0, %s18
    %s21 = sphi 0, %s19
    %s22 = sphi 0, %s20
    %s34 = sphi 0, %s36
    %s37 = sphi 0, %s34
    %s38 = sphi 0, %s37
    %s54 = sphi 0, %s38
    %s58 = sphi 0, %s58
    %s60 = sphi 0, %s58
    %s61 = sphi 0, %s60
    %s75 = sphi 0, %s61
    %s79 = sphi 0, %s79
    %s81 = sphi 0, %s79
    %s82 = sphi 0, %s81
    %s96 = sphi 0, %s82
    %s100 = sphi 0, %s100
    %s102 = sphi 0, %s100
    %s103 = sphi 0, %s102
    %s117 = sphi 0, %s103
    %s125 = sphi 0, %s127
    %s128 = sphi 0, %s125
    %s129 = sphi 0, %s128
    %s145 = sphi 0, %s129
  $region4: #{_lambda_.7} parent=0 // loop_header_branch
    %13 = sbr.rel (%p11) target = $region8
  $region5: #{_lambda_.7} parent=0 // loop_body
    %s15 = ssub.s32 %s10, 1
    %s16 = ssub.s32 %s10, 2
    %s23 = sadd.s32 1, %s18
    %p24 = scmp.ge.s32.totalorder %s23, 1
    %s25 = scalar_select %p24, 0, %s23
    %s26 = sadd.s32 1, %s17
    %s27 = scalar_select %p24, %s26, %s17
    %p28 = scmp.ge.s32.totalorder %s27, 8
    %s29 = scalar_select %p28, 0, %s27
    %s30 = ssub.s32 %s17, %s29
    %s31 = ssub.s32 %s18, %s25
    %s32 = sor.u32 %s30, %s31
    %p33 = scmp.eq.s32.totalorder %s32, 0
    %s35 = sadd.s32 %s34, 1
    %s36 = scalar_select %p33, %s34, %s35
    %p39 = pneg %p33
    %p40 = scmp.eq.s32.totalorder %s10, 7
    %p41 = por %p39, %p40
    %p42 = scmp.ne.s32.totalorder %s34, %s37
    %p43 = scmp.eq.s32.totalorder %s10, 0
    %p44 = por %p42, %p43
    %p45 = scmp.ne.s32.totalorder %s34, %s37
    %p46 = scmp.eq.s32.totalorder %s15, 7
    %p47 = por %p45, %p46
    %p48 = scmp.ne.s32.totalorder %s37, %s38
    %p49 = scmp.eq.s32.totalorder %s15, 0
    %p50 = por %p48, %p49
    %p51 = scmp.ne.s32.totalorder %s37, %s38
    %p52 = scmp.eq.s32.totalorder %s16, 7
    %p53 = por %p51, %p52
    %p55 = scmp.ne.s32.totalorder %s38, %s54
    %p56 = scmp.eq.s32.totalorder %s16, 0
    %p57 = por %p55, %p56
    %s59 = sadd.s32 %s58, 1
    %p62 = scmp.eq.s32.totalorder %s10, 7
    %p63 = scmp.ne.s32.totalorder %s58, %s60
    %p64 = scmp.eq.s32.totalorder %s10, 0
    %p65 = por %p63, %p64
    %p66 = scmp.ne.s32.totalorder %s58, %s60
    %p67 = scmp.eq.s32.totalorder %s15, 7
    %p68 = por %p66, %p67
    %p69 = scmp.ne.s32.totalorder %s60, %s61
    %p70 = scmp.eq.s32.totalorder %s15, 0
    %p71 = por %p69, %p70
    %p72 = scmp.ne.s32.totalorder %s60, %s61
    %p73 = scmp.eq.s32.totalorder %s16, 7
    %p74 = por %p72, %p73
    %p76 = scmp.ne.s32.totalorder %s61, %s75
    %p77 = scmp.eq.s32.totalorder %s16, 0
    %p78 = por %p76, %p77
    %s80 = sadd.s32 %s79, 1
    %p83 = scmp.eq.s32.totalorder %s10, 7
    %p84 = scmp.ne.s32.totalorder %s79, %s81
    %p85 = scmp.eq.s32.totalorder %s10, 0
    %p86 = por %p84, %p85
    %p87 = scmp.ne.s32.totalorder %s79, %s81
    %p88 = scmp.eq.s32.totalorder %s15, 7
    %p89 = por %p87, %p88
    %p90 = scmp.ne.s32.totalorder %s81, %s82
    %p91 = scmp.eq.s32.totalorder %s15, 0
    %p92 = por %p90, %p91
    %p93 = scmp.ne.s32.totalorder %s81, %s82
    %p94 = scmp.eq.s32.totalorder %s16, 7
    %p95 = por %p93, %p94
    %p97 = scmp.ne.s32.totalorder %s82, %s96
    %p98 = scmp.eq.s32.totalorder %s16, 0
    %p99 = por %p97, %p98
    %s101 = sadd.s32 %s100, 1
    %p104 = scmp.eq.s32.totalorder %s10, 7
    %p105 = scmp.ne.s32.totalorder %s100, %s102
    %p106 = scmp.eq.s32.totalorder %s10, 0
    %p107 = por %p105, %p106
    %p108 = scmp.ne.s32.totalorder %s100, %s102
    %p109 = scmp.eq.s32.totalorder %s15, 7
    %p110 = por %p108, %p109
    %p111 = scmp.ne.s32.totalorder %s102, %s103
    %p112 = scmp.eq.s32.totalorder %s15, 0
    %p113 = por %p111, %p112
    %p114 = scmp.ne.s32.totalorder %s102, %s103
    %p115 = scmp.eq.s32.totalorder %s16, 7
    %p116 = por %p114, %p115
    %p118 = scmp.ne.s32.totalorder %s103, %s117
    %p119 = scmp.eq.s32.totalorder %s16, 0
    %p120 = por %p118, %p119
    %s121 = ssub.s32 %s17, %s29
    %s122 = ssub.s32 %s18, %s25
    %s123 = sor.u32 %s121, %s122
    %p124 = scmp.eq.s32.totalorder %s123, 0
    %s126 = sadd.s32 %s125, 1
    %s127 = scalar_select %p124, %s125, %s126
    %p130 = pneg %p124
    %p131 = scmp.eq.s32.totalorder %s10, 7
    %p132 = por %p130, %p131
    %p133 = scmp.ne.s32.totalorder %s125, %s128
    %p134 = scmp.eq.s32.totalorder %s10, 0
    %p135 = por %p133, %p134
    %p136 = scmp.ne.s32.totalorder %s125, %s128
    %p137 = scmp.eq.s32.totalorder %s15, 7
    %p138 = por %p136, %p137
    %p139 = scmp.ne.s32.totalorder %s128, %s129
    %p140 = scmp.eq.s32.totalorder %s15, 0
    %p141 = por %p139, %p140
    %p142 = scmp.ne.s32.totalorder %s128, %s129
    %p143 = scmp.eq.s32.totalorder %s16, 7
    %p144 = por %p142, %p143
    %p146 = scmp.ne.s32.totalorder %s129, %s145
    %p147 = scmp.eq.s32.totalorder %s16, 0
    %p148 = por %p146, %p147
    %p149 = scmp.le.s32.totalorder 1, %s10
    %p150 = scmp.lt.s32.totalorder %s10, 9
    %p151 = pnand %p149, %p150
    %p152 = pneg %p151
    // Predicated region
    $region9: #{_lambda_.7} parent=5 // pred_check
      _
    $region10: #{_lambda_.7} parent=5 // pred_check_branch
      %154 = sbr.rel (%p151) target = $region12
    $region11: #{_lambda_.7} parent=5 // pred_region
      %s155 = ssub.s32 %s10, 1
      // Predicated region
      $region13: #{_lambda_.7} parent=11 // pred_check
        %p156 = pneg %p71
      $region14: #{_lambda_.7} parent=11 // pred_check_branch
        %158 = sbr.rel (%p156) target = $region16
      $region15: #{_lambda_.7} parent=11 // pred_region
        _
      $region16: #{_lambda_.7} parent=11 // pred_fallthru
        _
      // Predicated region
      $region17: #{_lambda_.7} parent=11 // pred_check
        %p159 = pneg %p92
      $region18: #{_lambda_.7} parent=11 // pred_check_branch
        %161 = sbr.rel (%p159) target = $region20
      $region19: #{_lambda_.7} parent=11 // pred_region
        _
      $region20: #{_lambda_.7} parent=11 // pred_fallthru
        _
      // Predicated region
      $region21: #{_lambda_.7} parent=11 // pred_check
        %p162 = pneg %p113
      $region22: #{_lambda_.7} parent=11 // pred_check_branch
        %164 = sbr.rel (%p162) target = $region24
      $region23: #{_lambda_.7} parent=11 // pred_region
        _
      $region24: #{_lambda_.7} parent=11 // pred_fallthru
        _
    $region12: #{_lambda_.7} parent=5 // pred_fallthru
      _
    %p165 = scmp.lt.s32.totalorder %s10, 8
    // Predicated region
    $region25: #{_lambda_.7} parent=5 // pred_check
      %p166 = pneg %p165
    $region26: #{_lambda_.7} parent=5 // pred_check_branch
      %168 = sbr.rel (%p166) target = $region28
    $region27: #{_lambda_.7} parent=5 // pred_region
      // Predicated region
      $region29: #{_lambda_.7} parent=27 // pred_check
        %p169 = pneg %p44
      $region30: #{_lambda_.7} parent=27 // pred_check_branch
        %171 = sbr.rel (%p169) target = $region32
      $region31: #{_lambda_.7} parent=27 // pred_region
        %s172 = smul.u32 32, %s18
        %p173 = scmp.lt.s32.totalorder %s17, 7
        %s174 = scalar_select %p173, %s17, 7
        %p175 = scmp.lt.s32.totalorder %s172, 31
        %s176 = scalar_select %p175, %s172, 31
        %s177 = smul.addr %s174, 128
        %s178 = sadd.s32 %s176, %s177
        %s179 = smul.addr %s178, 8
        %s180 = scalar_lea.vmem %s0, %s179
        %s181 = smul.u32 32, %s18
      $region32: #{_lambda_.7} parent=27 // pred_fallthru
        _
    $region28: #{_lambda_.7} parent=5 // pred_fallthru
      _
    %p182 = scmp.le.s32.totalorder 1, %s10
    %p183 = scmp.lt.s32.totalorder %s10, 9
    %p184 = pnand %p182, %p183
    %p185 = pneg %p184
    // Predicated region
    $region33: #{_lambda_.7} parent=5 // pred_check
      _
    $region34: #{_lambda_.7} parent=5 // pred_check_branch
      %187 = sbr.rel (%p184) target = $region36
    $region35: #{_lambda_.7} parent=5 // pred_region
      %s188 = ssub.s32 %s10, 1
      %s189 = smul.u32 32, %s20
      %p190 = scmp.lt.s32.totalorder %s19, 7
      %s191 = scalar_select %p190, %s19, 7
      %p192 = scmp.lt.s32.totalorder %s189, 31
      %s193 = scalar_select %p192, %s189, 31
      %s194 = smul.addr %s191, 128
      %s195 = sadd.s32 %s193, %s194
      %s196 = smul.addr %s195, 8
      %s197 = scalar_lea.vmem %s0, %s196
      %p198 = pneg %p50
      %p199 = pneg %p47
      %p200 = pneg %p71
      %p201 = pneg %p68
      %p202 = pneg %p92
      %p203 = pneg %p89
      %p204 = pneg %p113
      %p205 = pneg %p110
      %p206 = pneg %p141
      %p207 = pneg %p138
      %s208 = smul.u32 32, %s20
      %p209 = scmp.lt.s32.totalorder %s19, 7
      %s210 = scalar_select %p209, %s19, 7
      %p211 = scmp.lt.s32.totalorder %s208, 31
      %s212 = scalar_select %p211, %s208, 31
      %s213 = smul.addr %s210, 32
      %s214 = sadd.s32 %s212, %s213
      %s215 = smul.addr %s214, 8
      %s216 = scalar_lea.vmem %s4, %s215
      %s217 = smul.u32 32, %s20
      %p218 = scmp.lt.s32.totalorder %s19, 7
      %s219 = scalar_select %p218, %s19, 7
      %p220 = scmp.lt.s32.totalorder %s217, 31
      %s221 = scalar_select %p220, %s217, 31
      %s222 = smul.addr %s219, 128
      %s223 = sadd.s32 %s221, %s222
      %s224 = smul.addr %s223, 8
      %s225 = scalar_lea.vmem %s0, %s224
      %s226 = smul.u32 32, %s20
      %s227 = smul.u32 32, %s20
      %p228 = scmp.lt.s32.totalorder %s19, 7
      %s229 = scalar_select %p228, %s19, 7
      %p230 = scmp.lt.s32.totalorder %s227, 31
      %s231 = scalar_select %p230, %s227, 31
      %s232 = smul.addr %s229, 32
      %s233 = sadd.s32 %s231, %s232
      %s234 = smul.addr %s233, 8
      %s235 = scalar_lea.vmem %s4, %s234
      %s236 = smul.u32 32, %s20
      %v237 = vld [vmem:[%s2] sm:$0x1]
      %v238 = vld [vmem:[%s3] sm:$0x1]
      %v239 = vld [vmem:[%s225] sm:$0xff]
      %v240 = vld [vmem:[%s225 + $0x8] sm:$0xff]
      %v241 = vld [vmem:[%s225 + $0x10] sm:$0xff]
      %v242 = vld [vmem:[%s225 + $0x18] sm:$0xff]
      %v243 = vld [vmem:[%s225 + $0x20] sm:$0xff]
      %v244 = vld [vmem:[%s225 + $0x28] sm:$0xff]
      %v245 = vld [vmem:[%s225 + $0x30] sm:$0xff]
      %v246 = vld [vmem:[%s225 + $0x38] sm:$0xff]
      %v247 = vld [vmem:[%s225 + $0x40] sm:$0xff]
      %v248 = vld [vmem:[%s225 + $0x48] sm:$0xff]
      %v249 = vld [vmem:[%s225 + $0x50] sm:$0xff]
      %v250 = vld [vmem:[%s225 + $0x58] sm:$0xff]
      %v251 = vld [vmem:[%s225 + $0x60] sm:$0xff]
      %v252 = vld [vmem:[%s225 + $0x68] sm:$0xff]
      %v253 = vld [vmem:[%s225 + $0x70] sm:$0xff]
      %v254 = vld [vmem:[%s225 + $0x78] sm:$0xff]
      %v255 = vld [vmem:[%s225 + $0x80] sm:$0xff]
      %v256 = vld [vmem:[%s225 + $0x88] sm:$0xff]
      %v257 = vld [vmem:[%s225 + $0x90] sm:$0xff]
      %v258 = vld [vmem:[%s225 + $0x98] sm:$0xff]
      %v259 = vld [vmem:[%s225 + $0xa0] sm:$0xff]
      %v260 = vld [vmem:[%s225 + $0xa8] sm:$0xff]
      %v261 = vld [vmem:[%s225 + $0xb0] sm:$0xff]
      %v262 = vld [vmem:[%s225 + $0xb8] sm:$0xff]
      %v263 = vld [vmem:[%s225 + $0xc0] sm:$0xff]
      %v264 = vld [vmem:[%s225 + $0xc8] sm:$0xff]
      %v265 = vld [vmem:[%s225 + $0xd0] sm:$0xff]
      %v266 = vld [vmem:[%s225 + $0xd8] sm:$0xff]
      %v267 = vld [vmem:[%s225 + $0xe0] sm:$0xff]
      %v268 = vld [vmem:[%s225 + $0xe8] sm:$0xff]
      %v269 = vld [vmem:[%s225 + $0xf0] sm:$0xff]
      %v270 = vld [vmem:[%s225 + $0xf8] sm:$0xff]
      %v271 = vld [vmem:[%s1] sm:$0xff]
      %v272 = vld [vmem:[%s1 + $0x8] sm:$0x1]
      %vm273 = vcmask 72704
      %v275 = vsel %vm273, %v239, 0
      %v278 = vsel %vm273, %v240, 0
      %v281 = vsel %vm273, %v241, 0
      %v284 = vsel %vm273, %v242, 0
      %v287 = vsel %vm273, %v243, 0
      %v290 = vsel %vm273, %v244, 0
      %v293 = vsel %vm273, %v245, 0
      %v296 = vsel %vm273, %v246, 0
      %v299 = vsel %vm273, %v247, 0
      %v302 = vsel %vm273, %v248, 0
      %v305 = vsel %vm273, %v249, 0
      %v308 = vsel %vm273, %v250, 0
      %v311 = vsel %vm273, %v251, 0
      %v314 = vsel %vm273, %v252, 0
      %v317 = vsel %vm273, %v253, 0
      %v320 = vsel %vm273, %v254, 0
      %v323 = vsel %vm273, %v255, 0
      %v326 = vsel %vm273, %v256, 0
      %v329 = vsel %vm273, %v257, 0
      %v332 = vsel %vm273, %v258, 0
      %v335 = vsel %vm273, %v259, 0
      %v338 = vsel %vm273, %v260, 0
      %v341 = vsel %vm273, %v261, 0
      %v344 = vsel %vm273, %v262, 0
      %v347 = vsel %vm273, %v263, 0
      %v350 = vsel %vm273, %v264, 0
      %v353 = vsel %vm273, %v265, 0
      %v356 = vsel %vm273, %v266, 0
      %v359 = vsel %vm273, %v267, 0
      %v362 = vsel %vm273, %v268, 0
      %v365 = vsel %vm273, %v269, 0
      %v368 = vsel %vm273, %v270, 0
      %vm370 = vcmask 1040384
      %v372 = vsel %vm370, %v272, 0
      %374 = vmatpush.msra.mxu0 0.0
      %375 = vmatpush.msra.mxu0 0.0
      %376 = vmatpush.msra.mxu0 0.0
      %377 = vmatpush.msra.mxu0 0.0
      %378 = vmatpush.msra.mxu0 0.0
      %379 = vmatpush.msra.mxu0 0.0
      %380 = vmatpush.msra.mxu0 0.0
      %381 = vmatpush.msra.mxu0 0.0
      %382 = vmatpush.msra.mxu0 0.0
      %383 = vmatpush.msra.mxu0 0.0
      %384 = vmatpush.msra.mxu0 0.0
      %385 = vmatpush.msra.mxu0 0.0
      %386 = vmatpush.msra.mxu0 0.0
      %387 = vmatpush.msra.mxu0 0.0
      %388 = vmatpush.msra.mxu0 %v372
      %389 = vmatpush.msra.mxu0 %v271
      %390 = vmatmul.f32.gmra.mxu0 %v275
      %v391 = vpop.f32.mrf.mxu0
      %v392 = vadd.f32 0.0, %v391
      %393 = vmatmul.f32.gmra.mxu0 %v278
      %v394 = vpop.f32.mrf.mxu0
      %v395 = vadd.f32 0.0, %v394
      %396 = vmatmul.f32.gmra.mxu0 %v281
      %v397 = vpop.f32.mrf.mxu0
      %v398 = vadd.f32 0.0, %v397
      %399 = vmatmul.f32.gmra.mxu0 %v284
      %v400 = vpop.f32.mrf.mxu0
      %v401 = vadd.f32 0.0, %v400
      %402 = vmatmul.f32.gmra.mxu0 %v287
      %v403 = vpop.f32.mrf.mxu0
      %v404 = vadd.f32 0.0, %v403
      %405 = vmatmul.f32.gmra.mxu0 %v290
      %v406 = vpop.f32.mrf.mxu0
      %v407 = vadd.f32 0.0, %v406
      %408 = vmatmul.f32.gmra.mxu0 %v293
      %v409 = vpop.f32.mrf.mxu0
      %v410 = vadd.f32 0.0, %v409
      %411 = vmatmul.f32.gmra.mxu0 %v296
      %v412 = vpop.f32.mrf.mxu0
      %v413 = vadd.f32 0.0, %v412
      %414 = vmatmul.f32.gmra.mxu0 %v299
      %v415 = vpop.f32.mrf.mxu0
      %v416 = vadd.f32 0.0, %v415
      %417 = vmatmul.f32.gmra.mxu0 %v302
      %v418 = vpop.f32.mrf.mxu0
      %v419 = vadd.f32 0.0, %v418
      %420 = vmatmul.f32.gmra.mxu0 %v305
      %v421 = vpop.f32.mrf.mxu0
      %v422 = vadd.f32 0.0, %v421
      %423 = vmatmul.f32.gmra.mxu0 %v308
      %v424 = vpop.f32.mrf.mxu0
      %v425 = vadd.f32 0.0, %v424
      %426 = vmatmul.f32.gmra.mxu0 %v311
      %v427 = vpop.f32.mrf.mxu0
      %v428 = vadd.f32 0.0, %v427
      %429 = vmatmul.f32.gmra.mxu0 %v314
      %v430 = vpop.f32.mrf.mxu0
      %v431 = vadd.f32 0.0, %v430
      %432 = vmatmul.f32.gmra.mxu0 %v317
      %v433 = vpop.f32.mrf.mxu0
      %v434 = vadd.f32 0.0, %v433
      %435 = vmatmul.f32.gmra.mxu0 %v320
      %v436 = vpop.f32.mrf.mxu0
      %v437 = vadd.f32 0.0, %v436
      %438 = vmatmul.f32.gmra.mxu0 %v323
      %v439 = vpop.f32.mrf.mxu0
      %v440 = vadd.f32 0.0, %v439
      %441 = vmatmul.f32.gmra.mxu0 %v326
      %v442 = vpop.f32.mrf.mxu0
      %v443 = vadd.f32 0.0, %v442
      %444 = vmatmul.f32.gmra.mxu0 %v329
      %v445 = vpop.f32.mrf.mxu0
      %v446 = vadd.f32 0.0, %v445
      %447 = vmatmul.f32.gmra.mxu0 %v332
      %v448 = vpop.f32.mrf.mxu0
      %v449 = vadd.f32 0.0, %v448
      %450 = vmatmul.f32.gmra.mxu0 %v335
      %v451 = vpop.f32.mrf.mxu0
      %v452 = vadd.f32 0.0, %v451
      %453 = vmatmul.f32.gmra.mxu0 %v338
      %v454 = vpop.f32.mrf.mxu0
      %v455 = vadd.f32 0.0, %v454
      %456 = vmatmul.f32.gmra.mxu0 %v341
      %v457 = vpop.f32.mrf.mxu0
      %v458 = vadd.f32 0.0, %v457
      %459 = vmatmul.f32.gmra.mxu0 %v344
      %v460 = vpop.f32.mrf.mxu0
      %v461 = vadd.f32 0.0, %v460
      %462 = vmatmul.f32.gmra.mxu0 %v347
      %v463 = vpop.f32.mrf.mxu0
      %v464 = vadd.f32 0.0, %v463
      %465 = vmatmul.f32.gmra.mxu0 %v350
      %v466 = vpop.f32.mrf.mxu0
      %v467 = vadd.f32 0.0, %v466
      %468 = vmatmul.f32.gmra.mxu0 %v353
      %v469 = vpop.f32.mrf.mxu0
      %v470 = vadd.f32 0.0, %v469
      %471 = vmatmul.f32.gmra.mxu0 %v356
      %v472 = vpop.f32.mrf.mxu0
      %v473 = vadd.f32 0.0, %v472
      %474 = vmatmul.f32.gmra.mxu0 %v359
      %v475 = vpop.f32.mrf.mxu0
      %v476 = vadd.f32 0.0, %v475
      %477 = vmatmul.f32.gmra.mxu0 %v362
      %v478 = vpop.f32.mrf.mxu0
      %v479 = vadd.f32 0.0, %v478
      %480 = vmatmul.f32.gmra.mxu0 %v365
      %v481 = vpop.f32.mrf.mxu0
      %v482 = vadd.f32 0.0, %v481
      %483 = vmatmul.f32.gmra.mxu0 %v368
      %v484 = vpop.f32.mrf.mxu0
      %v485 = vadd.f32 0.0, %v484
      %486 = vdwg.mxu0
      %v488 = vperm.slane %v237, 0
      %v490 = vmul.f32 %v392, %v488
      %v491 = vmul.f32 %v395, %v488
      %v492 = vmul.f32 %v398, %v488
      %v493 = vmul.f32 %v401, %v488
      %v494 = vmul.f32 %v404, %v488
      %v495 = vmul.f32 %v407, %v488
      %v496 = vmul.f32 %v410, %v488
      %v497 = vmul.f32 %v413, %v488
      %v498 = vmul.f32 %v416, %v488
      %v499 = vmul.f32 %v419, %v488
      %v500 = vmul.f32 %v422, %v488
      %v501 = vmul.f32 %v425, %v488
      %v502 = vmul.f32 %v428, %v488
      %v503 = vmul.f32 %v431, %v488
      %v504 = vmul.f32 %v434, %v488
      %v505 = vmul.f32 %v437, %v488
      %v506 = vmul.f32 %v440, %v488
      %v507 = vmul.f32 %v443, %v488
      %v508 = vmul.f32 %v446, %v488
      %v509 = vmul.f32 %v449, %v488
      %v510 = vmul.f32 %v452, %v488
      %v511 = vmul.f32 %v455, %v488
      %v512 = vmul.f32 %v458, %v488
      %v513 = vmul.f32 %v461, %v488
      %v514 = vmul.f32 %v464, %v488
      %v515 = vmul.f32 %v467, %v488
      %v516 = vmul.f32 %v470, %v488
      %v517 = vmul.f32 %v473, %v488
      %v518 = vmul.f32 %v476, %v488
      %v519 = vmul.f32 %v479, %v488
      %v520 = vmul.f32 %v482, %v488
      %v521 = vmul.f32 %v485, %v488
      %v523 = vperm.slane %v238, 0
      %v525 = vadd.f32 %v490, %v523
      %v526 = vadd.f32 %v491, %v523
      %v527 = vadd.f32 %v492, %v523
      %v528 = vadd.f32 %v493, %v523
      %v529 = vadd.f32 %v494, %v523
      %v530 = vadd.f32 %v495, %v523
      %v531 = vadd.f32 %v496, %v523
      %v532 = vadd.f32 %v497, %v523
      %v533 = vadd.f32 %v498, %v523
      %v534 = vadd.f32 %v499, %v523
      %v535 = vadd.f32 %v500, %v523
      %v536 = vadd.f32 %v501, %v523
      %v537 = vadd.f32 %v502, %v523
      %v538 = vadd.f32 %v503, %v523
      %v539 = vadd.f32 %v504, %v523
      %v540 = vadd.f32 %v505, %v523
      %v541 = vadd.f32 %v506, %v523
      %v542 = vadd.f32 %v507, %v523
      %v543 = vadd.f32 %v508, %v523
      %v544 = vadd.f32 %v509, %v523
      %v545 = vadd.f32 %v510, %v523
      %v546 = vadd.f32 %v511, %v523
      %v547 = vadd.f32 %v512, %v523
      %v548 = vadd.f32 %v513, %v523
      %v549 = vadd.f32 %v514, %v523
      %v550 = vadd.f32 %v515, %v523
      %v551 = vadd.f32 %v516, %v523
      %v552 = vadd.f32 %v517, %v523
      %v553 = vadd.f32 %v518, %v523
      %v554 = vadd.f32 %v519, %v523
      %v555 = vadd.f32 %v520, %v523
      %v556 = vadd.f32 %v521, %v523
      %v557 = vmax.f32 %v525, 0.0
      %v558 = vmax.f32 %v526, 0.0
      %v559 = vmax.f32 %v527, 0.0
      %v560 = vmax.f32 %v528, 0.0
      %v561 = vmax.f32 %v529, 0.0
      %v562 = vmax.f32 %v530, 0.0
      %v563 = vmax.f32 %v531, 0.0
      %v564 = vmax.f32 %v532, 0.0
      %v565 = vmax.f32 %v533, 0.0
      %v566 = vmax.f32 %v534, 0.0
      %v567 = vmax.f32 %v535, 0.0
      %v568 = vmax.f32 %v536, 0.0
      %v569 = vmax.f32 %v537, 0.0
      %v570 = vmax.f32 %v538, 0.0
      %v571 = vmax.f32 %v539, 0.0
      %v572 = vmax.f32 %v540, 0.0
      %v573 = vmax.f32 %v541, 0.0
      %v574 = vmax.f32 %v542, 0.0
      %v575 = vmax.f32 %v543, 0.0
      %v576 = vmax.f32 %v544, 0.0
      %v577 = vmax.f32 %v545, 0.0
      %v578 = vmax.f32 %v546, 0.0
      %v579 = vmax.f32 %v547, 0.0
      %v580 = vmax.f32 %v548, 0.0
      %v581 = vmax.f32 %v549, 0.0
      %v582 = vmax.f32 %v550, 0.0
      %v583 = vmax.f32 %v551, 0.0
      %v584 = vmax.f32 %v552, 0.0
      %v585 = vmax.f32 %v553, 0.0
      %v586 = vmax.f32 %v554, 0.0
      %v587 = vmax.f32 %v555, 0.0
      %v588 = vmax.f32 %v556, 0.0
      %s589 = scalar_lea.vmem %s225, 256
      %v590 = vld [vmem:[%s589] sm:$0xff]
      %v591 = vld [vmem:[%s589 + $0x8] sm:$0xff]
      %v592 = vld [vmem:[%s589 + $0x10] sm:$0xff]
      %v593 = vld [vmem:[%s589 + $0x18] sm:$0xff]
      %v594 = vld [vmem:[%s589 + $0x20] sm:$0xff]
      %v595 = vld [vmem:[%s589 + $0x28] sm:$0xff]
      %v596 = vld [vmem:[%s589 + $0x30] sm:$0xff]
      %v597 = vld [vmem:[%s589 + $0x38] sm:$0xff]
      %v598 = vld [vmem:[%s589 + $0x40] sm:$0xff]
      %v599 = vld [vmem:[%s589 + $0x48] sm:$0xff]
      %v600 = vld [vmem:[%s589 + $0x50] sm:$0xff]
      %v601 = vld [vmem:[%s589 + $0x58] sm:$0xff]
      %v602 = vld [vmem:[%s589 + $0x60] sm:$0xff]
      %v603 = vld [vmem:[%s589 + $0x68] sm:$0xff]
      %v604 = vld [vmem:[%s589 + $0x70] sm:$0xff]
      %v605 = vld [vmem:[%s589 + $0x78] sm:$0xff]
      %v606 = vld [vmem:[%s589 + $0x80] sm:$0xff]
      %v607 = vld [vmem:[%s589 + $0x88] sm:$0xff]
      %v608 = vld [vmem:[%s589 + $0x90] sm:$0xff]
      %v609 = vld [vmem:[%s589 + $0x98] sm:$0xff]
      %v610 = vld [vmem:[%s589 + $0xa0] sm:$0xff]
      %v611 = vld [vmem:[%s589 + $0xa8] sm:$0xff]
      %v612 = vld [vmem:[%s589 + $0xb0] sm:$0xff]
      %v613 = vld [vmem:[%s589 + $0xb8] sm:$0xff]
      %v614 = vld [vmem:[%s589 + $0xc0] sm:$0xff]
      %v615 = vld [vmem:[%s589 + $0xc8] sm:$0xff]
      %v616 = vld [vmem:[%s589 + $0xd0] sm:$0xff]
      %v617 = vld [vmem:[%s589 + $0xd8] sm:$0xff]
      %v618 = vld [vmem:[%s589 + $0xe0] sm:$0xff]
      %v619 = vld [vmem:[%s589 + $0xe8] sm:$0xff]
      %v620 = vld [vmem:[%s589 + $0xf0] sm:$0xff]
      %v621 = vld [vmem:[%s589 + $0xf8] sm:$0xff]
      %v623 = vsel %vm273, %v590, 0
      %v626 = vsel %vm273, %v591, 0
      %v629 = vsel %vm273, %v592, 0
      %v632 = vsel %vm273, %v593, 0
      %v635 = vsel %vm273, %v594, 0
      %v638 = vsel %vm273, %v595, 0
      %v641 = vsel %vm273, %v596, 0
      %v644 = vsel %vm273, %v597, 0
      %v647 = vsel %vm273, %v598, 0
      %v650 = vsel %vm273, %v599, 0
      %v653 = vsel %vm273, %v600, 0
      %v656 = vsel %vm273, %v601, 0
      %v659 = vsel %vm273, %v602, 0
      %v662 = vsel %vm273, %v603, 0
      %v665 = vsel %vm273, %v604, 0
      %v668 = vsel %vm273, %v605, 0
      %v671 = vsel %vm273, %v606, 0
      %v674 = vsel %vm273, %v607, 0
      %v677 = vsel %vm273, %v608, 0
      %v680 = vsel %vm273, %v609, 0
      %v683 = vsel %vm273, %v610, 0
      %v686 = vsel %vm273, %v611, 0
      %v689 = vsel %vm273, %v612, 0
      %v692 = vsel %vm273, %v613, 0
      %v695 = vsel %vm273, %v614, 0
      %v698 = vsel %vm273, %v615, 0
      %v701 = vsel %vm273, %v616, 0
      %v704 = vsel %vm273, %v617, 0
      %v707 = vsel %vm273, %v618, 0
      %v710 = vsel %vm273, %v619, 0
      %v713 = vsel %vm273, %v620, 0
      %v716 = vsel %vm273, %v621, 0
      %718 = vmatpush.msra.mxu0 0.0
      %719 = vmatpush.msra.mxu0 0.0
      %720 = vmatpush.msra.mxu0 0.0
      %721 = vmatpush.msra.mxu0 0.0
      %722 = vmatpush.msra.mxu0 0.0
      %723 = vmatpush.msra.mxu0 0.0
      %724 = vmatpush.msra.mxu0 0.0
      %725 = vmatpush.msra.mxu0 0.0
      %726 = vmatpush.msra.mxu0 0.0
      %727 = vmatpush.msra.mxu0 0.0
      %728 = vmatpush.msra.mxu0 0.0
      %729 = vmatpush.msra.mxu0 0.0
      %730 = vmatpush.msra.mxu0 0.0
      %731 = vmatpush.msra.mxu0 0.0
      %732 = vmatpush.msra.mxu0 %v372
      %733 = vmatpush.msra.mxu0 %v271
      %734 = vmatmul.f32.gmra.mxu0 %v623
      %v735 = vpop.f32.mrf.mxu0
      %v736 = vadd.f32 0.0, %v735
      %737 = vmatmul.f32.gmra.mxu0 %v626
      %v738 = vpop.f32.mrf.mxu0
      %v739 = vadd.f32 0.0, %v738
      %740 = vmatmul.f32.gmra.mxu0 %v629
      %v741 = vpop.f32.mrf.mxu0
      %v742 = vadd.f32 0.0, %v741
      %743 = vmatmul.f32.gmra.mxu0 %v632
      %v744 = vpop.f32.mrf.mxu0
      %v745 = vadd.f32 0.0, %v744
      %746 = vmatmul.f32.gmra.mxu0 %v635
      %v747 = vpop.f32.mrf.mxu0
      %v748 = vadd.f32 0.0, %v747
      %749 = vmatmul.f32.gmra.mxu0 %v638
      %v750 = vpop.f32.mrf.mxu0
      %v751 = vadd.f32 0.0, %v750
      %752 = vmatmul.f32.gmra.mxu0 %v641
      %v753 = vpop.f32.mrf.mxu0
      %v754 = vadd.f32 0.0, %v753
      %755 = vmatmul.f32.gmra.mxu0 %v644
      %v756 = vpop.f32.mrf.mxu0
      %v757 = vadd.f32 0.0, %v756
      %758 = vmatmul.f32.gmra.mxu0 %v647
      %v759 = vpop.f32.mrf.mxu0
      %v760 = vadd.f32 0.0, %v759
      %761 = vmatmul.f32.gmra.mxu0 %v650
      %v762 = vpop.f32.mrf.mxu0
      %v763 = vadd.f32 0.0, %v762
      %764 = vmatmul.f32.gmra.mxu0 %v653
      %v765 = vpop.f32.mrf.mxu0
      %v766 = vadd.f32 0.0, %v765
      %767 = vmatmul.f32.gmra.mxu0 %v656
      %v768 = vpop.f32.mrf.mxu0
      %v769 = vadd.f32 0.0, %v768
      %770 = vmatmul.f32.gmra.mxu0 %v659
      %v771 = vpop.f32.mrf.mxu0
      %v772 = vadd.f32 0.0, %v771
      %773 = vmatmul.f32.gmra.mxu0 %v662
      %v774 = vpop.f32.mrf.mxu0
      %v775 = vadd.f32 0.0, %v774
      %776 = vmatmul.f32.gmra.mxu0 %v665
      %v777 = vpop.f32.mrf.mxu0
      %v778 = vadd.f32 0.0, %v777
      %779 = vmatmul.f32.gmra.mxu0 %v668
      %v780 = vpop.f32.mrf.mxu0
      %v781 = vadd.f32 0.0, %v780
      %782 = vmatmul.f32.gmra.mxu0 %v671
      %v783 = vpop.f32.mrf.mxu0
      %v784 = vadd.f32 0.0, %v783
      %785 = vmatmul.f32.gmra.mxu0 %v674
      %v786 = vpop.f32.mrf.mxu0
      %v787 = vadd.f32 0.0, %v786
      %788 = vmatmul.f32.gmra.mxu0 %v677
      %v789 = vpop.f32.mrf.mxu0
      %v790 = vadd.f32 0.0, %v789
      %791 = vmatmul.f32.gmra.mxu0 %v680
      %v792 = vpop.f32.mrf.mxu0
      %v793 = vadd.f32 0.0, %v792
      %794 = vmatmul.f32.gmra.mxu0 %v683
      %v795 = vpop.f32.mrf.mxu0
      %v796 = vadd.f32 0.0, %v795
      %797 = vmatmul.f32.gmra.mxu0 %v686
      %v798 = vpop.f32.mrf.mxu0
      %v799 = vadd.f32 0.0, %v798
      %800 = vmatmul.f32.gmra.mxu0 %v689
      %v801 = vpop.f32.mrf.mxu0
      %v802 = vadd.f32 0.0, %v801
      %803 = vmatmul.f32.gmra.mxu0 %v692
      %v804 = vpop.f32.mrf.mxu0
      %v805 = vadd.f32 0.0, %v804
      %806 = vmatmul.f32.gmra.mxu0 %v695
      %v807 = vpop.f32.mrf.mxu0
      %v808 = vadd.f32 0.0, %v807
      %809 = vmatmul.f32.gmra.mxu0 %v698
      %v810 = vpop.f32.mrf.mxu0
      %v811 = vadd.f32 0.0, %v810
      %812 = vmatmul.f32.gmra.mxu0 %v701
      %v813 = vpop.f32.mrf.mxu0
      %v814 = vadd.f32 0.0, %v813
      %815 = vmatmul.f32.gmra.mxu0 %v704
      %v816 = vpop.f32.mrf.mxu0
      %v817 = vadd.f32 0.0, %v816
      %818 = vmatmul.f32.gmra.mxu0 %v707
      %v819 = vpop.f32.mrf.mxu0
      %v820 = vadd.f32 0.0, %v819
      %821 = vmatmul.f32.gmra.mxu0 %v710
      %v822 = vpop.f32.mrf.mxu0
      %v823 = vadd.f32 0.0, %v822
      %824 = vmatmul.f32.gmra.mxu0 %v713
      %v825 = vpop.f32.mrf.mxu0
      %v826 = vadd.f32 0.0, %v825
      %827 = vmatmul.f32.gmra.mxu0 %v716
      %v828 = vpop.f32.mrf.mxu0
      %v829 = vadd.f32 0.0, %v828
      %830 = vdwg.mxu0
      %v831 = vmul.f32 %v736, %v488
      %v832 = vmul.f32 %v739, %v488
      %v833 = vmul.f32 %v742, %v488
      %v834 = vmul.f32 %v745, %v488
      %v835 = vmul.f32 %v748, %v488
      %v836 = vmul.f32 %v751, %v488
      %v837 = vmul.f32 %v754, %v488
      %v838 = vmul.f32 %v757, %v488
      %v839 = vmul.f32 %v760, %v488
      %v840 = vmul.f32 %v763, %v488
      %v841 = vmul.f32 %v766, %v488
      %v842 = vmul.f32 %v769, %v488
      %v843 = vmul.f32 %v772, %v488
      %v844 = vmul.f32 %v775, %v488
      %v845 = vmul.f32 %v778, %v488
      %v846 = vmul.f32 %v781, %v488
      %v847 = vmul.f32 %v784, %v488
      %v848 = vmul.f32 %v787, %v488
      %v849 = vmul.f32 %v790, %v488
      %v850 = vmul.f32 %v793, %v488
      %v851 = vmul.f32 %v796, %v488
      %v852 = vmul.f32 %v799, %v488
      %v853 = vmul.f32 %v802, %v488
      %v854 = vmul.f32 %v805, %v488
      %v855 = vmul.f32 %v808, %v488
      %v856 = vmul.f32 %v811, %v488
      %v857 = vmul.f32 %v814, %v488
      %v858 = vmul.f32 %v817, %v488
      %v859 = vmul.f32 %v820, %v488
      %v860 = vmul.f32 %v823, %v488
      %v861 = vmul.f32 %v826, %v488
      %v862 = vmul.f32 %v829, %v488
      %v863 = vadd.f32 %v831, %v523
      %v864 = vadd.f32 %v832, %v523
      %v865 = vadd.f32 %v833, %v523
      %v866 = vadd.f32 %v834, %v523
      %v867 = vadd.f32 %v835, %v523
      %v868 = vadd.f32 %v836, %v523
      %v869 = vadd.f32 %v837, %v523
      %v870 = vadd.f32 %v838, %v523
      %v871 = vadd.f32 %v839, %v523
      %v872 = vadd.f32 %v840, %v523
      %v873 = vadd.f32 %v841, %v523
      %v874 = vadd.f32 %v842, %v523
      %v875 = vadd.f32 %v843, %v523
      %v876 = vadd.f32 %v844, %v523
      %v877 = vadd.f32 %v845, %v523
      %v878 = vadd.f32 %v846, %v523
      %v879 = vadd.f32 %v847, %v523
      %v880 = vadd.f32 %v848, %v523
      %v881 = vadd.f32 %v849, %v523
      %v882 = vadd.f32 %v850, %v523
      %v883 = vadd.f32 %v851, %v523
      %v884 = vadd.f32 %v852, %v523
      %v885 = vadd.f32 %v853, %v523
      %v886 = vadd.f32 %v854, %v523
      %v887 = vadd.f32 %v855, %v523
      %v888 = vadd.f32 %v856, %v523
      %v889 = vadd.f32 %v857, %v523
      %v890 = vadd.f32 %v858, %v523
      %v891 = vadd.f32 %v859, %v523
      %v892 = vadd.f32 %v860, %v523
      %v893 = vadd.f32 %v861, %v523
      %v894 = vadd.f32 %v862, %v523
      %v895 = vmax.f32 %v863, 0.0
      %v896 = vmax.f32 %v864, 0.0
      %v897 = vmax.f32 %v865, 0.0
      %v898 = vmax.f32 %v866, 0.0
      %v899 = vmax.f32 %v867, 0.0
      %v900 = vmax.f32 %v868, 0.0
      %v901 = vmax.f32 %v869, 0.0
      %v902 = vmax.f32 %v870, 0.0
      %v903 = vmax.f32 %v871, 0.0
      %v904 = vmax.f32 %v872, 0.0
      %v905 = vmax.f32 %v873, 0.0
      %v906 = vmax.f32 %v874, 0.0
      %v907 = vmax.f32 %v875, 0.0
      %v908 = vmax.f32 %v876, 0.0
      %v909 = vmax.f32 %v877, 0.0
      %v910 = vmax.f32 %v878, 0.0
      %v911 = vmax.f32 %v879, 0.0
      %v912 = vmax.f32 %v880, 0.0
      %v913 = vmax.f32 %v881, 0.0
      %v914 = vmax.f32 %v882, 0.0
      %v915 = vmax.f32 %v883, 0.0
      %v916 = vmax.f32 %v884, 0.0
      %v917 = vmax.f32 %v885, 0.0
      %v918 = vmax.f32 %v886, 0.0
      %v919 = vmax.f32 %v887, 0.0
      %v920 = vmax.f32 %v888, 0.0
      %v921 = vmax.f32 %v889, 0.0
      %v922 = vmax.f32 %v890, 0.0
      %v923 = vmax.f32 %v891, 0.0
      %v924 = vmax.f32 %v892, 0.0
      %v925 = vmax.f32 %v893, 0.0
      %v926 = vmax.f32 %v894, 0.0
      %v927 = vmax.f32 %v557, %v895
      %v928 = vmax.f32 %v558, %v896
      %v929 = vmax.f32 %v559, %v897
      %v930 = vmax.f32 %v560, %v898
      %v931 = vmax.f32 %v561, %v899
      %v932 = vmax.f32 %v562, %v900
      %v933 = vmax.f32 %v563, %v901
      %v934 = vmax.f32 %v564, %v902
      %v935 = vmax.f32 %v565, %v903
      %v936 = vmax.f32 %v566, %v904
      %v937 = vmax.f32 %v567, %v905
      %v938 = vmax.f32 %v568, %v906
      %v939 = vmax.f32 %v569, %v907
      %v940 = vmax.f32 %v570, %v908
      %v941 = vmax.f32 %v571, %v909
      %v942 = vmax.f32 %v572, %v910
      %v943 = vmax.f32 %v573, %v911
      %v944 = vmax.f32 %v574, %v912
      %v945 = vmax.f32 %v575, %v913
      %v946 = vmax.f32 %v576, %v914
      %v947 = vmax.f32 %v577, %v915
      %v948 = vmax.f32 %v578, %v916
      %v949 = vmax.f32 %v579, %v917
      %v950 = vmax.f32 %v580, %v918
      %v951 = vmax.f32 %v581, %v919
      %v952 = vmax.f32 %v582, %v920
      %v953 = vmax.f32 %v583, %v921
      %v954 = vmax.f32 %v584, %v922
      %v955 = vmax.f32 %v585, %v923
      %v956 = vmax.f32 %v586, %v924
      %v957 = vmax.f32 %v587, %v925
      %v958 = vmax.f32 %v588, %v926
      %s959 = scalar_lea.vmem %s225, 512
      %v960 = vld [vmem:[%s959] sm:$0xff]
      %v961 = vld [vmem:[%s959 + $0x8] sm:$0xff]
      %v962 = vld [vmem:[%s959 + $0x10] sm:$0xff]
      %v963 = vld [vmem:[%s959 + $0x18] sm:$0xff]
      %v964 = vld [vmem:[%s959 + $0x20] sm:$0xff]
      %v965 = vld [vmem:[%s959 + $0x28] sm:$0xff]
      %v966 = vld [vmem:[%s959 + $0x30] sm:$0xff]
      %v967 = vld [vmem:[%s959 + $0x38] sm:$0xff]
      %v968 = vld [vmem:[%s959 + $0x40] sm:$0xff]
      %v969 = vld [vmem:[%s959 + $0x48] sm:$0xff]
      %v970 = vld [vmem:[%s959 + $0x50] sm:$0xff]
      %v971 = vld [vmem:[%s959 + $0x58] sm:$0xff]
      %v972 = vld [vmem:[%s959 + $0x60] sm:$0xff]
      %v973 = vld [vmem:[%s959 + $0x68] sm:$0xff]
      %v974 = vld [vmem:[%s959 + $0x70] sm:$0xff]
      %v975 = vld [vmem:[%s959 + $0x78] sm:$0xff]
      %v976 = vld [vmem:[%s959 + $0x80] sm:$0xff]
      %v977 = vld [vmem:[%s959 + $0x88] sm:$0xff]
      %v978 = vld [vmem:[%s959 + $0x90] sm:$0xff]
      %v979 = vld [vmem:[%s959 + $0x98] sm:$0xff]
      %v980 = vld [vmem:[%s959 + $0xa0] sm:$0xff]
      %v981 = vld [vmem:[%s959 + $0xa8] sm:$0xff]
      %v982 = vld [vmem:[%s959 + $0xb0] sm:$0xff]
      %v983 = vld [vmem:[%s959 + $0xb8] sm:$0xff]
      %v984 = vld [vmem:[%s959 + $0xc0] sm:$0xff]
      %v985 = vld [vmem:[%s959 + $0xc8] sm:$0xff]
      %v986 = vld [vmem:[%s959 + $0xd0] sm:$0xff]
      %v987 = vld [vmem:[%s959 + $0xd8] sm:$0xff]
      %v988 = vld [vmem:[%s959 + $0xe0] sm:$0xff]
      %v989 = vld [vmem:[%s959 + $0xe8] sm:$0xff]
      %v990 = vld [vmem:[%s959 + $0xf0] sm:$0xff]
      %v991 = vld [vmem:[%s959 + $0xf8] sm:$0xff]
      %v993 = vsel %vm273, %v960, 0
      %v996 = vsel %vm273, %v961, 0
      %v999 = vsel %vm273, %v962, 0
      %v1002 = vsel %vm273, %v963, 0
      %v1005 = vsel %vm273, %v964, 0
      %v1008 = vsel %vm273, %v965, 0
      %v1011 = vsel %vm273, %v966, 0
      %v1014 = vsel %vm273, %v967, 0
      %v1017 = vsel %vm273, %v968, 0
      %v1020 = vsel %vm273, %v969, 0
      %v1023 = vsel %vm273, %v970, 0
      %v1026 = vsel %vm273, %v971, 0
      %v1029 = vsel %vm273, %v972, 0
      %v1032 = vsel %vm273, %v973, 0
      %v1035 = vsel %vm273, %v974, 0
      %v1038 = vsel %vm273, %v975, 0
      %v1041 = vsel %vm273, %v976, 0
      %v1044 = vsel %vm273, %v977, 0
      %v1047 = vsel %vm273, %v978, 0
      %v1050 = vsel %vm273, %v979, 0
      %v1053 = vsel %vm273, %v980, 0
      %v1056 = vsel %vm273, %v981, 0
      %v1059 = vsel %vm273, %v982, 0
      %v1062 = vsel %vm273, %v983, 0
      %v1065 = vsel %vm273, %v984, 0
      %v1068 = vsel %vm273, %v985, 0
      %v1071 = vsel %vm273, %v986, 0
      %v1074 = vsel %vm273, %v987, 0
      %v1077 = vsel %vm273, %v988, 0
      %v1080 = vsel %vm273, %v989, 0
      %v1083 = vsel %vm273, %v990, 0
      %v1086 = vsel %vm273, %v991, 0
      %1088 = vmatpush.msra.mxu0 0.0
      %1089 = vmatpush.msra.mxu0 0.0
      %1090 = vmatpush.msra.mxu0 0.0
      %1091 = vmatpush.msra.mxu0 0.0
      %1092 = vmatpush.msra.mxu0 0.0
      %1093 = vmatpush.msra.mxu0 0.0
      %1094 = vmatpush.msra.mxu0 0.0
      %1095 = vmatpush.msra.mxu0 0.0
      %1096 = vmatpush.msra.mxu0 0.0
      %1097 = vmatpush.msra.mxu0 0.0
      %1098 = vmatpush.msra.mxu0 0.0
      %1099 = vmatpush.msra.mxu0 0.0
      %1100 = vmatpush.msra.mxu0 0.0
      %1101 = vmatpush.msra.mxu0 0.0
      %1102 = vmatpush.msra.mxu0 %v372
      %1103 = vmatpush.msra.mxu0 %v271
      %1104 = vmatmul.f32.gmra.mxu0 %v993
      %v1105 = vpop.f32.mrf.mxu0
      %v1106 = vadd.f32 0.0, %v1105
      %1107 = vmatmul.f32.gmra.mxu0 %v996
      %v1108 = vpop.f32.mrf.mxu0
      %v1109 = vadd.f32 0.0, %v1108
      %1110 = vmatmul.f32.gmra.mxu0 %v999
      %v1111 = vpop.f32.mrf.mxu0
      %v1112 = vadd.f32 0.0, %v1111
      %1113 = vmatmul.f32.gmra.mxu0 %v1002
      %v1114 = vpop.f32.mrf.mxu0
      %v1115 = vadd.f32 0.0, %v1114
      %1116 = vmatmul.f32.gmra.mxu0 %v1005
      %v1117 = vpop.f32.mrf.mxu0
      %v1118 = vadd.f32 0.0, %v1117
      %1119 = vmatmul.f32.gmra.mxu0 %v1008
      %v1120 = vpop.f32.mrf.mxu0
      %v1121 = vadd.f32 0.0, %v1120
      %1122 = vmatmul.f32.gmra.mxu0 %v1011
      %v1123 = vpop.f32.mrf.mxu0
      %v1124 = vadd.f32 0.0, %v1123
      %1125 = vmatmul.f32.gmra.mxu0 %v1014
      %v1126 = vpop.f32.mrf.mxu0
      %v1127 = vadd.f32 0.0, %v1126
      %1128 = vmatmul.f32.gmra.mxu0 %v1017
      %v1129 = vpop.f32.mrf.mxu0
      %v1130 = vadd.f32 0.0, %v1129
      %1131 = vmatmul.f32.gmra.mxu0 %v1020
      %v1132 = vpop.f32.mrf.mxu0
      %v1133 = vadd.f32 0.0, %v1132
      %1134 = vmatmul.f32.gmra.mxu0 %v1023
      %v1135 = vpop.f32.mrf.mxu0
      %v1136 = vadd.f32 0.0, %v1135
      %1137 = vmatmul.f32.gmra.mxu0 %v1026
      %v1138 = vpop.f32.mrf.mxu0
      %v1139 = vadd.f32 0.0, %v1138
      %1140 = vmatmul.f32.gmra.mxu0 %v1029
      %v1141 = vpop.f32.mrf.mxu0
      %v1142 = vadd.f32 0.0, %v1141
      %1143 = vmatmul.f32.gmra.mxu0 %v1032
      %v1144 = vpop.f32.mrf.mxu0
      %v1145 = vadd.f32 0.0, %v1144
      %1146 = vmatmul.f32.gmra.mxu0 %v1035
      %v1147 = vpop.f32.mrf.mxu0
      %v1148 = vadd.f32 0.0, %v1147
      %1149 = vmatmul.f32.gmra.mxu0 %v1038
      %v1150 = vpop.f32.mrf.mxu0
      %v1151 = vadd.f32 0.0, %v1150
      %1152 = vmatmul.f32.gmra.mxu0 %v1041
      %v1153 = vpop.f32.mrf.mxu0
      %v1154 = vadd.f32 0.0, %v1153
      %1155 = vmatmul.f32.gmra.mxu0 %v1044
      %v1156 = vpop.f32.mrf.mxu0
      %v1157 = vadd.f32 0.0, %v1156
      %1158 = vmatmul.f32.gmra.mxu0 %v1047
      %v1159 = vpop.f32.mrf.mxu0
      %v1160 = vadd.f32 0.0, %v1159
      %1161 = vmatmul.f32.gmra.mxu0 %v1050
      %v1162 = vpop.f32.mrf.mxu0
      %v1163 = vadd.f32 0.0, %v1162
      %1164 = vmatmul.f32.gmra.mxu0 %v1053
      %v1165 = vpop.f32.mrf.mxu0
      %v1166 = vadd.f32 0.0, %v1165
      %1167 = vmatmul.f32.gmra.mxu0 %v1056
      %v1168 = vpop.f32.mrf.mxu0
      %v1169 = vadd.f32 0.0, %v1168
      %1170 = vmatmul.f32.gmra.mxu0 %v1059
      %v1171 = vpop.f32.mrf.mxu0
      %v1172 = vadd.f32 0.0, %v1171
      %1173 = vmatmul.f32.gmra.mxu0 %v1062
      %v1174 = vpop.f32.mrf.mxu0
      %v1175 = vadd.f32 0.0, %v1174
      %1176 = vmatmul.f32.gmra.mxu0 %v1065
      %v1177 = vpop.f32.mrf.mxu0
      %v1178 = vadd.f32 0.0, %v1177
      %1179 = vmatmul.f32.gmra.mxu0 %v1068
      %v1180 = vpop.f32.mrf.mxu0
      %v1181 = vadd.f32 0.0, %v1180
      %1182 = vmatmul.f32.gmra.mxu0 %v1071
      %v1183 = vpop.f32.mrf.mxu0
      %v1184 = vadd.f32 0.0, %v1183
      %1185 = vmatmul.f32.gmra.mxu0 %v1074
      %v1186 = vpop.f32.mrf.mxu0
      %v1187 = vadd.f32 0.0, %v1186
      %1188 = vmatmul.f32.gmra.mxu0 %v1077
      %v1189 = vpop.f32.mrf.mxu0
      %v1190 = vadd.f32 0.0, %v1189
      %1191 = vmatmul.f32.gmra.mxu0 %v1080
      %v1192 = vpop.f32.mrf.mxu0
      %v1193 = vadd.f32 0.0, %v1192
      %1194 = vmatmul.f32.gmra.mxu0 %v1083
      %v1195 = vpop.f32.mrf.mxu0
      %v1196 = vadd.f32 0.0, %v1195
      %1197 = vmatmul.f32.gmra.mxu0 %v1086
      %v1198 = vpop.f32.mrf.mxu0
      %v1199 = vadd.f32 0.0, %v1198
      %1200 = vdwg.mxu0
      %v1201 = vmul.f32 %v1106, %v488
      %v1202 = vmul.f32 %v1109, %v488
      %v1203 = vmul.f32 %v1112, %v488
      %v1204 = vmul.f32 %v1115, %v488
      %v1205 = vmul.f32 %v1118, %v488
      %v1206 = vmul.f32 %v1121, %v488
      %v1207 = vmul.f32 %v1124, %v488
      %v1208 = vmul.f32 %v1127, %v488
      %v1209 = vmul.f32 %v1130, %v488
      %v1210 = vmul.f32 %v1133, %v488
      %v1211 = vmul.f32 %v1136, %v488
      %v1212 = vmul.f32 %v1139, %v488
      %v1213 = vmul.f32 %v1142, %v488
      %v1214 = vmul.f32 %v1145, %v488
      %v1215 = vmul.f32 %v1148, %v488
      %v1216 = vmul.f32 %v1151, %v488
      %v1217 = vmul.f32 %v1154, %v488
      %v1218 = vmul.f32 %v1157, %v488
      %v1219 = vmul.f32 %v1160, %v488
      %v1220 = vmul.f32 %v1163, %v488
      %v1221 = vmul.f32 %v1166, %v488
      %v1222 = vmul.f32 %v1169, %v488
      %v1223 = vmul.f32 %v1172, %v488
      %v1224 = vmul.f32 %v1175, %v488
      %v1225 = vmul.f32 %v1178, %v488
      %v1226 = vmul.f32 %v1181, %v488
      %v1227 = vmul.f32 %v1184, %v488
      %v1228 = vmul.f32 %v1187, %v488
      %v1229 = vmul.f32 %v1190, %v488
      %v1230 = vmul.f32 %v1193, %v488
      %v1231 = vmul.f32 %v1196, %v488
      %v1232 = vmul.f32 %v1199, %v488
      %v1233 = vadd.f32 %v1201, %v523
      %v1234 = vadd.f32 %v1202, %v523
      %v1235 = vadd.f32 %v1203, %v523
      %v1236 = vadd.f32 %v1204, %v523
      %v1237 = vadd.f32 %v1205, %v523
      %v1238 = vadd.f32 %v1206, %v523
      %v1239 = vadd.f32 %v1207, %v523
      %v1240 = vadd.f32 %v1208, %v523
      %v1241 = vadd.f32 %v1209, %v523
      %v1242 = vadd.f32 %v1210, %v523
      %v1243 = vadd.f32 %v1211, %v523
      %v1244 = vadd.f32 %v1212, %v523
      %v1245 = vadd.f32 %v1213, %v523
      %v1246 = vadd.f32 %v1214, %v523
      %v1247 = vadd.f32 %v1215, %v523
      %v1248 = vadd.f32 %v1216, %v523
      %v1249 = vadd.f32 %v1217, %v523
      %v1250 = vadd.f32 %v1218, %v523
      %v1251 = vadd.f32 %v1219, %v523
      %v1252 = vadd.f32 %v1220, %v523
      %v1253 = vadd.f32 %v1221, %v523
      %v1254 = vadd.f32 %v1222, %v523
      %v1255 = vadd.f32 %v1223, %v523
      %v1256 = vadd.f32 %v1224, %v523
      %v1257 = vadd.f32 %v1225, %v523
      %v1258 = vadd.f32 %v1226, %v523
      %v1259 = vadd.f32 %v1227, %v523
      %v1260 = vadd.f32 %v1228, %v523
      %v1261 = vadd.f32 %v1229, %v523
      %v1262 = vadd.f32 %v1230, %v523
      %v1263 = vadd.f32 %v1231, %v523
      %v1264 = vadd.f32 %v1232, %v523
      %v1265 = vmax.f32 %v1233, 0.0
      %v1266 = vmax.f32 %v1234, 0.0
      %v1267 = vmax.f32 %v1235, 0.0
      %v1268 = vmax.f32 %v1236, 0.0
      %v1269 = vmax.f32 %v1237, 0.0
      %v1270 = vmax.f32 %v1238, 0.0
      %v1271 = vmax.f32 %v1239, 0.0
      %v1272 = vmax.f32 %v1240, 0.0
      %v1273 = vmax.f32 %v1241, 0.0
      %v1274 = vmax.f32 %v1242, 0.0
      %v1275 = vmax.f32 %v1243, 0.0
      %v1276 = vmax.f32 %v1244, 0.0
      %v1277 = vmax.f32 %v1245, 0.0
      %v1278 = vmax.f32 %v1246, 0.0
      %v1279 = vmax.f32 %v1247, 0.0
      %v1280 = vmax.f32 %v1248, 0.0
      %v1281 = vmax.f32 %v1249, 0.0
      %v1282 = vmax.f32 %v1250, 0.0
      %v1283 = vmax.f32 %v1251, 0.0
      %v1284 = vmax.f32 %v1252, 0.0
      %v1285 = vmax.f32 %v1253, 0.0
      %v1286 = vmax.f32 %v1254, 0.0
      %v1287 = vmax.f32 %v1255, 0.0
      %v1288 = vmax.f32 %v1256, 0.0
      %v1289 = vmax.f32 %v1257, 0.0
      %v1290 = vmax.f32 %v1258, 0.0
      %v1291 = vmax.f32 %v1259, 0.0
      %v1292 = vmax.f32 %v1260, 0.0
      %v1293 = vmax.f32 %v1261, 0.0
      %v1294 = vmax.f32 %v1262, 0.0
      %v1295 = vmax.f32 %v1263, 0.0
      %v1296 = vmax.f32 %v1264, 0.0
      %s1297 = scalar_lea.vmem %s225, 768
      %v1298 = vld [vmem:[%s1297] sm:$0xff]
      %v1299 = vld [vmem:[%s1297 + $0x8] sm:$0xff]
      %v1300 = vld [vmem:[%s1297 + $0x10] sm:$0xff]
      %v1301 = vld [vmem:[%s1297 + $0x18] sm:$0xff]
      %v1302 = vld [vmem:[%s1297 + $0x20] sm:$0xff]
      %v1303 = vld [vmem:[%s1297 + $0x28] sm:$0xff]
      %v1304 = vld [vmem:[%s1297 + $0x30] sm:$0xff]
      %v1305 = vld [vmem:[%s1297 + $0x38] sm:$0xff]
      %v1306 = vld [vmem:[%s1297 + $0x40] sm:$0xff]
      %v1307 = vld [vmem:[%s1297 + $0x48] sm:$0xff]
      %v1308 = vld [vmem:[%s1297 + $0x50] sm:$0xff]
      %v1309 = vld [vmem:[%s1297 + $0x58] sm:$0xff]
      %v1310 = vld [vmem:[%s1297 + $0x60] sm:$0xff]
      %v1311 = vld [vmem:[%s1297 + $0x68] sm:$0xff]
      %v1312 = vld [vmem:[%s1297 + $0x70] sm:$0xff]
      %v1313 = vld [vmem:[%s1297 + $0x78] sm:$0xff]
      %v1314 = vld [vmem:[%s1297 + $0x80] sm:$0xff]
      %v1315 = vld [vmem:[%s1297 + $0x88] sm:$0xff]
      %v1316 = vld [vmem:[%s1297 + $0x90] sm:$0xff]
      %v1317 = vld [vmem:[%s1297 + $0x98] sm:$0xff]
      %v1318 = vld [vmem:[%s1297 + $0xa0] sm:$0xff]
      %v1319 = vld [vmem:[%s1297 + $0xa8] sm:$0xff]
      %v1320 = vld [vmem:[%s1297 + $0xb0] sm:$0xff]
      %v1321 = vld [vmem:[%s1297 + $0xb8] sm:$0xff]
      %v1322 = vld [vmem:[%s1297 + $0xc0] sm:$0xff]
      %v1323 = vld [vmem:[%s1297 + $0xc8] sm:$0xff]
      %v1324 = vld [vmem:[%s1297 + $0xd0] sm:$0xff]
      %v1325 = vld [vmem:[%s1297 + $0xd8] sm:$0xff]
      %v1326 = vld [vmem:[%s1297 + $0xe0] sm:$0xff]
      %v1327 = vld [vmem:[%s1297 + $0xe8] sm:$0xff]
      %v1328 = vld [vmem:[%s1297 + $0xf0] sm:$0xff]
      %v1329 = vld [vmem:[%s1297 + $0xf8] sm:$0xff]
      %v1331 = vsel %vm273, %v1298, 0
      %v1334 = vsel %vm273, %v1299, 0
      %v1337 = vsel %vm273, %v1300, 0
      %v1340 = vsel %vm273, %v1301, 0
      %v1343 = vsel %vm273, %v1302, 0
      %v1346 = vsel %vm273, %v1303, 0
      %v1349 = vsel %vm273, %v1304, 0
      %v1352 = vsel %vm273, %v1305, 0
      %v1355 = vsel %vm273, %v1306, 0
      %v1358 = vsel %vm273, %v1307, 0
      %v1361 = vsel %vm273, %v1308, 0
      %v1364 = vsel %vm273, %v1309, 0
      %v1367 = vsel %vm273, %v1310, 0
      %v1370 = vsel %vm273, %v1311, 0
      %v1373 = vsel %vm273, %v1312, 0
      %v1376 = vsel %vm273, %v1313, 0
      %v1379 = vsel %vm273, %v1314, 0
      %v1382 = vsel %vm273, %v1315, 0
      %v1385 = vsel %vm273, %v1316, 0
      %v1388 = vsel %vm273, %v1317, 0
      %v1391 = vsel %vm273, %v1318, 0
      %v1394 = vsel %vm273, %v1319, 0
      %v1397 = vsel %vm273, %v1320, 0
      %v1400 = vsel %vm273, %v1321, 0
      %v1403 = vsel %vm273, %v1322, 0
      %v1406 = vsel %vm273, %v1323, 0
      %v1409 = vsel %vm273, %v1324, 0
      %v1412 = vsel %vm273, %v1325, 0
      %v1415 = vsel %vm273, %v1326, 0
      %v1418 = vsel %vm273, %v1327, 0
      %v1421 = vsel %vm273, %v1328, 0
      %v1424 = vsel %vm273, %v1329, 0
      %1426 = vmatpush.msra.mxu0 0.0
      %1427 = vmatpush.msra.mxu0 0.0
      %1428 = vmatpush.msra.mxu0 0.0
      %1429 = vmatpush.msra.mxu0 0.0
      %1430 = vmatpush.msra.mxu0 0.0
      %1431 = vmatpush.msra.mxu0 0.0
      %1432 = vmatpush.msra.mxu0 0.0
      %1433 = vmatpush.msra.mxu0 0.0
      %1434 = vmatpush.msra.mxu0 0.0
      %1435 = vmatpush.msra.mxu0 0.0
      %1436 = vmatpush.msra.mxu0 0.0
      %1437 = vmatpush.msra.mxu0 0.0
      %1438 = vmatpush.msra.mxu0 0.0
      %1439 = vmatpush.msra.mxu0 0.0
      %1440 = vmatpush.msra.mxu0 %v372
      %1441 = vmatpush.msra.mxu0 %v271
      %1442 = vmatmul.f32.gmra.mxu0 %v1331
      %v1443 = vpop.f32.mrf.mxu0
      %v1444 = vadd.f32 0.0, %v1443
      %1445 = vmatmul.f32.gmra.mxu0 %v1334
      %v1446 = vpop.f32.mrf.mxu0
      %v1447 = vadd.f32 0.0, %v1446
      %1448 = vmatmul.f32.gmra.mxu0 %v1337
      %v1449 = vpop.f32.mrf.mxu0
      %v1450 = vadd.f32 0.0, %v1449
      %1451 = vmatmul.f32.gmra.mxu0 %v1340
      %v1452 = vpop.f32.mrf.mxu0
      %v1453 = vadd.f32 0.0, %v1452
      %1454 = vmatmul.f32.gmra.mxu0 %v1343
      %v1455 = vpop.f32.mrf.mxu0
      %v1456 = vadd.f32 0.0, %v1455
      %1457 = vmatmul.f32.gmra.mxu0 %v1346
      %v1458 = vpop.f32.mrf.mxu0
      %v1459 = vadd.f32 0.0, %v1458
      %1460 = vmatmul.f32.gmra.mxu0 %v1349
      %v1461 = vpop.f32.mrf.mxu0
      %v1462 = vadd.f32 0.0, %v1461
      %1463 = vmatmul.f32.gmra.mxu0 %v1352
      %v1464 = vpop.f32.mrf.mxu0
      %v1465 = vadd.f32 0.0, %v1464
      %1466 = vmatmul.f32.gmra.mxu0 %v1355
      %v1467 = vpop.f32.mrf.mxu0
      %v1468 = vadd.f32 0.0, %v1467
      %1469 = vmatmul.f32.gmra.mxu0 %v1358
      %v1470 = vpop.f32.mrf.mxu0
      %v1471 = vadd.f32 0.0, %v1470
      %1472 = vmatmul.f32.gmra.mxu0 %v1361
      %v1473 = vpop.f32.mrf.mxu0
      %v1474 = vadd.f32 0.0, %v1473
      %1475 = vmatmul.f32.gmra.mxu0 %v1364
      %v1476 = vpop.f32.mrf.mxu0
      %v1477 = vadd.f32 0.0, %v1476
      %1478 = vmatmul.f32.gmra.mxu0 %v1367
      %v1479 = vpop.f32.mrf.mxu0
      %v1480 = vadd.f32 0.0, %v1479
      %1481 = vmatmul.f32.gmra.mxu0 %v1370
      %v1482 = vpop.f32.mrf.mxu0
      %v1483 = vadd.f32 0.0, %v1482
      %1484 = vmatmul.f32.gmra.mxu0 %v1373
      %v1485 = vpop.f32.mrf.mxu0
      %v1486 = vadd.f32 0.0, %v1485
      %1487 = vmatmul.f32.gmra.mxu0 %v1376
      %v1488 = vpop.f32.mrf.mxu0
      %v1489 = vadd.f32 0.0, %v1488
      %1490 = vmatmul.f32.gmra.mxu0 %v1379
      %v1491 = vpop.f32.mrf.mxu0
      %v1492 = vadd.f32 0.0, %v1491
      %1493 = vmatmul.f32.gmra.mxu0 %v1382
      %v1494 = vpop.f32.mrf.mxu0
      %v1495 = vadd.f32 0.0, %v1494
      %1496 = vmatmul.f32.gmra.mxu0 %v1385
      %v1497 = vpop.f32.mrf.mxu0
      %v1498 = vadd.f32 0.0, %v1497
      %1499 = vmatmul.f32.gmra.mxu0 %v1388
      %v1500 = vpop.f32.mrf.mxu0
      %v1501 = vadd.f32 0.0, %v1500
      %1502 = vmatmul.f32.gmra.mxu0 %v1391
      %v1503 = vpop.f32.mrf.mxu0
      %v1504 = vadd.f32 0.0, %v1503
      %1505 = vmatmul.f32.gmra.mxu0 %v1394
      %v1506 = vpop.f32.mrf.mxu0
      %v1507 = vadd.f32 0.0, %v1506
      %1508 = vmatmul.f32.gmra.mxu0 %v1397
      %v1509 = vpop.f32.mrf.mxu0
      %v1510 = vadd.f32 0.0, %v1509
      %1511 = vmatmul.f32.gmra.mxu0 %v1400
      %v1512 = vpop.f32.mrf.mxu0
      %v1513 = vadd.f32 0.0, %v1512
      %1514 = vmatmul.f32.gmra.mxu0 %v1403
      %v1515 = vpop.f32.mrf.mxu0
      %v1516 = vadd.f32 0.0, %v1515
      %1517 = vmatmul.f32.gmra.mxu0 %v1406
      %v1518 = vpop.f32.mrf.mxu0
      %v1519 = vadd.f32 0.0, %v1518
      %1520 = vmatmul.f32.gmra.mxu0 %v1409
      %v1521 = vpop.f32.mrf.mxu0
      %v1522 = vadd.f32 0.0, %v1521
      %1523 = vmatmul.f32.gmra.mxu0 %v1412
      %v1524 = vpop.f32.mrf.mxu0
      %v1525 = vadd.f32 0.0, %v1524
      %1526 = vmatmul.f32.gmra.mxu0 %v1415
      %v1527 = vpop.f32.mrf.mxu0
      %v1528 = vadd.f32 0.0, %v1527
      %1529 = vmatmul.f32.gmra.mxu0 %v1418
      %v1530 = vpop.f32.mrf.mxu0
      %v1531 = vadd.f32 0.0, %v1530
      %1532 = vmatmul.f32.gmra.mxu0 %v1421
      %v1533 = vpop.f32.mrf.mxu0
      %v1534 = vadd.f32 0.0, %v1533
      %1535 = vmatmul.f32.gmra.mxu0 %v1424
      %v1536 = vpop.f32.mrf.mxu0
      %v1537 = vadd.f32 0.0, %v1536
      %1538 = vdwg.mxu0
      %v1539 = vmul.f32 %v1444, %v488
      %v1540 = vmul.f32 %v1447, %v488
      %v1541 = vmul.f32 %v1450, %v488
      %v1542 = vmul.f32 %v1453, %v488
      %v1543 = vmul.f32 %v1456, %v488
      %v1544 = vmul.f32 %v1459, %v488
      %v1545 = vmul.f32 %v1462, %v488
      %v1546 = vmul.f32 %v1465, %v488
      %v1547 = vmul.f32 %v1468, %v488
      %v1548 = vmul.f32 %v1471, %v488
      %v1549 = vmul.f32 %v1474, %v488
      %v1550 = vmul.f32 %v1477, %v488
      %v1551 = vmul.f32 %v1480, %v488
      %v1552 = vmul.f32 %v1483, %v488
      %v1553 = vmul.f32 %v1486, %v488
      %v1554 = vmul.f32 %v1489, %v488
      %v1555 = vmul.f32 %v1492, %v488
      %v1556 = vmul.f32 %v1495, %v488
      %v1557 = vmul.f32 %v1498, %v488
      %v1558 = vmul.f32 %v1501, %v488
      %v1559 = vmul.f32 %v1504, %v488
      %v1560 = vmul.f32 %v1507, %v488
      %v1561 = vmul.f32 %v1510, %v488
      %v1562 = vmul.f32 %v1513, %v488
      %v1563 = vmul.f32 %v1516, %v488
      %v1564 = vmul.f32 %v1519, %v488
      %v1565 = vmul.f32 %v1522, %v488
      %v1566 = vmul.f32 %v1525, %v488
      %v1567 = vmul.f32 %v1528, %v488
      %v1568 = vmul.f32 %v1531, %v488
      %v1569 = vmul.f32 %v1534, %v488
      %v1570 = vmul.f32 %v1537, %v488
      %v1571 = vadd.f32 %v1539, %v523
      %v1572 = vadd.f32 %v1540, %v523
      %v1573 = vadd.f32 %v1541, %v523
      %v1574 = vadd.f32 %v1542, %v523
      %v1575 = vadd.f32 %v1543, %v523
      %v1576 = vadd.f32 %v1544, %v523
      %v1577 = vadd.f32 %v1545, %v523
      %v1578 = vadd.f32 %v1546, %v523
      %v1579 = vadd.f32 %v1547, %v523
      %v1580 = vadd.f32 %v1548, %v523
      %v1581 = vadd.f32 %v1549, %v523
      %v1582 = vadd.f32 %v1550, %v523
      %v1583 = vadd.f32 %v1551, %v523
      %v1584 = vadd.f32 %v1552, %v523
      %v1585 = vadd.f32 %v1553, %v523
      %v1586 = vadd.f32 %v1554, %v523
      %v1587 = vadd.f32 %v1555, %v523
      %v1588 = vadd.f32 %v1556, %v523
      %v1589 = vadd.f32 %v1557, %v523
      %v1590 = vadd.f32 %v1558, %v523
      %v1591 = vadd.f32 %v1559, %v523
      %v1592 = vadd.f32 %v1560, %v523
      %v1593 = vadd.f32 %v1561, %v523
      %v1594 = vadd.f32 %v1562, %v523
      %v1595 = vadd.f32 %v1563, %v523
      %v1596 = vadd.f32 %v1564, %v523
      %v1597 = vadd.f32 %v1565, %v523
      %v1598 = vadd.f32 %v1566, %v523
      %v1599 = vadd.f32 %v1567, %v523
      %v1600 = vadd.f32 %v1568, %v523
      %v1601 = vadd.f32 %v1569, %v523
      %v1602 = vadd.f32 %v1570, %v523
      %v1603 = vmax.f32 %v1571, 0.0
      %v1604 = vmax.f32 %v1572, 0.0
      %v1605 = vmax.f32 %v1573, 0.0
      %v1606 = vmax.f32 %v1574, 0.0
      %v1607 = vmax.f32 %v1575, 0.0
      %v1608 = vmax.f32 %v1576, 0.0
      %v1609 = vmax.f32 %v1577, 0.0
      %v1610 = vmax.f32 %v1578, 0.0
      %v1611 = vmax.f32 %v1579, 0.0
      %v1612 = vmax.f32 %v1580, 0.0
      %v1613 = vmax.f32 %v1581, 0.0
      %v1614 = vmax.f32 %v1582, 0.0
      %v1615 = vmax.f32 %v1583, 0.0
      %v1616 = vmax.f32 %v1584, 0.0
      %v1617 = vmax.f32 %v1585, 0.0
      %v1618 = vmax.f32 %v1586, 0.0
      %v1619 = vmax.f32 %v1587, 0.0
      %v1620 = vmax.f32 %v1588, 0.0
      %v1621 = vmax.f32 %v1589, 0.0
      %v1622 = vmax.f32 %v1590, 0.0
      %v1623 = vmax.f32 %v1591, 0.0
      %v1624 = vmax.f32 %v1592, 0.0
      %v1625 = vmax.f32 %v1593, 0.0
      %v1626 = vmax.f32 %v1594, 0.0
      %v1627 = vmax.f32 %v1595, 0.0
      %v1628 = vmax.f32 %v1596, 0.0
      %v1629 = vmax.f32 %v1597, 0.0
      %v1630 = vmax.f32 %v1598, 0.0
      %v1631 = vmax.f32 %v1599, 0.0
      %v1632 = vmax.f32 %v1600, 0.0
      %v1633 = vmax.f32 %v1601, 0.0
      %v1634 = vmax.f32 %v1602, 0.0
      %v1635 = vmax.f32 %v1265, %v1603
      %v1636 = vmax.f32 %v1266, %v1604
      %v1637 = vmax.f32 %v1267, %v1605
      %v1638 = vmax.f32 %v1268, %v1606
      %v1639 = vmax.f32 %v1269, %v1607
      %v1640 = vmax.f32 %v1270, %v1608
      %v1641 = vmax.f32 %v1271, %v1609
      %v1642 = vmax.f32 %v1272, %v1610
      %v1643 = vmax.f32 %v1273, %v1611
      %v1644 = vmax.f32 %v1274, %v1612
      %v1645 = vmax.f32 %v1275, %v1613
      %v1646 = vmax.f32 %v1276, %v1614
      %v1647 = vmax.f32 %v1277, %v1615
      %v1648 = vmax.f32 %v1278, %v1616
      %v1649 = vmax.f32 %v1279, %v1617
      %v1650 = vmax.f32 %v1280, %v1618
      %v1651 = vmax.f32 %v1281, %v1619
      %v1652 = vmax.f32 %v1282, %v1620
      %v1653 = vmax.f32 %v1283, %v1621
      %v1654 = vmax.f32 %v1284, %v1622
      %v1655 = vmax.f32 %v1285, %v1623
      %v1656 = vmax.f32 %v1286, %v1624
      %v1657 = vmax.f32 %v1287, %v1625
      %v1658 = vmax.f32 %v1288, %v1626
      %v1659 = vmax.f32 %v1289, %v1627
      %v1660 = vmax.f32 %v1290, %v1628
      %v1661 = vmax.f32 %v1291, %v1629
      %v1662 = vmax.f32 %v1292, %v1630
      %v1663 = vmax.f32 %v1293, %v1631
      %v1664 = vmax.f32 %v1294, %v1632
      %v1665 = vmax.f32 %v1295, %v1633
      %v1666 = vmax.f32 %v1296, %v1634
      %v1667 = vmax.f32 %v927, %v1635
      %v1668 = vmax.f32 %v928, %v1636
      %v1669 = vmax.f32 %v929, %v1637
      %v1670 = vmax.f32 %v930, %v1638
      %v1671 = vmax.f32 %v931, %v1639
      %v1672 = vmax.f32 %v932, %v1640
      %v1673 = vmax.f32 %v933, %v1641
      %v1674 = vmax.f32 %v934, %v1642
      %v1675 = vmax.f32 %v935, %v1643
      %v1676 = vmax.f32 %v936, %v1644
      %v1677 = vmax.f32 %v937, %v1645
      %v1678 = vmax.f32 %v938, %v1646
      %v1679 = vmax.f32 %v939, %v1647
      %v1680 = vmax.f32 %v940, %v1648
      %v1681 = vmax.f32 %v941, %v1649
      %v1682 = vmax.f32 %v942, %v1650
      %v1683 = vmax.f32 %v943, %v1651
      %v1684 = vmax.f32 %v944, %v1652
      %v1685 = vmax.f32 %v945, %v1653
      %v1686 = vmax.f32 %v946, %v1654
      %v1687 = vmax.f32 %v947, %v1655
      %v1688 = vmax.f32 %v948, %v1656
      %v1689 = vmax.f32 %v949, %v1657
      %v1690 = vmax.f32 %v950, %v1658
      %v1691 = vmax.f32 %v951, %v1659
      %v1692 = vmax.f32 %v952, %v1660
      %v1693 = vmax.f32 %v953, %v1661
      %v1694 = vmax.f32 %v954, %v1662
      %v1695 = vmax.f32 %v955, %v1663
      %v1696 = vmax.f32 %v956, %v1664
      %v1697 = vmax.f32 %v957, %v1665
      %v1698 = vmax.f32 %v958, %v1666
      %vm1699 = vcmask 64512
      %1700 = vst.msk [vmem:[%s235] sm:$0xff] %vm1699, %v1667
      %1701 = vst.msk [vmem:[%s235 + $0x8] sm:$0xff] %vm1699, %v1668
      %1702 = vst.msk [vmem:[%s235 + $0x10] sm:$0xff] %vm1699, %v1669
      %1703 = vst.msk [vmem:[%s235 + $0x18] sm:$0xff] %vm1699, %v1670
      %1704 = vst.msk [vmem:[%s235 + $0x20] sm:$0xff] %vm1699, %v1671
      %1705 = vst.msk [vmem:[%s235 + $0x28] sm:$0xff] %vm1699, %v1672
      %1706 = vst.msk [vmem:[%s235 + $0x30] sm:$0xff] %vm1699, %v1673
      %1707 = vst.msk [vmem:[%s235 + $0x38] sm:$0xff] %vm1699, %v1674
      %1708 = vst.msk [vmem:[%s235 + $0x40] sm:$0xff] %vm1699, %v1675
      %1709 = vst.msk [vmem:[%s235 + $0x48] sm:$0xff] %vm1699, %v1676
      %1710 = vst.msk [vmem:[%s235 + $0x50] sm:$0xff] %vm1699, %v1677
      %1711 = vst.msk [vmem:[%s235 + $0x58] sm:$0xff] %vm1699, %v1678
      %1712 = vst.msk [vmem:[%s235 + $0x60] sm:$0xff] %vm1699, %v1679
      %1713 = vst.msk [vmem:[%s235 + $0x68] sm:$0xff] %vm1699, %v1680
      %1714 = vst.msk [vmem:[%s235 + $0x70] sm:$0xff] %vm1699, %v1681
      %1715 = vst.msk [vmem:[%s235 + $0x78] sm:$0xff] %vm1699, %v1682
      %1716 = vst.msk [vmem:[%s235 + $0x80] sm:$0xff] %vm1699, %v1683
      %1717 = vst.msk [vmem:[%s235 + $0x88] sm:$0xff] %vm1699, %v1684
      %1718 = vst.msk [vmem:[%s235 + $0x90] sm:$0xff] %vm1699, %v1685
      %1719 = vst.msk [vmem:[%s235 + $0x98] sm:$0xff] %vm1699, %v1686
      %1720 = vst.msk [vmem:[%s235 + $0xa0] sm:$0xff] %vm1699, %v1687
      %1721 = vst.msk [vmem:[%s235 + $0xa8] sm:$0xff] %vm1699, %v1688
      %1722 = vst.msk [vmem:[%s235 + $0xb0] sm:$0xff] %vm1699, %v1689
      %1723 = vst.msk [vmem:[%s235 + $0xb8] sm:$0xff] %vm1699, %v1690
      %1724 = vst.msk [vmem:[%s235 + $0xc0] sm:$0xff] %vm1699, %v1691
      %1725 = vst.msk [vmem:[%s235 + $0xc8] sm:$0xff] %vm1699, %v1692
      %1726 = vst.msk [vmem:[%s235 + $0xd0] sm:$0xff] %vm1699, %v1693
      %1727 = vst.msk [vmem:[%s235 + $0xd8] sm:$0xff] %vm1699, %v1694
      %1728 = vst.msk [vmem:[%s235 + $0xe0] sm:$0xff] %vm1699, %v1695
      %1729 = vst.msk [vmem:[%s235 + $0xe8] sm:$0xff] %vm1699, %v1696
      %1730 = vst.msk [vmem:[%s235 + $0xf0] sm:$0xff] %vm1699, %v1697
      %1731 = vst.msk [vmem:[%s235 + $0xf8] sm:$0xff] %vm1699, %v1698
      %s1732 = smul.u32 32, %s20
      %p1733 = scmp.lt.s32.totalorder %s19, 7
      %s1734 = scalar_select %p1733, %s19, 7
      %p1735 = scmp.lt.s32.totalorder %s1732, 31
      %s1736 = scalar_select %p1735, %s1732, 31
      %s1737 = smul.addr %s1734, 32
      %s1738 = sadd.s32 %s1736, %s1737
      %s1739 = smul.addr %s1738, 8
      %s1740 = scalar_lea.vmem %s4, %s1739
      // Predicated region
      $region37: #{_lambda_.7} parent=35 // pred_check
        %p1741 = pneg %p138
      $region38: #{_lambda_.7} parent=35 // pred_check_branch
        %1743 = sbr.rel (%p1741) target = $region40
      $region39: #{_lambda_.7} parent=35 // pred_region
        %s1744 = smul.u32 32, %s20
      $region40: #{_lambda_.7} parent=35 // pred_fallthru
        _
    $region36: #{_lambda_.7} parent=5 // pred_fallthru
      _
    %p1745 = scmp.le.s32.totalorder 2, %s10
    // Predicated region
    $region41: #{_lambda_.7} parent=5 // pred_check
      %p1746 = pneg %p1745
    $region42: #{_lambda_.7} parent=5 // pred_check_branch
      %1748 = sbr.rel (%p1746) target = $region44
    $region43: #{_lambda_.7} parent=5 // pred_region
      %s1749 = ssub.s32 %s10, 2
      // Predicated region
      $region45: #{_lambda_.7} parent=43 // pred_check
        %p1750 = pneg %p144
      $region46: #{_lambda_.7} parent=43 // pred_check_branch
        %1752 = sbr.rel (%p1750) target = $region48
      $region47: #{_lambda_.7} parent=43 // pred_region
        %s1753 = smul.u32 32, %s22
        %p1754 = scmp.lt.s32.totalorder %s21, 7
        %s1755 = scalar_select %p1754, %s21, 7
        %p1756 = scmp.lt.s32.totalorder %s1753, 31
        %s1757 = scalar_select %p1756, %s1753, 31
        %s1758 = smul.addr %s1755, 32
        %s1759 = sadd.s32 %s1757, %s1758
        %s1760 = smul.addr %s1759, 8
        %s1761 = scalar_lea.vmem %s4, %s1760
      $region48: #{_lambda_.7} parent=43 // pred_fallthru
        _
    $region44: #{_lambda_.7} parent=5 // pred_fallthru
      _
  $region6: #{_lambda_.7} parent=0 // loop_footer
    %s14 = sadd.s32 1, %s10
  $region7: #{_lambda_.7} parent=0 // loop_footer_branch
    %9 = sbr.rel target = $region3
  $region8: #{_lambda_.7} parent=0 // loop_exit
    _

// kernel: _lambda_.8
$region0: #{_lambda_.8}
  #allocation0 [shape = 'u32[]', space=smem, size = 0x4, offset = 0x4, fixed_abs, tag = 'smem constant byte address 0x4 - core index']
  #allocation1 [shape = 'u32[72,128]{1,0:T(1,128)}', space=vmem, size = 0x9000, scoped, tag = 'internal scratch']
  %s0 = inlined_call_operand.vmem [shape: f32[8,4,64,72], index: 0, kind: input, shape index: {}]
  %s1 = inlined_call_operand.vmem [shape: f32[72,16], index: 1, kind: input, shape index: {}]
  %s2 = inlined_call_operand.vmem [shape: f32[1,16], index: 2, kind: input, shape index: {}]
  %s3 = inlined_call_operand.vmem [shape: f32[1,16], index: 3, kind: input, shape index: {}]
  %s4 = inlined_call_operand.vmem [shape: f32[8,64,16], index: 4, kind: output, shape index: {}]
  %s5 = sld [smem:[#allocation0]]
  $region49: #{_lambda_.8} parent=0
    _
  %s7 = ssub.s32 1, %s5
  %s8 = scalar_select 0, %s7, %s5
  loop: start=0, step=1, limit=10
  $region2: #{_lambda_.8} parent=0 // loop_pre_header
    _
  $region3: #{_lambda_.8} parent=0 // loop_header
    %s10 = sphi 0, %s14
    %p11 = scmp.ge.s32.totalorder %s10, 10
    %s17 = sphi 0, %s29
    %s18 = sphi 0, %s25
    %s19 = sphi 0, %s17
    %s20 = sphi 0, %s18
    %s21 = sphi 0, %s19
    %s22 = sphi 0, %s20
    %s34 = sphi 0, %s36
    %s37 = sphi 0, %s34
    %s38 = sphi 0, %s37
    %s54 = sphi 0, %s38
    %s58 = sphi 0, %s58
    %s60 = sphi 0, %s58
    %s61 = sphi 0, %s60
    %s75 = sphi 0, %s61
    %s79 = sphi 0, %s79
    %s81 = sphi 0, %s79
    %s82 = sphi 0, %s81
    %s96 = sphi 0, %s82
    %s100 = sphi 0, %s100
    %s102 = sphi 0, %s100
    %s103 = sphi 0, %s102
    %s117 = sphi 0, %s103
    %s125 = sphi 0, %s127
    %s128 = sphi 0, %s125
    %s129 = sphi 0, %s128
    %s145 = sphi 0, %s129
  $region4: #{_lambda_.8} parent=0 // loop_header_branch
    %13 = sbr.rel (%p11) target = $region8
  $region5: #{_lambda_.8} parent=0 // loop_body
    %s15 = ssub.s32 %s10, 1
    %s16 = ssub.s32 %s10, 2
    %s23 = sadd.s32 1, %s18
    %p24 = scmp.ge.s32.totalorder %s23, 1
    %s25 = scalar_select %p24, 0, %s23
    %s26 = sadd.s32 1, %s17
    %s27 = scalar_select %p24, %s26, %s17
    %p28 = scmp.ge.s32.totalorder %s27, 8
    %s29 = scalar_select %p28, 0, %s27
    %s30 = ssub.s32 %s17, %s29
    %s31 = ssub.s32 %s18, %s25
    %s32 = sor.u32 %s30, %s31
    %p33 = scmp.eq.s32.totalorder %s32, 0
    %s35 = sadd.s32 %s34, 1
    %s36 = scalar_select %p33, %s34, %s35
    %p39 = pneg %p33
    %p40 = scmp.eq.s32.totalorder %s10, 7
    %p41 = por %p39, %p40
    %p42 = scmp.ne.s32.totalorder %s34, %s37
    %p43 = scmp.eq.s32.totalorder %s10, 0
    %p44 = por %p42, %p43
    %p45 = scmp.ne.s32.totalorder %s34, %s37
    %p46 = scmp.eq.s32.totalorder %s15, 7
    %p47 = por %p45, %p46
    %p48 = scmp.ne.s32.totalorder %s37, %s38
    %p49 = scmp.eq.s32.totalorder %s15, 0
    %p50 = por %p48, %p49
    %p51 = scmp.ne.s32.totalorder %s37, %s38
    %p52 = scmp.eq.s32.totalorder %s16, 7
    %p53 = por %p51, %p52
    %p55 = scmp.ne.s32.totalorder %s38, %s54
    %p56 = scmp.eq.s32.totalorder %s16, 0
    %p57 = por %p55, %p56
    %s59 = sadd.s32 %s58, 1
    %p62 = scmp.eq.s32.totalorder %s10, 7
    %p63 = scmp.ne.s32.totalorder %s58, %s60
    %p64 = scmp.eq.s32.totalorder %s10, 0
    %p65 = por %p63, %p64
    %p66 = scmp.ne.s32.totalorder %s58, %s60
    %p67 = scmp.eq.s32.totalorder %s15, 7
    %p68 = por %p66, %p67
    %p69 = scmp.ne.s32.totalorder %s60, %s61
    %p70 = scmp.eq.s32.totalorder %s15, 0
    %p71 = por %p69, %p70
    %p72 = scmp.ne.s32.totalorder %s60, %s61
    %p73 = scmp.eq.s32.totalorder %s16, 7
    %p74 = por %p72, %p73
    %p76 = scmp.ne.s32.totalorder %s61, %s75
    %p77 = scmp.eq.s32.totalorder %s16, 0
    %p78 = por %p76, %p77
    %s80 = sadd.s32 %s79, 1
    %p83 = scmp.eq.s32.totalorder %s10, 7
    %p84 = scmp.ne.s32.totalorder %s79, %s81
    %p85 = scmp.eq.s32.totalorder %s10, 0
    %p86 = por %p84, %p85
    %p87 = scmp.ne.s32.totalorder %s79, %s81
    %p88 = scmp.eq.s32.totalorder %s15, 7
    %p89 = por %p87, %p88
    %p90 = scmp.ne.s32.totalorder %s81, %s82
    %p91 = scmp.eq.s32.totalorder %s15, 0
    %p92 = por %p90, %p91
    %p93 = scmp.ne.s32.totalorder %s81, %s82
    %p94 = scmp.eq.s32.totalorder %s16, 7
    %p95 = por %p93, %p94
    %p97 = scmp.ne.s32.totalorder %s82, %s96
    %p98 = scmp.eq.s32.totalorder %s16, 0
    %p99 = por %p97, %p98
    %s101 = sadd.s32 %s100, 1
    %p104 = scmp.eq.s32.totalorder %s10, 7
    %p105 = scmp.ne.s32.totalorder %s100, %s102
    %p106 = scmp.eq.s32.totalorder %s10, 0
    %p107 = por %p105, %p106
    %p108 = scmp.ne.s32.totalorder %s100, %s102
    %p109 = scmp.eq.s32.totalorder %s15, 7
    %p110 = por %p108, %p109
    %p111 = scmp.ne.s32.totalorder %s102, %s103
    %p112 = scmp.eq.s32.totalorder %s15, 0
    %p113 = por %p111, %p112
    %p114 = scmp.ne.s32.totalorder %s102, %s103
    %p115 = scmp.eq.s32.totalorder %s16, 7
    %p116 = por %p114, %p115
    %p118 = scmp.ne.s32.totalorder %s103, %s117
    %p119 = scmp.eq.s32.totalorder %s16, 0
    %p120 = por %p118, %p119
    %s121 = ssub.s32 %s17, %s29
    %s122 = ssub.s32 %s18, %s25
    %s123 = sor.u32 %s121, %s122
    %p124 = scmp.eq.s32.totalorder %s123, 0
    %s126 = sadd.s32 %s125, 1
    %s127 = scalar_select %p124, %s125, %s126
    %p130 = pneg %p124
    %p131 = scmp.eq.s32.totalorder %s10, 7
    %p132 = por %p130, %p131
    %p133 = scmp.ne.s32.totalorder %s125, %s128
    %p134 = scmp.eq.s32.totalorder %s10, 0
    %p135 = por %p133, %p134
    %p136 = scmp.ne.s32.totalorder %s125, %s128
    %p137 = scmp.eq.s32.totalorder %s15, 7
    %p138 = por %p136, %p137
    %p139 = scmp.ne.s32.totalorder %s128, %s129
    %p140 = scmp.eq.s32.totalorder %s15, 0
    %p141 = por %p139, %p140
    %p142 = scmp.ne.s32.totalorder %s128, %s129
    %p143 = scmp.eq.s32.totalorder %s16, 7
    %p144 = por %p142, %p143
    %p146 = scmp.ne.s32.totalorder %s129, %s145
    %p147 = scmp.eq.s32.totalorder %s16, 0
    %p148 = por %p146, %p147
    %p149 = scmp.le.s32.totalorder 1, %s10
    %p150 = scmp.lt.s32.totalorder %s10, 9
    %p151 = pnand %p149, %p150
    %p152 = pneg %p151
    // Predicated region
    $region9: #{_lambda_.8} parent=5 // pred_check
      _
    $region10: #{_lambda_.8} parent=5 // pred_check_branch
      %154 = sbr.rel (%p151) target = $region12
    $region11: #{_lambda_.8} parent=5 // pred_region
      %s155 = ssub.s32 %s10, 1
      // Predicated region
      $region13: #{_lambda_.8} parent=11 // pred_check
        %p156 = pneg %p71
      $region14: #{_lambda_.8} parent=11 // pred_check_branch
        %158 = sbr.rel (%p156) target = $region16
      $region15: #{_lambda_.8} parent=11 // pred_region
        _
      $region16: #{_lambda_.8} parent=11 // pred_fallthru
        _
      // Predicated region
      $region17: #{_lambda_.8} parent=11 // pred_check
        %p159 = pneg %p92
      $region18: #{_lambda_.8} parent=11 // pred_check_branch
        %161 = sbr.rel (%p159) target = $region20
      $region19: #{_lambda_.8} parent=11 // pred_region
        _
      $region20: #{_lambda_.8} parent=11 // pred_fallthru
        _
      // Predicated region
      $region21: #{_lambda_.8} parent=11 // pred_check
        %p162 = pneg %p113
      $region22: #{_lambda_.8} parent=11 // pred_check_branch
        %164 = sbr.rel (%p162) target = $region24
      $region23: #{_lambda_.8} parent=11 // pred_region
        _
      $region24: #{_lambda_.8} parent=11 // pred_fallthru
        _
    $region12: #{_lambda_.8} parent=5 // pred_fallthru
      _
    %p165 = scmp.lt.s32.totalorder %s10, 8
    // Predicated region
    $region25: #{_lambda_.8} parent=5 // pred_check
      %p166 = pneg %p165
    $region26: #{_lambda_.8} parent=5 // pred_check_branch
      %168 = sbr.rel (%p166) target = $region28
    $region27: #{_lambda_.8} parent=5 // pred_region
      // Predicated region
      $region29: #{_lambda_.8} parent=27 // pred_check
        %p169 = pneg %p44
      $region30: #{_lambda_.8} parent=27 // pred_check_branch
        %171 = sbr.rel (%p169) target = $region32
      $region31: #{_lambda_.8} parent=27 // pred_region
        %s172 = smul.u32 8, %s18
        %p173 = scmp.lt.s32.totalorder %s17, 7
        %s174 = scalar_select %p173, %s17, 7
        %p175 = scmp.lt.s32.totalorder %s172, 7
        %s176 = scalar_select %p175, %s172, 7
        %s177 = smul.addr %s174, 32
        %s178 = sadd.s32 %s176, %s177
        %s179 = smul.addr %s178, 8
        %s180 = scalar_lea.vmem %s0, %s179
        %s181 = smul.u32 8, %s18
      $region32: #{_lambda_.8} parent=27 // pred_fallthru
        _
    $region28: #{_lambda_.8} parent=5 // pred_fallthru
      _
    %p182 = scmp.le.s32.totalorder 1, %s10
    %p183 = scmp.lt.s32.totalorder %s10, 9
    %p184 = pnand %p182, %p183
    %p185 = pneg %p184
    // Predicated region
    $region33: #{_lambda_.8} parent=5 // pred_check
      _
    $region34: #{_lambda_.8} parent=5 // pred_check_branch
      %187 = sbr.rel (%p184) target = $region36
    $region35: #{_lambda_.8} parent=5 // pred_region
      %s188 = ssub.s32 %s10, 1
      %s189 = smul.u32 8, %s20
      %p190 = scmp.lt.s32.totalorder %s19, 7
      %s191 = scalar_select %p190, %s19, 7
      %p192 = scmp.lt.s32.totalorder %s189, 7
      %s193 = scalar_select %p192, %s189, 7
      %s194 = smul.addr %s191, 32
      %s195 = sadd.s32 %s193, %s194
      %s196 = smul.addr %s195, 8
      %s197 = scalar_lea.vmem %s0, %s196
      %p198 = pneg %p50
      %p199 = pneg %p47
      %p200 = pneg %p71
      %p201 = pneg %p68
      %p202 = pneg %p92
      %p203 = pneg %p89
      %p204 = pneg %p113
      %p205 = pneg %p110
      %p206 = pneg %p141
      %p207 = pneg %p138
      %s208 = smul.u32 8, %s20
      %p209 = scmp.lt.s32.totalorder %s19, 7
      %s210 = scalar_select %p209, %s19, 7
      %p211 = scmp.lt.s32.totalorder %s208, 7
      %s212 = scalar_select %p211, %s208, 7
      %s213 = smul.addr %s210, 8
      %s214 = sadd.s32 %s212, %s213
      %s215 = smul.addr %s214, 8
      %s216 = scalar_lea.vmem %s4, %s215
      %s217 = smul.u32 8, %s20
      %p218 = scmp.lt.s32.totalorder %s19, 7
      %s219 = scalar_select %p218, %s19, 7
      %p220 = scmp.lt.s32.totalorder %s217, 7
      %s221 = scalar_select %p220, %s217, 7
      %s222 = smul.addr %s219, 32
      %s223 = sadd.s32 %s221, %s222
      %s224 = smul.addr %s223, 8
      %s225 = scalar_lea.vmem %s0, %s224
      %s226 = smul.u32 8, %s20
      %s227 = smul.u32 8, %s20
      %p228 = scmp.lt.s32.totalorder %s19, 7
      %s229 = scalar_select %p228, %s19, 7
      %p230 = scmp.lt.s32.totalorder %s227, 7
      %s231 = scalar_select %p230, %s227, 7
      %s232 = smul.addr %s229, 8
      %s233 = sadd.s32 %s231, %s232
      %s234 = smul.addr %s233, 8
      %s235 = scalar_lea.vmem %s4, %s234
      %s236 = smul.u32 8, %s20
      %v237 = vld [vmem:[%s2] sm:$0x1]
      %v238 = vld [vmem:[%s3] sm:$0x1]
      %v239 = vld [vmem:[%s225] sm:$0xff]
      %v240 = vld [vmem:[%s225 + $0x8] sm:$0xff]
      %v241 = vld [vmem:[%s225 + $0x10] sm:$0xff]
      %v242 = vld [vmem:[%s225 + $0x18] sm:$0xff]
      %v243 = vld [vmem:[%s225 + $0x20] sm:$0xff]
      %v244 = vld [vmem:[%s225 + $0x28] sm:$0xff]
      %v245 = vld [vmem:[%s225 + $0x30] sm:$0xff]
      %v246 = vld [vmem:[%s225 + $0x38] sm:$0xff]
      %v247 = vld [vmem:[%s1] sm:$0xff]
      %v248 = vld [vmem:[%s1 + $0x8] sm:$0xff]
      %v249 = vld [vmem:[%s1 + $0x10] sm:$0xff]
      %v250 = vld [vmem:[%s1 + $0x18] sm:$0xff]
      %v251 = vld [vmem:[%s1 + $0x20] sm:$0xff]
      %v252 = vld [vmem:[%s1 + $0x28] sm:$0xff]
      %v253 = vld [vmem:[%s1 + $0x30] sm:$0xff]
      %v254 = vld [vmem:[%s1 + $0x38] sm:$0xff]
      %v255 = vld [vmem:[%s1 + $0x40] sm:$0xff]
      %vm256 = vcmask 588800
      %v258 = vsel %vm256, %v239, 0
      %v261 = vsel %vm256, %v240, 0
      %v264 = vsel %vm256, %v241, 0
      %v267 = vsel %vm256, %v242, 0
      %v270 = vsel %vm256, %v243, 0
      %v273 = vsel %vm256, %v244, 0
      %v276 = vsel %vm256, %v245, 0
      %v279 = vsel %vm256, %v246, 0
      %281 = vmatpush.msra.mxu0 0.0
      %282 = vmatpush.msra.mxu0 0.0
      %283 = vmatpush.msra.mxu0 0.0
      %284 = vmatpush.msra.mxu0 0.0
      %285 = vmatpush.msra.mxu0 0.0
      %286 = vmatpush.msra.mxu0 0.0
      %287 = vmatpush.msra.mxu0 0.0
      %288 = vmatpush.msra.mxu0 %v255
      %289 = vmatpush.msra.mxu0 %v254
      %290 = vmatpush.msra.mxu0 %v253
      %291 = vmatpush.msra.mxu0 %v252
      %292 = vmatpush.msra.mxu0 %v251
      %293 = vmatpush.msra.mxu0 %v250
      %294 = vmatpush.msra.mxu0 %v249
      %295 = vmatpush.msra.mxu0 %v248
      %296 = vmatpush.msra.mxu0 %v247
      %297 = vmatmul.f32.gmra.mxu0 %v258
      %v298 = vpop.f32.mrf.mxu0
      %v299 = vadd.f32 0.0, %v298
      %300 = vmatmul.f32.gmra.mxu0 %v261
      %v301 = vpop.f32.mrf.mxu0
      %v302 = vadd.f32 0.0, %v301
      %303 = vmatmul.f32.gmra.mxu0 %v264
      %v304 = vpop.f32.mrf.mxu0
      %v305 = vadd.f32 0.0, %v304
      %306 = vmatmul.f32.gmra.mxu0 %v267
      %v307 = vpop.f32.mrf.mxu0
      %v308 = vadd.f32 0.0, %v307
      %309 = vmatmul.f32.gmra.mxu0 %v270
      %v310 = vpop.f32.mrf.mxu0
      %v311 = vadd.f32 0.0, %v310
      %312 = vmatmul.f32.gmra.mxu0 %v273
      %v313 = vpop.f32.mrf.mxu0
      %v314 = vadd.f32 0.0, %v313
      %315 = vmatmul.f32.gmra.mxu0 %v276
      %v316 = vpop.f32.mrf.mxu0
      %v317 = vadd.f32 0.0, %v316
      %318 = vmatmul.f32.gmra.mxu0 %v279
      %v319 = vpop.f32.mrf.mxu0
      %v320 = vadd.f32 0.0, %v319
      %321 = vdwg.mxu0
      %v323 = vperm.slane %v237, 0
      %v325 = vmul.f32 %v299, %v323
      %v326 = vmul.f32 %v302, %v323
      %v327 = vmul.f32 %v305, %v323
      %v328 = vmul.f32 %v308, %v323
      %v329 = vmul.f32 %v311, %v323
      %v330 = vmul.f32 %v314, %v323
      %v331 = vmul.f32 %v317, %v323
      %v332 = vmul.f32 %v320, %v323
      %v334 = vperm.slane %v238, 0
      %v336 = vadd.f32 %v325, %v334
      %v337 = vadd.f32 %v326, %v334
      %v338 = vadd.f32 %v327, %v334
      %v339 = vadd.f32 %v328, %v334
      %v340 = vadd.f32 %v329, %v334
      %v341 = vadd.f32 %v330, %v334
      %v342 = vadd.f32 %v331, %v334
      %v343 = vadd.f32 %v332, %v334
      %v344 = vmax.f32 %v336, 0.0
      %v345 = vmax.f32 %v337, 0.0
      %v346 = vmax.f32 %v338, 0.0
      %v347 = vmax.f32 %v339, 0.0
      %v348 = vmax.f32 %v340, 0.0
      %v349 = vmax.f32 %v341, 0.0
      %v350 = vmax.f32 %v342, 0.0
      %v351 = vmax.f32 %v343, 0.0
      %s352 = scalar_lea.vmem %s225, 64
      %v353 = vld [vmem:[%s352] sm:$0xff]
      %v354 = vld [vmem:[%s352 + $0x8] sm:$0xff]
      %v355 = vld [vmem:[%s352 + $0x10] sm:$0xff]
      %v356 = vld [vmem:[%s352 + $0x18] sm:$0xff]
      %v357 = vld [vmem:[%s352 + $0x20] sm:$0xff]
      %v358 = vld [vmem:[%s352 + $0x28] sm:$0xff]
      %v359 = vld [vmem:[%s352 + $0x30] sm:$0xff]
      %v360 = vld [vmem:[%s352 + $0x38] sm:$0xff]
      %v362 = vsel %vm256, %v353, 0
      %v365 = vsel %vm256, %v354, 0
      %v368 = vsel %vm256, %v355, 0
      %v371 = vsel %vm256, %v356, 0
      %v374 = vsel %vm256, %v357, 0
      %v377 = vsel %vm256, %v358, 0
      %v380 = vsel %vm256, %v359, 0
      %v383 = vsel %vm256, %v360, 0
      %385 = vmatpush.msra.mxu0 0.0
      %386 = vmatpush.msra.mxu0 0.0
      %387 = vmatpush.msra.mxu0 0.0
      %388 = vmatpush.msra.mxu0 0.0
      %389 = vmatpush.msra.mxu0 0.0
      %390 = vmatpush.msra.mxu0 0.0
      %391 = vmatpush.msra.mxu0 0.0
      %392 = vmatpush.msra.mxu0 %v255
      %393 = vmatpush.msra.mxu0 %v254
      %394 = vmatpush.msra.mxu0 %v253
      %395 = vmatpush.msra.mxu0 %v252
      %396 = vmatpush.msra.mxu0 %v251
      %397 = vmatpush.msra.mxu0 %v250
      %398 = vmatpush.msra.mxu0 %v249
      %399 = vmatpush.msra.mxu0 %v248
      %400 = vmatpush.msra.mxu0 %v247
      %401 = vmatmul.f32.gmra.mxu0 %v362
      %v402 = vpop.f32.mrf.mxu0
      %v403 = vadd.f32 0.0, %v402
      %404 = vmatmul.f32.gmra.mxu0 %v365
      %v405 = vpop.f32.mrf.mxu0
      %v406 = vadd.f32 0.0, %v405
      %407 = vmatmul.f32.gmra.mxu0 %v368
      %v408 = vpop.f32.mrf.mxu0
      %v409 = vadd.f32 0.0, %v408
      %410 = vmatmul.f32.gmra.mxu0 %v371
      %v411 = vpop.f32.mrf.mxu0
      %v412 = vadd.f32 0.0, %v411
      %413 = vmatmul.f32.gmra.mxu0 %v374
      %v414 = vpop.f32.mrf.mxu0
      %v415 = vadd.f32 0.0, %v414
      %416 = vmatmul.f32.gmra.mxu0 %v377
      %v417 = vpop.f32.mrf.mxu0
      %v418 = vadd.f32 0.0, %v417
      %419 = vmatmul.f32.gmra.mxu0 %v380
      %v420 = vpop.f32.mrf.mxu0
      %v421 = vadd.f32 0.0, %v420
      %422 = vmatmul.f32.gmra.mxu0 %v383
      %v423 = vpop.f32.mrf.mxu0
      %v424 = vadd.f32 0.0, %v423
      %425 = vdwg.mxu0
      %v426 = vmul.f32 %v403, %v323
      %v427 = vmul.f32 %v406, %v323
      %v428 = vmul.f32 %v409, %v323
      %v429 = vmul.f32 %v412, %v323
      %v430 = vmul.f32 %v415, %v323
      %v431 = vmul.f32 %v418, %v323
      %v432 = vmul.f32 %v421, %v323
      %v433 = vmul.f32 %v424, %v323
      %v434 = vadd.f32 %v426, %v334
      %v435 = vadd.f32 %v427, %v334
      %v436 = vadd.f32 %v428, %v334
      %v437 = vadd.f32 %v429, %v334
      %v438 = vadd.f32 %v430, %v334
      %v439 = vadd.f32 %v431, %v334
      %v440 = vadd.f32 %v432, %v334
      %v441 = vadd.f32 %v433, %v334
      %v442 = vmax.f32 %v434, 0.0
      %v443 = vmax.f32 %v435, 0.0
      %v444 = vmax.f32 %v436, 0.0
      %v445 = vmax.f32 %v437, 0.0
      %v446 = vmax.f32 %v438, 0.0
      %v447 = vmax.f32 %v439, 0.0
      %v448 = vmax.f32 %v440, 0.0
      %v449 = vmax.f32 %v441, 0.0
      %v450 = vmax.f32 %v344, %v442
      %v451 = vmax.f32 %v345, %v443
      %v452 = vmax.f32 %v346, %v444
      %v453 = vmax.f32 %v347, %v445
      %v454 = vmax.f32 %v348, %v446
      %v455 = vmax.f32 %v349, %v447
      %v456 = vmax.f32 %v350, %v448
      %v457 = vmax.f32 %v351, %v449
      %s458 = scalar_lea.vmem %s225, 128
      %v459 = vld [vmem:[%s458] sm:$0xff]
      %v460 = vld [vmem:[%s458 + $0x8] sm:$0xff]
      %v461 = vld [vmem:[%s458 + $0x10] sm:$0xff]
      %v462 = vld [vmem:[%s458 + $0x18] sm:$0xff]
      %v463 = vld [vmem:[%s458 + $0x20] sm:$0xff]
      %v464 = vld [vmem:[%s458 + $0x28] sm:$0xff]
      %v465 = vld [vmem:[%s458 + $0x30] sm:$0xff]
      %v466 = vld [vmem:[%s458 + $0x38] sm:$0xff]
      %v468 = vsel %vm256, %v459, 0
      %v471 = vsel %vm256, %v460, 0
      %v474 = vsel %vm256, %v461, 0
      %v477 = vsel %vm256, %v462, 0
      %v480 = vsel %vm256, %v463, 0
      %v483 = vsel %vm256, %v464, 0
      %v486 = vsel %vm256, %v465, 0
      %v489 = vsel %vm256, %v466, 0
      %491 = vmatpush.msra.mxu0 0.0
      %492 = vmatpush.msra.mxu0 0.0
      %493 = vmatpush.msra.mxu0 0.0
      %494 = vmatpush.msra.mxu0 0.0
      %495 = vmatpush.msra.mxu0 0.0
      %496 = vmatpush.msra.mxu0 0.0
      %497 = vmatpush.msra.mxu0 0.0
      %498 = vmatpush.msra.mxu0 %v255
      %499 = vmatpush.msra.mxu0 %v254
      %500 = vmatpush.msra.mxu0 %v253
      %501 = vmatpush.msra.mxu0 %v252
      %502 = vmatpush.msra.mxu0 %v251
      %503 = vmatpush.msra.mxu0 %v250
      %504 = vmatpush.msra.mxu0 %v249
      %505 = vmatpush.msra.mxu0 %v248
      %506 = vmatpush.msra.mxu0 %v247
      %507 = vmatmul.f32.gmra.mxu0 %v468
      %v508 = vpop.f32.mrf.mxu0
      %v509 = vadd.f32 0.0, %v508
      %510 = vmatmul.f32.gmra.mxu0 %v471
      %v511 = vpop.f32.mrf.mxu0
      %v512 = vadd.f32 0.0, %v511
      %513 = vmatmul.f32.gmra.mxu0 %v474
      %v514 = vpop.f32.mrf.mxu0
      %v515 = vadd.f32 0.0, %v514
      %516 = vmatmul.f32.gmra.mxu0 %v477
      %v517 = vpop.f32.mrf.mxu0
      %v518 = vadd.f32 0.0, %v517
      %519 = vmatmul.f32.gmra.mxu0 %v480
      %v520 = vpop.f32.mrf.mxu0
      %v521 = vadd.f32 0.0, %v520
      %522 = vmatmul.f32.gmra.mxu0 %v483
      %v523 = vpop.f32.mrf.mxu0
      %v524 = vadd.f32 0.0, %v523
      %525 = vmatmul.f32.gmra.mxu0 %v486
      %v526 = vpop.f32.mrf.mxu0
      %v527 = vadd.f32 0.0, %v526
      %528 = vmatmul.f32.gmra.mxu0 %v489
      %v529 = vpop.f32.mrf.mxu0
      %v530 = vadd.f32 0.0, %v529
      %531 = vdwg.mxu0
      %v532 = vmul.f32 %v509, %v323
      %v533 = vmul.f32 %v512, %v323
      %v534 = vmul.f32 %v515, %v323
      %v535 = vmul.f32 %v518, %v323
      %v536 = vmul.f32 %v521, %v323
      %v537 = vmul.f32 %v524, %v323
      %v538 = vmul.f32 %v527, %v323
      %v539 = vmul.f32 %v530, %v323
      %v540 = vadd.f32 %v532, %v334
      %v541 = vadd.f32 %v533, %v334
      %v542 = vadd.f32 %v534, %v334
      %v543 = vadd.f32 %v535, %v334
      %v544 = vadd.f32 %v536, %v334
      %v545 = vadd.f32 %v537, %v334
      %v546 = vadd.f32 %v538, %v334
      %v547 = vadd.f32 %v539, %v334
      %v548 = vmax.f32 %v540, 0.0
      %v549 = vmax.f32 %v541, 0.0
      %v550 = vmax.f32 %v542, 0.0
      %v551 = vmax.f32 %v543, 0.0
      %v552 = vmax.f32 %v544, 0.0
      %v553 = vmax.f32 %v545, 0.0
      %v554 = vmax.f32 %v546, 0.0
      %v555 = vmax.f32 %v547, 0.0
      %s556 = scalar_lea.vmem %s225, 192
      %v557 = vld [vmem:[%s556] sm:$0xff]
      %v558 = vld [vmem:[%s556 + $0x8] sm:$0xff]
      %v559 = vld [vmem:[%s556 + $0x10] sm:$0xff]
      %v560 = vld [vmem:[%s556 + $0x18] sm:$0xff]
      %v561 = vld [vmem:[%s556 + $0x20] sm:$0xff]
      %v562 = vld [vmem:[%s556 + $0x28] sm:$0xff]
      %v563 = vld [vmem:[%s556 + $0x30] sm:$0xff]
      %v564 = vld [vmem:[%s556 + $0x38] sm:$0xff]
      %v566 = vsel %vm256, %v557, 0
      %v569 = vsel %vm256, %v558, 0
      %v572 = vsel %vm256, %v559, 0
      %v575 = vsel %vm256, %v560, 0
      %v578 = vsel %vm256, %v561, 0
      %v581 = vsel %vm256, %v562, 0
      %v584 = vsel %vm256, %v563, 0
      %v587 = vsel %vm256, %v564, 0
      %589 = vmatpush.msra.mxu0 0.0
      %590 = vmatpush.msra.mxu0 0.0
      %591 = vmatpush.msra.mxu0 0.0
      %592 = vmatpush.msra.mxu0 0.0
      %593 = vmatpush.msra.mxu0 0.0
      %594 = vmatpush.msra.mxu0 0.0
      %595 = vmatpush.msra.mxu0 0.0
      %596 = vmatpush.msra.mxu0 %v255
      %597 = vmatpush.msra.mxu0 %v254
      %598 = vmatpush.msra.mxu0 %v253
      %599 = vmatpush.msra.mxu0 %v252
      %600 = vmatpush.msra.mxu0 %v251
      %601 = vmatpush.msra.mxu0 %v250
      %602 = vmatpush.msra.mxu0 %v249
      %603 = vmatpush.msra.mxu0 %v248
      %604 = vmatpush.msra.mxu0 %v247
      %605 = vmatmul.f32.gmra.mxu0 %v566
      %v606 = vpop.f32.mrf.mxu0
      %v607 = vadd.f32 0.0, %v606
      %608 = vmatmul.f32.gmra.mxu0 %v569
      %v609 = vpop.f32.mrf.mxu0
      %v610 = vadd.f32 0.0, %v609
      %611 = vmatmul.f32.gmra.mxu0 %v572
      %v612 = vpop.f32.mrf.mxu0
      %v613 = vadd.f32 0.0, %v612
      %614 = vmatmul.f32.gmra.mxu0 %v575
      %v615 = vpop.f32.mrf.mxu0
      %v616 = vadd.f32 0.0, %v615
      %617 = vmatmul.f32.gmra.mxu0 %v578
      %v618 = vpop.f32.mrf.mxu0
      %v619 = vadd.f32 0.0, %v618
      %620 = vmatmul.f32.gmra.mxu0 %v581
      %v621 = vpop.f32.mrf.mxu0
      %v622 = vadd.f32 0.0, %v621
      %623 = vmatmul.f32.gmra.mxu0 %v584
      %v624 = vpop.f32.mrf.mxu0
      %v625 = vadd.f32 0.0, %v624
      %626 = vmatmul.f32.gmra.mxu0 %v587
      %v627 = vpop.f32.mrf.mxu0
      %v628 = vadd.f32 0.0, %v627
      %629 = vdwg.mxu0
      %v630 = vmul.f32 %v607, %v323
      %v631 = vmul.f32 %v610, %v323
      %v632 = vmul.f32 %v613, %v323
      %v633 = vmul.f32 %v616, %v323
      %v634 = vmul.f32 %v619, %v323
      %v635 = vmul.f32 %v622, %v323
      %v636 = vmul.f32 %v625, %v323
      %v637 = vmul.f32 %v628, %v323
      %v638 = vadd.f32 %v630, %v334
      %v639 = vadd.f32 %v631, %v334
      %v640 = vadd.f32 %v632, %v334
      %v641 = vadd.f32 %v633, %v334
      %v642 = vadd.f32 %v634, %v334
      %v643 = vadd.f32 %v635, %v334
      %v644 = vadd.f32 %v636, %v334
      %v645 = vadd.f32 %v637, %v334
      %v646 = vmax.f32 %v638, 0.0
      %v647 = vmax.f32 %v639, 0.0
      %v648 = vmax.f32 %v640, 0.0
      %v649 = vmax.f32 %v641, 0.0
      %v650 = vmax.f32 %v642, 0.0
      %v651 = vmax.f32 %v643, 0.0
      %v652 = vmax.f32 %v644, 0.0
      %v653 = vmax.f32 %v645, 0.0
      %v654 = vmax.f32 %v548, %v646
      %v655 = vmax.f32 %v549, %v647
      %v656 = vmax.f32 %v550, %v648
      %v657 = vmax.f32 %v551, %v649
      %v658 = vmax.f32 %v552, %v650
      %v659 = vmax.f32 %v553, %v651
      %v660 = vmax.f32 %v554, %v652
      %v661 = vmax.f32 %v555, %v653
      %v662 = vmax.f32 %v450, %v654
      %v663 = vmax.f32 %v451, %v655
      %v664 = vmax.f32 %v452, %v656
      %v665 = vmax.f32 %v453, %v657
      %v666 = vmax.f32 %v454, %v658
      %v667 = vmax.f32 %v455, %v659
      %v668 = vmax.f32 %v456, %v660
      %v669 = vmax.f32 %v457, %v661
      %vm670 = vcmask 130048
      %671 = vst.msk [vmem:[%s235] sm:$0xff] %vm670, %v662
      %672 = vst.msk [vmem:[%s235 + $0x8] sm:$0xff] %vm670, %v663
      %673 = vst.msk [vmem:[%s235 + $0x10] sm:$0xff] %vm670, %v664
      %674 = vst.msk [vmem:[%s235 + $0x18] sm:$0xff] %vm670, %v665
      %675 = vst.msk [vmem:[%s235 + $0x20] sm:$0xff] %vm670, %v666
      %676 = vst.msk [vmem:[%s235 + $0x28] sm:$0xff] %vm670, %v667
      %677 = vst.msk [vmem:[%s235 + $0x30] sm:$0xff] %vm670, %v668
      %678 = vst.msk [vmem:[%s235 + $0x38] sm:$0xff] %vm670, %v669
      %s679 = smul.u32 8, %s20
      %p680 = scmp.lt.s32.totalorder %s19, 7
      %s681 = scalar_select %p680, %s19, 7
      %p682 = scmp.lt.s32.totalorder %s679, 7
      %s683 = scalar_select %p682, %s679, 7
      %s684 = smul.addr %s681, 8
      %s685 = sadd.s32 %s683, %s684
      %s686 = smul.addr %s685, 8
      %s687 = scalar_lea.vmem %s4, %s686
      // Predicated region
      $region37: #{_lambda_.8} parent=35 // pred_check
        %p688 = pneg %p138
      $region38: #{_lambda_.8} parent=35 // pred_check_branch
        %690 = sbr.rel (%p688) target = $region40
      $region39: #{_lambda_.8} parent=35 // pred_region
        %s691 = smul.u32 8, %s20
      $region40: #{_lambda_.8} parent=35 // pred_fallthru
        _
    $region36: #{_lambda_.8} parent=5 // pred_fallthru
      _
    %p692 = scmp.le.s32.totalorder 2, %s10
    // Predicated region
    $region41: #{_lambda_.8} parent=5 // pred_check
      %p693 = pneg %p692
    $region42: #{_lambda_.8} parent=5 // pred_check_branch
      %695 = sbr.rel (%p693) target = $region44
    $region43: #{_lambda_.8} parent=5 // pred_region
      %s696 = ssub.s32 %s10, 2
      // Predicated region
      $region45: #{_lambda_.8} parent=43 // pred_check
        %p697 = pneg %p144
      $region46: #{_lambda_.8} parent=43 // pred_check_branch
        %699 = sbr.rel (%p697) target = $region48
      $region47: #{_lambda_.8} parent=43 // pred_region
        %s700 = smul.u32 8, %s22
        %p701 = scmp.lt.s32.totalorder %s21, 7
        %s702 = scalar_select %p701, %s21, 7
        %p703 = scmp.lt.s32.totalorder %s700, 7
        %s704 = scalar_select %p703, %s700, 7
        %s705 = smul.addr %s702, 8
        %s706 = sadd.s32 %s704, %s705
        %s707 = smul.addr %s706, 8
        %s708 = scalar_lea.vmem %s4, %s707
      $region48: #{_lambda_.8} parent=43 // pred_fallthru
        _
    $region44: #{_lambda_.8} parent=5 // pred_fallthru
      _
  $region6: #{_lambda_.8} parent=0 // loop_footer
    %s14 = sadd.s32 1, %s10
  $region7: #{_lambda_.8} parent=0 // loop_footer_branch
    %9 = sbr.rel target = $region3
  $region8: #{_lambda_.8} parent=0 // loop_exit
    _

// kernel: _lambda_.9
$region0: #{_lambda_.9}
  #allocation0 [shape = 'u32[]', space=smem, size = 0x4, offset = 0x4, fixed_abs, tag = 'smem constant byte address 0x4 - core index']
  #allocation1 [shape = 'u32[72,128]{1,0:T(1,128)}', space=vmem, size = 0x9000, scoped, tag = 'internal scratch']
  %s0 = inlined_call_operand.vmem [shape: f32[2,64,144], index: 0, kind: input, shape index: {}]
  %s1 = inlined_call_operand.vmem [shape: f32[2,64,144], index: 1, kind: input, shape index: {}]
  %s2 = inlined_call_operand.vmem [shape: f32[2,64,16], index: 2, kind: input, shape index: {}]
  %s3 = inlined_call_operand.vmem [shape: f32[4,144,16], index: 3, kind: input, shape index: {}]
  %s4 = inlined_call_operand.vmem [shape: f32[4,144,16], index: 4, kind: input, shape index: {}]
  %s5 = inlined_call_operand.vmem [shape: f32[4,1,16], index: 5, kind: input, shape index: {}]
  %s6 = inlined_call_operand.vmem [shape: f32[2,64,16], index: 6, kind: output, shape index: {0}]
  %s7 = inlined_call_operand.vmem [shape: f32[2,64,16], index: 7, kind: output, shape index: {1}]
  %8 = xla_tuple %s6, %s7
  %s9 = sld [smem:[#allocation0]]
  $region65: #{_lambda_.9} parent=0
    _
  %s11 = ssub.s32 1, %s9
  %s12 = scalar_select 0, %s11, %s9
  loop: start=0, step=1, limit=4
  $region2: #{_lambda_.9} parent=0 // loop_pre_header
    _
  $region3: #{_lambda_.9} parent=0 // loop_header
    %s14 = sphi 0, %s18
    %p15 = scmp.ge.s32.totalorder %s14, 4
    %s21 = sphi 0, %s33
    %s22 = sphi 0, %s29
    %s23 = sphi 0, %s21
    %s24 = sphi 0, %s22
    %s25 = sphi 0, %s23
    %s26 = sphi 0, %s24
    %s38 = sphi 0, %s40
    %s41 = sphi 0, %s38
    %s42 = sphi 0, %s41
    %s58 = sphi 0, %s42
    %s66 = sphi 0, %s68
    %s69 = sphi 0, %s66
    %s70 = sphi 0, %s69
    %s86 = sphi 0, %s70
    %s94 = sphi 0, %s96
    %s97 = sphi 0, %s94
    %s98 = sphi 0, %s97
    %s114 = sphi 0, %s98
    %s118 = sphi 0, %s118
    %s120 = sphi 0, %s118
    %s121 = sphi 0, %s120
    %s135 = sphi 0, %s121
    %s139 = sphi 0, %s139
    %s141 = sphi 0, %s139
    %s142 = sphi 0, %s141
    %s156 = sphi 0, %s142
    %s160 = sphi 0, %s160
    %s162 = sphi 0, %s160
    %s163 = sphi 0, %s162
    %s177 = sphi 0, %s163
    %s185 = sphi 0, %s187
    %s188 = sphi 0, %s185
    %s189 = sphi 0, %s188
    %s205 = sphi 0, %s189
    %s213 = sphi 0, %s215
    %s216 = sphi 0, %s213
    %s217 = sphi 0, %s216
    %s233 = sphi 0, %s217
  $region4: #{_lambda_.9} parent=0 // loop_header_branch
    %17 = sbr.rel (%p15) target = $region8
  $region5: #{_lambda_.9} parent=0 // loop_body
    %s19 = ssub.s32 %s14, 1
    %s20 = ssub.s32 %s14, 2
    %s27 = sadd.s32 1, %s22
    %p28 = scmp.ge.s32.totalorder %s27, 1
    %s29 = scalar_select %p28, 0, %s27
    %s30 = sadd.s32 1, %s21
    %s31 = scalar_select %p28, %s30, %s21
    %p32 = scmp.ge.s32.totalorder %s31, 2
    %s33 = scalar_select %p32, 0, %s31
    %s34 = ssub.s32 %s21, %s33
    %s35 = ssub.s32 %s22, %s29
    %s36 = sor.u32 %s34, %s35
    %p37 = scmp.eq.s32.totalorder %s36, 0
    %s39 = sadd.s32 %s38, 1
    %s40 = scalar_select %p37, %s38, %s39
    %p43 = pneg %p37
    %p44 = scmp.eq.s32.totalorder %s14, 1
    %p45 = por %p43, %p44
    %p46 = scmp.ne.s32.totalorder %s38, %s41
    %p47 = scmp.eq.s32.totalorder %s14, 0
    %p48 = por %p46, %p47
    %p49 = scmp.ne.s32.totalorder %s38, %s41
    %p50 = scmp.eq.s32.totalorder %s19, 1
    %p51 = por %p49, %p50
    %p52 = scmp.ne.s32.totalorder %s41, %s42
    %p53 = scmp.eq.s32.totalorder %s19, 0
    %p54 = por %p52, %p53
    %p55 = scmp.ne.s32.totalorder %s41, %s42
    %p56 = scmp.eq.s32.totalorder %s20, 1
    %p57 = por %p55, %p56
    %p59 = scmp.ne.s32.totalorder %s42, %s58
    %p60 = scmp.eq.s32.totalorder %s20, 0
    %p61 = por %p59, %p60
    %s62 = ssub.s32 %s21, %s33
    %s63 = ssub.s32 %s22, %s29
    %s64 = sor.u32 %s62, %s63
    %p65 = scmp.eq.s32.totalorder %s64, 0
    %s67 = sadd.s32 %s66, 1
    %s68 = scalar_select %p65, %s66, %s67
    %p71 = pneg %p65
    %p72 = scmp.eq.s32.totalorder %s14, 1
    %p73 = por %p71, %p72
    %p74 = scmp.ne.s32.totalorder %s66, %s69
    %p75 = scmp.eq.s32.totalorder %s14, 0
    %p76 = por %p74, %p75
    %p77 = scmp.ne.s32.totalorder %s66, %s69
    %p78 = scmp.eq.s32.totalorder %s19, 1
    %p79 = por %p77, %p78
    %p80 = scmp.ne.s32.totalorder %s69, %s70
    %p81 = scmp.eq.s32.totalorder %s19, 0
    %p82 = por %p80, %p81
    %p83 = scmp.ne.s32.totalorder %s69, %s70
    %p84 = scmp.eq.s32.totalorder %s20, 1
    %p85 = por %p83, %p84
    %p87 = scmp.ne.s32.totalorder %s70, %s86
    %p88 = scmp.eq.s32.totalorder %s20, 0
    %p89 = por %p87, %p88
    %s90 = ssub.s32 %s21, %s33
    %s91 = ssub.s32 %s22, %s29
    %s92 = sor.u32 %s90, %s91
    %p93 = scmp.eq.s32.totalorder %s92, 0
    %s95 = sadd.s32 %s94, 1
    %s96 = scalar_select %p93, %s94, %s95
    %p99 = pneg %p93
    %p100 = scmp.eq.s32.totalorder %s14, 1
    %p101 = por %p99, %p100
    %p102 = scmp.ne.s32.totalorder %s94, %s97
    %p103 = scmp.eq.s32.totalorder %s14, 0
    %p104 = por %p102, %p103
    %p105 = scmp.ne.s32.totalorder %s94, %s97
    %p106 = scmp.eq.s32.totalorder %s19, 1
    %p107 = por %p105, %p106
    %p108 = scmp.ne.s32.totalorder %s97, %s98
    %p109 = scmp.eq.s32.totalorder %s19, 0
    %p110 = por %p108, %p109
    %p111 = scmp.ne.s32.totalorder %s97, %s98
    %p112 = scmp.eq.s32.totalorder %s20, 1
    %p113 = por %p111, %p112
    %p115 = scmp.ne.s32.totalorder %s98, %s114
    %p116 = scmp.eq.s32.totalorder %s20, 0
    %p117 = por %p115, %p116
    %s119 = sadd.s32 %s118, 1
    %p122 = scmp.eq.s32.totalorder %s14, 1
    %p123 = scmp.ne.s32.totalorder %s118, %s120
    %p124 = scmp.eq.s32.totalorder %s14, 0
    %p125 = por %p123, %p124
    %p126 = scmp.ne.s32.totalorder %s118, %s120
    %p127 = scmp.eq.s32.totalorder %s19, 1
    %p128 = por %p126, %p127
    %p129 = scmp.ne.s32.totalorder %s120, %s121
    %p130 = scmp.eq.s32.totalorder %s19, 0
    %p131 = por %p129, %p130
    %p132 = scmp.ne.s32.totalorder %s120, %s121
    %p133 = scmp.eq.s32.totalorder %s20, 1
    %p134 = por %p132, %p133
    %p136 = scmp.ne.s32.totalorder %s121, %s135
    %p137 = scmp.eq.s32.totalorder %s20, 0
    %p138 = por %p136, %p137
    %s140 = sadd.s32 %s139, 1
    %p143 = scmp.eq.s32.totalorder %s14, 1
    %p144 = scmp.ne.s32.totalorder %s139, %s141
    %p145 = scmp.eq.s32.totalorder %s14, 0
    %p146 = por %p144, %p145
    %p147 = scmp.ne.s32.totalorder %s139, %s141
    %p148 = scmp.eq.s32.totalorder %s19, 1
    %p149 = por %p147, %p148
    %p150 = scmp.ne.s32.totalorder %s141, %s142
    %p151 = scmp.eq.s32.totalorder %s19, 0
    %p152 = por %p150, %p151
    %p153 = scmp.ne.s32.totalorder %s141, %s142
    %p154 = scmp.eq.s32.totalorder %s20, 1
    %p155 = por %p153, %p154
    %p157 = scmp.ne.s32.totalorder %s142, %s156
    %p158 = scmp.eq.s32.totalorder %s20, 0
    %p159 = por %p157, %p158
    %s161 = sadd.s32 %s160, 1
    %p164 = scmp.eq.s32.totalorder %s14, 1
    %p165 = scmp.ne.s32.totalorder %s160, %s162
    %p166 = scmp.eq.s32.totalorder %s14, 0
    %p167 = por %p165, %p166
    %p168 = scmp.ne.s32.totalorder %s160, %s162
    %p169 = scmp.eq.s32.totalorder %s19, 1
    %p170 = por %p168, %p169
    %p171 = scmp.ne.s32.totalorder %s162, %s163
    %p172 = scmp.eq.s32.totalorder %s19, 0
    %p173 = por %p171, %p172
    %p174 = scmp.ne.s32.totalorder %s162, %s163
    %p175 = scmp.eq.s32.totalorder %s20, 1
    %p176 = por %p174, %p175
    %p178 = scmp.ne.s32.totalorder %s163, %s177
    %p179 = scmp.eq.s32.totalorder %s20, 0
    %p180 = por %p178, %p179
    %s181 = ssub.s32 %s21, %s33
    %s182 = ssub.s32 %s22, %s29
    %s183 = sor.u32 %s181, %s182
    %p184 = scmp.eq.s32.totalorder %s183, 0
    %s186 = sadd.s32 %s185, 1
    %s187 = scalar_select %p184, %s185, %s186
    %p190 = pneg %p184
    %p191 = scmp.eq.s32.totalorder %s14, 1
    %p192 = por %p190, %p191
    %p193 = scmp.ne.s32.totalorder %s185, %s188
    %p194 = scmp.eq.s32.totalorder %s14, 0
    %p195 = por %p193, %p194
    %p196 = scmp.ne.s32.totalorder %s185, %s188
    %p197 = scmp.eq.s32.totalorder %s19, 1
    %p198 = por %p196, %p197
    %p199 = scmp.ne.s32.totalorder %s188, %s189
    %p200 = scmp.eq.s32.totalorder %s19, 0
    %p201 = por %p199, %p200
    %p202 = scmp.ne.s32.totalorder %s188, %s189
    %p203 = scmp.eq.s32.totalorder %s20, 1
    %p204 = por %p202, %p203
    %p206 = scmp.ne.s32.totalorder %s189, %s205
    %p207 = scmp.eq.s32.totalorder %s20, 0
    %p208 = por %p206, %p207
    %s209 = ssub.s32 %s21, %s33
    %s210 = ssub.s32 %s22, %s29
    %s211 = sor.u32 %s209, %s210
    %p212 = scmp.eq.s32.totalorder %s211, 0
    %s214 = sadd.s32 %s213, 1
    %s215 = scalar_select %p212, %s213, %s214
    %p218 = pneg %p212
    %p219 = scmp.eq.s32.totalorder %s14, 1
    %p220 = por %p218, %p219
    %p221 = scmp.ne.s32.totalorder %s213, %s216
    %p222 = scmp.eq.s32.totalorder %s14, 0
    %p223 = por %p221, %p222
    %p224 = scmp.ne.s32.totalorder %s213, %s216
    %p225 = scmp.eq.s32.totalorder %s19, 1
    %p226 = por %p224, %p225
    %p227 = scmp.ne.s32.totalorder %s216, %s217
    %p228 = scmp.eq.s32.totalorder %s19, 0
    %p229 = por %p227, %p228
    %p230 = scmp.ne.s32.totalorder %s216, %s217
    %p231 = scmp.eq.s32.totalorder %s20, 1
    %p232 = por %p230, %p231
    %p234 = scmp.ne.s32.totalorder %s217, %s233
    %p235 = scmp.eq.s32.totalorder %s20, 0
    %p236 = por %p234, %p235
    %p237 = scmp.le.s32.totalorder 1, %s14
    %p238 = scmp.lt.s32.totalorder %s14, 3
    %p239 = pnand %p237, %p238
    %p240 = pneg %p239
    // Predicated region
    $region9: #{_lambda_.9} parent=5 // pred_check
      _
    $region10: #{_lambda_.9} parent=5 // pred_check_branch
      %242 = sbr.rel (%p239) target = $region12
    $region11: #{_lambda_.9} parent=5 // pred_region
      %s243 = ssub.s32 %s14, 1
      // Predicated region
      $region13: #{_lambda_.9} parent=11 // pred_check
        %p244 = pneg %p131
      $region14: #{_lambda_.9} parent=11 // pred_check_branch
        %246 = sbr.rel (%p244) target = $region16
      $region15: #{_lambda_.9} parent=11 // pred_region
        _
      $region16: #{_lambda_.9} parent=11 // pred_fallthru
        _
      // Predicated region
      $region17: #{_lambda_.9} parent=11 // pred_check
        %p247 = pneg %p152
      $region18: #{_lambda_.9} parent=11 // pred_check_branch
        %249 = sbr.rel (%p247) target = $region20
      $region19: #{_lambda_.9} parent=11 // pred_region
        _
      $region20: #{_lambda_.9} parent=11 // pred_fallthru
        _
      // Predicated region
      $region21: #{_lambda_.9} parent=11 // pred_check
        %p250 = pneg %p173
      $region22: #{_lambda_.9} parent=11 // pred_check_branch
        %252 = sbr.rel (%p250) target = $region24
      $region23: #{_lambda_.9} parent=11 // pred_region
        _
      $region24: #{_lambda_.9} parent=11 // pred_fallthru
        _
    $region12: #{_lambda_.9} parent=5 // pred_fallthru
      _
    %p253 = scmp.lt.s32.totalorder %s14, 2
    // Predicated region
    $region25: #{_lambda_.9} parent=5 // pred_check
      %p254 = pneg %p253
    $region26: #{_lambda_.9} parent=5 // pred_check_branch
      %256 = sbr.rel (%p254) target = $region28
    $region27: #{_lambda_.9} parent=5 // pred_region
      // Predicated region
      $region29: #{_lambda_.9} parent=27 // pred_check
        %p257 = pneg %p48
      $region30: #{_lambda_.9} parent=27 // pred_check_branch
        %259 = sbr.rel (%p257) target = $region32
      $region31: #{_lambda_.9} parent=27 // pred_region
        %s260 = smul.u32 8, %s22
        %p261 = scmp.lt.s32.totalorder %s21, 1
        %s262 = scalar_select %p261, %s21, 1
        %p263 = scmp.lt.s32.totalorder %s260, 7
        %s264 = scalar_select %p263, %s260, 7
        %s265 = smul.addr %s264, 2
        %s266 = smul.addr %s262, 16
        %s267 = sadd.s32 %s265, %s266
        %s268 = smul.addr %s267, 8
        %s269 = scalar_lea.vmem %s0, %s268
        %s270 = smul.u32 8, %s22
      $region32: #{_lambda_.9} parent=27 // pred_fallthru
        _
      // Predicated region
      $region33: #{_lambda_.9} parent=27 // pred_check
        %p271 = pneg %p76
      $region34: #{_lambda_.9} parent=27 // pred_check_branch
        %273 = sbr.rel (%p271) target = $region36
      $region35: #{_lambda_.9} parent=27 // pred_region
        %s274 = smul.u32 8, %s22
        %p275 = scmp.lt.s32.totalorder %s21, 1
        %s276 = scalar_select %p275, %s21, 1
        %p277 = scmp.lt.s32.totalorder %s274, 7
        %s278 = scalar_select %p277, %s274, 7
        %s279 = smul.addr %s278, 2
        %s280 = smul.addr %s276, 16
        %s281 = sadd.s32 %s279, %s280
        %s282 = smul.addr %s281, 8
        %s283 = scalar_lea.vmem %s1, %s282
        %s284 = smul.u32 8, %s22
      $region36: #{_lambda_.9} parent=27 // pred_fallthru
        _
      // Predicated region
      $region37: #{_lambda_.9} parent=27 // pred_check
        %p285 = pneg %p104
      $region38: #{_lambda_.9} parent=27 // pred_check_branch
        %287 = sbr.rel (%p285) target = $region40
      $region39: #{_lambda_.9} parent=27 // pred_region
        %s288 = smul.u32 8, %s22
        %p289 = scmp.lt.s32.totalorder %s21, 1
        %s290 = scalar_select %p289, %s21, 1
        %p291 = scmp.lt.s32.totalorder %s288, 7
        %s292 = scalar_select %p291, %s288, 7
        %s293 = smul.addr %s290, 8
        %s294 = sadd.s32 %s292, %s293
        %s295 = smul.addr %s294, 8
        %s296 = scalar_lea.vmem %s2, %s295
        %s297 = smul.u32 8, %s22
      $region40: #{_lambda_.9} parent=27 // pred_fallthru
        _
    $region28: #{_lambda_.9} parent=5 // pred_fallthru
      _
    %p298 = scmp.le.s32.totalorder 1, %s14
    %p299 = scmp.lt.s32.totalorder %s14, 3
    %p300 = pnand %p298, %p299
    %p301 = pneg %p300
    // Predicated region
    $region41: #{_lambda_.9} parent=5 // pred_check
      _
    $region42: #{_lambda_.9} parent=5 // pred_check_branch
      %303 = sbr.rel (%p300) target = $region44
    $region43: #{_lambda_.9} parent=5 // pred_region
      %s304 = ssub.s32 %s14, 1
      %s305 = smul.u32 8, %s24
      %p306 = scmp.lt.s32.totalorder %s23, 1
      %s307 = scalar_select %p306, %s23, 1
      %p308 = scmp.lt.s32.totalorder %s305, 7
      %s309 = scalar_select %p308, %s305, 7
      %s310 = smul.addr %s309, 2
      %s311 = smul.addr %s307, 16
      %s312 = sadd.s32 %s310, %s311
      %s313 = smul.addr %s312, 8
      %s314 = scalar_lea.vmem %s0, %s313
      %p315 = pneg %p54
      %p316 = pneg %p51
      %s317 = smul.u32 8, %s24
      %p318 = scmp.lt.s32.totalorder %s23, 1
      %s319 = scalar_select %p318, %s23, 1
      %p320 = scmp.lt.s32.totalorder %s317, 7
      %s321 = scalar_select %p320, %s317, 7
      %s322 = smul.addr %s321, 2
      %s323 = smul.addr %s319, 16
      %s324 = sadd.s32 %s322, %s323
      %s325 = smul.addr %s324, 8
      %s326 = scalar_lea.vmem %s1, %s325
      %p327 = pneg %p82
      %p328 = pneg %p79
      %s329 = smul.u32 8, %s24
      %p330 = scmp.lt.s32.totalorder %s23, 1
      %s331 = scalar_select %p330, %s23, 1
      %p332 = scmp.lt.s32.totalorder %s329, 7
      %s333 = scalar_select %p332, %s329, 7
      %s334 = smul.addr %s331, 8
      %s335 = sadd.s32 %s333, %s334
      %s336 = smul.addr %s335, 8
      %s337 = scalar_lea.vmem %s2, %s336
      %p338 = pneg %p110
      %p339 = pneg %p107
      %p340 = pneg %p131
      %p341 = pneg %p128
      %p342 = pneg %p152
      %p343 = pneg %p149
      %p344 = pneg %p173
      %p345 = pneg %p170
      %p346 = pneg %p201
      %p347 = pneg %p198
      %s348 = smul.u32 8, %s24
      %p349 = scmp.lt.s32.totalorder %s23, 1
      %s350 = scalar_select %p349, %s23, 1
      %p351 = scmp.lt.s32.totalorder %s348, 7
      %s352 = scalar_select %p351, %s348, 7
      %s353 = smul.addr %s350, 8
      %s354 = sadd.s32 %s352, %s353
      %s355 = smul.addr %s354, 8
      %s356 = scalar_lea.vmem %s6, %s355
      %p357 = pneg %p229
      %p358 = pneg %p226
      %s359 = smul.u32 8, %s24
      %p360 = scmp.lt.s32.totalorder %s23, 1
      %s361 = scalar_select %p360, %s23, 1
      %p362 = scmp.lt.s32.totalorder %s359, 7
      %s363 = scalar_select %p362, %s359, 7
      %s364 = smul.addr %s361, 8
      %s365 = sadd.s32 %s363, %s364
      %s366 = smul.addr %s365, 8
      %s367 = scalar_lea.vmem %s7, %s366
      %s368 = smul.u32 8, %s24
      %p369 = scmp.lt.s32.totalorder %s23, 1
      %s370 = scalar_select %p369, %s23, 1
      %p371 = scmp.lt.s32.totalorder %s368, 7
      %s372 = scalar_select %p371, %s368, 7
      %s373 = smul.addr %s372, 2
      %s374 = smul.addr %s370, 16
      %s375 = sadd.s32 %s373, %s374
      %s376 = smul.addr %s375, 8
      %s377 = scalar_lea.vmem %s0, %s376
      %s378 = smul.u32 8, %s24
      %s379 = smul.u32 8, %s24
      %p380 = scmp.lt.s32.totalorder %s23, 1
      %s381 = scalar_select %p380, %s23, 1
      %p382 = scmp.lt.s32.totalorder %s379, 7
      %s383 = scalar_select %p382, %s379, 7
      %s384 = smul.addr %s383, 2
      %s385 = smul.addr %s381, 16
      %s386 = sadd.s32 %s384, %s385
      %s387 = smul.addr %s386, 8
      %s388 = scalar_lea.vmem %s1, %s387
      %s389 = smul.u32 8, %s24
      %s390 = smul.u32 8, %s24
      %p391 = scmp.lt.s32.totalorder %s23, 1
      %s392 = scalar_select %p391, %s23, 1
      %p393 = scmp.lt.s32.totalorder %s390, 7
      %s394 = scalar_select %p393, %s390, 7
      %s395 = smul.addr %s392, 8
      %s396 = sadd.s32 %s394, %s395
      %s397 = smul.addr %s396, 8
      %s398 = scalar_lea.vmem %s2, %s397
      %s399 = smul.u32 8, %s24
      %s400 = smul.u32 8, %s24
      %p401 = scmp.lt.s32.totalorder %s23, 1
      %s402 = scalar_select %p401, %s23, 1
      %p403 = scmp.lt.s32.totalorder %s400, 7
      %s404 = scalar_select %p403, %s400, 7
      %s405 = smul.addr %s402, 8
      %s406 = sadd.s32 %s404, %s405
      %s407 = smul.addr %s406, 8
      %s408 = scalar_lea.vmem %s6, %s407
      %s409 = smul.u32 8, %s24
      %s410 = smul.u32 8, %s24
      %p411 = scmp.lt.s32.totalorder %s23, 1
      %s412 = scalar_select %p411, %s23, 1
      %p413 = scmp.lt.s32.totalorder %s410, 7
      %s414 = scalar_select %p413, %s410, 7
      %s415 = smul.addr %s412, 8
      %s416 = sadd.s32 %s414, %s415
      %s417 = smul.addr %s416, 8
      %s418 = scalar_lea.vmem %s7, %s417
      %s419 = smul.u32 8, %s24
      %v420 = vld [vmem:[%s377] sm:$0xff]
      %v421 = vld [vmem:[%s377 + $0x8] sm:$0xff]
      %v422 = vld [vmem:[%s377 + $0x10] sm:$0xff]
      %v423 = vld [vmem:[%s377 + $0x18] sm:$0xff]
      %v424 = vld [vmem:[%s377 + $0x20] sm:$0xff]
      %v425 = vld [vmem:[%s377 + $0x28] sm:$0xff]
      %v426 = vld [vmem:[%s377 + $0x30] sm:$0xff]
      %v427 = vld [vmem:[%s377 + $0x38] sm:$0xff]
      %v428 = vld [vmem:[%s377 + $0x40] sm:$0xff]
      %v429 = vld [vmem:[%s377 + $0x48] sm:$0xff]
      %v430 = vld [vmem:[%s377 + $0x50] sm:$0xff]
      %v431 = vld [vmem:[%s377 + $0x58] sm:$0xff]
      %v432 = vld [vmem:[%s377 + $0x60] sm:$0xff]
      %v433 = vld [vmem:[%s377 + $0x68] sm:$0xff]
      %v434 = vld [vmem:[%s377 + $0x70] sm:$0xff]
      %v435 = vld [vmem:[%s377 + $0x78] sm:$0xff]
      %v436 = vld [vmem:[%s388] sm:$0xff]
      %v437 = vld [vmem:[%s388 + $0x8] sm:$0xff]
      %v438 = vld [vmem:[%s388 + $0x10] sm:$0xff]
      %v439 = vld [vmem:[%s388 + $0x18] sm:$0xff]
      %v440 = vld [vmem:[%s388 + $0x20] sm:$0xff]
      %v441 = vld [vmem:[%s388 + $0x28] sm:$0xff]
      %v442 = vld [vmem:[%s388 + $0x30] sm:$0xff]
      %v443 = vld [vmem:[%s388 + $0x38] sm:$0xff]
      %v444 = vld [vmem:[%s388 + $0x40] sm:$0xff]
      %v445 = vld [vmem:[%s388 + $0x48] sm:$0xff]
      %v446 = vld [vmem:[%s388 + $0x50] sm:$0xff]
      %v447 = vld [vmem:[%s388 + $0x58] sm:$0xff]
      %v448 = vld [vmem:[%s388 + $0x60] sm:$0xff]
      %v449 = vld [vmem:[%s388 + $0x68] sm:$0xff]
      %v450 = vld [vmem:[%s388 + $0x70] sm:$0xff]
      %v451 = vld [vmem:[%s388 + $0x78] sm:$0xff]
      %v452 = vld [vmem:[%s3] sm:$0xff]
      %v453 = vld [vmem:[%s3 + $0x8] sm:$0xff]
      %v454 = vld [vmem:[%s3 + $0x10] sm:$0xff]
      %v455 = vld [vmem:[%s3 + $0x18] sm:$0xff]
      %v456 = vld [vmem:[%s3 + $0x20] sm:$0xff]
      %v457 = vld [vmem:[%s3 + $0x28] sm:$0xff]
      %v458 = vld [vmem:[%s3 + $0x30] sm:$0xff]
      %v459 = vld [vmem:[%s3 + $0x38] sm:$0xff]
      %v460 = vld [vmem:[%s3 + $0x40] sm:$0xff]
      %v461 = vld [vmem:[%s3 + $0x48] sm:$0xff]
      %v462 = vld [vmem:[%s3 + $0x50] sm:$0xff]
      %v463 = vld [vmem:[%s3 + $0x58] sm:$0xff]
      %v464 = vld [vmem:[%s3 + $0x60] sm:$0xff]
      %v465 = vld [vmem:[%s3 + $0x68] sm:$0xff]
      %v466 = vld [vmem:[%s3 + $0x70] sm:$0xff]
      %v467 = vld [vmem:[%s3 + $0x78] sm:$0xff]
      %v468 = vld [vmem:[%s3 + $0x80] sm:$0xff]
      %v469 = vld [vmem:[%s3 + $0x88] sm:$0xff]
      %v470 = vld [vmem:[%s4] sm:$0xff]
      %v471 = vld [vmem:[%s4 + $0x8] sm:$0xff]
      %v472 = vld [vmem:[%s4 + $0x10] sm:$0xff]
      %v473 = vld [vmem:[%s4 + $0x18] sm:$0xff]
      %v474 = vld [vmem:[%s4 + $0x20] sm:$0xff]
      %v475 = vld [vmem:[%s4 + $0x28] sm:$0xff]
      %v476 = vld [vmem:[%s4 + $0x30] sm:$0xff]
      %v477 = vld [vmem:[%s4 + $0x38] sm:$0xff]
      %v478 = vld [vmem:[%s4 + $0x40] sm:$0xff]
      %v479 = vld [vmem:[%s4 + $0x48] sm:$0xff]
      %v480 = vld [vmem:[%s4 + $0x50] sm:$0xff]
      %v481 = vld [vmem:[%s4 + $0x58] sm:$0xff]
      %v482 = vld [vmem:[%s4 + $0x60] sm:$0xff]
      %v483 = vld [vmem:[%s4 + $0x68] sm:$0xff]
      %v484 = vld [vmem:[%s4 + $0x70] sm:$0xff]
      %v485 = vld [vmem:[%s4 + $0x78] sm:$0xff]
      %v486 = vld [vmem:[%s4 + $0x80] sm:$0xff]
      %v487 = vld [vmem:[%s4 + $0x88] sm:$0xff]
      %vm488 = vcmask 130048
      %v490 = vsel %vm488, %v437, 0
      %v493 = vsel %vm488, %v439, 0
      %v496 = vsel %vm488, %v441, 0
      %v499 = vsel %vm488, %v443, 0
      %v502 = vsel %vm488, %v445, 0
      %v505 = vsel %vm488, %v447, 0
      %v508 = vsel %vm488, %v449, 0
      %v511 = vsel %vm488, %v451, 0
      %513 = vmatpush.msra.mxu0 %v485
      %514 = vmatpush.msra.mxu0 %v484
      %515 = vmatpush.msra.mxu0 %v483
      %516 = vmatpush.msra.mxu0 %v482
      %517 = vmatpush.msra.mxu0 %v481
      %518 = vmatpush.msra.mxu0 %v480
      %519 = vmatpush.msra.mxu0 %v479
      %520 = vmatpush.msra.mxu0 %v478
      %521 = vmatpush.msra.mxu0 %v477
      %522 = vmatpush.msra.mxu0 %v476
      %523 = vmatpush.msra.mxu0 %v475
      %524 = vmatpush.msra.mxu0 %v474
      %525 = vmatpush.msra.mxu0 %v473
      %526 = vmatpush.msra.mxu0 %v472
      %527 = vmatpush.msra.mxu0 %v471
      %528 = vmatpush.msra.mxu0 %v470
      %529 = vmatmul.f32.gmra.mxu0 %v436
      %v530 = vpop.f32.mrf.mxu0
      %v531 = vadd.f32 0.0, %v530
      %532 = vmatmul.f32.gmra.mxu0 %v438
      %v533 = vpop.f32.mrf.mxu0
      %v534 = vadd.f32 0.0, %v533
      %535 = vmatmul.f32.gmra.mxu0 %v440
      %v536 = vpop.f32.mrf.mxu0
      %v537 = vadd.f32 0.0, %v536
      %538 = vmatmul.f32.gmra.mxu0 %v442
      %v539 = vpop.f32.mrf.mxu0
      %v540 = vadd.f32 0.0, %v539
      %541 = vmatmul.f32.gmra.mxu0 %v444
      %v542 = vpop.f32.mrf.mxu0
      %v543 = vadd.f32 0.0, %v542
      %544 = vmatmul.f32.gmra.mxu0 %v446
      %v545 = vpop.f32.mrf.mxu0
      %v546 = vadd.f32 0.0, %v545
      %547 = vmatmul.f32.gmra.mxu0 %v448
      %v548 = vpop.f32.mrf.mxu0
      %v549 = vadd.f32 0.0, %v548
      %550 = vmatmul.f32.gmra.mxu0 %v450
      %v551 = vpop.f32.mrf.mxu0
      %v552 = vadd.f32 0.0, %v551
      %553 = vdwg.mxu0
      %554 = vmatpush.msra.mxu0 0.0
      %555 = vmatpush.msra.mxu0 0.0
      %556 = vmatpush.msra.mxu0 0.0
      %557 = vmatpush.msra.mxu0 0.0
      %558 = vmatpush.msra.mxu0 0.0
      %559 = vmatpush.msra.mxu0 0.0
      %560 = vmatpush.msra.mxu0 0.0
      %561 = vmatpush.msra.mxu0 0.0
      %562 = vmatpush.msra.mxu0 0.0
      %563 = vmatpush.msra.mxu0 0.0
      %564 = vmatpush.msra.mxu0 0.0
      %565 = vmatpush.msra.mxu0 0.0
      %566 = vmatpush.msra.mxu0 0.0
      %567 = vmatpush.msra.mxu0 0.0
      %568 = vmatpush.msra.mxu0 %v487
      %569 = vmatpush.msra.mxu0 %v486
      %570 = vmatmul.f32.gmra.mxu0 %v490
      %v571 = vpop.f32.mrf.mxu0
      %v572 = vadd.f32 %v531, %v571
      %573 = vmatmul.f32.gmra.mxu0 %v493
      %v574 = vpop.f32.mrf.mxu0
      %v575 = vadd.f32 %v534, %v574
      %576 = vmatmul.f32.gmra.mxu0 %v496
      %v577 = vpop.f32.mrf.mxu0
      %v578 = vadd.f32 %v537, %v577
      %579 = vmatmul.f32.gmra.mxu0 %v499
      %v580 = vpop.f32.mrf.mxu0
      %v581 = vadd.f32 %v540, %v580
      %582 = vmatmul.f32.gmra.mxu0 %v502
      %v583 = vpop.f32.mrf.mxu0
      %v584 = vadd.f32 %v543, %v583
      %585 = vmatmul.f32.gmra.mxu0 %v505
      %v586 = vpop.f32.mrf.mxu0
      %v587 = vadd.f32 %v546, %v586
      %588 = vmatmul.f32.gmra.mxu0 %v508
      %v589 = vpop.f32.mrf.mxu0
      %v590 = vadd.f32 %v549, %v589
      %591 = vmatmul.f32.gmra.mxu0 %v511
      %v592 = vpop.f32.mrf.mxu0
      %v593 = vadd.f32 %v552, %v592
      %594 = vdwg.mxu0
      %v596 = vsel %vm488, %v421, 0
      %v599 = vsel %vm488, %v423, 0
      %v602 = vsel %vm488, %v425, 0
      %v605 = vsel %vm488, %v427, 0
      %v608 = vsel %vm488, %v429, 0
      %v611 = vsel %vm488, %v431, 0
      %v614 = vsel %vm488, %v433, 0
      %v617 = vsel %vm488, %v435, 0
      %619 = vmatpush.msra.mxu0 %v467
      %620 = vmatpush.msra.mxu0 %v466
      %621 = vmatpush.msra.mxu0 %v465
      %622 = vmatpush.msra.mxu0 %v464
      %623 = vmatpush.msra.mxu0 %v463
      %624 = vmatpush.msra.mxu0 %v462
      %625 = vmatpush.msra.mxu0 %v461
      %626 = vmatpush.msra.mxu0 %v460
      %627 = vmatpush.msra.mxu0 %v459
      %628 = vmatpush.msra.mxu0 %v458
      %629 = vmatpush.msra.mxu0 %v457
      %630 = vmatpush.msra.mxu0 %v456
      %631 = vmatpush.msra.mxu0 %v455
      %632 = vmatpush.msra.mxu0 %v454
      %633 = vmatpush.msra.mxu0 %v453
      %634 = vmatpush.msra.mxu0 %v452
      %635 = vmatmul.f32.gmra.mxu0 %v420
      %v636 = vpop.f32.mrf.mxu0
      %v637 = vadd.f32 %v572, %v636
      %638 = vmatmul.f32.gmra.mxu0 %v422
      %v639 = vpop.f32.mrf.mxu0
      %v640 = vadd.f32 %v575, %v639
      %641 = vmatmul.f32.gmra.mxu0 %v424
      %v642 = vpop.f32.mrf.mxu0
      %v643 = vadd.f32 %v578, %v642
      %644 = vmatmul.f32.gmra.mxu0 %v426
      %v645 = vpop.f32.mrf.mxu0
      %v646 = vadd.f32 %v581, %v645
      %647 = vmatmul.f32.gmra.mxu0 %v428
      %v648 = vpop.f32.mrf.mxu0
      %v649 = vadd.f32 %v584, %v648
      %650 = vmatmul.f32.gmra.mxu0 %v430
      %v651 = vpop.f32.mrf.mxu0
      %v652 = vadd.f32 %v587, %v651
      %653 = vmatmul.f32.gmra.mxu0 %v432
      %v654 = vpop.f32.mrf.mxu0
      %v655 = vadd.f32 %v590, %v654
      %656 = vmatmul.f32.gmra.mxu0 %v434
      %v657 = vpop.f32.mrf.mxu0
      %v658 = vadd.f32 %v593, %v657
      %659 = vdwg.mxu0
      %660 = vmatpush.msra.mxu0 0.0
      %661 = vmatpush.msra.mxu0 0.0
      %662 = vmatpush.msra.mxu0 0.0
      %663 = vmatpush.msra.mxu0 0.0
      %664 = vmatpush.msra.mxu0 0.0
      %665 = vmatpush.msra.mxu0 0.0
      %666 = vmatpush.msra.mxu0 0.0
      %667 = vmatpush.msra.mxu0 0.0
      %668 = vmatpush.msra.mxu0 0.0
      %669 = vmatpush.msra.mxu0 0.0
      %670 = vmatpush.msra.mxu0 0.0
      %671 = vmatpush.msra.mxu0 0.0
      %672 = vmatpush.msra.mxu0 0.0
      %673 = vmatpush.msra.mxu0 0.0
      %674 = vmatpush.msra.mxu0 %v469
      %675 = vmatpush.msra.mxu0 %v468
      %676 = vmatmul.f32.gmra.mxu0 %v596
      %v677 = vpop.f32.mrf.mxu0
      %v678 = vadd.f32 %v637, %v677
      %679 = vmatmul.f32.gmra.mxu0 %v599
      %v680 = vpop.f32.mrf.mxu0
      %v681 = vadd.f32 %v640, %v680
      %682 = vmatmul.f32.gmra.mxu0 %v602
      %v683 = vpop.f32.mrf.mxu0
      %v684 = vadd.f32 %v643, %v683
      %685 = vmatmul.f32.gmra.mxu0 %v605
      %v686 = vpop.f32.mrf.mxu0
      %v687 = vadd.f32 %v646, %v686
      %688 = vmatmul.f32.gmra.mxu0 %v608
      %v689 = vpop.f32.mrf.mxu0
      %v690 = vadd.f32 %v649, %v689
      %691 = vmatmul.f32.gmra.mxu0 %v611
      %v692 = vpop.f32.mrf.mxu0
      %v693 = vadd.f32 %v652, %v692
      %694 = vmatmul.f32.gmra.mxu0 %v614
      %v695 = vpop.f32.mrf.mxu0
      %v696 = vadd.f32 %v655, %v695
      %697 = vmatmul.f32.gmra.mxu0 %v617
      %v698 = vpop.f32.mrf.mxu0
      %v699 = vadd.f32 %v658, %v698
      %700 = vdwg.mxu0
      %v701 = vld [vmem:[%s5] sm:$0x1]
      %v703 = vperm.slane %v701, 0
      %v705 = vadd.f32 %v678, %v703
      %v706 = vadd.f32 %v681, %v703
      %v707 = vadd.f32 %v684, %v703
      %v708 = vadd.f32 %v687, %v703
      %v709 = vadd.f32 %v690, %v703
      %v710 = vadd.f32 %v693, %v703
      %v711 = vadd.f32 %v696, %v703
      %v712 = vadd.f32 %v699, %v703
      %v713 = vmul.f32 %v705, 0.5
      %v714 = vmul.f32 %v706, 0.5
      %v715 = vmul.f32 %v707, 0.5
      %v716 = vmul.f32 %v708, 0.5
      %v717 = vmul.f32 %v709, 0.5
      %v718 = vmul.f32 %v710, 0.5
      %v719 = vmul.f32 %v711, 0.5
      %v720 = vmul.f32 %v712, 0.5
      %v721 = vtanh.pop %v713
      %v722 = vtanh.pop %v714
      %v723 = vtanh.pop %v715
      %v724 = vtanh.pop %v716
      %v725 = vtanh.pop %v717
      %v726 = vtanh.pop %v718
      %v727 = vtanh.pop %v719
      %v728 = vtanh.pop %v720
      %v729 = vadd.f32 %v721, 1.0
      %v730 = vadd.f32 %v722, 1.0
      %v731 = vadd.f32 %v723, 1.0
      %v732 = vadd.f32 %v724, 1.0
      %v733 = vadd.f32 %v725, 1.0
      %v734 = vadd.f32 %v726, 1.0
      %v735 = vadd.f32 %v727, 1.0
      %v736 = vadd.f32 %v728, 1.0
      %v737 = vmul.f32 %v729, 0.5
      %v738 = vmul.f32 %v730, 0.5
      %v739 = vmul.f32 %v731, 0.5
      %v740 = vmul.f32 %v732, 0.5
      %v741 = vmul.f32 %v733, 0.5
      %v742 = vmul.f32 %v734, 0.5
      %v743 = vmul.f32 %v735, 0.5
      %v744 = vmul.f32 %v736, 0.5
      %s745 = scalar_lea.vmem %s3, 144
      %v746 = vld [vmem:[%s745] sm:$0xff]
      %v747 = vld [vmem:[%s745 + $0x8] sm:$0xff]
      %v748 = vld [vmem:[%s745 + $0x10] sm:$0xff]
      %v749 = vld [vmem:[%s745 + $0x18] sm:$0xff]
      %v750 = vld [vmem:[%s745 + $0x20] sm:$0xff]
      %v751 = vld [vmem:[%s745 + $0x28] sm:$0xff]
      %v752 = vld [vmem:[%s745 + $0x30] sm:$0xff]
      %v753 = vld [vmem:[%s745 + $0x38] sm:$0xff]
      %v754 = vld [vmem:[%s745 + $0x40] sm:$0xff]
      %v755 = vld [vmem:[%s745 + $0x48] sm:$0xff]
      %v756 = vld [vmem:[%s745 + $0x50] sm:$0xff]
      %v757 = vld [vmem:[%s745 + $0x58] sm:$0xff]
      %v758 = vld [vmem:[%s745 + $0x60] sm:$0xff]
      %v759 = vld [vmem:[%s745 + $0x68] sm:$0xff]
      %v760 = vld [vmem:[%s745 + $0x70] sm:$0xff]
      %v761 = vld [vmem:[%s745 + $0x78] sm:$0xff]
      %v762 = vld [vmem:[%s745 + $0x80] sm:$0xff]
      %v763 = vld [vmem:[%s745 + $0x88] sm:$0xff]
      %s764 = scalar_lea.vmem %s4, 144
      %v765 = vld [vmem:[%s764] sm:$0xff]
      %v766 = vld [vmem:[%s764 + $0x8] sm:$0xff]
      %v767 = vld [vmem:[%s764 + $0x10] sm:$0xff]
      %v768 = vld [vmem:[%s764 + $0x18] sm:$0xff]
      %v769 = vld [vmem:[%s764 + $0x20] sm:$0xff]
      %v770 = vld [vmem:[%s764 + $0x28] sm:$0xff]
      %v771 = vld [vmem:[%s764 + $0x30] sm:$0xff]
      %v772 = vld [vmem:[%s764 + $0x38] sm:$0xff]
      %v773 = vld [vmem:[%s764 + $0x40] sm:$0xff]
      %v774 = vld [vmem:[%s764 + $0x48] sm:$0xff]
      %v775 = vld [vmem:[%s764 + $0x50] sm:$0xff]
      %v776 = vld [vmem:[%s764 + $0x58] sm:$0xff]
      %v777 = vld [vmem:[%s764 + $0x60] sm:$0xff]
      %v778 = vld [vmem:[%s764 + $0x68] sm:$0xff]
      %v779 = vld [vmem:[%s764 + $0x70] sm:$0xff]
      %v780 = vld [vmem:[%s764 + $0x78] sm:$0xff]
      %v781 = vld [vmem:[%s764 + $0x80] sm:$0xff]
      %v782 = vld [vmem:[%s764 + $0x88] sm:$0xff]
      %783 = vmatpush.msra.mxu0 %v780
      %784 = vmatpush.msra.mxu0 %v779
      %785 = vmatpush.msra.mxu0 %v778
      %786 = vmatpush.msra.mxu0 %v777
      %787 = vmatpush.msra.mxu0 %v776
      %788 = vmatpush.msra.mxu0 %v775
      %789 = vmatpush.msra.mxu0 %v774
      %790 = vmatpush.msra.mxu0 %v773
      %791 = vmatpush.msra.mxu0 %v772
      %792 = vmatpush.msra.mxu0 %v771
      %793 = vmatpush.msra.mxu0 %v770
      %794 = vmatpush.msra.mxu0 %v769
      %795 = vmatpush.msra.mxu0 %v768
      %796 = vmatpush.msra.mxu0 %v767
      %797 = vmatpush.msra.mxu0 %v766
      %798 = vmatpush.msra.mxu0 %v765
      %799 = vmatmul.f32.gmra.mxu0 %v436
      %v800 = vpop.f32.mrf.mxu0
      %v801 = vadd.f32 0.0, %v800
      %802 = vmatmul.f32.gmra.mxu0 %v438
      %v803 = vpop.f32.mrf.mxu0
      %v804 = vadd.f32 0.0, %v803
      %805 = vmatmul.f32.gmra.mxu0 %v440
      %v806 = vpop.f32.mrf.mxu0
      %v807 = vadd.f32 0.0, %v806
      %808 = vmatmul.f32.gmra.mxu0 %v442
      %v809 = vpop.f32.mrf.mxu0
      %v810 = vadd.f32 0.0, %v809
      %811 = vmatmul.f32.gmra.mxu0 %v444
      %v812 = vpop.f32.mrf.mxu0
      %v813 = vadd.f32 0.0, %v812
      %814 = vmatmul.f32.gmra.mxu0 %v446
      %v815 = vpop.f32.mrf.mxu0
      %v816 = vadd.f32 0.0, %v815
      %817 = vmatmul.f32.gmra.mxu0 %v448
      %v818 = vpop.f32.mrf.mxu0
      %v819 = vadd.f32 0.0, %v818
      %820 = vmatmul.f32.gmra.mxu0 %v450
      %v821 = vpop.f32.mrf.mxu0
      %v822 = vadd.f32 0.0, %v821
      %823 = vdwg.mxu0
      %824 = vmatpush.msra.mxu0 0.0
      %825 = vmatpush.msra.mxu0 0.0
      %826 = vmatpush.msra.mxu0 0.0
      %827 = vmatpush.msra.mxu0 0.0
      %828 = vmatpush.msra.mxu0 0.0
      %829 = vmatpush.msra.mxu0 0.0
      %830 = vmatpush.msra.mxu0 0.0
      %831 = vmatpush.msra.mxu0 0.0
      %832 = vmatpush.msra.mxu0 0.0
      %833 = vmatpush.msra.mxu0 0.0
      %834 = vmatpush.msra.mxu0 0.0
      %835 = vmatpush.msra.mxu0 0.0
      %836 = vmatpush.msra.mxu0 0.0
      %837 = vmatpush.msra.mxu0 0.0
      %838 = vmatpush.msra.mxu0 %v782
      %839 = vmatpush.msra.mxu0 %v781
      %840 = vmatmul.f32.gmra.mxu0 %v490
      %v841 = vpop.f32.mrf.mxu0
      %v842 = vadd.f32 %v801, %v841
      %843 = vmatmul.f32.gmra.mxu0 %v493
      %v844 = vpop.f32.mrf.mxu0
      %v845 = vadd.f32 %v804, %v844
      %846 = vmatmul.f32.gmra.mxu0 %v496
      %v847 = vpop.f32.mrf.mxu0
      %v848 = vadd.f32 %v807, %v847
      %849 = vmatmul.f32.gmra.mxu0 %v499
      %v850 = vpop.f32.mrf.mxu0
      %v851 = vadd.f32 %v810, %v850
      %852 = vmatmul.f32.gmra.mxu0 %v502
      %v853 = vpop.f32.mrf.mxu0
      %v854 = vadd.f32 %v813, %v853
      %855 = vmatmul.f32.gmra.mxu0 %v505
      %v856 = vpop.f32.mrf.mxu0
      %v857 = vadd.f32 %v816, %v856
      %858 = vmatmul.f32.gmra.mxu0 %v508
      %v859 = vpop.f32.mrf.mxu0
      %v860 = vadd.f32 %v819, %v859
      %861 = vmatmul.f32.gmra.mxu0 %v511
      %v862 = vpop.f32.mrf.mxu0
      %v863 = vadd.f32 %v822, %v862
      %864 = vdwg.mxu0
      %865 = vmatpush.msra.mxu0 %v761
      %866 = vmatpush.msra.mxu0 %v760
      %867 = vmatpush.msra.mxu0 %v759
      %868 = vmatpush.msra.mxu0 %v758
      %869 = vmatpush.msra.mxu0 %v757
      %870 = vmatpush.msra.mxu0 %v756
      %871 = vmatpush.msra.mxu0 %v755
      %872 = vmatpush.msra.mxu0 %v754
      %873 = vmatpush.msra.mxu0 %v753
      %874 = vmatpush.msra.mxu0 %v752
      %875 = vmatpush.msra.mxu0 %v751
      %876 = vmatpush.msra.mxu0 %v750
      %877 = vmatpush.msra.mxu0 %v749
      %878 = vmatpush.msra.mxu0 %v748
      %879 = vmatpush.msra.mxu0 %v747
      %880 = vmatpush.msra.mxu0 %v746
      %881 = vmatmul.f32.gmra.mxu0 %v420
      %v882 = vpop.f32.mrf.mxu0
      %v883 = vadd.f32 %v842, %v882
      %884 = vmatmul.f32.gmra.mxu0 %v422
      %v885 = vpop.f32.mrf.mxu0
      %v886 = vadd.f32 %v845, %v885
      %887 = vmatmul.f32.gmra.mxu0 %v424
      %v888 = vpop.f32.mrf.mxu0
      %v889 = vadd.f32 %v848, %v888
      %890 = vmatmul.f32.gmra.mxu0 %v426
      %v891 = vpop.f32.mrf.mxu0
      %v892 = vadd.f32 %v851, %v891
      %893 = vmatmul.f32.gmra.mxu0 %v428
      %v894 = vpop.f32.mrf.mxu0
      %v895 = vadd.f32 %v854, %v894
      %896 = vmatmul.f32.gmra.mxu0 %v430
      %v897 = vpop.f32.mrf.mxu0
      %v898 = vadd.f32 %v857, %v897
      %899 = vmatmul.f32.gmra.mxu0 %v432
      %v900 = vpop.f32.mrf.mxu0
      %v901 = vadd.f32 %v860, %v900
      %902 = vmatmul.f32.gmra.mxu0 %v434
      %v903 = vpop.f32.mrf.mxu0
      %v904 = vadd.f32 %v863, %v903
      %905 = vdwg.mxu0
      %906 = vmatpush.msra.mxu0 0.0
      %907 = vmatpush.msra.mxu0 0.0
      %908 = vmatpush.msra.mxu0 0.0
      %909 = vmatpush.msra.mxu0 0.0
      %910 = vmatpush.msra.mxu0 0.0
      %911 = vmatpush.msra.mxu0 0.0
      %912 = vmatpush.msra.mxu0 0.0
      %913 = vmatpush.msra.mxu0 0.0
      %914 = vmatpush.msra.mxu0 0.0
      %915 = vmatpush.msra.mxu0 0.0
      %916 = vmatpush.msra.mxu0 0.0
      %917 = vmatpush.msra.mxu0 0.0
      %918 = vmatpush.msra.mxu0 0.0
      %919 = vmatpush.msra.mxu0 0.0
      %920 = vmatpush.msra.mxu0 %v763
      %921 = vmatpush.msra.mxu0 %v762
      %922 = vmatmul.f32.gmra.mxu0 %v596
      %v923 = vpop.f32.mrf.mxu0
      %v924 = vadd.f32 %v883, %v923
      %925 = vmatmul.f32.gmra.mxu0 %v599
      %v926 = vpop.f32.mrf.mxu0
      %v927 = vadd.f32 %v886, %v926
      %928 = vmatmul.f32.gmra.mxu0 %v602
      %v929 = vpop.f32.mrf.mxu0
      %v930 = vadd.f32 %v889, %v929
      %931 = vmatmul.f32.gmra.mxu0 %v605
      %v932 = vpop.f32.mrf.mxu0
      %v933 = vadd.f32 %v892, %v932
      %934 = vmatmul.f32.gmra.mxu0 %v608
      %v935 = vpop.f32.mrf.mxu0
      %v936 = vadd.f32 %v895, %v935
      %937 = vmatmul.f32.gmra.mxu0 %v611
      %v938 = vpop.f32.mrf.mxu0
      %v939 = vadd.f32 %v898, %v938
      %940 = vmatmul.f32.gmra.mxu0 %v614
      %v941 = vpop.f32.mrf.mxu0
      %v942 = vadd.f32 %v901, %v941
      %943 = vmatmul.f32.gmra.mxu0 %v617
      %v944 = vpop.f32.mrf.mxu0
      %v945 = vadd.f32 %v904, %v944
      %946 = vdwg.mxu0
      %s947 = scalar_lea.vmem %s5, 1
      %v948 = vld [vmem:[%s947] sm:$0x1]
      %v950 = vperm.slane %v948, 0
      %v952 = vadd.f32 %v924, %v950
      %v953 = vadd.f32 %v927, %v950
      %v954 = vadd.f32 %v930, %v950
      %v955 = vadd.f32 %v933, %v950
      %v956 = vadd.f32 %v936, %v950
      %v957 = vadd.f32 %v939, %v950
      %v958 = vadd.f32 %v942, %v950
      %v959 = vadd.f32 %v945, %v950
      %v960 = vmul.f32 %v952, 0.5
      %v961 = vmul.f32 %v953, 0.5
      %v962 = vmul.f32 %v954, 0.5
      %v963 = vmul.f32 %v955, 0.5
      %v964 = vmul.f32 %v956, 0.5
      %v965 = vmul.f32 %v957, 0.5
      %v966 = vmul.f32 %v958, 0.5
      %v967 = vmul.f32 %v959, 0.5
      %v968 = vtanh.pop %v960
      %v969 = vtanh.pop %v961
      %v970 = vtanh.pop %v962
      %v971 = vtanh.pop %v963
      %v972 = vtanh.pop %v964
      %v973 = vtanh.pop %v965
      %v974 = vtanh.pop %v966
      %v975 = vtanh.pop %v967
      %v976 = vadd.f32 %v968, 1.0
      %v977 = vadd.f32 %v969, 1.0
      %v978 = vadd.f32 %v970, 1.0
      %v979 = vadd.f32 %v971, 1.0
      %v980 = vadd.f32 %v972, 1.0
      %v981 = vadd.f32 %v973, 1.0
      %v982 = vadd.f32 %v974, 1.0
      %v983 = vadd.f32 %v975, 1.0
      %v984 = vmul.f32 %v976, 0.5
      %v985 = vmul.f32 %v977, 0.5
      %v986 = vmul.f32 %v978, 0.5
      %v987 = vmul.f32 %v979, 0.5
      %v988 = vmul.f32 %v980, 0.5
      %v989 = vmul.f32 %v981, 0.5
      %v990 = vmul.f32 %v982, 0.5
      %v991 = vmul.f32 %v983, 0.5
      %s992 = scalar_lea.vmem %s3, 288
      %v993 = vld [vmem:[%s992] sm:$0xff]
      %v994 = vld [vmem:[%s992 + $0x8] sm:$0xff]
      %v995 = vld [vmem:[%s992 + $0x10] sm:$0xff]
      %v996 = vld [vmem:[%s992 + $0x18] sm:$0xff]
      %v997 = vld [vmem:[%s992 + $0x20] sm:$0xff]
      %v998 = vld [vmem:[%s992 + $0x28] sm:$0xff]
      %v999 = vld [vmem:[%s992 + $0x30] sm:$0xff]
      %v1000 = vld [vmem:[%s992 + $0x38] sm:$0xff]
      %v1001 = vld [vmem:[%s992 + $0x40] sm:$0xff]
      %v1002 = vld [vmem:[%s992 + $0x48] sm:$0xff]
      %v1003 = vld [vmem:[%s992 + $0x50] sm:$0xff]
      %v1004 = vld [vmem:[%s992 + $0x58] sm:$0xff]
      %v1005 = vld [vmem:[%s992 + $0x60] sm:$0xff]
      %v1006 = vld [vmem:[%s992 + $0x68] sm:$0xff]
      %v1007 = vld [vmem:[%s992 + $0x70] sm:$0xff]
      %v1008 = vld [vmem:[%s992 + $0x78] sm:$0xff]
      %v1009 = vld [vmem:[%s992 + $0x80] sm:$0xff]
      %v1010 = vld [vmem:[%s992 + $0x88] sm:$0xff]
      %s1011 = scalar_lea.vmem %s4, 288
      %v1012 = vld [vmem:[%s1011] sm:$0xff]
      %v1013 = vld [vmem:[%s1011 + $0x8] sm:$0xff]
      %v1014 = vld [vmem:[%s1011 + $0x10] sm:$0xff]
      %v1015 = vld [vmem:[%s1011 + $0x18] sm:$0xff]
      %v1016 = vld [vmem:[%s1011 + $0x20] sm:$0xff]
      %v1017 = vld [vmem:[%s1011 + $0x28] sm:$0xff]
      %v1018 = vld [vmem:[%s1011 + $0x30] sm:$0xff]
      %v1019 = vld [vmem:[%s1011 + $0x38] sm:$0xff]
      %v1020 = vld [vmem:[%s1011 + $0x40] sm:$0xff]
      %v1021 = vld [vmem:[%s1011 + $0x48] sm:$0xff]
      %v1022 = vld [vmem:[%s1011 + $0x50] sm:$0xff]
      %v1023 = vld [vmem:[%s1011 + $0x58] sm:$0xff]
      %v1024 = vld [vmem:[%s1011 + $0x60] sm:$0xff]
      %v1025 = vld [vmem:[%s1011 + $0x68] sm:$0xff]
      %v1026 = vld [vmem:[%s1011 + $0x70] sm:$0xff]
      %v1027 = vld [vmem:[%s1011 + $0x78] sm:$0xff]
      %v1028 = vld [vmem:[%s1011 + $0x80] sm:$0xff]
      %v1029 = vld [vmem:[%s1011 + $0x88] sm:$0xff]
      %1030 = vmatpush.msra.mxu0 %v1027
      %1031 = vmatpush.msra.mxu0 %v1026
      %1032 = vmatpush.msra.mxu0 %v1025
      %1033 = vmatpush.msra.mxu0 %v1024
      %1034 = vmatpush.msra.mxu0 %v1023
      %1035 = vmatpush.msra.mxu0 %v1022
      %1036 = vmatpush.msra.mxu0 %v1021
      %1037 = vmatpush.msra.mxu0 %v1020
      %1038 = vmatpush.msra.mxu0 %v1019
      %1039 = vmatpush.msra.mxu0 %v1018
      %1040 = vmatpush.msra.mxu0 %v1017
      %1041 = vmatpush.msra.mxu0 %v1016
      %1042 = vmatpush.msra.mxu0 %v1015
      %1043 = vmatpush.msra.mxu0 %v1014
      %1044 = vmatpush.msra.mxu0 %v1013
      %1045 = vmatpush.msra.mxu0 %v1012
      %1046 = vmatmul.f32.gmra.mxu0 %v436
      %v1047 = vpop.f32.mrf.mxu0
      %v1048 = vadd.f32 0.0, %v1047
      %1049 = vmatmul.f32.gmra.mxu0 %v438
      %v1050 = vpop.f32.mrf.mxu0
      %v1051 = vadd.f32 0.0, %v1050
      %1052 = vmatmul.f32.gmra.mxu0 %v440
      %v1053 = vpop.f32.mrf.mxu0
      %v1054 = vadd.f32 0.0, %v1053
      %1055 = vmatmul.f32.gmra.mxu0 %v442
      %v1056 = vpop.f32.mrf.mxu0
      %v1057 = vadd.f32 0.0, %v1056
      %1058 = vmatmul.f32.gmra.mxu0 %v444
      %v1059 = vpop.f32.mrf.mxu0
      %v1060 = vadd.f32 0.0, %v1059
      %1061 = vmatmul.f32.gmra.mxu0 %v446
      %v1062 = vpop.f32.mrf.mxu0
      %v1063 = vadd.f32 0.0, %v1062
      %1064 = vmatmul.f32.gmra.mxu0 %v448
      %v1065 = vpop.f32.mrf.mxu0
      %v1066 = vadd.f32 0.0, %v1065
      %1067 = vmatmul.f32.gmra.mxu0 %v450
      %v1068 = vpop.f32.mrf.mxu0
      %v1069 = vadd.f32 0.0, %v1068
      %1070 = vdwg.mxu0
      %1071 = vmatpush.msra.mxu0 0.0
      %1072 = vmatpush.msra.mxu0 0.0
      %1073 = vmatpush.msra.mxu0 0.0
      %1074 = vmatpush.msra.mxu0 0.0
      %1075 = vmatpush.msra.mxu0 0.0
      %1076 = vmatpush.msra.mxu0 0.0
      %1077 = vmatpush.msra.mxu0 0.0
      %1078 = vmatpush.msra.mxu0 0.0
      %1079 = vmatpush.msra.mxu0 0.0
      %1080 = vmatpush.msra.mxu0 0.0
      %1081 = vmatpush.msra.mxu0 0.0
      %1082 = vmatpush.msra.mxu0 0.0
      %1083 = vmatpush.msra.mxu0 0.0
      %1084 = vmatpush.msra.mxu0 0.0
      %1085 = vmatpush.msra.mxu0 %v1029
      %1086 = vmatpush.msra.mxu0 %v1028
      %1087 = vmatmul.f32.gmra.mxu0 %v490
      %v1088 = vpop.f32.mrf.mxu0
      %v1089 = vadd.f32 %v1048, %v1088
      %1090 = vmatmul.f32.gmra.mxu0 %v493
      %v1091 = vpop.f32.mrf.mxu0
      %v1092 = vadd.f32 %v1051, %v1091
      %1093 = vmatmul.f32.gmra.mxu0 %v496
      %v1094 = vpop.f32.mrf.mxu0
      %v1095 = vadd.f32 %v1054, %v1094
      %1096 = vmatmul.f32.gmra.mxu0 %v499
      %v1097 = vpop.f32.mrf.mxu0
      %v1098 = vadd.f32 %v1057, %v1097
      %1099 = vmatmul.f32.gmra.mxu0 %v502
      %v1100 = vpop.f32.mrf.mxu0
      %v1101 = vadd.f32 %v1060, %v1100
      %1102 = vmatmul.f32.gmra.mxu0 %v505
      %v1103 = vpop.f32.mrf.mxu0
      %v1104 = vadd.f32 %v1063, %v1103
      %1105 = vmatmul.f32.gmra.mxu0 %v508
      %v1106 = vpop.f32.mrf.mxu0
      %v1107 = vadd.f32 %v1066, %v1106
      %1108 = vmatmul.f32.gmra.mxu0 %v511
      %v1109 = vpop.f32.mrf.mxu0
      %v1110 = vadd.f32 %v1069, %v1109
      %1111 = vdwg.mxu0
      %1112 = vmatpush.msra.mxu0 %v1008
      %1113 = vmatpush.msra.mxu0 %v1007
      %1114 = vmatpush.msra.mxu0 %v1006
      %1115 = vmatpush.msra.mxu0 %v1005
      %1116 = vmatpush.msra.mxu0 %v1004
      %1117 = vmatpush.msra.mxu0 %v1003
      %1118 = vmatpush.msra.mxu0 %v1002
      %1119 = vmatpush.msra.mxu0 %v1001
      %1120 = vmatpush.msra.mxu0 %v1000
      %1121 = vmatpush.msra.mxu0 %v999
      %1122 = vmatpush.msra.mxu0 %v998
      %1123 = vmatpush.msra.mxu0 %v997
      %1124 = vmatpush.msra.mxu0 %v996
      %1125 = vmatpush.msra.mxu0 %v995
      %1126 = vmatpush.msra.mxu0 %v994
      %1127 = vmatpush.msra.mxu0 %v993
      %1128 = vmatmul.f32.gmra.mxu0 %v420
      %v1129 = vpop.f32.mrf.mxu0
      %v1130 = vadd.f32 %v1089, %v1129
      %1131 = vmatmul.f32.gmra.mxu0 %v422
      %v1132 = vpop.f32.mrf.mxu0
      %v1133 = vadd.f32 %v1092, %v1132
      %1134 = vmatmul.f32.gmra.mxu0 %v424
      %v1135 = vpop.f32.mrf.mxu0
      %v1136 = vadd.f32 %v1095, %v1135
      %1137 = vmatmul.f32.gmra.mxu0 %v426
      %v1138 = vpop.f32.mrf.mxu0
      %v1139 = vadd.f32 %v1098, %v1138
      %1140 = vmatmul.f32.gmra.mxu0 %v428
      %v1141 = vpop.f32.mrf.mxu0
      %v1142 = vadd.f32 %v1101, %v1141
      %1143 = vmatmul.f32.gmra.mxu0 %v430
      %v1144 = vpop.f32.mrf.mxu0
      %v1145 = vadd.f32 %v1104, %v1144
      %1146 = vmatmul.f32.gmra.mxu0 %v432
      %v1147 = vpop.f32.mrf.mxu0
      %v1148 = vadd.f32 %v1107, %v1147
      %1149 = vmatmul.f32.gmra.mxu0 %v434
      %v1150 = vpop.f32.mrf.mxu0
      %v1151 = vadd.f32 %v1110, %v1150
      %1152 = vdwg.mxu0
      %1153 = vmatpush.msra.mxu0 0.0
      %1154 = vmatpush.msra.mxu0 0.0
      %1155 = vmatpush.msra.mxu0 0.0
      %1156 = vmatpush.msra.mxu0 0.0
      %1157 = vmatpush.msra.mxu0 0.0
      %1158 = vmatpush.msra.mxu0 0.0
      %1159 = vmatpush.msra.mxu0 0.0
      %1160 = vmatpush.msra.mxu0 0.0
      %1161 = vmatpush.msra.mxu0 0.0
      %1162 = vmatpush.msra.mxu0 0.0
      %1163 = vmatpush.msra.mxu0 0.0
      %1164 = vmatpush.msra.mxu0 0.0
      %1165 = vmatpush.msra.mxu0 0.0
      %1166 = vmatpush.msra.mxu0 0.0
      %1167 = vmatpush.msra.mxu0 %v1010
      %1168 = vmatpush.msra.mxu0 %v1009
      %1169 = vmatmul.f32.gmra.mxu0 %v596
      %v1170 = vpop.f32.mrf.mxu0
      %v1171 = vadd.f32 %v1130, %v1170
      %1172 = vmatmul.f32.gmra.mxu0 %v599
      %v1173 = vpop.f32.mrf.mxu0
      %v1174 = vadd.f32 %v1133, %v1173
      %1175 = vmatmul.f32.gmra.mxu0 %v602
      %v1176 = vpop.f32.mrf.mxu0
      %v1177 = vadd.f32 %v1136, %v1176
      %1178 = vmatmul.f32.gmra.mxu0 %v605
      %v1179 = vpop.f32.mrf.mxu0
      %v1180 = vadd.f32 %v1139, %v1179
      %1181 = vmatmul.f32.gmra.mxu0 %v608
      %v1182 = vpop.f32.mrf.mxu0
      %v1183 = vadd.f32 %v1142, %v1182
      %1184 = vmatmul.f32.gmra.mxu0 %v611
      %v1185 = vpop.f32.mrf.mxu0
      %v1186 = vadd.f32 %v1145, %v1185
      %1187 = vmatmul.f32.gmra.mxu0 %v614
      %v1188 = vpop.f32.mrf.mxu0
      %v1189 = vadd.f32 %v1148, %v1188
      %1190 = vmatmul.f32.gmra.mxu0 %v617
      %v1191 = vpop.f32.mrf.mxu0
      %v1192 = vadd.f32 %v1151, %v1191
      %1193 = vdwg.mxu0
      %s1194 = scalar_lea.vmem %s5, 2
      %v1195 = vld [vmem:[%s1194] sm:$0x1]
      %v1197 = vperm.slane %v1195, 0
      %v1199 = vadd.f32 %v1171, %v1197
      %v1200 = vadd.f32 %v1174, %v1197
      %v1201 = vadd.f32 %v1177, %v1197
      %v1202 = vadd.f32 %v1180, %v1197
      %v1203 = vadd.f32 %v1183, %v1197
      %v1204 = vadd.f32 %v1186, %v1197
      %v1205 = vadd.f32 %v1189, %v1197
      %v1206 = vadd.f32 %v1192, %v1197
      %v1207 = vmul.f32 %v1199, 0.5
      %v1208 = vmul.f32 %v1200, 0.5
      %v1209 = vmul.f32 %v1201, 0.5
      %v1210 = vmul.f32 %v1202, 0.5
      %v1211 = vmul.f32 %v1203, 0.5
      %v1212 = vmul.f32 %v1204, 0.5
      %v1213 = vmul.f32 %v1205, 0.5
      %v1214 = vmul.f32 %v1206, 0.5
      %v1215 = vtanh.pop %v1207
      %v1216 = vtanh.pop %v1208
      %v1217 = vtanh.pop %v1209
      %v1218 = vtanh.pop %v1210
      %v1219 = vtanh.pop %v1211
      %v1220 = vtanh.pop %v1212
      %v1221 = vtanh.pop %v1213
      %v1222 = vtanh.pop %v1214
      %v1223 = vadd.f32 %v1215, 1.0
      %v1224 = vadd.f32 %v1216, 1.0
      %v1225 = vadd.f32 %v1217, 1.0
      %v1226 = vadd.f32 %v1218, 1.0
      %v1227 = vadd.f32 %v1219, 1.0
      %v1228 = vadd.f32 %v1220, 1.0
      %v1229 = vadd.f32 %v1221, 1.0
      %v1230 = vadd.f32 %v1222, 1.0
      %v1231 = vmul.f32 %v1223, 0.5
      %v1232 = vmul.f32 %v1224, 0.5
      %v1233 = vmul.f32 %v1225, 0.5
      %v1234 = vmul.f32 %v1226, 0.5
      %v1235 = vmul.f32 %v1227, 0.5
      %v1236 = vmul.f32 %v1228, 0.5
      %v1237 = vmul.f32 %v1229, 0.5
      %v1238 = vmul.f32 %v1230, 0.5
      %s1239 = scalar_lea.vmem %s3, 432
      %v1240 = vld [vmem:[%s1239] sm:$0xff]
      %v1241 = vld [vmem:[%s1239 + $0x8] sm:$0xff]
      %v1242 = vld [vmem:[%s1239 + $0x10] sm:$0xff]
      %v1243 = vld [vmem:[%s1239 + $0x18] sm:$0xff]
      %v1244 = vld [vmem:[%s1239 + $0x20] sm:$0xff]
      %v1245 = vld [vmem:[%s1239 + $0x28] sm:$0xff]
      %v1246 = vld [vmem:[%s1239 + $0x30] sm:$0xff]
      %v1247 = vld [vmem:[%s1239 + $0x38] sm:$0xff]
      %v1248 = vld [vmem:[%s1239 + $0x40] sm:$0xff]
      %v1249 = vld [vmem:[%s1239 + $0x48] sm:$0xff]
      %v1250 = vld [vmem:[%s1239 + $0x50] sm:$0xff]
      %v1251 = vld [vmem:[%s1239 + $0x58] sm:$0xff]
      %v1252 = vld [vmem:[%s1239 + $0x60] sm:$0xff]
      %v1253 = vld [vmem:[%s1239 + $0x68] sm:$0xff]
      %v1254 = vld [vmem:[%s1239 + $0x70] sm:$0xff]
      %v1255 = vld [vmem:[%s1239 + $0x78] sm:$0xff]
      %v1256 = vld [vmem:[%s1239 + $0x80] sm:$0xff]
      %v1257 = vld [vmem:[%s1239 + $0x88] sm:$0xff]
      %s1258 = scalar_lea.vmem %s4, 432
      %v1259 = vld [vmem:[%s1258] sm:$0xff]
      %v1260 = vld [vmem:[%s1258 + $0x8] sm:$0xff]
      %v1261 = vld [vmem:[%s1258 + $0x10] sm:$0xff]
      %v1262 = vld [vmem:[%s1258 + $0x18] sm:$0xff]
      %v1263 = vld [vmem:[%s1258 + $0x20] sm:$0xff]
      %v1264 = vld [vmem:[%s1258 + $0x28] sm:$0xff]
      %v1265 = vld [vmem:[%s1258 + $0x30] sm:$0xff]
      %v1266 = vld [vmem:[%s1258 + $0x38] sm:$0xff]
      %v1267 = vld [vmem:[%s1258 + $0x40] sm:$0xff]
      %v1268 = vld [vmem:[%s1258 + $0x48] sm:$0xff]
      %v1269 = vld [vmem:[%s1258 + $0x50] sm:$0xff]
      %v1270 = vld [vmem:[%s1258 + $0x58] sm:$0xff]
      %v1271 = vld [vmem:[%s1258 + $0x60] sm:$0xff]
      %v1272 = vld [vmem:[%s1258 + $0x68] sm:$0xff]
      %v1273 = vld [vmem:[%s1258 + $0x70] sm:$0xff]
      %v1274 = vld [vmem:[%s1258 + $0x78] sm:$0xff]
      %v1275 = vld [vmem:[%s1258 + $0x80] sm:$0xff]
      %v1276 = vld [vmem:[%s1258 + $0x88] sm:$0xff]
      %1277 = vmatpush.msra.mxu0 %v1274
      %1278 = vmatpush.msra.mxu0 %v1273
      %1279 = vmatpush.msra.mxu0 %v1272
      %1280 = vmatpush.msra.mxu0 %v1271
      %1281 = vmatpush.msra.mxu0 %v1270
      %1282 = vmatpush.msra.mxu0 %v1269
      %1283 = vmatpush.msra.mxu0 %v1268
      %1284 = vmatpush.msra.mxu0 %v1267
      %1285 = vmatpush.msra.mxu0 %v1266
      %1286 = vmatpush.msra.mxu0 %v1265
      %1287 = vmatpush.msra.mxu0 %v1264
      %1288 = vmatpush.msra.mxu0 %v1263
      %1289 = vmatpush.msra.mxu0 %v1262
      %1290 = vmatpush.msra.mxu0 %v1261
      %1291 = vmatpush.msra.mxu0 %v1260
      %1292 = vmatpush.msra.mxu0 %v1259
      %1293 = vmatmul.f32.gmra.mxu0 %v436
      %v1294 = vpop.f32.mrf.mxu0
      %v1295 = vadd.f32 0.0, %v1294
      %1296 = vmatmul.f32.gmra.mxu0 %v438
      %v1297 = vpop.f32.mrf.mxu0
      %v1298 = vadd.f32 0.0, %v1297
      %1299 = vmatmul.f32.gmra.mxu0 %v440
      %v1300 = vpop.f32.mrf.mxu0
      %v1301 = vadd.f32 0.0, %v1300
      %1302 = vmatmul.f32.gmra.mxu0 %v442
      %v1303 = vpop.f32.mrf.mxu0
      %v1304 = vadd.f32 0.0, %v1303
      %1305 = vmatmul.f32.gmra.mxu0 %v444
      %v1306 = vpop.f32.mrf.mxu0
      %v1307 = vadd.f32 0.0, %v1306
      %1308 = vmatmul.f32.gmra.mxu0 %v446
      %v1309 = vpop.f32.mrf.mxu0
      %v1310 = vadd.f32 0.0, %v1309
      %1311 = vmatmul.f32.gmra.mxu0 %v448
      %v1312 = vpop.f32.mrf.mxu0
      %v1313 = vadd.f32 0.0, %v1312
      %1314 = vmatmul.f32.gmra.mxu0 %v450
      %v1315 = vpop.f32.mrf.mxu0
      %v1316 = vadd.f32 0.0, %v1315
      %1317 = vdwg.mxu0
      %1318 = vmatpush.msra.mxu0 0.0
      %1319 = vmatpush.msra.mxu0 0.0
      %1320 = vmatpush.msra.mxu0 0.0
      %1321 = vmatpush.msra.mxu0 0.0
      %1322 = vmatpush.msra.mxu0 0.0
      %1323 = vmatpush.msra.mxu0 0.0
      %1324 = vmatpush.msra.mxu0 0.0
      %1325 = vmatpush.msra.mxu0 0.0
      %1326 = vmatpush.msra.mxu0 0.0
      %1327 = vmatpush.msra.mxu0 0.0
      %1328 = vmatpush.msra.mxu0 0.0
      %1329 = vmatpush.msra.mxu0 0.0
      %1330 = vmatpush.msra.mxu0 0.0
      %1331 = vmatpush.msra.mxu0 0.0
      %1332 = vmatpush.msra.mxu0 %v1276
      %1333 = vmatpush.msra.mxu0 %v1275
      %1334 = vmatmul.f32.gmra.mxu0 %v490
      %v1335 = vpop.f32.mrf.mxu0
      %v1336 = vadd.f32 %v1295, %v1335
      %1337 = vmatmul.f32.gmra.mxu0 %v493
      %v1338 = vpop.f32.mrf.mxu0
      %v1339 = vadd.f32 %v1298, %v1338
      %1340 = vmatmul.f32.gmra.mxu0 %v496
      %v1341 = vpop.f32.mrf.mxu0
      %v1342 = vadd.f32 %v1301, %v1341
      %1343 = vmatmul.f32.gmra.mxu0 %v499
      %v1344 = vpop.f32.mrf.mxu0
      %v1345 = vadd.f32 %v1304, %v1344
      %1346 = vmatmul.f32.gmra.mxu0 %v502
      %v1347 = vpop.f32.mrf.mxu0
      %v1348 = vadd.f32 %v1307, %v1347
      %1349 = vmatmul.f32.gmra.mxu0 %v505
      %v1350 = vpop.f32.mrf.mxu0
      %v1351 = vadd.f32 %v1310, %v1350
      %1352 = vmatmul.f32.gmra.mxu0 %v508
      %v1353 = vpop.f32.mrf.mxu0
      %v1354 = vadd.f32 %v1313, %v1353
      %1355 = vmatmul.f32.gmra.mxu0 %v511
      %v1356 = vpop.f32.mrf.mxu0
      %v1357 = vadd.f32 %v1316, %v1356
      %1358 = vdwg.mxu0
      %1359 = vmatpush.msra.mxu0 %v1255
      %1360 = vmatpush.msra.mxu0 %v1254
      %1361 = vmatpush.msra.mxu0 %v1253
      %1362 = vmatpush.msra.mxu0 %v1252
      %1363 = vmatpush.msra.mxu0 %v1251
      %1364 = vmatpush.msra.mxu0 %v1250
      %1365 = vmatpush.msra.mxu0 %v1249
      %1366 = vmatpush.msra.mxu0 %v1248
      %1367 = vmatpush.msra.mxu0 %v1247
      %1368 = vmatpush.msra.mxu0 %v1246
      %1369 = vmatpush.msra.mxu0 %v1245
      %1370 = vmatpush.msra.mxu0 %v1244
      %1371 = vmatpush.msra.mxu0 %v1243
      %1372 = vmatpush.msra.mxu0 %v1242
      %1373 = vmatpush.msra.mxu0 %v1241
      %1374 = vmatpush.msra.mxu0 %v1240
      %1375 = vmatmul.f32.gmra.mxu0 %v420
      %v1376 = vpop.f32.mrf.mxu0
      %v1377 = vadd.f32 %v1336, %v1376
      %1378 = vmatmul.f32.gmra.mxu0 %v422
      %v1379 = vpop.f32.mrf.mxu0
      %v1380 = vadd.f32 %v1339, %v1379
      %1381 = vmatmul.f32.gmra.mxu0 %v424
      %v1382 = vpop.f32.mrf.mxu0
      %v1383 = vadd.f32 %v1342, %v1382
      %1384 = vmatmul.f32.gmra.mxu0 %v426
      %v1385 = vpop.f32.mrf.mxu0
      %v1386 = vadd.f32 %v1345, %v1385
      %1387 = vmatmul.f32.gmra.mxu0 %v428
      %v1388 = vpop.f32.mrf.mxu0
      %v1389 = vadd.f32 %v1348, %v1388
      %1390 = vmatmul.f32.gmra.mxu0 %v430
      %v1391 = vpop.f32.mrf.mxu0
      %v1392 = vadd.f32 %v1351, %v1391
      %1393 = vmatmul.f32.gmra.mxu0 %v432
      %v1394 = vpop.f32.mrf.mxu0
      %v1395 = vadd.f32 %v1354, %v1394
      %1396 = vmatmul.f32.gmra.mxu0 %v434
      %v1397 = vpop.f32.mrf.mxu0
      %v1398 = vadd.f32 %v1357, %v1397
      %1399 = vdwg.mxu0
      %1400 = vmatpush.msra.mxu0 0.0
      %1401 = vmatpush.msra.mxu0 0.0
      %1402 = vmatpush.msra.mxu0 0.0
      %1403 = vmatpush.msra.mxu0 0.0
      %1404 = vmatpush.msra.mxu0 0.0
      %1405 = vmatpush.msra.mxu0 0.0
      %1406 = vmatpush.msra.mxu0 0.0
      %1407 = vmatpush.msra.mxu0 0.0
      %1408 = vmatpush.msra.mxu0 0.0
      %1409 = vmatpush.msra.mxu0 0.0
      %1410 = vmatpush.msra.mxu0 0.0
      %1411 = vmatpush.msra.mxu0 0.0
      %1412 = vmatpush.msra.mxu0 0.0
      %1413 = vmatpush.msra.mxu0 0.0
      %1414 = vmatpush.msra.mxu0 %v1257
      %1415 = vmatpush.msra.mxu0 %v1256
      %1416 = vmatmul.f32.gmra.mxu0 %v596
      %v1417 = vpop.f32.mrf.mxu0
      %v1418 = vadd.f32 %v1377, %v1417
      %1419 = vmatmul.f32.gmra.mxu0 %v599
      %v1420 = vpop.f32.mrf.mxu0
      %v1421 = vadd.f32 %v1380, %v1420
      %1422 = vmatmul.f32.gmra.mxu0 %v602
      %v1423 = vpop.f32.mrf.mxu0
      %v1424 = vadd.f32 %v1383, %v1423
      %1425 = vmatmul.f32.gmra.mxu0 %v605
      %v1426 = vpop.f32.mrf.mxu0
      %v1427 = vadd.f32 %v1386, %v1426
      %1428 = vmatmul.f32.gmra.mxu0 %v608
      %v1429 = vpop.f32.mrf.mxu0
      %v1430 = vadd.f32 %v1389, %v1429
      %1431 = vmatmul.f32.gmra.mxu0 %v611
      %v1432 = vpop.f32.mrf.mxu0
      %v1433 = vadd.f32 %v1392, %v1432
      %1434 = vmatmul.f32.gmra.mxu0 %v614
      %v1435 = vpop.f32.mrf.mxu0
      %v1436 = vadd.f32 %v1395, %v1435
      %1437 = vmatmul.f32.gmra.mxu0 %v617
      %v1438 = vpop.f32.mrf.mxu0
      %v1439 = vadd.f32 %v1398, %v1438
      %1440 = vdwg.mxu0
      %s1441 = scalar_lea.vmem %s5, 3
      %v1442 = vld [vmem:[%s1441] sm:$0x1]
      %v1444 = vperm.slane %v1442, 0
      %v1446 = vadd.f32 %v1418, %v1444
      %v1447 = vadd.f32 %v1421, %v1444
      %v1448 = vadd.f32 %v1424, %v1444
      %v1449 = vadd.f32 %v1427, %v1444
      %v1450 = vadd.f32 %v1430, %v1444
      %v1451 = vadd.f32 %v1433, %v1444
      %v1452 = vadd.f32 %v1436, %v1444
      %v1453 = vadd.f32 %v1439, %v1444
      %v1454 = vtanh.pop %v1446
      %v1455 = vtanh.pop %v1447
      %v1456 = vtanh.pop %v1448
      %v1457 = vtanh.pop %v1449
      %v1458 = vtanh.pop %v1450
      %v1459 = vtanh.pop %v1451
      %v1460 = vtanh.pop %v1452
      %v1461 = vtanh.pop %v1453
      %v1462 = vld [vmem:[%s398] sm:$0xff]
      %v1463 = vld [vmem:[%s398 + $0x8] sm:$0xff]
      %v1464 = vld [vmem:[%s398 + $0x10] sm:$0xff]
      %v1465 = vld [vmem:[%s398 + $0x18] sm:$0xff]
      %v1466 = vld [vmem:[%s398 + $0x20] sm:$0xff]
      %v1467 = vld [vmem:[%s398 + $0x28] sm:$0xff]
      %v1468 = vld [vmem:[%s398 + $0x30] sm:$0xff]
      %v1469 = vld [vmem:[%s398 + $0x38] sm:$0xff]
      %v1470 = vmul.f32 %v984, %v1462
      %v1471 = vmul.f32 %v985, %v1463
      %v1472 = vmul.f32 %v986, %v1464
      %v1473 = vmul.f32 %v987, %v1465
      %v1474 = vmul.f32 %v988, %v1466
      %v1475 = vmul.f32 %v989, %v1467
      %v1476 = vmul.f32 %v990, %v1468
      %v1477 = vmul.f32 %v991, %v1469
      %v1478 = vmul.f32 %v737, %v1454
      %v1479 = vmul.f32 %v738, %v1455
      %v1480 = vmul.f32 %v739, %v1456
      %v1481 = vmul.f32 %v740, %v1457
      %v1482 = vmul.f32 %v741, %v1458
      %v1483 = vmul.f32 %v742, %v1459
      %v1484 = vmul.f32 %v743, %v1460
      %v1485 = vmul.f32 %v744, %v1461
      %v1486 = vadd.f32 %v1470, %v1478
      %v1487 = vadd.f32 %v1471, %v1479
      %v1488 = vadd.f32 %v1472, %v1480
      %v1489 = vadd.f32 %v1473, %v1481
      %v1490 = vadd.f32 %v1474, %v1482
      %v1491 = vadd.f32 %v1475, %v1483
      %v1492 = vadd.f32 %v1476, %v1484
      %v1493 = vadd.f32 %v1477, %v1485
      %v1494 = vtanh.pop %v1486
      %v1495 = vtanh.pop %v1487
      %v1496 = vtanh.pop %v1488
      %v1497 = vtanh.pop %v1489
      %v1498 = vtanh.pop %v1490
      %v1499 = vtanh.pop %v1491
      %v1500 = vtanh.pop %v1492
      %v1501 = vtanh.pop %v1493
      %v1502 = vmul.f32 %v1231, %v1494
      %v1503 = vmul.f32 %v1232, %v1495
      %v1504 = vmul.f32 %v1233, %v1496
      %v1505 = vmul.f32 %v1234, %v1497
      %v1506 = vmul.f32 %v1235, %v1498
      %v1507 = vmul.f32 %v1236, %v1499
      %v1508 = vmul.f32 %v1237, %v1500
      %v1509 = vmul.f32 %v1238, %v1501
      %1510 = vst.msk [vmem:[%s418] sm:$0xff] %vm488, %v1486
      %1511 = vst.msk [vmem:[%s418 + $0x8] sm:$0xff] %vm488, %v1487
      %1512 = vst.msk [vmem:[%s418 + $0x10] sm:$0xff] %vm488, %v1488
      %1513 = vst.msk [vmem:[%s418 + $0x18] sm:$0xff] %vm488, %v1489
      %1514 = vst.msk [vmem:[%s418 + $0x20] sm:$0xff] %vm488, %v1490
      %1515 = vst.msk [vmem:[%s418 + $0x28] sm:$0xff] %vm488, %v1491
      %1516 = vst.msk [vmem:[%s418 + $0x30] sm:$0xff] %vm488, %v1492
      %1517 = vst.msk [vmem:[%s418 + $0x38] sm:$0xff] %vm488, %v1493
      %1518 = vst.msk [vmem:[%s408] sm:$0xff] %vm488, %v1502
      %1519 = vst.msk [vmem:[%s408 + $0x8] sm:$0xff] %vm488, %v1503
      %1520 = vst.msk [vmem:[%s408 + $0x10] sm:$0xff] %vm488, %v1504
      %1521 = vst.msk [vmem:[%s408 + $0x18] sm:$0xff] %vm488, %v1505
      %1522 = vst.msk [vmem:[%s408 + $0x20] sm:$0xff] %vm488, %v1506
      %1523 = vst.msk [vmem:[%s408 + $0x28] sm:$0xff] %vm488, %v1507
      %1524 = vst.msk [vmem:[%s408 + $0x30] sm:$0xff] %vm488, %v1508
      %1525 = vst.msk [vmem:[%s408 + $0x38] sm:$0xff] %vm488, %v1509
      %s1526 = smul.u32 8, %s24
      %p1527 = scmp.lt.s32.totalorder %s23, 1
      %s1528 = scalar_select %p1527, %s23, 1
      %p1529 = scmp.lt.s32.totalorder %s1526, 7
      %s1530 = scalar_select %p1529, %s1526, 7
      %s1531 = smul.addr %s1528, 8
      %s1532 = sadd.s32 %s1530, %s1531
      %s1533 = smul.addr %s1532, 8
      %s1534 = scalar_lea.vmem %s6, %s1533
      %s1535 = smul.u32 8, %s24
      %p1536 = scmp.lt.s32.totalorder %s23, 1
      %s1537 = scalar_select %p1536, %s23, 1
      %p1538 = scmp.lt.s32.totalorder %s1535, 7
      %s1539 = scalar_select %p1538, %s1535, 7
      %s1540 = smul.addr %s1537, 8
      %s1541 = sadd.s32 %s1539, %s1540
      %s1542 = smul.addr %s1541, 8
      %s1543 = scalar_lea.vmem %s7, %s1542
      // Predicated region
      $region45: #{_lambda_.9} parent=43 // pred_check
        %p1544 = pneg %p198
      $region46: #{_lambda_.9} parent=43 // pred_check_branch
        %1546 = sbr.rel (%p1544) target = $region48
      $region47: #{_lambda_.9} parent=43 // pred_region
        %s1547 = smul.u32 8, %s24
      $region48: #{_lambda_.9} parent=43 // pred_fallthru
        _
      // Predicated region
      $region49: #{_lambda_.9} parent=43 // pred_check
        %p1548 = pneg %p226
      $region50: #{_lambda_.9} parent=43 // pred_check_branch
        %1550 = sbr.rel (%p1548) target = $region52
      $region51: #{_lambda_.9} parent=43 // pred_region
        %s1551 = smul.u32 8, %s24
      $region52: #{_lambda_.9} parent=43 // pred_fallthru
        _
    $region44: #{_lambda_.9} parent=5 // pred_fallthru
      _
    %p1552 = scmp.le.s32.totalorder 2, %s14
    // Predicated region
    $region53: #{_lambda_.9} parent=5 // pred_check
      %p1553 = pneg %p1552
    $region54: #{_lambda_.9} parent=5 // pred_check_branch
      %1555 = sbr.rel (%p1553) target = $region56
    $region55: #{_lambda_.9} parent=5 // pred_region
      %s1556 = ssub.s32 %s14, 2
      // Predicated region
      $region57: #{_lambda_.9} parent=55 // pred_check
        %p1557 = pneg %p204
      $region58: #{_lambda_.9} parent=55 // pred_check_branch
        %1559 = sbr.rel (%p1557) target = $region60
      $region59: #{_lambda_.9} parent=55 // pred_region
        %s1560 = smul.u32 8, %s26
        %p1561 = scmp.lt.s32.totalorder %s25, 1
        %s1562 = scalar_select %p1561, %s25, 1
        %p1563 = scmp.lt.s32.totalorder %s1560, 7
        %s1564 = scalar_select %p1563, %s1560, 7
        %s1565 = smul.addr %s1562, 8
        %s1566 = sadd.s32 %s1564, %s1565
        %s1567 = smul.addr %s1566, 8
        %s1568 = scalar_lea.vmem %s6, %s1567
      $region60: #{_lambda_.9} parent=55 // pred_fallthru
        _
      // Predicated region
      $region61: #{_lambda_.9} parent=55 // pred_check
        %p1569 = pneg %p232
      $region62: #{_lambda_.9} parent=55 // pred_check_branch
        %1571 = sbr.rel (%p1569) target = $region64
      $region63: #{_lambda_.9} parent=55 // pred_region
        %s1572 = smul.u32 8, %s26
        %p1573 = scmp.lt.s32.totalorder %s25, 1
        %s1574 = scalar_select %p1573, %s25, 1
        %p1575 = scmp.lt.s32.totalorder %s1572, 7
        %s1576 = scalar_select %p1575, %s1572, 7
        %s1577 = smul.addr %s1574, 8
        %s1578 = sadd.s32 %s1576, %s1577
        %s1579 = smul.addr %s1578, 8
        %s1580 = scalar_lea.vmem %s7, %s1579
      $region64: #{_lambda_.9} parent=55 // pred_fallthru
        _
    $region56: #{_lambda_.9} parent=5 // pred_fallthru
      _
  $region6: #{_lambda_.9} parent=0 // loop_footer
    %s18 = sadd.s32 1, %s14
  $region7: #{_lambda_.9} parent=0 // loop_footer_branch
    %13 = sbr.rel target = $region3
  $region8: #{_lambda_.9} parent=0 // loop_exit
    _

// kernel: _lambda_.12
$region0: #{_lambda_.12}
  #allocation0 [shape = 'u32[]', space=smem, size = 0x4, offset = 0x4, fixed_abs, tag = 'smem constant byte address 0x4 - core index']
  #allocation1 [shape = 'u32[72,128]{1,0:T(1,128)}', space=vmem, size = 0x9000, scoped, tag = 'internal scratch']
  %s0 = inlined_call_operand.vmem [shape: f32[2,64,144], index: 0, kind: input, shape index: {}]
  %s1 = inlined_call_operand.vmem [shape: f32[2,64,144], index: 1, kind: input, shape index: {}]
  %s2 = inlined_call_operand.vmem [shape: f32[2,64,16], index: 2, kind: input, shape index: {}]
  %s3 = inlined_call_operand.vmem [shape: f32[4,144,16], index: 3, kind: input, shape index: {}]
  %s4 = inlined_call_operand.vmem [shape: f32[4,144,16], index: 4, kind: input, shape index: {}]
  %s5 = inlined_call_operand.vmem [shape: f32[4,1,16], index: 5, kind: input, shape index: {}]
  %s6 = inlined_call_operand.vmem [shape: f32[2,64,16], index: 6, kind: output, shape index: {0}]
  %s7 = inlined_call_operand.hbm [shape: f32[2,64,16], index: 7, kind: output, shape index: {1}]
  %8 = xla_tuple %s6, %s7
  %s9 = sld [smem:[#allocation0]]
  $region65: #{_lambda_.12} parent=0
    _
  %s11 = ssub.s32 1, %s9
  %s12 = scalar_select 0, %s11, %s9
  $region1: #{_lambda_.12} parent=0
    #allocation2 [shape = 'u8[65536]{0}', space=vmem, size = 0x10000, scoped, tag = 'output window, operand 1']
    #allocation3 [shape = 's32[2]{0}', space=sflag, size = 0x8, scoped, tag = 'scoped memory for _lambda_.12']
    %13 = vsyncpa [#allocation3], 0
    %s14 = scalar_lea.sflag [#allocation3], 1
    %15 = vsyncpa %s14, 0
    loop: start=0, step=1, limit=4
    $region2: #{_lambda_.12} parent=1 // loop_pre_header
      _
    $region3: #{_lambda_.12} parent=1 // loop_header
      %s17 = sphi 0, %s21
      %p18 = scmp.ge.s32.totalorder %s17, 4
      %s24 = sphi 0, %s36
      %s25 = sphi 0, %s32
      %s26 = sphi 0, %s24
      %s27 = sphi 0, %s25
      %s28 = sphi 0, %s26
      %s29 = sphi 0, %s27
      %s41 = sphi 0, %s43
      %s44 = sphi 0, %s41
      %s45 = sphi 0, %s44
      %s61 = sphi 0, %s45
      %s69 = sphi 0, %s71
      %s72 = sphi 0, %s69
      %s73 = sphi 0, %s72
      %s89 = sphi 0, %s73
      %s97 = sphi 0, %s99
      %s100 = sphi 0, %s97
      %s101 = sphi 0, %s100
      %s117 = sphi 0, %s101
      %s121 = sphi 0, %s121
      %s123 = sphi 0, %s121
      %s124 = sphi 0, %s123
      %s138 = sphi 0, %s124
      %s142 = sphi 0, %s142
      %s144 = sphi 0, %s142
      %s145 = sphi 0, %s144
      %s159 = sphi 0, %s145
      %s163 = sphi 0, %s163
      %s165 = sphi 0, %s163
      %s166 = sphi 0, %s165
      %s180 = sphi 0, %s166
      %s188 = sphi 0, %s190
      %s191 = sphi 0, %s188
      %s192 = sphi 0, %s191
      %s208 = sphi 0, %s192
      %s216 = sphi 0, %s218
      %s219 = sphi 0, %s216
      %s220 = sphi 0, %s219
      %s236 = sphi 0, %s220
    $region4: #{_lambda_.12} parent=1 // loop_header_branch
      %20 = sbr.rel (%p18) target = $region8
    $region5: #{_lambda_.12} parent=1 // loop_body
      %s22 = ssub.s32 %s17, 1
      %s23 = ssub.s32 %s17, 2
      %s30 = sadd.s32 1, %s25
      %p31 = scmp.ge.s32.totalorder %s30, 1
      %s32 = scalar_select %p31, 0, %s30
      %s33 = sadd.s32 1, %s24
      %s34 = scalar_select %p31, %s33, %s24
      %p35 = scmp.ge.s32.totalorder %s34, 2
      %s36 = scalar_select %p35, 0, %s34
      %s37 = ssub.s32 %s24, %s36
      %s38 = ssub.s32 %s25, %s32
      %s39 = sor.u32 %s37, %s38
      %p40 = scmp.eq.s32.totalorder %s39, 0
      %s42 = sadd.s32 %s41, 1
      %s43 = scalar_select %p40, %s41, %s42
      %p46 = pneg %p40
      %p47 = scmp.eq.s32.totalorder %s17, 1
      %p48 = por %p46, %p47
      %p49 = scmp.ne.s32.totalorder %s41, %s44
      %p50 = scmp.eq.s32.totalorder %s17, 0
      %p51 = por %p49, %p50
      %p52 = scmp.ne.s32.totalorder %s41, %s44
      %p53 = scmp.eq.s32.totalorder %s22, 1
      %p54 = por %p52, %p53
      %p55 = scmp.ne.s32.totalorder %s44, %s45
      %p56 = scmp.eq.s32.totalorder %s22, 0
      %p57 = por %p55, %p56
      %p58 = scmp.ne.s32.totalorder %s44, %s45
      %p59 = scmp.eq.s32.totalorder %s23, 1
      %p60 = por %p58, %p59
      %p62 = scmp.ne.s32.totalorder %s45, %s61
      %p63 = scmp.eq.s32.totalorder %s23, 0
      %p64 = por %p62, %p63
      %s65 = ssub.s32 %s24, %s36
      %s66 = ssub.s32 %s25, %s32
      %s67 = sor.u32 %s65, %s66
      %p68 = scmp.eq.s32.totalorder %s67, 0
      %s70 = sadd.s32 %s69, 1
      %s71 = scalar_select %p68, %s69, %s70
      %p74 = pneg %p68
      %p75 = scmp.eq.s32.totalorder %s17, 1
      %p76 = por %p74, %p75
      %p77 = scmp.ne.s32.totalorder %s69, %s72
      %p78 = scmp.eq.s32.totalorder %s17, 0
      %p79 = por %p77, %p78
      %p80 = scmp.ne.s32.totalorder %s69, %s72
      %p81 = scmp.eq.s32.totalorder %s22, 1
      %p82 = por %p80, %p81
      %p83 = scmp.ne.s32.totalorder %s72, %s73
      %p84 = scmp.eq.s32.totalorder %s22, 0
      %p85 = por %p83, %p84
      %p86 = scmp.ne.s32.totalorder %s72, %s73
      %p87 = scmp.eq.s32.totalorder %s23, 1
      %p88 = por %p86, %p87
      %p90 = scmp.ne.s32.totalorder %s73, %s89
      %p91 = scmp.eq.s32.totalorder %s23, 0
      %p92 = por %p90, %p91
      %s93 = ssub.s32 %s24, %s36
      %s94 = ssub.s32 %s25, %s32
      %s95 = sor.u32 %s93, %s94
      %p96 = scmp.eq.s32.totalorder %s95, 0
      %s98 = sadd.s32 %s97, 1
      %s99 = scalar_select %p96, %s97, %s98
      %p102 = pneg %p96
      %p103 = scmp.eq.s32.totalorder %s17, 1
      %p104 = por %p102, %p103
      %p105 = scmp.ne.s32.totalorder %s97, %s100
      %p106 = scmp.eq.s32.totalorder %s17, 0
      %p107 = por %p105, %p106
      %p108 = scmp.ne.s32.totalorder %s97, %s100
      %p109 = scmp.eq.s32.totalorder %s22, 1
      %p110 = por %p108, %p109
      %p111 = scmp.ne.s32.totalorder %s100, %s101
      %p112 = scmp.eq.s32.totalorder %s22, 0
      %p113 = por %p111, %p112
      %p114 = scmp.ne.s32.totalorder %s100, %s101
      %p115 = scmp.eq.s32.totalorder %s23, 1
      %p116 = por %p114, %p115
      %p118 = scmp.ne.s32.totalorder %s101, %s117
      %p119 = scmp.eq.s32.totalorder %s23, 0
      %p120 = por %p118, %p119
      %s122 = sadd.s32 %s121, 1
      %p125 = scmp.eq.s32.totalorder %s17, 1
      %p126 = scmp.ne.s32.totalorder %s121, %s123
      %p127 = scmp.eq.s32.totalorder %s17, 0
      %p128 = por %p126, %p127
      %p129 = scmp.ne.s32.totalorder %s121, %s123
      %p130 = scmp.eq.s32.totalorder %s22, 1
      %p131 = por %p129, %p130
      %p132 = scmp.ne.s32.totalorder %s123, %s124
      %p133 = scmp.eq.s32.totalorder %s22, 0
      %p134 = por %p132, %p133
      %p135 = scmp.ne.s32.totalorder %s123, %s124
      %p136 = scmp.eq.s32.totalorder %s23, 1
      %p137 = por %p135, %p136
      %p139 = scmp.ne.s32.totalorder %s124, %s138
      %p140 = scmp.eq.s32.totalorder %s23, 0
      %p141 = por %p139, %p140
      %s143 = sadd.s32 %s142, 1
      %p146 = scmp.eq.s32.totalorder %s17, 1
      %p147 = scmp.ne.s32.totalorder %s142, %s144
      %p148 = scmp.eq.s32.totalorder %s17, 0
      %p149 = por %p147, %p148
      %p150 = scmp.ne.s32.totalorder %s142, %s144
      %p151 = scmp.eq.s32.totalorder %s22, 1
      %p152 = por %p150, %p151
      %p153 = scmp.ne.s32.totalorder %s144, %s145
      %p154 = scmp.eq.s32.totalorder %s22, 0
      %p155 = por %p153, %p154
      %p156 = scmp.ne.s32.totalorder %s144, %s145
      %p157 = scmp.eq.s32.totalorder %s23, 1
      %p158 = por %p156, %p157
      %p160 = scmp.ne.s32.totalorder %s145, %s159
      %p161 = scmp.eq.s32.totalorder %s23, 0
      %p162 = por %p160, %p161
      %s164 = sadd.s32 %s163, 1
      %p167 = scmp.eq.s32.totalorder %s17, 1
      %p168 = scmp.ne.s32.totalorder %s163, %s165
      %p169 = scmp.eq.s32.totalorder %s17, 0
      %p170 = por %p168, %p169
      %p171 = scmp.ne.s32.totalorder %s163, %s165
      %p172 = scmp.eq.s32.totalorder %s22, 1
      %p173 = por %p171, %p172
      %p174 = scmp.ne.s32.totalorder %s165, %s166
      %p175 = scmp.eq.s32.totalorder %s22, 0
      %p176 = por %p174, %p175
      %p177 = scmp.ne.s32.totalorder %s165, %s166
      %p178 = scmp.eq.s32.totalorder %s23, 1
      %p179 = por %p177, %p178
      %p181 = scmp.ne.s32.totalorder %s166, %s180
      %p182 = scmp.eq.s32.totalorder %s23, 0
      %p183 = por %p181, %p182
      %s184 = ssub.s32 %s24, %s36
      %s185 = ssub.s32 %s25, %s32
      %s186 = sor.u32 %s184, %s185
      %p187 = scmp.eq.s32.totalorder %s186, 0
      %s189 = sadd.s32 %s188, 1
      %s190 = scalar_select %p187, %s188, %s189
      %p193 = pneg %p187
      %p194 = scmp.eq.s32.totalorder %s17, 1
      %p195 = por %p193, %p194
      %p196 = scmp.ne.s32.totalorder %s188, %s191
      %p197 = scmp.eq.s32.totalorder %s17, 0
      %p198 = por %p196, %p197
      %p199 = scmp.ne.s32.totalorder %s188, %s191
      %p200 = scmp.eq.s32.totalorder %s22, 1
      %p201 = por %p199, %p200
      %p202 = scmp.ne.s32.totalorder %s191, %s192
      %p203 = scmp.eq.s32.totalorder %s22, 0
      %p204 = por %p202, %p203
      %p205 = scmp.ne.s32.totalorder %s191, %s192
      %p206 = scmp.eq.s32.totalorder %s23, 1
      %p207 = por %p205, %p206
      %p209 = scmp.ne.s32.totalorder %s192, %s208
      %p210 = scmp.eq.s32.totalorder %s23, 0
      %p211 = por %p209, %p210
      %s212 = ssub.s32 %s24, %s36
      %s213 = ssub.s32 %s25, %s32
      %s214 = sor.u32 %s212, %s213
      %p215 = scmp.eq.s32.totalorder %s214, 0
      %s217 = sadd.s32 %s216, 1
      %s218 = scalar_select %p215, %s216, %s217
      %p221 = pneg %p215
      %p222 = scmp.eq.s32.totalorder %s17, 1
      %p223 = por %p221, %p222
      %p224 = scmp.ne.s32.totalorder %s216, %s219
      %p225 = scmp.eq.s32.totalorder %s17, 0
      %p226 = por %p224, %p225
      %p227 = scmp.ne.s32.totalorder %s216, %s219
      %p228 = scmp.eq.s32.totalorder %s22, 1
      %p229 = por %p227, %p228
      %p230 = scmp.ne.s32.totalorder %s219, %s220
      %p231 = scmp.eq.s32.totalorder %s22, 0
      %p232 = por %p230, %p231
      %p233 = scmp.ne.s32.totalorder %s219, %s220
      %p234 = scmp.eq.s32.totalorder %s23, 1
      %p235 = por %p233, %p234
      %p237 = scmp.ne.s32.totalorder %s220, %s236
      %p238 = scmp.eq.s32.totalorder %s23, 0
      %p239 = por %p237, %p238
      %p240 = scmp.le.s32.totalorder 1, %s17
      %p241 = scmp.lt.s32.totalorder %s17, 3
      %p242 = pnand %p240, %p241
      %p243 = pneg %p242
      // Predicated region
      $region9: #{_lambda_.12} parent=5 // pred_check
        _
      $region10: #{_lambda_.12} parent=5 // pred_check_branch
        %245 = sbr.rel (%p242) target = $region12
      $region11: #{_lambda_.12} parent=5 // pred_region
        %s246 = ssub.s32 %s17, 1
        // Predicated region
        $region13: #{_lambda_.12} parent=11 // pred_check
          %p247 = pneg %p134
        $region14: #{_lambda_.12} parent=11 // pred_check_branch
          %249 = sbr.rel (%p247) target = $region16
        $region15: #{_lambda_.12} parent=11 // pred_region
          _
        $region16: #{_lambda_.12} parent=11 // pred_fallthru
          _
        // Predicated region
        $region17: #{_lambda_.12} parent=11 // pred_check
          %p250 = pneg %p155
        $region18: #{_lambda_.12} parent=11 // pred_check_branch
          %252 = sbr.rel (%p250) target = $region20
        $region19: #{_lambda_.12} parent=11 // pred_region
          _
        $region20: #{_lambda_.12} parent=11 // pred_fallthru
          _
        // Predicated region
        $region21: #{_lambda_.12} parent=11 // pred_check
          %p253 = pneg %p176
        $region22: #{_lambda_.12} parent=11 // pred_check_branch
          %255 = sbr.rel (%p253) target = $region24
        $region23: #{_lambda_.12} parent=11 // pred_region
          _
        $region24: #{_lambda_.12} parent=11 // pred_fallthru
          _
      $region12: #{_lambda_.12} parent=5 // pred_fallthru
        _
      %p256 = scmp.lt.s32.totalorder %s17, 2
      // Predicated region
      $region25: #{_lambda_.12} parent=5 // pred_check
        %p257 = pneg %p256
      $region26: #{_lambda_.12} parent=5 // pred_check_branch
        %259 = sbr.rel (%p257) target = $region28
      $region27: #{_lambda_.12} parent=5 // pred_region
        // Predicated region
        $region29: #{_lambda_.12} parent=27 // pred_check
          %p260 = pneg %p51
        $region30: #{_lambda_.12} parent=27 // pred_check_branch
          %262 = sbr.rel (%p260) target = $region32
        $region31: #{_lambda_.12} parent=27 // pred_region
          %s263 = smul.u32 8, %s25
          %p264 = scmp.lt.s32.totalorder %s24, 1
          %s265 = scalar_select %p264, %s24, 1
          %p266 = scmp.lt.s32.totalorder %s263, 7
          %s267 = scalar_select %p266, %s263, 7
          %s268 = smul.addr %s267, 2
          %s269 = smul.addr %s265, 16
          %s270 = sadd.s32 %s268, %s269
          %s271 = smul.addr %s270, 8
          %s272 = scalar_lea.vmem %s0, %s271
          %s273 = smul.u32 8, %s25
        $region32: #{_lambda_.12} parent=27 // pred_fallthru
          _
        // Predicated region
        $region33: #{_lambda_.12} parent=27 // pred_check
          %p274 = pneg %p79
        $region34: #{_lambda_.12} parent=27 // pred_check_branch
          %276 = sbr.rel (%p274) target = $region36
        $region35: #{_lambda_.12} parent=27 // pred_region
          %s277 = smul.u32 8, %s25
          %p278 = scmp.lt.s32.totalorder %s24, 1
          %s279 = scalar_select %p278, %s24, 1
          %p280 = scmp.lt.s32.totalorder %s277, 7
          %s281 = scalar_select %p280, %s277, 7
          %s282 = smul.addr %s281, 2
          %s283 = smul.addr %s279, 16
          %s284 = sadd.s32 %s282, %s283
          %s285 = smul.addr %s284, 8
          %s286 = scalar_lea.vmem %s1, %s285
          %s287 = smul.u32 8, %s25
        $region36: #{_lambda_.12} parent=27 // pred_fallthru
          _
        // Predicated region
        $region37: #{_lambda_.12} parent=27 // pred_check
          %p288 = pneg %p107
        $region38: #{_lambda_.12} parent=27 // pred_check_branch
          %290 = sbr.rel (%p288) target = $region40
        $region39: #{_lambda_.12} parent=27 // pred_region
          %s291 = smul.u32 8, %s25
          %p292 = scmp.lt.s32.totalorder %s24, 1
          %s293 = scalar_select %p292, %s24, 1
          %p294 = scmp.lt.s32.totalorder %s291, 7
          %s295 = scalar_select %p294, %s291, 7
          %s296 = smul.addr %s293, 8
          %s297 = sadd.s32 %s295, %s296
          %s298 = smul.addr %s297, 8
          %s299 = scalar_lea.vmem %s2, %s298
          %s300 = smul.u32 8, %s25
        $region40: #{_lambda_.12} parent=27 // pred_fallthru
          _
      $region28: #{_lambda_.12} parent=5 // pred_fallthru
        _
      %p301 = scmp.le.s32.totalorder 1, %s17
      %p302 = scmp.lt.s32.totalorder %s17, 3
      %p303 = pnand %p301, %p302
      %p304 = pneg %p303
      // Predicated region
      $region41: #{_lambda_.12} parent=5 // pred_check
        _
      $region42: #{_lambda_.12} parent=5 // pred_check_branch
        %306 = sbr.rel (%p303) target = $region44
      $region43: #{_lambda_.12} parent=5 // pred_region
        %s307 = ssub.s32 %s17, 1
        %s308 = smul.u32 8, %s27
        %p309 = scmp.lt.s32.totalorder %s26, 1
        %s310 = scalar_select %p309, %s26, 1
        %p311 = scmp.lt.s32.totalorder %s308, 7
        %s312 = scalar_select %p311, %s308, 7
        %s313 = smul.addr %s312, 2
        %s314 = smul.addr %s310, 16
        %s315 = sadd.s32 %s313, %s314
        %s316 = smul.addr %s315, 8
        %s317 = scalar_lea.vmem %s0, %s316
        %p318 = pneg %p57
        %p319 = pneg %p54
        %s320 = smul.u32 8, %s27
        %p321 = scmp.lt.s32.totalorder %s26, 1
        %s322 = scalar_select %p321, %s26, 1
        %p323 = scmp.lt.s32.totalorder %s320, 7
        %s324 = scalar_select %p323, %s320, 7
        %s325 = smul.addr %s324, 2
        %s326 = smul.addr %s322, 16
        %s327 = sadd.s32 %s325, %s326
        %s328 = smul.addr %s327, 8
        %s329 = scalar_lea.vmem %s1, %s328
        %p330 = pneg %p85
        %p331 = pneg %p82
        %s332 = smul.u32 8, %s27
        %p333 = scmp.lt.s32.totalorder %s26, 1
        %s334 = scalar_select %p333, %s26, 1
        %p335 = scmp.lt.s32.totalorder %s332, 7
        %s336 = scalar_select %p335, %s332, 7
        %s337 = smul.addr %s334, 8
        %s338 = sadd.s32 %s336, %s337
        %s339 = smul.addr %s338, 8
        %s340 = scalar_lea.vmem %s2, %s339
        %p341 = pneg %p113
        %p342 = pneg %p110
        %p343 = pneg %p134
        %p344 = pneg %p131
        %p345 = pneg %p155
        %p346 = pneg %p152
        %p347 = pneg %p176
        %p348 = pneg %p173
        %p349 = pneg %p204
        %p350 = pneg %p201
        %s351 = smul.u32 8, %s27
        %p352 = scmp.lt.s32.totalorder %s26, 1
        %s353 = scalar_select %p352, %s26, 1
        %p354 = scmp.lt.s32.totalorder %s351, 7
        %s355 = scalar_select %p354, %s351, 7
        %s356 = smul.addr %s353, 8
        %s357 = sadd.s32 %s355, %s356
        %s358 = smul.addr %s357, 8
        %s359 = scalar_lea.vmem %s6, %s358
        %p360 = pneg %p232
        %p361 = pneg %p229
        %s362 = sand.u32 %s219, 1
        %s363 = scalar_lea.sflag [#allocation3], %s362
        %s364 = sand.u32 %s219, 1
        %s365 = smul.addr %s364, 64
        %s366 = scalar_lea.vmem [#allocation2], %s365
        %s367 = smul.u32 8, %s27
        %p368 = scmp.lt.s32.totalorder %s26, 1
        %s369 = scalar_select %p368, %s26, 1
        %p370 = scmp.lt.s32.totalorder %s367, 7
        %s371 = scalar_select %p370, %s367, 7
        %s372 = smul.addr %s371, 2
        %s373 = smul.addr %s369, 16
        %s374 = sadd.s32 %s372, %s373
        %s375 = smul.addr %s374, 8
        %s376 = scalar_lea.vmem %s0, %s375
        %s377 = smul.u32 8, %s27
        %s378 = smul.u32 8, %s27
        %p379 = scmp.lt.s32.totalorder %s26, 1
        %s380 = scalar_select %p379, %s26, 1
        %p381 = scmp.lt.s32.totalorder %s378, 7
        %s382 = scalar_select %p381, %s378, 7
        %s383 = smul.addr %s382, 2
        %s384 = smul.addr %s380, 16
        %s385 = sadd.s32 %s383, %s384
        %s386 = smul.addr %s385, 8
        %s387 = scalar_lea.vmem %s1, %s386
        %s388 = smul.u32 8, %s27
        %s389 = smul.u32 8, %s27
        %p390 = scmp.lt.s32.totalorder %s26, 1
        %s391 = scalar_select %p390, %s26, 1
        %p392 = scmp.lt.s32.totalorder %s389, 7
        %s393 = scalar_select %p392, %s389, 7
        %s394 = smul.addr %s391, 8
        %s395 = sadd.s32 %s393, %s394
        %s396 = smul.addr %s395, 8
        %s397 = scalar_lea.vmem %s2, %s396
        %s398 = smul.u32 8, %s27
        %s399 = smul.u32 8, %s27
        %p400 = scmp.lt.s32.totalorder %s26, 1
        %s401 = scalar_select %p400, %s26, 1
        %p402 = scmp.lt.s32.totalorder %s399, 7
        %s403 = scalar_select %p402, %s399, 7
        %s404 = smul.addr %s401, 8
        %s405 = sadd.s32 %s403, %s404
        %s406 = smul.addr %s405, 8
        %s407 = scalar_lea.vmem %s6, %s406
        %s408 = smul.u32 8, %s27
        %s409 = smul.u32 8, %s27
        %v410 = vld [vmem:[%s376] sm:$0xff]
        %v411 = vld [vmem:[%s376 + $0x8] sm:$0xff]
        %v412 = vld [vmem:[%s376 + $0x10] sm:$0xff]
        %v413 = vld [vmem:[%s376 + $0x18] sm:$0xff]
        %v414 = vld [vmem:[%s376 + $0x20] sm:$0xff]
        %v415 = vld [vmem:[%s376 + $0x28] sm:$0xff]
        %v416 = vld [vmem:[%s376 + $0x30] sm:$0xff]
        %v417 = vld [vmem:[%s376 + $0x38] sm:$0xff]
        %v418 = vld [vmem:[%s376 + $0x40] sm:$0xff]
        %v419 = vld [vmem:[%s376 + $0x48] sm:$0xff]
        %v420 = vld [vmem:[%s376 + $0x50] sm:$0xff]
        %v421 = vld [vmem:[%s376 + $0x58] sm:$0xff]
        %v422 = vld [vmem:[%s376 + $0x60] sm:$0xff]
        %v423 = vld [vmem:[%s376 + $0x68] sm:$0xff]
        %v424 = vld [vmem:[%s376 + $0x70] sm:$0xff]
        %v425 = vld [vmem:[%s376 + $0x78] sm:$0xff]
        %v426 = vld [vmem:[%s387] sm:$0xff]
        %v427 = vld [vmem:[%s387 + $0x8] sm:$0xff]
        %v428 = vld [vmem:[%s387 + $0x10] sm:$0xff]
        %v429 = vld [vmem:[%s387 + $0x18] sm:$0xff]
        %v430 = vld [vmem:[%s387 + $0x20] sm:$0xff]
        %v431 = vld [vmem:[%s387 + $0x28] sm:$0xff]
        %v432 = vld [vmem:[%s387 + $0x30] sm:$0xff]
        %v433 = vld [vmem:[%s387 + $0x38] sm:$0xff]
        %v434 = vld [vmem:[%s387 + $0x40] sm:$0xff]
        %v435 = vld [vmem:[%s387 + $0x48] sm:$0xff]
        %v436 = vld [vmem:[%s387 + $0x50] sm:$0xff]
        %v437 = vld [vmem:[%s387 + $0x58] sm:$0xff]
        %v438 = vld [vmem:[%s387 + $0x60] sm:$0xff]
        %v439 = vld [vmem:[%s387 + $0x68] sm:$0xff]
        %v440 = vld [vmem:[%s387 + $0x70] sm:$0xff]
        %v441 = vld [vmem:[%s387 + $0x78] sm:$0xff]
        %v442 = vld [vmem:[%s3] sm:$0xff]
        %v443 = vld [vmem:[%s3 + $0x8] sm:$0xff]
        %v444 = vld [vmem:[%s3 + $0x10] sm:$0xff]
        %v445 = vld [vmem:[%s3 + $0x18] sm:$0xff]
        %v446 = vld [vmem:[%s3 + $0x20] sm:$0xff]
        %v447 = vld [vmem:[%s3 + $0x28] sm:$0xff]
        %v448 = vld [vmem:[%s3 + $0x30] sm:$0xff]
        %v449 = vld [vmem:[%s3 + $0x38] sm:$0xff]
        %v450 = vld [vmem:[%s3 + $0x40] sm:$0xff]
        %v451 = vld [vmem:[%s3 + $0x48] sm:$0xff]
        %v452 = vld [vmem:[%s3 + $0x50] sm:$0xff]
        %v453 = vld [vmem:[%s3 + $0x58] sm:$0xff]
        %v454 = vld [vmem:[%s3 + $0x60] sm:$0xff]
        %v455 = vld [vmem:[%s3 + $0x68] sm:$0xff]
        %v456 = vld [vmem:[%s3 + $0x70] sm:$0xff]
        %v457 = vld [vmem:[%s3 + $0x78] sm:$0xff]
        %v458 = vld [vmem:[%s3 + $0x80] sm:$0xff]
        %v459 = vld [vmem:[%s3 + $0x88] sm:$0xff]
        %v460 = vld [vmem:[%s4] sm:$0xff]
        %v461 = vld [vmem:[%s4 + $0x8] sm:$0xff]
        %v462 = vld [vmem:[%s4 + $0x10] sm:$0xff]
        %v463 = vld [vmem:[%s4 + $0x18] sm:$0xff]
        %v464 = vld [vmem:[%s4 + $0x20] sm:$0xff]
        %v465 = vld [vmem:[%s4 + $0x28] sm:$0xff]
        %v466 = vld [vmem:[%s4 + $0x30] sm:$0xff]
        %v467 = vld [vmem:[%s4 + $0x38] sm:$0xff]
        %v468 = vld [vmem:[%s4 + $0x40] sm:$0xff]
        %v469 = vld [vmem:[%s4 + $0x48] sm:$0xff]
        %v470 = vld [vmem:[%s4 + $0x50] sm:$0xff]
        %v471 = vld [vmem:[%s4 + $0x58] sm:$0xff]
        %v472 = vld [vmem:[%s4 + $0x60] sm:$0xff]
        %v473 = vld [vmem:[%s4 + $0x68] sm:$0xff]
        %v474 = vld [vmem:[%s4 + $0x70] sm:$0xff]
        %v475 = vld [vmem:[%s4 + $0x78] sm:$0xff]
        %v476 = vld [vmem:[%s4 + $0x80] sm:$0xff]
        %v477 = vld [vmem:[%s4 + $0x88] sm:$0xff]
        %vm478 = vcmask 130048
        %v480 = vsel %vm478, %v427, 0
        %v483 = vsel %vm478, %v429, 0
        %v486 = vsel %vm478, %v431, 0
        %v489 = vsel %vm478, %v433, 0
        %v492 = vsel %vm478, %v435, 0
        %v495 = vsel %vm478, %v437, 0
        %v498 = vsel %vm478, %v439, 0
        %v501 = vsel %vm478, %v441, 0
        %503 = vmatpush.msra.mxu0 %v475
        %504 = vmatpush.msra.mxu0 %v474
        %505 = vmatpush.msra.mxu0 %v473
        %506 = vmatpush.msra.mxu0 %v472
        %507 = vmatpush.msra.mxu0 %v471
        %508 = vmatpush.msra.mxu0 %v470
        %509 = vmatpush.msra.mxu0 %v469
        %510 = vmatpush.msra.mxu0 %v468
        %511 = vmatpush.msra.mxu0 %v467
        %512 = vmatpush.msra.mxu0 %v466
        %513 = vmatpush.msra.mxu0 %v465
        %514 = vmatpush.msra.mxu0 %v464
        %515 = vmatpush.msra.mxu0 %v463
        %516 = vmatpush.msra.mxu0 %v462
        %517 = vmatpush.msra.mxu0 %v461
        %518 = vmatpush.msra.mxu0 %v460
        %519 = vmatmul.f32.gmra.mxu0 %v426
        %v520 = vpop.f32.mrf.mxu0
        %v521 = vadd.f32 0.0, %v520
        %522 = vmatmul.f32.gmra.mxu0 %v428
        %v523 = vpop.f32.mrf.mxu0
        %v524 = vadd.f32 0.0, %v523
        %525 = vmatmul.f32.gmra.mxu0 %v430
        %v526 = vpop.f32.mrf.mxu0
        %v527 = vadd.f32 0.0, %v526
        %528 = vmatmul.f32.gmra.mxu0 %v432
        %v529 = vpop.f32.mrf.mxu0
        %v530 = vadd.f32 0.0, %v529
        %531 = vmatmul.f32.gmra.mxu0 %v434
        %v532 = vpop.f32.mrf.mxu0
        %v533 = vadd.f32 0.0, %v532
        %534 = vmatmul.f32.gmra.mxu0 %v436
        %v535 = vpop.f32.mrf.mxu0
        %v536 = vadd.f32 0.0, %v535
        %537 = vmatmul.f32.gmra.mxu0 %v438
        %v538 = vpop.f32.mrf.mxu0
        %v539 = vadd.f32 0.0, %v538
        %540 = vmatmul.f32.gmra.mxu0 %v440
        %v541 = vpop.f32.mrf.mxu0
        %v542 = vadd.f32 0.0, %v541
        %543 = vdwg.mxu0
        %544 = vmatpush.msra.mxu0 0.0
        %545 = vmatpush.msra.mxu0 0.0
        %546 = vmatpush.msra.mxu0 0.0
        %547 = vmatpush.msra.mxu0 0.0
        %548 = vmatpush.msra.mxu0 0.0
        %549 = vmatpush.msra.mxu0 0.0
        %550 = vmatpush.msra.mxu0 0.0
        %551 = vmatpush.msra.mxu0 0.0
        %552 = vmatpush.msra.mxu0 0.0
        %553 = vmatpush.msra.mxu0 0.0
        %554 = vmatpush.msra.mxu0 0.0
        %555 = vmatpush.msra.mxu0 0.0
        %556 = vmatpush.msra.mxu0 0.0
        %557 = vmatpush.msra.mxu0 0.0
        %558 = vmatpush.msra.mxu0 %v477
        %559 = vmatpush.msra.mxu0 %v476
        %560 = vmatmul.f32.gmra.mxu0 %v480
        %v561 = vpop.f32.mrf.mxu0
        %v562 = vadd.f32 %v521, %v561
        %563 = vmatmul.f32.gmra.mxu0 %v483
        %v564 = vpop.f32.mrf.mxu0
        %v565 = vadd.f32 %v524, %v564
        %566 = vmatmul.f32.gmra.mxu0 %v486
        %v567 = vpop.f32.mrf.mxu0
        %v568 = vadd.f32 %v527, %v567
        %569 = vmatmul.f32.gmra.mxu0 %v489
        %v570 = vpop.f32.mrf.mxu0
        %v571 = vadd.f32 %v530, %v570
        %572 = vmatmul.f32.gmra.mxu0 %v492
        %v573 = vpop.f32.mrf.mxu0
        %v574 = vadd.f32 %v533, %v573
        %575 = vmatmul.f32.gmra.mxu0 %v495
        %v576 = vpop.f32.mrf.mxu0
        %v577 = vadd.f32 %v536, %v576
        %578 = vmatmul.f32.gmra.mxu0 %v498
        %v579 = vpop.f32.mrf.mxu0
        %v580 = vadd.f32 %v539, %v579
        %581 = vmatmul.f32.gmra.mxu0 %v501
        %v582 = vpop.f32.mrf.mxu0
        %v583 = vadd.f32 %v542, %v582
        %584 = vdwg.mxu0
        %v586 = vsel %vm478, %v411, 0
        %v589 = vsel %vm478, %v413, 0
        %v592 = vsel %vm478, %v415, 0
        %v595 = vsel %vm478, %v417, 0
        %v598 = vsel %vm478, %v419, 0
        %v601 = vsel %vm478, %v421, 0
        %v604 = vsel %vm478, %v423, 0
        %v607 = vsel %vm478, %v425, 0
        %609 = vmatpush.msra.mxu0 %v457
        %610 = vmatpush.msra.mxu0 %v456
        %611 = vmatpush.msra.mxu0 %v455
        %612 = vmatpush.msra.mxu0 %v454
        %613 = vmatpush.msra.mxu0 %v453
        %614 = vmatpush.msra.mxu0 %v452
        %615 = vmatpush.msra.mxu0 %v451
        %616 = vmatpush.msra.mxu0 %v450
        %617 = vmatpush.msra.mxu0 %v449
        %618 = vmatpush.msra.mxu0 %v448
        %619 = vmatpush.msra.mxu0 %v447
        %620 = vmatpush.msra.mxu0 %v446
        %621 = vmatpush.msra.mxu0 %v445
        %622 = vmatpush.msra.mxu0 %v444
        %623 = vmatpush.msra.mxu0 %v443
        %624 = vmatpush.msra.mxu0 %v442
        %625 = vmatmul.f32.gmra.mxu0 %v410
        %v626 = vpop.f32.mrf.mxu0
        %v627 = vadd.f32 %v562, %v626
        %628 = vmatmul.f32.gmra.mxu0 %v412
        %v629 = vpop.f32.mrf.mxu0
        %v630 = vadd.f32 %v565, %v629
        %631 = vmatmul.f32.gmra.mxu0 %v414
        %v632 = vpop.f32.mrf.mxu0
        %v633 = vadd.f32 %v568, %v632
        %634 = vmatmul.f32.gmra.mxu0 %v416
        %v635 = vpop.f32.mrf.mxu0
        %v636 = vadd.f32 %v571, %v635
        %637 = vmatmul.f32.gmra.mxu0 %v418
        %v638 = vpop.f32.mrf.mxu0
        %v639 = vadd.f32 %v574, %v638
        %640 = vmatmul.f32.gmra.mxu0 %v420
        %v641 = vpop.f32.mrf.mxu0
        %v642 = vadd.f32 %v577, %v641
        %643 = vmatmul.f32.gmra.mxu0 %v422
        %v644 = vpop.f32.mrf.mxu0
        %v645 = vadd.f32 %v580, %v644
        %646 = vmatmul.f32.gmra.mxu0 %v424
        %v647 = vpop.f32.mrf.mxu0
        %v648 = vadd.f32 %v583, %v647
        %649 = vdwg.mxu0
        %650 = vmatpush.msra.mxu0 0.0
        %651 = vmatpush.msra.mxu0 0.0
        %652 = vmatpush.msra.mxu0 0.0
        %653 = vmatpush.msra.mxu0 0.0
        %654 = vmatpush.msra.mxu0 0.0
        %655 = vmatpush.msra.mxu0 0.0
        %656 = vmatpush.msra.mxu0 0.0
        %657 = vmatpush.msra.mxu0 0.0
        %658 = vmatpush.msra.mxu0 0.0
        %659 = vmatpush.msra.mxu0 0.0
        %660 = vmatpush.msra.mxu0 0.0
        %661 = vmatpush.msra.mxu0 0.0
        %662 = vmatpush.msra.mxu0 0.0
        %663 = vmatpush.msra.mxu0 0.0
        %664 = vmatpush.msra.mxu0 %v459
        %665 = vmatpush.msra.mxu0 %v458
        %666 = vmatmul.f32.gmra.mxu0 %v586
        %v667 = vpop.f32.mrf.mxu0
        %v668 = vadd.f32 %v627, %v667
        %669 = vmatmul.f32.gmra.mxu0 %v589
        %v670 = vpop.f32.mrf.mxu0
        %v671 = vadd.f32 %v630, %v670
        %672 = vmatmul.f32.gmra.mxu0 %v592
        %v673 = vpop.f32.mrf.mxu0
        %v674 = vadd.f32 %v633, %v673
        %675 = vmatmul.f32.gmra.mxu0 %v595
        %v676 = vpop.f32.mrf.mxu0
        %v677 = vadd.f32 %v636, %v676
        %678 = vmatmul.f32.gmra.mxu0 %v598
        %v679 = vpop.f32.mrf.mxu0
        %v680 = vadd.f32 %v639, %v679
        %681 = vmatmul.f32.gmra.mxu0 %v601
        %v682 = vpop.f32.mrf.mxu0
        %v683 = vadd.f32 %v642, %v682
        %684 = vmatmul.f32.gmra.mxu0 %v604
        %v685 = vpop.f32.mrf.mxu0
        %v686 = vadd.f32 %v645, %v685
        %687 = vmatmul.f32.gmra.mxu0 %v607
        %v688 = vpop.f32.mrf.mxu0
        %v689 = vadd.f32 %v648, %v688
        %690 = vdwg.mxu0
        %v691 = vld [vmem:[%s5] sm:$0x1]
        %v693 = vperm.slane %v691, 0
        %v695 = vadd.f32 %v668, %v693
        %v696 = vadd.f32 %v671, %v693
        %v697 = vadd.f32 %v674, %v693
        %v698 = vadd.f32 %v677, %v693
        %v699 = vadd.f32 %v680, %v693
        %v700 = vadd.f32 %v683, %v693
        %v701 = vadd.f32 %v686, %v693
        %v702 = vadd.f32 %v689, %v693
        %v703 = vmul.f32 %v695, 0.5
        %v704 = vmul.f32 %v696, 0.5
        %v705 = vmul.f32 %v697, 0.5
        %v706 = vmul.f32 %v698, 0.5
        %v707 = vmul.f32 %v699, 0.5
        %v708 = vmul.f32 %v700, 0.5
        %v709 = vmul.f32 %v701, 0.5
        %v710 = vmul.f32 %v702, 0.5
        %v711 = vtanh.pop %v703
        %v712 = vtanh.pop %v704
        %v713 = vtanh.pop %v705
        %v714 = vtanh.pop %v706
        %v715 = vtanh.pop %v707
        %v716 = vtanh.pop %v708
        %v717 = vtanh.pop %v709
        %v718 = vtanh.pop %v710
        %v719 = vadd.f32 %v711, 1.0
        %v720 = vadd.f32 %v712, 1.0
        %v721 = vadd.f32 %v713, 1.0
        %v722 = vadd.f32 %v714, 1.0
        %v723 = vadd.f32 %v715, 1.0
        %v724 = vadd.f32 %v716, 1.0
        %v725 = vadd.f32 %v717, 1.0
        %v726 = vadd.f32 %v718, 1.0
        %v727 = vmul.f32 %v719, 0.5
        %v728 = vmul.f32 %v720, 0.5
        %v729 = vmul.f32 %v721, 0.5
        %v730 = vmul.f32 %v722, 0.5
        %v731 = vmul.f32 %v723, 0.5
        %v732 = vmul.f32 %v724, 0.5
        %v733 = vmul.f32 %v725, 0.5
        %v734 = vmul.f32 %v726, 0.5
        %s735 = scalar_lea.vmem %s3, 144
        %v736 = vld [vmem:[%s735] sm:$0xff]
        %v737 = vld [vmem:[%s735 + $0x8] sm:$0xff]
        %v738 = vld [vmem:[%s735 + $0x10] sm:$0xff]
        %v739 = vld [vmem:[%s735 + $0x18] sm:$0xff]
        %v740 = vld [vmem:[%s735 + $0x20] sm:$0xff]
        %v741 = vld [vmem:[%s735 + $0x28] sm:$0xff]
        %v742 = vld [vmem:[%s735 + $0x30] sm:$0xff]
        %v743 = vld [vmem:[%s735 + $0x38] sm:$0xff]
        %v744 = vld [vmem:[%s735 + $0x40] sm:$0xff]
        %v745 = vld [vmem:[%s735 + $0x48] sm:$0xff]
        %v746 = vld [vmem:[%s735 + $0x50] sm:$0xff]
        %v747 = vld [vmem:[%s735 + $0x58] sm:$0xff]
        %v748 = vld [vmem:[%s735 + $0x60] sm:$0xff]
        %v749 = vld [vmem:[%s735 + $0x68] sm:$0xff]
        %v750 = vld [vmem:[%s735 + $0x70] sm:$0xff]
        %v751 = vld [vmem:[%s735 + $0x78] sm:$0xff]
        %v752 = vld [vmem:[%s735 + $0x80] sm:$0xff]
        %v753 = vld [vmem:[%s735 + $0x88] sm:$0xff]
        %s754 = scalar_lea.vmem %s4, 144
        %v755 = vld [vmem:[%s754] sm:$0xff]
        %v756 = vld [vmem:[%s754 + $0x8] sm:$0xff]
        %v757 = vld [vmem:[%s754 + $0x10] sm:$0xff]
        %v758 = vld [vmem:[%s754 + $0x18] sm:$0xff]
        %v759 = vld [vmem:[%s754 + $0x20] sm:$0xff]
        %v760 = vld [vmem:[%s754 + $0x28] sm:$0xff]
        %v761 = vld [vmem:[%s754 + $0x30] sm:$0xff]
        %v762 = vld [vmem:[%s754 + $0x38] sm:$0xff]
        %v763 = vld [vmem:[%s754 + $0x40] sm:$0xff]
        %v764 = vld [vmem:[%s754 + $0x48] sm:$0xff]
        %v765 = vld [vmem:[%s754 + $0x50] sm:$0xff]
        %v766 = vld [vmem:[%s754 + $0x58] sm:$0xff]
        %v767 = vld [vmem:[%s754 + $0x60] sm:$0xff]
        %v768 = vld [vmem:[%s754 + $0x68] sm:$0xff]
        %v769 = vld [vmem:[%s754 + $0x70] sm:$0xff]
        %v770 = vld [vmem:[%s754 + $0x78] sm:$0xff]
        %v771 = vld [vmem:[%s754 + $0x80] sm:$0xff]
        %v772 = vld [vmem:[%s754 + $0x88] sm:$0xff]
        %773 = vmatpush.msra.mxu0 %v770
        %774 = vmatpush.msra.mxu0 %v769
        %775 = vmatpush.msra.mxu0 %v768
        %776 = vmatpush.msra.mxu0 %v767
        %777 = vmatpush.msra.mxu0 %v766
        %778 = vmatpush.msra.mxu0 %v765
        %779 = vmatpush.msra.mxu0 %v764
        %780 = vmatpush.msra.mxu0 %v763
        %781 = vmatpush.msra.mxu0 %v762
        %782 = vmatpush.msra.mxu0 %v761
        %783 = vmatpush.msra.mxu0 %v760
        %784 = vmatpush.msra.mxu0 %v759
        %785 = vmatpush.msra.mxu0 %v758
        %786 = vmatpush.msra.mxu0 %v757
        %787 = vmatpush.msra.mxu0 %v756
        %788 = vmatpush.msra.mxu0 %v755
        %789 = vmatmul.f32.gmra.mxu0 %v426
        %v790 = vpop.f32.mrf.mxu0
        %v791 = vadd.f32 0.0, %v790
        %792 = vmatmul.f32.gmra.mxu0 %v428
        %v793 = vpop.f32.mrf.mxu0
        %v794 = vadd.f32 0.0, %v793
        %795 = vmatmul.f32.gmra.mxu0 %v430
        %v796 = vpop.f32.mrf.mxu0
        %v797 = vadd.f32 0.0, %v796
        %798 = vmatmul.f32.gmra.mxu0 %v432
        %v799 = vpop.f32.mrf.mxu0
        %v800 = vadd.f32 0.0, %v799
        %801 = vmatmul.f32.gmra.mxu0 %v434
        %v802 = vpop.f32.mrf.mxu0
        %v803 = vadd.f32 0.0, %v802
        %804 = vmatmul.f32.gmra.mxu0 %v436
        %v805 = vpop.f32.mrf.mxu0
        %v806 = vadd.f32 0.0, %v805
        %807 = vmatmul.f32.gmra.mxu0 %v438
        %v808 = vpop.f32.mrf.mxu0
        %v809 = vadd.f32 0.0, %v808
        %810 = vmatmul.f32.gmra.mxu0 %v440
        %v811 = vpop.f32.mrf.mxu0
        %v812 = vadd.f32 0.0, %v811
        %813 = vdwg.mxu0
        %814 = vmatpush.msra.mxu0 0.0
        %815 = vmatpush.msra.mxu0 0.0
        %816 = vmatpush.msra.mxu0 0.0
        %817 = vmatpush.msra.mxu0 0.0
        %818 = vmatpush.msra.mxu0 0.0
        %819 = vmatpush.msra.mxu0 0.0
        %820 = vmatpush.msra.mxu0 0.0
        %821 = vmatpush.msra.mxu0 0.0
        %822 = vmatpush.msra.mxu0 0.0
        %823 = vmatpush.msra.mxu0 0.0
        %824 = vmatpush.msra.mxu0 0.0
        %825 = vmatpush.msra.mxu0 0.0
        %826 = vmatpush.msra.mxu0 0.0
        %827 = vmatpush.msra.mxu0 0.0
        %828 = vmatpush.msra.mxu0 %v772
        %829 = vmatpush.msra.mxu0 %v771
        %830 = vmatmul.f32.gmra.mxu0 %v480
        %v831 = vpop.f32.mrf.mxu0
        %v832 = vadd.f32 %v791, %v831
        %833 = vmatmul.f32.gmra.mxu0 %v483
        %v834 = vpop.f32.mrf.mxu0
        %v835 = vadd.f32 %v794, %v834
        %836 = vmatmul.f32.gmra.mxu0 %v486
        %v837 = vpop.f32.mrf.mxu0
        %v838 = vadd.f32 %v797, %v837
        %839 = vmatmul.f32.gmra.mxu0 %v489
        %v840 = vpop.f32.mrf.mxu0
        %v841 = vadd.f32 %v800, %v840
        %842 = vmatmul.f32.gmra.mxu0 %v492
        %v843 = vpop.f32.mrf.mxu0
        %v844 = vadd.f32 %v803, %v843
        %845 = vmatmul.f32.gmra.mxu0 %v495
        %v846 = vpop.f32.mrf.mxu0
        %v847 = vadd.f32 %v806, %v846
        %848 = vmatmul.f32.gmra.mxu0 %v498
        %v849 = vpop.f32.mrf.mxu0
        %v850 = vadd.f32 %v809, %v849
        %851 = vmatmul.f32.gmra.mxu0 %v501
        %v852 = vpop.f32.mrf.mxu0
        %v853 = vadd.f32 %v812, %v852
        %854 = vdwg.mxu0
        %855 = vmatpush.msra.mxu0 %v751
        %856 = vmatpush.msra.mxu0 %v750
        %857 = vmatpush.msra.mxu0 %v749
        %858 = vmatpush.msra.mxu0 %v748
        %859 = vmatpush.msra.mxu0 %v747
        %860 = vmatpush.msra.mxu0 %v746
        %861 = vmatpush.msra.mxu0 %v745
        %862 = vmatpush.msra.mxu0 %v744
        %863 = vmatpush.msra.mxu0 %v743
        %864 = vmatpush.msra.mxu0 %v742
        %865 = vmatpush.msra.mxu0 %v741
        %866 = vmatpush.msra.mxu0 %v740
        %867 = vmatpush.msra.mxu0 %v739
        %868 = vmatpush.msra.mxu0 %v738
        %869 = vmatpush.msra.mxu0 %v737
        %870 = vmatpush.msra.mxu0 %v736
        %871 = vmatmul.f32.gmra.mxu0 %v410
        %v872 = vpop.f32.mrf.mxu0
        %v873 = vadd.f32 %v832, %v872
        %874 = vmatmul.f32.gmra.mxu0 %v412
        %v875 = vpop.f32.mrf.mxu0
        %v876 = vadd.f32 %v835, %v875
        %877 = vmatmul.f32.gmra.mxu0 %v414
        %v878 = vpop.f32.mrf.mxu0
        %v879 = vadd.f32 %v838, %v878
        %880 = vmatmul.f32.gmra.mxu0 %v416
        %v881 = vpop.f32.mrf.mxu0
        %v882 = vadd.f32 %v841, %v881
        %883 = vmatmul.f32.gmra.mxu0 %v418
        %v884 = vpop.f32.mrf.mxu0
        %v885 = vadd.f32 %v844, %v884
        %886 = vmatmul.f32.gmra.mxu0 %v420
        %v887 = vpop.f32.mrf.mxu0
        %v888 = vadd.f32 %v847, %v887
        %889 = vmatmul.f32.gmra.mxu0 %v422
        %v890 = vpop.f32.mrf.mxu0
        %v891 = vadd.f32 %v850, %v890
        %892 = vmatmul.f32.gmra.mxu0 %v424
        %v893 = vpop.f32.mrf.mxu0
        %v894 = vadd.f32 %v853, %v893
        %895 = vdwg.mxu0
        %896 = vmatpush.msra.mxu0 0.0
        %897 = vmatpush.msra.mxu0 0.0
        %898 = vmatpush.msra.mxu0 0.0
        %899 = vmatpush.msra.mxu0 0.0
        %900 = vmatpush.msra.mxu0 0.0
        %901 = vmatpush.msra.mxu0 0.0
        %902 = vmatpush.msra.mxu0 0.0
        %903 = vmatpush.msra.mxu0 0.0
        %904 = vmatpush.msra.mxu0 0.0
        %905 = vmatpush.msra.mxu0 0.0
        %906 = vmatpush.msra.mxu0 0.0
        %907 = vmatpush.msra.mxu0 0.0
        %908 = vmatpush.msra.mxu0 0.0
        %909 = vmatpush.msra.mxu0 0.0
        %910 = vmatpush.msra.mxu0 %v753
        %911 = vmatpush.msra.mxu0 %v752
        %912 = vmatmul.f32.gmra.mxu0 %v586
        %v913 = vpop.f32.mrf.mxu0
        %v914 = vadd.f32 %v873, %v913
        %915 = vmatmul.f32.gmra.mxu0 %v589
        %v916 = vpop.f32.mrf.mxu0
        %v917 = vadd.f32 %v876, %v916
        %918 = vmatmul.f32.gmra.mxu0 %v592
        %v919 = vpop.f32.mrf.mxu0
        %v920 = vadd.f32 %v879, %v919
        %921 = vmatmul.f32.gmra.mxu0 %v595
        %v922 = vpop.f32.mrf.mxu0
        %v923 = vadd.f32 %v882, %v922
        %924 = vmatmul.f32.gmra.mxu0 %v598
        %v925 = vpop.f32.mrf.mxu0
        %v926 = vadd.f32 %v885, %v925
        %927 = vmatmul.f32.gmra.mxu0 %v601
        %v928 = vpop.f32.mrf.mxu0
        %v929 = vadd.f32 %v888, %v928
        %930 = vmatmul.f32.gmra.mxu0 %v604
        %v931 = vpop.f32.mrf.mxu0
        %v932 = vadd.f32 %v891, %v931
        %933 = vmatmul.f32.gmra.mxu0 %v607
        %v934 = vpop.f32.mrf.mxu0
        %v935 = vadd.f32 %v894, %v934
        %936 = vdwg.mxu0
        %s937 = scalar_lea.vmem %s5, 1
        %v938 = vld [vmem:[%s937] sm:$0x1]
        %v940 = vperm.slane %v938, 0
        %v942 = vadd.f32 %v914, %v940
        %v943 = vadd.f32 %v917, %v940
        %v944 = vadd.f32 %v920, %v940
        %v945 = vadd.f32 %v923, %v940
        %v946 = vadd.f32 %v926, %v940
        %v947 = vadd.f32 %v929, %v940
        %v948 = vadd.f32 %v932, %v940
        %v949 = vadd.f32 %v935, %v940
        %v950 = vmul.f32 %v942, 0.5
        %v951 = vmul.f32 %v943, 0.5
        %v952 = vmul.f32 %v944, 0.5
        %v953 = vmul.f32 %v945, 0.5
        %v954 = vmul.f32 %v946, 0.5
        %v955 = vmul.f32 %v947, 0.5
        %v956 = vmul.f32 %v948, 0.5
        %v957 = vmul.f32 %v949, 0.5
        %v958 = vtanh.pop %v950
        %v959 = vtanh.pop %v951
        %v960 = vtanh.pop %v952
        %v961 = vtanh.pop %v953
        %v962 = vtanh.pop %v954
        %v963 = vtanh.pop %v955
        %v964 = vtanh.pop %v956
        %v965 = vtanh.pop %v957
        %v966 = vadd.f32 %v958, 1.0
        %v967 = vadd.f32 %v959, 1.0
        %v968 = vadd.f32 %v960, 1.0
        %v969 = vadd.f32 %v961, 1.0
        %v970 = vadd.f32 %v962, 1.0
        %v971 = vadd.f32 %v963, 1.0
        %v972 = vadd.f32 %v964, 1.0
        %v973 = vadd.f32 %v965, 1.0
        %v974 = vmul.f32 %v966, 0.5
        %v975 = vmul.f32 %v967, 0.5
        %v976 = vmul.f32 %v968, 0.5
        %v977 = vmul.f32 %v969, 0.5
        %v978 = vmul.f32 %v970, 0.5
        %v979 = vmul.f32 %v971, 0.5
        %v980 = vmul.f32 %v972, 0.5
        %v981 = vmul.f32 %v973, 0.5
        %s982 = scalar_lea.vmem %s3, 288
        %v983 = vld [vmem:[%s982] sm:$0xff]
        %v984 = vld [vmem:[%s982 + $0x8] sm:$0xff]
        %v985 = vld [vmem:[%s982 + $0x10] sm:$0xff]
        %v986 = vld [vmem:[%s982 + $0x18] sm:$0xff]
        %v987 = vld [vmem:[%s982 + $0x20] sm:$0xff]
        %v988 = vld [vmem:[%s982 + $0x28] sm:$0xff]
        %v989 = vld [vmem:[%s982 + $0x30] sm:$0xff]
        %v990 = vld [vmem:[%s982 + $0x38] sm:$0xff]
        %v991 = vld [vmem:[%s982 + $0x40] sm:$0xff]
        %v992 = vld [vmem:[%s982 + $0x48] sm:$0xff]
        %v993 = vld [vmem:[%s982 + $0x50] sm:$0xff]
        %v994 = vld [vmem:[%s982 + $0x58] sm:$0xff]
        %v995 = vld [vmem:[%s982 + $0x60] sm:$0xff]
        %v996 = vld [vmem:[%s982 + $0x68] sm:$0xff]
        %v997 = vld [vmem:[%s982 + $0x70] sm:$0xff]
        %v998 = vld [vmem:[%s982 + $0x78] sm:$0xff]
        %v999 = vld [vmem:[%s982 + $0x80] sm:$0xff]
        %v1000 = vld [vmem:[%s982 + $0x88] sm:$0xff]
        %s1001 = scalar_lea.vmem %s4, 288
        %v1002 = vld [vmem:[%s1001] sm:$0xff]
        %v1003 = vld [vmem:[%s1001 + $0x8] sm:$0xff]
        %v1004 = vld [vmem:[%s1001 + $0x10] sm:$0xff]
        %v1005 = vld [vmem:[%s1001 + $0x18] sm:$0xff]
        %v1006 = vld [vmem:[%s1001 + $0x20] sm:$0xff]
        %v1007 = vld [vmem:[%s1001 + $0x28] sm:$0xff]
        %v1008 = vld [vmem:[%s1001 + $0x30] sm:$0xff]
        %v1009 = vld [vmem:[%s1001 + $0x38] sm:$0xff]
        %v1010 = vld [vmem:[%s1001 + $0x40] sm:$0xff]
        %v1011 = vld [vmem:[%s1001 + $0x48] sm:$0xff]
        %v1012 = vld [vmem:[%s1001 + $0x50] sm:$0xff]
        %v1013 = vld [vmem:[%s1001 + $0x58] sm:$0xff]
        %v1014 = vld [vmem:[%s1001 + $0x60] sm:$0xff]
        %v1015 = vld [vmem:[%s1001 + $0x68] sm:$0xff]
        %v1016 = vld [vmem:[%s1001 + $0x70] sm:$0xff]
        %v1017 = vld [vmem:[%s1001 + $0x78] sm:$0xff]
        %v1018 = vld [vmem:[%s1001 + $0x80] sm:$0xff]
        %v1019 = vld [vmem:[%s1001 + $0x88] sm:$0xff]
        %1020 = vmatpush.msra.mxu0 %v1017
        %1021 = vmatpush.msra.mxu0 %v1016
        %1022 = vmatpush.msra.mxu0 %v1015
        %1023 = vmatpush.msra.mxu0 %v1014
        %1024 = vmatpush.msra.mxu0 %v1013
        %1025 = vmatpush.msra.mxu0 %v1012
        %1026 = vmatpush.msra.mxu0 %v1011
        %1027 = vmatpush.msra.mxu0 %v1010
        %1028 = vmatpush.msra.mxu0 %v1009
        %1029 = vmatpush.msra.mxu0 %v1008
        %1030 = vmatpush.msra.mxu0 %v1007
        %1031 = vmatpush.msra.mxu0 %v1006
        %1032 = vmatpush.msra.mxu0 %v1005
        %1033 = vmatpush.msra.mxu0 %v1004
        %1034 = vmatpush.msra.mxu0 %v1003
        %1035 = vmatpush.msra.mxu0 %v1002
        %1036 = vmatmul.f32.gmra.mxu0 %v426
        %v1037 = vpop.f32.mrf.mxu0
        %v1038 = vadd.f32 0.0, %v1037
        %1039 = vmatmul.f32.gmra.mxu0 %v428
        %v1040 = vpop.f32.mrf.mxu0
        %v1041 = vadd.f32 0.0, %v1040
        %1042 = vmatmul.f32.gmra.mxu0 %v430
        %v1043 = vpop.f32.mrf.mxu0
        %v1044 = vadd.f32 0.0, %v1043
        %1045 = vmatmul.f32.gmra.mxu0 %v432
        %v1046 = vpop.f32.mrf.mxu0
        %v1047 = vadd.f32 0.0, %v1046
        %1048 = vmatmul.f32.gmra.mxu0 %v434
        %v1049 = vpop.f32.mrf.mxu0
        %v1050 = vadd.f32 0.0, %v1049
        %1051 = vmatmul.f32.gmra.mxu0 %v436
        %v1052 = vpop.f32.mrf.mxu0
        %v1053 = vadd.f32 0.0, %v1052
        %1054 = vmatmul.f32.gmra.mxu0 %v438
        %v1055 = vpop.f32.mrf.mxu0
        %v1056 = vadd.f32 0.0, %v1055
        %1057 = vmatmul.f32.gmra.mxu0 %v440
        %v1058 = vpop.f32.mrf.mxu0
        %v1059 = vadd.f32 0.0, %v1058
        %1060 = vdwg.mxu0
        %1061 = vmatpush.msra.mxu0 0.0
        %1062 = vmatpush.msra.mxu0 0.0
        %1063 = vmatpush.msra.mxu0 0.0
        %1064 = vmatpush.msra.mxu0 0.0
        %1065 = vmatpush.msra.mxu0 0.0
        %1066 = vmatpush.msra.mxu0 0.0
        %1067 = vmatpush.msra.mxu0 0.0
        %1068 = vmatpush.msra.mxu0 0.0
        %1069 = vmatpush.msra.mxu0 0.0
        %1070 = vmatpush.msra.mxu0 0.0
        %1071 = vmatpush.msra.mxu0 0.0
        %1072 = vmatpush.msra.mxu0 0.0
        %1073 = vmatpush.msra.mxu0 0.0
        %1074 = vmatpush.msra.mxu0 0.0
        %1075 = vmatpush.msra.mxu0 %v1019
        %1076 = vmatpush.msra.mxu0 %v1018
        %1077 = vmatmul.f32.gmra.mxu0 %v480
        %v1078 = vpop.f32.mrf.mxu0
        %v1079 = vadd.f32 %v1038, %v1078
        %1080 = vmatmul.f32.gmra.mxu0 %v483
        %v1081 = vpop.f32.mrf.mxu0
        %v1082 = vadd.f32 %v1041, %v1081
        %1083 = vmatmul.f32.gmra.mxu0 %v486
        %v1084 = vpop.f32.mrf.mxu0
        %v1085 = vadd.f32 %v1044, %v1084
        %1086 = vmatmul.f32.gmra.mxu0 %v489
        %v1087 = vpop.f32.mrf.mxu0
        %v1088 = vadd.f32 %v1047, %v1087
        %1089 = vmatmul.f32.gmra.mxu0 %v492
        %v1090 = vpop.f32.mrf.mxu0
        %v1091 = vadd.f32 %v1050, %v1090
        %1092 = vmatmul.f32.gmra.mxu0 %v495
        %v1093 = vpop.f32.mrf.mxu0
        %v1094 = vadd.f32 %v1053, %v1093
        %1095 = vmatmul.f32.gmra.mxu0 %v498
        %v1096 = vpop.f32.mrf.mxu0
        %v1097 = vadd.f32 %v1056, %v1096
        %1098 = vmatmul.f32.gmra.mxu0 %v501
        %v1099 = vpop.f32.mrf.mxu0
        %v1100 = vadd.f32 %v1059, %v1099
        %1101 = vdwg.mxu0
        %1102 = vmatpush.msra.mxu0 %v998
        %1103 = vmatpush.msra.mxu0 %v997
        %1104 = vmatpush.msra.mxu0 %v996
        %1105 = vmatpush.msra.mxu0 %v995
        %1106 = vmatpush.msra.mxu0 %v994
        %1107 = vmatpush.msra.mxu0 %v993
        %1108 = vmatpush.msra.mxu0 %v992
        %1109 = vmatpush.msra.mxu0 %v991
        %1110 = vmatpush.msra.mxu0 %v990
        %1111 = vmatpush.msra.mxu0 %v989
        %1112 = vmatpush.msra.mxu0 %v988
        %1113 = vmatpush.msra.mxu0 %v987
        %1114 = vmatpush.msra.mxu0 %v986
        %1115 = vmatpush.msra.mxu0 %v985
        %1116 = vmatpush.msra.mxu0 %v984
        %1117 = vmatpush.msra.mxu0 %v983
        %1118 = vmatmul.f32.gmra.mxu0 %v410
        %v1119 = vpop.f32.mrf.mxu0
        %v1120 = vadd.f32 %v1079, %v1119
        %1121 = vmatmul.f32.gmra.mxu0 %v412
        %v1122 = vpop.f32.mrf.mxu0
        %v1123 = vadd.f32 %v1082, %v1122
        %1124 = vmatmul.f32.gmra.mxu0 %v414
        %v1125 = vpop.f32.mrf.mxu0
        %v1126 = vadd.f32 %v1085, %v1125
        %1127 = vmatmul.f32.gmra.mxu0 %v416
        %v1128 = vpop.f32.mrf.mxu0
        %v1129 = vadd.f32 %v1088, %v1128
        %1130 = vmatmul.f32.gmra.mxu0 %v418
        %v1131 = vpop.f32.mrf.mxu0
        %v1132 = vadd.f32 %v1091, %v1131
        %1133 = vmatmul.f32.gmra.mxu0 %v420
        %v1134 = vpop.f32.mrf.mxu0
        %v1135 = vadd.f32 %v1094, %v1134
        %1136 = vmatmul.f32.gmra.mxu0 %v422
        %v1137 = vpop.f32.mrf.mxu0
        %v1138 = vadd.f32 %v1097, %v1137
        %1139 = vmatmul.f32.gmra.mxu0 %v424
        %v1140 = vpop.f32.mrf.mxu0
        %v1141 = vadd.f32 %v1100, %v1140
        %1142 = vdwg.mxu0
        %1143 = vmatpush.msra.mxu0 0.0
        %1144 = vmatpush.msra.mxu0 0.0
        %1145 = vmatpush.msra.mxu0 0.0
        %1146 = vmatpush.msra.mxu0 0.0
        %1147 = vmatpush.msra.mxu0 0.0
        %1148 = vmatpush.msra.mxu0 0.0
        %1149 = vmatpush.msra.mxu0 0.0
        %1150 = vmatpush.msra.mxu0 0.0
        %1151 = vmatpush.msra.mxu0 0.0
        %1152 = vmatpush.msra.mxu0 0.0
        %1153 = vmatpush.msra.mxu0 0.0
        %1154 = vmatpush.msra.mxu0 0.0
        %1155 = vmatpush.msra.mxu0 0.0
        %1156 = vmatpush.msra.mxu0 0.0
        %1157 = vmatpush.msra.mxu0 %v1000
        %1158 = vmatpush.msra.mxu0 %v999
        %1159 = vmatmul.f32.gmra.mxu0 %v586
        %v1160 = vpop.f32.mrf.mxu0
        %v1161 = vadd.f32 %v1120, %v1160
        %1162 = vmatmul.f32.gmra.mxu0 %v589
        %v1163 = vpop.f32.mrf.mxu0
        %v1164 = vadd.f32 %v1123, %v1163
        %1165 = vmatmul.f32.gmra.mxu0 %v592
        %v1166 = vpop.f32.mrf.mxu0
        %v1167 = vadd.f32 %v1126, %v1166
        %1168 = vmatmul.f32.gmra.mxu0 %v595
        %v1169 = vpop.f32.mrf.mxu0
        %v1170 = vadd.f32 %v1129, %v1169
        %1171 = vmatmul.f32.gmra.mxu0 %v598
        %v1172 = vpop.f32.mrf.mxu0
        %v1173 = vadd.f32 %v1132, %v1172
        %1174 = vmatmul.f32.gmra.mxu0 %v601
        %v1175 = vpop.f32.mrf.mxu0
        %v1176 = vadd.f32 %v1135, %v1175
        %1177 = vmatmul.f32.gmra.mxu0 %v604
        %v1178 = vpop.f32.mrf.mxu0
        %v1179 = vadd.f32 %v1138, %v1178
        %1180 = vmatmul.f32.gmra.mxu0 %v607
        %v1181 = vpop.f32.mrf.mxu0
        %v1182 = vadd.f32 %v1141, %v1181
        %1183 = vdwg.mxu0
        %s1184 = scalar_lea.vmem %s5, 2
        %v1185 = vld [vmem:[%s1184] sm:$0x1]
        %v1187 = vperm.slane %v1185, 0
        %v1189 = vadd.f32 %v1161, %v1187
        %v1190 = vadd.f32 %v1164, %v1187
        %v1191 = vadd.f32 %v1167, %v1187
        %v1192 = vadd.f32 %v1170, %v1187
        %v1193 = vadd.f32 %v1173, %v1187
        %v1194 = vadd.f32 %v1176, %v1187
        %v1195 = vadd.f32 %v1179, %v1187
        %v1196 = vadd.f32 %v1182, %v1187
        %v1197 = vmul.f32 %v1189, 0.5
        %v1198 = vmul.f32 %v1190, 0.5
        %v1199 = vmul.f32 %v1191, 0.5
        %v1200 = vmul.f32 %v1192, 0.5
        %v1201 = vmul.f32 %v1193, 0.5
        %v1202 = vmul.f32 %v1194, 0.5
        %v1203 = vmul.f32 %v1195, 0.5
        %v1204 = vmul.f32 %v1196, 0.5
        %v1205 = vtanh.pop %v1197
        %v1206 = vtanh.pop %v1198
        %v1207 = vtanh.pop %v1199
        %v1208 = vtanh.pop %v1200
        %v1209 = vtanh.pop %v1201
        %v1210 = vtanh.pop %v1202
        %v1211 = vtanh.pop %v1203
        %v1212 = vtanh.pop %v1204
        %v1213 = vadd.f32 %v1205, 1.0
        %v1214 = vadd.f32 %v1206, 1.0
        %v1215 = vadd.f32 %v1207, 1.0
        %v1216 = vadd.f32 %v1208, 1.0
        %v1217 = vadd.f32 %v1209, 1.0
        %v1218 = vadd.f32 %v1210, 1.0
        %v1219 = vadd.f32 %v1211, 1.0
        %v1220 = vadd.f32 %v1212, 1.0
        %v1221 = vmul.f32 %v1213, 0.5
        %v1222 = vmul.f32 %v1214, 0.5
        %v1223 = vmul.f32 %v1215, 0.5
        %v1224 = vmul.f32 %v1216, 0.5
        %v1225 = vmul.f32 %v1217, 0.5
        %v1226 = vmul.f32 %v1218, 0.5
        %v1227 = vmul.f32 %v1219, 0.5
        %v1228 = vmul.f32 %v1220, 0.5
        %s1229 = scalar_lea.vmem %s3, 432
        %v1230 = vld [vmem:[%s1229] sm:$0xff]
        %v1231 = vld [vmem:[%s1229 + $0x8] sm:$0xff]
        %v1232 = vld [vmem:[%s1229 + $0x10] sm:$0xff]
        %v1233 = vld [vmem:[%s1229 + $0x18] sm:$0xff]
        %v1234 = vld [vmem:[%s1229 + $0x20] sm:$0xff]
        %v1235 = vld [vmem:[%s1229 + $0x28] sm:$0xff]
        %v1236 = vld [vmem:[%s1229 + $0x30] sm:$0xff]
        %v1237 = vld [vmem:[%s1229 + $0x38] sm:$0xff]
        %v1238 = vld [vmem:[%s1229 + $0x40] sm:$0xff]
        %v1239 = vld [vmem:[%s1229 + $0x48] sm:$0xff]
        %v1240 = vld [vmem:[%s1229 + $0x50] sm:$0xff]
        %v1241 = vld [vmem:[%s1229 + $0x58] sm:$0xff]
        %v1242 = vld [vmem:[%s1229 + $0x60] sm:$0xff]
        %v1243 = vld [vmem:[%s1229 + $0x68] sm:$0xff]
        %v1244 = vld [vmem:[%s1229 + $0x70] sm:$0xff]
        %v1245 = vld [vmem:[%s1229 + $0x78] sm:$0xff]
        %v1246 = vld [vmem:[%s1229 + $0x80] sm:$0xff]
        %v1247 = vld [vmem:[%s1229 + $0x88] sm:$0xff]
        %s1248 = scalar_lea.vmem %s4, 432
        %v1249 = vld [vmem:[%s1248] sm:$0xff]
        %v1250 = vld [vmem:[%s1248 + $0x8] sm:$0xff]
        %v1251 = vld [vmem:[%s1248 + $0x10] sm:$0xff]
        %v1252 = vld [vmem:[%s1248 + $0x18] sm:$0xff]
        %v1253 = vld [vmem:[%s1248 + $0x20] sm:$0xff]
        %v1254 = vld [vmem:[%s1248 + $0x28] sm:$0xff]
        %v1255 = vld [vmem:[%s1248 + $0x30] sm:$0xff]
        %v1256 = vld [vmem:[%s1248 + $0x38] sm:$0xff]
        %v1257 = vld [vmem:[%s1248 + $0x40] sm:$0xff]
        %v1258 = vld [vmem:[%s1248 + $0x48] sm:$0xff]
        %v1259 = vld [vmem:[%s1248 + $0x50] sm:$0xff]
        %v1260 = vld [vmem:[%s1248 + $0x58] sm:$0xff]
        %v1261 = vld [vmem:[%s1248 + $0x60] sm:$0xff]
        %v1262 = vld [vmem:[%s1248 + $0x68] sm:$0xff]
        %v1263 = vld [vmem:[%s1248 + $0x70] sm:$0xff]
        %v1264 = vld [vmem:[%s1248 + $0x78] sm:$0xff]
        %v1265 = vld [vmem:[%s1248 + $0x80] sm:$0xff]
        %v1266 = vld [vmem:[%s1248 + $0x88] sm:$0xff]
        %1267 = vmatpush.msra.mxu0 %v1264
        %1268 = vmatpush.msra.mxu0 %v1263
        %1269 = vmatpush.msra.mxu0 %v1262
        %1270 = vmatpush.msra.mxu0 %v1261
        %1271 = vmatpush.msra.mxu0 %v1260
        %1272 = vmatpush.msra.mxu0 %v1259
        %1273 = vmatpush.msra.mxu0 %v1258
        %1274 = vmatpush.msra.mxu0 %v1257
        %1275 = vmatpush.msra.mxu0 %v1256
        %1276 = vmatpush.msra.mxu0 %v1255
        %1277 = vmatpush.msra.mxu0 %v1254
        %1278 = vmatpush.msra.mxu0 %v1253
        %1279 = vmatpush.msra.mxu0 %v1252
        %1280 = vmatpush.msra.mxu0 %v1251
        %1281 = vmatpush.msra.mxu0 %v1250
        %1282 = vmatpush.msra.mxu0 %v1249
        %1283 = vmatmul.f32.gmra.mxu0 %v426
        %v1284 = vpop.f32.mrf.mxu0
        %v1285 = vadd.f32 0.0, %v1284
        %1286 = vmatmul.f32.gmra.mxu0 %v428
        %v1287 = vpop.f32.mrf.mxu0
        %v1288 = vadd.f32 0.0, %v1287
        %1289 = vmatmul.f32.gmra.mxu0 %v430
        %v1290 = vpop.f32.mrf.mxu0
        %v1291 = vadd.f32 0.0, %v1290
        %1292 = vmatmul.f32.gmra.mxu0 %v432
        %v1293 = vpop.f32.mrf.mxu0
        %v1294 = vadd.f32 0.0, %v1293
        %1295 = vmatmul.f32.gmra.mxu0 %v434
        %v1296 = vpop.f32.mrf.mxu0
        %v1297 = vadd.f32 0.0, %v1296
        %1298 = vmatmul.f32.gmra.mxu0 %v436
        %v1299 = vpop.f32.mrf.mxu0
        %v1300 = vadd.f32 0.0, %v1299
        %1301 = vmatmul.f32.gmra.mxu0 %v438
        %v1302 = vpop.f32.mrf.mxu0
        %v1303 = vadd.f32 0.0, %v1302
        %1304 = vmatmul.f32.gmra.mxu0 %v440
        %v1305 = vpop.f32.mrf.mxu0
        %v1306 = vadd.f32 0.0, %v1305
        %1307 = vdwg.mxu0
        %1308 = vmatpush.msra.mxu0 0.0
        %1309 = vmatpush.msra.mxu0 0.0
        %1310 = vmatpush.msra.mxu0 0.0
        %1311 = vmatpush.msra.mxu0 0.0
        %1312 = vmatpush.msra.mxu0 0.0
        %1313 = vmatpush.msra.mxu0 0.0
        %1314 = vmatpush.msra.mxu0 0.0
        %1315 = vmatpush.msra.mxu0 0.0
        %1316 = vmatpush.msra.mxu0 0.0
        %1317 = vmatpush.msra.mxu0 0.0
        %1318 = vmatpush.msra.mxu0 0.0
        %1319 = vmatpush.msra.mxu0 0.0
        %1320 = vmatpush.msra.mxu0 0.0
        %1321 = vmatpush.msra.mxu0 0.0
        %1322 = vmatpush.msra.mxu0 %v1266
        %1323 = vmatpush.msra.mxu0 %v1265
        %1324 = vmatmul.f32.gmra.mxu0 %v480
        %v1325 = vpop.f32.mrf.mxu0
        %v1326 = vadd.f32 %v1285, %v1325
        %1327 = vmatmul.f32.gmra.mxu0 %v483
        %v1328 = vpop.f32.mrf.mxu0
        %v1329 = vadd.f32 %v1288, %v1328
        %1330 = vmatmul.f32.gmra.mxu0 %v486
        %v1331 = vpop.f32.mrf.mxu0
        %v1332 = vadd.f32 %v1291, %v1331
        %1333 = vmatmul.f32.gmra.mxu0 %v489
        %v1334 = vpop.f32.mrf.mxu0
        %v1335 = vadd.f32 %v1294, %v1334
        %1336 = vmatmul.f32.gmra.mxu0 %v492
        %v1337 = vpop.f32.mrf.mxu0
        %v1338 = vadd.f32 %v1297, %v1337
        %1339 = vmatmul.f32.gmra.mxu0 %v495
        %v1340 = vpop.f32.mrf.mxu0
        %v1341 = vadd.f32 %v1300, %v1340
        %1342 = vmatmul.f32.gmra.mxu0 %v498
        %v1343 = vpop.f32.mrf.mxu0
        %v1344 = vadd.f32 %v1303, %v1343
        %1345 = vmatmul.f32.gmra.mxu0 %v501
        %v1346 = vpop.f32.mrf.mxu0
        %v1347 = vadd.f32 %v1306, %v1346
        %1348 = vdwg.mxu0
        %1349 = vmatpush.msra.mxu0 %v1245
        %1350 = vmatpush.msra.mxu0 %v1244
        %1351 = vmatpush.msra.mxu0 %v1243
        %1352 = vmatpush.msra.mxu0 %v1242
        %1353 = vmatpush.msra.mxu0 %v1241
        %1354 = vmatpush.msra.mxu0 %v1240
        %1355 = vmatpush.msra.mxu0 %v1239
        %1356 = vmatpush.msra.mxu0 %v1238
        %1357 = vmatpush.msra.mxu0 %v1237
        %1358 = vmatpush.msra.mxu0 %v1236
        %1359 = vmatpush.msra.mxu0 %v1235
        %1360 = vmatpush.msra.mxu0 %v1234
        %1361 = vmatpush.msra.mxu0 %v1233
        %1362 = vmatpush.msra.mxu0 %v1232
        %1363 = vmatpush.msra.mxu0 %v1231
        %1364 = vmatpush.msra.mxu0 %v1230
        %1365 = vmatmul.f32.gmra.mxu0 %v410
        %v1366 = vpop.f32.mrf.mxu0
        %v1367 = vadd.f32 %v1326, %v1366
        %1368 = vmatmul.f32.gmra.mxu0 %v412
        %v1369 = vpop.f32.mrf.mxu0
        %v1370 = vadd.f32 %v1329, %v1369
        %1371 = vmatmul.f32.gmra.mxu0 %v414
        %v1372 = vpop.f32.mrf.mxu0
        %v1373 = vadd.f32 %v1332, %v1372
        %1374 = vmatmul.f32.gmra.mxu0 %v416
        %v1375 = vpop.f32.mrf.mxu0
        %v1376 = vadd.f32 %v1335, %v1375
        %1377 = vmatmul.f32.gmra.mxu0 %v418
        %v1378 = vpop.f32.mrf.mxu0
        %v1379 = vadd.f32 %v1338, %v1378
        %1380 = vmatmul.f32.gmra.mxu0 %v420
        %v1381 = vpop.f32.mrf.mxu0
        %v1382 = vadd.f32 %v1341, %v1381
        %1383 = vmatmul.f32.gmra.mxu0 %v422
        %v1384 = vpop.f32.mrf.mxu0
        %v1385 = vadd.f32 %v1344, %v1384
        %1386 = vmatmul.f32.gmra.mxu0 %v424
        %v1387 = vpop.f32.mrf.mxu0
        %v1388 = vadd.f32 %v1347, %v1387
        %1389 = vdwg.mxu0
        %1390 = vmatpush.msra.mxu0 0.0
        %1391 = vmatpush.msra.mxu0 0.0
        %1392 = vmatpush.msra.mxu0 0.0
        %1393 = vmatpush.msra.mxu0 0.0
        %1394 = vmatpush.msra.mxu0 0.0
        %1395 = vmatpush.msra.mxu0 0.0
        %1396 = vmatpush.msra.mxu0 0.0
        %1397 = vmatpush.msra.mxu0 0.0
        %1398 = vmatpush.msra.mxu0 0.0
        %1399 = vmatpush.msra.mxu0 0.0
        %1400 = vmatpush.msra.mxu0 0.0
        %1401 = vmatpush.msra.mxu0 0.0
        %1402 = vmatpush.msra.mxu0 0.0
        %1403 = vmatpush.msra.mxu0 0.0
        %1404 = vmatpush.msra.mxu0 %v1247
        %1405 = vmatpush.msra.mxu0 %v1246
        %1406 = vmatmul.f32.gmra.mxu0 %v586
        %v1407 = vpop.f32.mrf.mxu0
        %v1408 = vadd.f32 %v1367, %v1407
        %1409 = vmatmul.f32.gmra.mxu0 %v589
        %v1410 = vpop.f32.mrf.mxu0
        %v1411 = vadd.f32 %v1370, %v1410
        %1412 = vmatmul.f32.gmra.mxu0 %v592
        %v1413 = vpop.f32.mrf.mxu0
        %v1414 = vadd.f32 %v1373, %v1413
        %1415 = vmatmul.f32.gmra.mxu0 %v595
        %v1416 = vpop.f32.mrf.mxu0
        %v1417 = vadd.f32 %v1376, %v1416
        %1418 = vmatmul.f32.gmra.mxu0 %v598
        %v1419 = vpop.f32.mrf.mxu0
        %v1420 = vadd.f32 %v1379, %v1419
        %1421 = vmatmul.f32.gmra.mxu0 %v601
        %v1422 = vpop.f32.mrf.mxu0
        %v1423 = vadd.f32 %v1382, %v1422
        %1424 = vmatmul.f32.gmra.mxu0 %v604
        %v1425 = vpop.f32.mrf.mxu0
        %v1426 = vadd.f32 %v1385, %v1425
        %1427 = vmatmul.f32.gmra.mxu0 %v607
        %v1428 = vpop.f32.mrf.mxu0
        %v1429 = vadd.f32 %v1388, %v1428
        %1430 = vdwg.mxu0
        %s1431 = scalar_lea.vmem %s5, 3
        %v1432 = vld [vmem:[%s1431] sm:$0x1]
        %v1434 = vperm.slane %v1432, 0
        %v1436 = vadd.f32 %v1408, %v1434
        %v1437 = vadd.f32 %v1411, %v1434
        %v1438 = vadd.f32 %v1414, %v1434
        %v1439 = vadd.f32 %v1417, %v1434
        %v1440 = vadd.f32 %v1420, %v1434
        %v1441 = vadd.f32 %v1423, %v1434
        %v1442 = vadd.f32 %v1426, %v1434
        %v1443 = vadd.f32 %v1429, %v1434
        %v1444 = vtanh.pop %v1436
        %v1445 = vtanh.pop %v1437
        %v1446 = vtanh.pop %v1438
        %v1447 = vtanh.pop %v1439
        %v1448 = vtanh.pop %v1440
        %v1449 = vtanh.pop %v1441
        %v1450 = vtanh.pop %v1442
        %v1451 = vtanh.pop %v1443
        %v1452 = vld [vmem:[%s397] sm:$0xff]
        %v1453 = vld [vmem:[%s397 + $0x8] sm:$0xff]
        %v1454 = vld [vmem:[%s397 + $0x10] sm:$0xff]
        %v1455 = vld [vmem:[%s397 + $0x18] sm:$0xff]
        %v1456 = vld [vmem:[%s397 + $0x20] sm:$0xff]
        %v1457 = vld [vmem:[%s397 + $0x28] sm:$0xff]
        %v1458 = vld [vmem:[%s397 + $0x30] sm:$0xff]
        %v1459 = vld [vmem:[%s397 + $0x38] sm:$0xff]
        %v1460 = vmul.f32 %v974, %v1452
        %v1461 = vmul.f32 %v975, %v1453
        %v1462 = vmul.f32 %v976, %v1454
        %v1463 = vmul.f32 %v977, %v1455
        %v1464 = vmul.f32 %v978, %v1456
        %v1465 = vmul.f32 %v979, %v1457
        %v1466 = vmul.f32 %v980, %v1458
        %v1467 = vmul.f32 %v981, %v1459
        %v1468 = vmul.f32 %v727, %v1444
        %v1469 = vmul.f32 %v728, %v1445
        %v1470 = vmul.f32 %v729, %v1446
        %v1471 = vmul.f32 %v730, %v1447
        %v1472 = vmul.f32 %v731, %v1448
        %v1473 = vmul.f32 %v732, %v1449
        %v1474 = vmul.f32 %v733, %v1450
        %v1475 = vmul.f32 %v734, %v1451
        %v1476 = vadd.f32 %v1460, %v1468
        %v1477 = vadd.f32 %v1461, %v1469
        %v1478 = vadd.f32 %v1462, %v1470
        %v1479 = vadd.f32 %v1463, %v1471
        %v1480 = vadd.f32 %v1464, %v1472
        %v1481 = vadd.f32 %v1465, %v1473
        %v1482 = vadd.f32 %v1466, %v1474
        %v1483 = vadd.f32 %v1467, %v1475
        %v1484 = vtanh.pop %v1476
        %v1485 = vtanh.pop %v1477
        %v1486 = vtanh.pop %v1478
        %v1487 = vtanh.pop %v1479
        %v1488 = vtanh.pop %v1480
        %v1489 = vtanh.pop %v1481
        %v1490 = vtanh.pop %v1482
        %v1491 = vtanh.pop %v1483
        %v1492 = vmul.f32 %v1221, %v1484
        %v1493 = vmul.f32 %v1222, %v1485
        %v1494 = vmul.f32 %v1223, %v1486
        %v1495 = vmul.f32 %v1224, %v1487
        %v1496 = vmul.f32 %v1225, %v1488
        %v1497 = vmul.f32 %v1226, %v1489
        %v1498 = vmul.f32 %v1227, %v1490
        %v1499 = vmul.f32 %v1228, %v1491
        %1500 = vst.msk [vmem:[%s366] sm:$0xff] %vm478, %v1476
        %1501 = vst.msk [vmem:[%s366 + $0x8] sm:$0xff] %vm478, %v1477
        %1502 = vst.msk [vmem:[%s366 + $0x10] sm:$0xff] %vm478, %v1478
        %1503 = vst.msk [vmem:[%s366 + $0x18] sm:$0xff] %vm478, %v1479
        %1504 = vst.msk [vmem:[%s366 + $0x20] sm:$0xff] %vm478, %v1480
        %1505 = vst.msk [vmem:[%s366 + $0x28] sm:$0xff] %vm478, %v1481
        %1506 = vst.msk [vmem:[%s366 + $0x30] sm:$0xff] %vm478, %v1482
        %1507 = vst.msk [vmem:[%s366 + $0x38] sm:$0xff] %vm478, %v1483
        %1508 = vst.msk [vmem:[%s407] sm:$0xff] %vm478, %v1492
        %1509 = vst.msk [vmem:[%s407 + $0x8] sm:$0xff] %vm478, %v1493
        %1510 = vst.msk [vmem:[%s407 + $0x10] sm:$0xff] %vm478, %v1494
        %1511 = vst.msk [vmem:[%s407 + $0x18] sm:$0xff] %vm478, %v1495
        %1512 = vst.msk [vmem:[%s407 + $0x20] sm:$0xff] %vm478, %v1496
        %1513 = vst.msk [vmem:[%s407 + $0x28] sm:$0xff] %vm478, %v1497
        %1514 = vst.msk [vmem:[%s407 + $0x30] sm:$0xff] %vm478, %v1498
        %1515 = vst.msk [vmem:[%s407 + $0x38] sm:$0xff] %vm478, %v1499
        %s1516 = smul.u32 8, %s27
        %p1517 = scmp.lt.s32.totalorder %s26, 1
        %s1518 = scalar_select %p1517, %s26, 1
        %p1519 = scmp.lt.s32.totalorder %s1516, 7
        %s1520 = scalar_select %p1519, %s1516, 7
        %s1521 = smul.addr %s1518, 8
        %s1522 = sadd.s32 %s1520, %s1521
        %s1523 = smul.addr %s1522, 8
        %s1524 = scalar_lea.vmem %s6, %s1523
        %s1525 = sand.u32 %s219, 1
        %s1526 = scalar_lea.sflag [#allocation3], %s1525
        %s1527 = sand.u32 %s219, 1
        %s1528 = smul.addr %s1527, 64
        %s1529 = scalar_lea.vmem [#allocation2], %s1528
        // Predicated region
        $region45: #{_lambda_.12} parent=43 // pred_check
          %p1530 = pneg %p201
        $region46: #{_lambda_.12} parent=43 // pred_check_branch
          %1532 = sbr.rel (%p1530) target = $region48
        $region47: #{_lambda_.12} parent=43 // pred_region
          %s1533 = smul.u32 8, %s27
        $region48: #{_lambda_.12} parent=43 // pred_fallthru
          _
        // Predicated region
        $region49: #{_lambda_.12} parent=43 // pred_check
          %p1534 = pneg %p229
        $region50: #{_lambda_.12} parent=43 // pred_check_branch
          %1536 = sbr.rel (%p1534) target = $region52
        $region51: #{_lambda_.12} parent=43 // pred_region
          %s1537 = smul.u32 8, %s27
          %1539 = vsyncadd %s1526, 0
          %s1540 = smul.addr %s26, 8
          %s1541 = sadd.s32 %s1537, %s1540
          %s1542 = smul.addr %s1541, 8
          %s1543 = scalar_lea.hbm %s7, %s1542
          %s1544 = sshll.u32 %s1529, 4
          %s1545 = int_to_ptr.vmem [resolvable:$true] %s1544
          %s1546 = sshll.u32 %s1543, 4
          %s1547 = int_to_ptr.hbm [resolvable:$true] %s1546
          %1552 = dma.vmem_to_hbm [thread:$0]  %s1545, 1024, %s1547, %s1526, 128, 128, 8
        $region52: #{_lambda_.12} parent=43 // pred_fallthru
          _
      $region44: #{_lambda_.12} parent=5 // pred_fallthru
        _
      %p1553 = scmp.le.s32.totalorder 2, %s17
      // Predicated region
      $region53: #{_lambda_.12} parent=5 // pred_check
        %p1554 = pneg %p1553
      $region54: #{_lambda_.12} parent=5 // pred_check_branch
        %1556 = sbr.rel (%p1554) target = $region56
      $region55: #{_lambda_.12} parent=5 // pred_region
        %s1557 = ssub.s32 %s17, 2
        // Predicated region
        $region57: #{_lambda_.12} parent=55 // pred_check
          %p1558 = pneg %p207
        $region58: #{_lambda_.12} parent=55 // pred_check_branch
          %1560 = sbr.rel (%p1558) target = $region60
        $region59: #{_lambda_.12} parent=55 // pred_region
          %s1561 = smul.u32 8, %s29
          %p1562 = scmp.lt.s32.totalorder %s28, 1
          %s1563 = scalar_select %p1562, %s28, 1
          %p1564 = scmp.lt.s32.totalorder %s1561, 7
          %s1565 = scalar_select %p1564, %s1561, 7
          %s1566 = smul.addr %s1563, 8
          %s1567 = sadd.s32 %s1565, %s1566
          %s1568 = smul.addr %s1567, 8
          %s1569 = scalar_lea.vmem %s6, %s1568
        $region60: #{_lambda_.12} parent=55 // pred_fallthru
          _
        // Predicated region
        $region61: #{_lambda_.12} parent=55 // pred_check
          %p1570 = pneg %p235
        $region62: #{_lambda_.12} parent=55 // pred_check_branch
          %1572 = sbr.rel (%p1570) target = $region64
        $region63: #{_lambda_.12} parent=55 // pred_region
          %s1573 = sand.u32 %s220, 1
          %s1574 = scalar_lea.sflag [#allocation3], %s1573
          %s1575 = sand.u32 %s220, 1
          %s1576 = smul.addr %s1575, 64
          %s1577 = scalar_lea.vmem [#allocation2], %s1576
          %1579 = dma.done %s1574, 1024
        $region64: #{_lambda_.12} parent=55 // pred_fallthru
          _
      $region56: #{_lambda_.12} parent=5 // pred_fallthru
        _
    $region6: #{_lambda_.12} parent=1 // loop_footer
      %s21 = sadd.s32 1, %s17
    $region7: #{_lambda_.12} parent=1 // loop_footer_branch
      %16 = sbr.rel target = $region3
    $region8: #{_lambda_.12} parent=1 // loop_exit
      _
    %1580 = vsyncpa [#allocation3], 1
    %s1581 = scalar_lea.sflag [#allocation3], 1
    %1582 = vsyncpa %s1581, 1

// kernel: _lambda_.13
$region0: #{_lambda_.13}
  #allocation0 [shape = 'u32[]', space=smem, size = 0x4, offset = 0x4, fixed_abs, tag = 'smem constant byte address 0x4 - core index']
  #allocation1 [shape = 'u32[72,128]{1,0:T(1,128)}', space=vmem, size = 0x9000, scoped, tag = 'internal scratch']
  #allocation2 [shape = 'f32[2,512]{1,0:T(2,128)}', space=vmem, size = 0x1000, scoped, tag = 'scratch operand']
  %s0 = inlined_call_operand.vmem [shape: bf16[2,1024], index: 0, kind: input, shape index: {}]
  %s1 = inlined_call_operand.vmem [shape: bf16[1024,512], index: 1, kind: input, shape index: {}]
  %s2 = inlined_call_operand.vmem [shape: f32[1,512], index: 2, kind: input, shape index: {}]
  %s3 = inlined_call_operand.vmem [shape: bf16[512,640], index: 3, kind: input, shape index: {}]
  %s4 = inlined_call_operand.vmem [shape: f32[1,640], index: 4, kind: input, shape index: {}]
  %s5 = inlined_call_operand.vmem [shape: f32[2,640], index: 5, kind: output, shape index: {}]
  %s6 = sld [smem:[#allocation0]]
  $region61: #{_lambda_.13} parent=0
    _
  %s8 = ssub.s32 1, %s6
  %s9 = scalar_select 0, %s8, %s6
  loop: start=0, step=1, limit=4
  $region2: #{_lambda_.13} parent=0 // loop_pre_header
    _
  $region3: #{_lambda_.13} parent=0 // loop_header
    %s11 = sphi 0, %s15
    %p12 = scmp.ge.s32.totalorder %s11, 4
    %s18 = sphi 0, %s30
    %s19 = sphi 0, %s26
    %s20 = sphi 0, %s18
    %s21 = sphi 0, %s19
    %s22 = sphi 0, %s20
    %s23 = sphi 0, %s21
    %s35 = sphi 0, %s37
    %s38 = sphi 0, %s35
    %s39 = sphi 0, %s38
    %s55 = sphi 0, %s39
    %s61 = sphi 0, %s63
    %s64 = sphi 0, %s61
    %s65 = sphi 0, %s64
    %s81 = sphi 0, %s65
    %s85 = sphi 0, %s85
    %s87 = sphi 0, %s85
    %s88 = sphi 0, %s87
    %s102 = sphi 0, %s88
    %s106 = sphi 0, %s106
    %s108 = sphi 0, %s106
    %s109 = sphi 0, %s108
    %s123 = sphi 0, %s109
    %s127 = sphi 0, %s127
    %s129 = sphi 0, %s127
    %s130 = sphi 0, %s129
    %s144 = sphi 0, %s130
    %s150 = sphi 0, %s152
    %s153 = sphi 0, %s150
    %s154 = sphi 0, %s153
    %s170 = sphi 0, %s154
  $region4: #{_lambda_.13} parent=0 // loop_header_branch
    %14 = sbr.rel (%p12) target = $region8
  $region5: #{_lambda_.13} parent=0 // loop_body
    %s16 = ssub.s32 %s11, 1
    %s17 = ssub.s32 %s11, 2
    %s24 = sadd.s32 1, %s19
    %p25 = scmp.ge.s32.totalorder %s24, 2
    %s26 = scalar_select %p25, 0, %s24
    %s27 = sadd.s32 1, %s18
    %s28 = scalar_select %p25, %s27, %s18
    %p29 = scmp.ge.s32.totalorder %s28, 1
    %s30 = scalar_select %p29, 0, %s28
    %s31 = ssub.s32 %s18, %s30
    %s32 = ssub.s32 %s19, %s26
    %s33 = sor.u32 %s31, %s32
    %p34 = scmp.eq.s32.totalorder %s33, 0
    %s36 = sadd.s32 %s35, 1
    %s37 = scalar_select %p34, %s35, %s36
    %p40 = pneg %p34
    %p41 = scmp.eq.s32.totalorder %s11, 1
    %p42 = por %p40, %p41
    %p43 = scmp.ne.s32.totalorder %s35, %s38
    %p44 = scmp.eq.s32.totalorder %s11, 0
    %p45 = por %p43, %p44
    %p46 = scmp.ne.s32.totalorder %s35, %s38
    %p47 = scmp.eq.s32.totalorder %s16, 1
    %p48 = por %p46, %p47
    %p49 = scmp.ne.s32.totalorder %s38, %s39
    %p50 = scmp.eq.s32.totalorder %s16, 0
    %p51 = por %p49, %p50
    %p52 = scmp.ne.s32.totalorder %s38, %s39
    %p53 = scmp.eq.s32.totalorder %s17, 1
    %p54 = por %p52, %p53
    %p56 = scmp.ne.s32.totalorder %s39, %s55
    %p57 = scmp.eq.s32.totalorder %s17, 0
    %p58 = por %p56, %p57
    %s59 = ssub.s32 %s19, %s26
    %p60 = scmp.eq.s32.totalorder %s59, 0
    %s62 = sadd.s32 %s61, 1
    %s63 = scalar_select %p60, %s61, %s62
    %p66 = pneg %p60
    %p67 = scmp.eq.s32.totalorder %s11, 1
    %p68 = por %p66, %p67
    %p69 = scmp.ne.s32.totalorder %s61, %s64
    %p70 = scmp.eq.s32.totalorder %s11, 0
    %p71 = por %p69, %p70
    %p72 = scmp.ne.s32.totalorder %s61, %s64
    %p73 = scmp.eq.s32.totalorder %s16, 1
    %p74 = por %p72, %p73
    %p75 = scmp.ne.s32.totalorder %s64, %s65
    %p76 = scmp.eq.s32.totalorder %s16, 0
    %p77 = por %p75, %p76
    %p78 = scmp.ne.s32.totalorder %s64, %s65
    %p79 = scmp.eq.s32.totalorder %s17, 1
    %p80 = por %p78, %p79
    %p82 = scmp.ne.s32.totalorder %s65, %s81
    %p83 = scmp.eq.s32.totalorder %s17, 0
    %p84 = por %p82, %p83
    %s86 = sadd.s32 %s85, 1
    %p89 = scmp.eq.s32.totalorder %s11, 1
    %p90 = scmp.ne.s32.totalorder %s85, %s87
    %p91 = scmp.eq.s32.totalorder %s11, 0
    %p92 = por %p90, %p91
    %p93 = scmp.ne.s32.totalorder %s85, %s87
    %p94 = scmp.eq.s32.totalorder %s16, 1
    %p95 = por %p93, %p94
    %p96 = scmp.ne.s32.totalorder %s87, %s88
    %p97 = scmp.eq.s32.totalorder %s16, 0
    %p98 = por %p96, %p97
    %p99 = scmp.ne.s32.totalorder %s87, %s88
    %p100 = scmp.eq.s32.totalorder %s17, 1
    %p101 = por %p99, %p100
    %p103 = scmp.ne.s32.totalorder %s88, %s102
    %p104 = scmp.eq.s32.totalorder %s17, 0
    %p105 = por %p103, %p104
    %s107 = sadd.s32 %s106, 1
    %p110 = scmp.eq.s32.totalorder %s11, 1
    %p111 = scmp.ne.s32.totalorder %s106, %s108
    %p112 = scmp.eq.s32.totalorder %s11, 0
    %p113 = por %p111, %p112
    %p114 = scmp.ne.s32.totalorder %s106, %s108
    %p115 = scmp.eq.s32.totalorder %s16, 1
    %p116 = por %p114, %p115
    %p117 = scmp.ne.s32.totalorder %s108, %s109
    %p118 = scmp.eq.s32.totalorder %s16, 0
    %p119 = por %p117, %p118
    %p120 = scmp.ne.s32.totalorder %s108, %s109
    %p121 = scmp.eq.s32.totalorder %s17, 1
    %p122 = por %p120, %p121
    %p124 = scmp.ne.s32.totalorder %s109, %s123
    %p125 = scmp.eq.s32.totalorder %s17, 0
    %p126 = por %p124, %p125
    %s128 = sadd.s32 %s127, 1
    %p131 = scmp.eq.s32.totalorder %s11, 1
    %p132 = scmp.ne.s32.totalorder %s127, %s129
    %p133 = scmp.eq.s32.totalorder %s11, 0
    %p134 = por %p132, %p133
    %p135 = scmp.ne.s32.totalorder %s127, %s129
    %p136 = scmp.eq.s32.totalorder %s16, 1
    %p137 = por %p135, %p136
    %p138 = scmp.ne.s32.totalorder %s129, %s130
    %p139 = scmp.eq.s32.totalorder %s16, 0
    %p140 = por %p138, %p139
    %p141 = scmp.ne.s32.totalorder %s129, %s130
    %p142 = scmp.eq.s32.totalorder %s17, 1
    %p143 = por %p141, %p142
    %p145 = scmp.ne.s32.totalorder %s130, %s144
    %p146 = scmp.eq.s32.totalorder %s17, 0
    %p147 = por %p145, %p146
    %s148 = ssub.s32 %s18, %s30
    %p149 = scmp.eq.s32.totalorder %s148, 0
    %s151 = sadd.s32 %s150, 1
    %s152 = scalar_select %p149, %s150, %s151
    %p155 = pneg %p149
    %p156 = scmp.eq.s32.totalorder %s11, 1
    %p157 = por %p155, %p156
    %p158 = scmp.ne.s32.totalorder %s150, %s153
    %p159 = scmp.eq.s32.totalorder %s11, 0
    %p160 = por %p158, %p159
    %p161 = scmp.ne.s32.totalorder %s150, %s153
    %p162 = scmp.eq.s32.totalorder %s16, 1
    %p163 = por %p161, %p162
    %p164 = scmp.ne.s32.totalorder %s153, %s154
    %p165 = scmp.eq.s32.totalorder %s16, 0
    %p166 = por %p164, %p165
    %p167 = scmp.ne.s32.totalorder %s153, %s154
    %p168 = scmp.eq.s32.totalorder %s17, 1
    %p169 = por %p167, %p168
    %p171 = scmp.ne.s32.totalorder %s154, %s170
    %p172 = scmp.eq.s32.totalorder %s17, 0
    %p173 = por %p171, %p172
    %p174 = scmp.le.s32.totalorder 1, %s11
    %p175 = scmp.lt.s32.totalorder %s11, 3
    %p176 = pnand %p174, %p175
    %p177 = pneg %p176
    // Predicated region
    $region9: #{_lambda_.13} parent=5 // pred_check
      _
    $region10: #{_lambda_.13} parent=5 // pred_check_branch
      %179 = sbr.rel (%p176) target = $region12
    $region11: #{_lambda_.13} parent=5 // pred_region
      %s180 = ssub.s32 %s11, 1
      // Predicated region
      $region13: #{_lambda_.13} parent=11 // pred_check
        %p181 = pneg %p98
      $region14: #{_lambda_.13} parent=11 // pred_check_branch
        %183 = sbr.rel (%p181) target = $region16
      $region15: #{_lambda_.13} parent=11 // pred_region
        _
      $region16: #{_lambda_.13} parent=11 // pred_fallthru
        _
      // Predicated region
      $region17: #{_lambda_.13} parent=11 // pred_check
        %p184 = pneg %p119
      $region18: #{_lambda_.13} parent=11 // pred_check_branch
        %186 = sbr.rel (%p184) target = $region20
      $region19: #{_lambda_.13} parent=11 // pred_region
        _
      $region20: #{_lambda_.13} parent=11 // pred_fallthru
        _
      // Predicated region
      $region21: #{_lambda_.13} parent=11 // pred_check
        %p187 = pneg %p140
      $region22: #{_lambda_.13} parent=11 // pred_check_branch
        %189 = sbr.rel (%p187) target = $region24
      $region23: #{_lambda_.13} parent=11 // pred_region
        _
      $region24: #{_lambda_.13} parent=11 // pred_fallthru
        _
    $region12: #{_lambda_.13} parent=5 // pred_fallthru
      _
    %p190 = scmp.lt.s32.totalorder %s11, 2
    // Predicated region
    $region25: #{_lambda_.13} parent=5 // pred_check
      %p191 = pneg %p190
    $region26: #{_lambda_.13} parent=5 // pred_check_branch
      %193 = sbr.rel (%p191) target = $region28
    $region27: #{_lambda_.13} parent=5 // pred_region
      // Predicated region
      $region29: #{_lambda_.13} parent=27 // pred_check
        %p194 = pneg %p45
      $region30: #{_lambda_.13} parent=27 // pred_check_branch
        %196 = sbr.rel (%p194) target = $region32
      $region31: #{_lambda_.13} parent=27 // pred_region
        %s197 = smul.u32 4, %s19
        %p198 = scmp.lt.s32.totalorder %s18, 0
        %s199 = scalar_select %p198, %s18, 0
        %p200 = scmp.lt.s32.totalorder %s197, 7
        %s201 = scalar_select %p200, %s197, 7
        %s202 = smul.addr %s199, 8
        %s203 = sadd.s32 %s201, %s202
        %s204 = scalar_lea.vmem %s0, %s203
        %s205 = smul.u32 4, %s19
      $region32: #{_lambda_.13} parent=27 // pred_fallthru
        _
      // Predicated region
      $region33: #{_lambda_.13} parent=27 // pred_check
        %p206 = pneg %p71
      $region34: #{_lambda_.13} parent=27 // pred_check_branch
        %208 = sbr.rel (%p206) target = $region36
      $region35: #{_lambda_.13} parent=27 // pred_region
        %s209 = smul.u32 64, %s19
        %p210 = scmp.lt.s32.totalorder %s209, 127
        %s211 = scalar_select %p210, %s209, 127
        %s212 = smul.addr %s211, 4
        %s213 = smul.addr %s212, 4
        %s214 = scalar_lea.vmem %s1, %s213
        %s215 = smul.u32 64, %s19
      $region36: #{_lambda_.13} parent=27 // pred_fallthru
        _
    $region28: #{_lambda_.13} parent=5 // pred_fallthru
      _
    %p216 = scmp.le.s32.totalorder 1, %s11
    %p217 = scmp.lt.s32.totalorder %s11, 3
    %p218 = pnand %p216, %p217
    %p219 = pneg %p218
    // Predicated region
    $region37: #{_lambda_.13} parent=5 // pred_check
      _
    $region38: #{_lambda_.13} parent=5 // pred_check_branch
      %221 = sbr.rel (%p218) target = $region40
    $region39: #{_lambda_.13} parent=5 // pred_region
      %s222 = ssub.s32 %s11, 1
      %s223 = smul.u32 4, %s21
      %p224 = scmp.lt.s32.totalorder %s20, 0
      %s225 = scalar_select %p224, %s20, 0
      %p226 = scmp.lt.s32.totalorder %s223, 7
      %s227 = scalar_select %p226, %s223, 7
      %s228 = smul.addr %s225, 8
      %s229 = sadd.s32 %s227, %s228
      %s230 = scalar_lea.vmem %s0, %s229
      %p231 = pneg %p51
      %p232 = pneg %p48
      %s233 = smul.u32 64, %s21
      %p234 = scmp.lt.s32.totalorder %s233, 127
      %s235 = scalar_select %p234, %s233, 127
      %s236 = smul.addr %s235, 4
      %s237 = smul.addr %s236, 4
      %s238 = scalar_lea.vmem %s1, %s237
      %p239 = pneg %p77
      %p240 = pneg %p74
      %p241 = pneg %p98
      %p242 = pneg %p95
      %p243 = pneg %p119
      %p244 = pneg %p116
      %p245 = pneg %p140
      %p246 = pneg %p137
      %p247 = pneg %p166
      %p248 = pneg %p163
      %p249 = scmp.lt.s32.totalorder %s20, 0
      %s250 = scalar_select %p249, %s20, 0
      %s251 = smul.addr %s250, 5
      %s252 = smul.addr %s251, 2
      %s253 = scalar_lea.vmem %s5, %s252
      %s254 = smul.u32 4, %s21
      %p255 = scmp.lt.s32.totalorder %s20, 0
      %s256 = scalar_select %p255, %s20, 0
      %p257 = scmp.lt.s32.totalorder %s254, 7
      %s258 = scalar_select %p257, %s254, 7
      %s259 = smul.addr %s256, 8
      %s260 = sadd.s32 %s258, %s259
      %s261 = scalar_lea.vmem %s0, %s260
      %s262 = smul.u32 4, %s21
      %s263 = smul.u32 64, %s21
      %p264 = scmp.lt.s32.totalorder %s263, 127
      %s265 = scalar_select %p264, %s263, 127
      %s266 = smul.addr %s265, 4
      %s267 = smul.addr %s266, 4
      %s268 = scalar_lea.vmem %s1, %s267
      %s269 = smul.u32 64, %s21
      %p270 = scmp.lt.s32.totalorder %s20, 0
      %s271 = scalar_select %p270, %s20, 0
      %s272 = smul.addr %s271, 5
      %s273 = smul.addr %s272, 2
      %s274 = scalar_lea.vmem %s5, %s273
      %p275 = scmp.eq.s32.totalorder %s21, 0
      // Predicated region
      $region41: #{_lambda_.13} parent=39 // pred_check
        %p276 = pneg %p275
      $region42: #{_lambda_.13} parent=39 // pred_check_branch
        %278 = sbr.rel (%p276) target = $region44
      $region43: #{_lambda_.13} parent=39 // pred_region
        %279 = vst [vmem:[#allocation2] sm:$0xff] 0.0
      $region44: #{_lambda_.13} parent=39 // pred_fallthru
        _
      %v280 = vld [vmem:[#allocation2] sm:$0xff]
      %v281 = vld [vmem:[%s261] sm:$0xf]
      %v282 = vld [vmem:[%s268] sm:$0xff]
      %v283 = vld [vmem:[%s268 + $0x8] sm:$0xff]
      %v284 = vld [vmem:[%s268 + $0x10] sm:$0xff]
      %v285 = vld [vmem:[%s268 + $0x18] sm:$0xff]
      %v286 = vld [vmem:[%s268 + $0x20] sm:$0xff]
      %v287 = vld [vmem:[%s268 + $0x28] sm:$0xff]
      %v288 = vld [vmem:[%s268 + $0x30] sm:$0xff]
      %v289 = vld [vmem:[%s268 + $0x38] sm:$0xff]
      %v290 = vld [vmem:[%s268 + $0x40] sm:$0xff]
      %v291 = vld [vmem:[%s268 + $0x48] sm:$0xff]
      %v292 = vld [vmem:[%s268 + $0x50] sm:$0xff]
      %v293 = vld [vmem:[%s268 + $0x58] sm:$0xff]
      %v294 = vld [vmem:[%s268 + $0x60] sm:$0xff]
      %v295 = vld [vmem:[%s268 + $0x68] sm:$0xff]
      %v296 = vld [vmem:[%s268 + $0x70] sm:$0xff]
      %v297 = vld [vmem:[%s268 + $0x78] sm:$0xff]
      %v298 = vld [vmem:[%s268 + $0x80] sm:$0xff]
      %v299 = vld [vmem:[%s268 + $0x88] sm:$0xff]
      %v300 = vld [vmem:[%s268 + $0x90] sm:$0xff]
      %v301 = vld [vmem:[%s268 + $0x98] sm:$0xff]
      %v302 = vld [vmem:[%s268 + $0xa0] sm:$0xff]
      %v303 = vld [vmem:[%s268 + $0xa8] sm:$0xff]
      %v304 = vld [vmem:[%s268 + $0xb0] sm:$0xff]
      %v305 = vld [vmem:[%s268 + $0xb8] sm:$0xff]
      %v306 = vld [vmem:[%s268 + $0xc0] sm:$0xff]
      %v307 = vld [vmem:[%s268 + $0xc8] sm:$0xff]
      %v308 = vld [vmem:[%s268 + $0xd0] sm:$0xff]
      %v309 = vld [vmem:[%s268 + $0xd8] sm:$0xff]
      %v310 = vld [vmem:[%s268 + $0xe0] sm:$0xff]
      %v311 = vld [vmem:[%s268 + $0xe8] sm:$0xff]
      %v312 = vld [vmem:[%s268 + $0xf0] sm:$0xff]
      %v313 = vld [vmem:[%s268 + $0xf8] sm:$0xff]
      %v314 = vld [vmem:[%s268 + $0x100] sm:$0xff]
      %v315 = vld [vmem:[%s268 + $0x108] sm:$0xff]
      %v316 = vld [vmem:[%s268 + $0x110] sm:$0xff]
      %v317 = vld [vmem:[%s268 + $0x118] sm:$0xff]
      %v318 = vld [vmem:[%s268 + $0x120] sm:$0xff]
      %v319 = vld [vmem:[%s268 + $0x128] sm:$0xff]
      %v320 = vld [vmem:[%s268 + $0x130] sm:$0xff]
      %v321 = vld [vmem:[%s268 + $0x138] sm:$0xff]
      %v322 = vld [vmem:[%s268 + $0x140] sm:$0xff]
      %v323 = vld [vmem:[%s268 + $0x148] sm:$0xff]
      %v324 = vld [vmem:[%s268 + $0x150] sm:$0xff]
      %v325 = vld [vmem:[%s268 + $0x158] sm:$0xff]
      %v326 = vld [vmem:[%s268 + $0x160] sm:$0xff]
      %v327 = vld [vmem:[%s268 + $0x168] sm:$0xff]
      %v328 = vld [vmem:[%s268 + $0x170] sm:$0xff]
      %v329 = vld [vmem:[%s268 + $0x178] sm:$0xff]
      %v330 = vld [vmem:[%s268 + $0x180] sm:$0xff]
      %v331 = vld [vmem:[%s268 + $0x188] sm:$0xff]
      %v332 = vld [vmem:[%s268 + $0x190] sm:$0xff]
      %v333 = vld [vmem:[%s268 + $0x198] sm:$0xff]
      %v334 = vld [vmem:[%s268 + $0x1a0] sm:$0xff]
      %v335 = vld [vmem:[%s268 + $0x1a8] sm:$0xff]
      %v336 = vld [vmem:[%s268 + $0x1b0] sm:$0xff]
      %v337 = vld [vmem:[%s268 + $0x1b8] sm:$0xff]
      %v338 = vld [vmem:[%s268 + $0x1c0] sm:$0xff]
      %v339 = vld [vmem:[%s268 + $0x1c8] sm:$0xff]
      %v340 = vld [vmem:[%s268 + $0x1d0] sm:$0xff]
      %v341 = vld [vmem:[%s268 + $0x1d8] sm:$0xff]
      %v342 = vld [vmem:[%s268 + $0x1e0] sm:$0xff]
      %v343 = vld [vmem:[%s268 + $0x1e8] sm:$0xff]
      %v344 = vld [vmem:[%s268 + $0x1f0] sm:$0xff]
      %v345 = vld [vmem:[%s268 + $0x1f8] sm:$0xff]
      %v346 = vld [vmem:[%s268 + $0x200] sm:$0xff]
      %v347 = vld [vmem:[%s268 + $0x208] sm:$0xff]
      %v348 = vld [vmem:[%s268 + $0x210] sm:$0xff]
      %v349 = vld [vmem:[%s268 + $0x218] sm:$0xff]
      %v350 = vld [vmem:[%s268 + $0x220] sm:$0xff]
      %v351 = vld [vmem:[%s268 + $0x228] sm:$0xff]
      %v352 = vld [vmem:[%s268 + $0x230] sm:$0xff]
      %v353 = vld [vmem:[%s268 + $0x238] sm:$0xff]
      %v354 = vld [vmem:[%s268 + $0x240] sm:$0xff]
      %v355 = vld [vmem:[%s268 + $0x248] sm:$0xff]
      %v356 = vld [vmem:[%s268 + $0x250] sm:$0xff]
      %v357 = vld [vmem:[%s268 + $0x258] sm:$0xff]
      %v358 = vld [vmem:[%s268 + $0x260] sm:$0xff]
      %v359 = vld [vmem:[%s268 + $0x268] sm:$0xff]
      %v360 = vld [vmem:[%s268 + $0x270] sm:$0xff]
      %v361 = vld [vmem:[%s268 + $0x278] sm:$0xff]
      %v362 = vld [vmem:[%s268 + $0x280] sm:$0xff]
      %v363 = vld [vmem:[%s268 + $0x288] sm:$0xff]
      %v364 = vld [vmem:[%s268 + $0x290] sm:$0xff]
      %v365 = vld [vmem:[%s268 + $0x298] sm:$0xff]
      %v366 = vld [vmem:[%s268 + $0x2a0] sm:$0xff]
      %v367 = vld [vmem:[%s268 + $0x2a8] sm:$0xff]
      %v368 = vld [vmem:[%s268 + $0x2b0] sm:$0xff]
      %v369 = vld [vmem:[%s268 + $0x2b8] sm:$0xff]
      %v370 = vld [vmem:[%s268 + $0x2c0] sm:$0xff]
      %v371 = vld [vmem:[%s268 + $0x2c8] sm:$0xff]
      %v372 = vld [vmem:[%s268 + $0x2d0] sm:$0xff]
      %v373 = vld [vmem:[%s268 + $0x2d8] sm:$0xff]
      %v374 = vld [vmem:[%s268 + $0x2e0] sm:$0xff]
      %v375 = vld [vmem:[%s268 + $0x2e8] sm:$0xff]
      %v376 = vld [vmem:[%s268 + $0x2f0] sm:$0xff]
      %v377 = vld [vmem:[%s268 + $0x2f8] sm:$0xff]
      %v378 = vld [vmem:[%s268 + $0x300] sm:$0xff]
      %v379 = vld [vmem:[%s268 + $0x308] sm:$0xff]
      %v380 = vld [vmem:[%s268 + $0x310] sm:$0xff]
      %v381 = vld [vmem:[%s268 + $0x318] sm:$0xff]
      %v382 = vld [vmem:[%s268 + $0x320] sm:$0xff]
      %v383 = vld [vmem:[%s268 + $0x328] sm:$0xff]
      %v384 = vld [vmem:[%s268 + $0x330] sm:$0xff]
      %v385 = vld [vmem:[%s268 + $0x338] sm:$0xff]
      %v386 = vld [vmem:[%s268 + $0x340] sm:$0xff]
      %v387 = vld [vmem:[%s268 + $0x348] sm:$0xff]
      %v388 = vld [vmem:[%s268 + $0x350] sm:$0xff]
      %v389 = vld [vmem:[%s268 + $0x358] sm:$0xff]
      %v390 = vld [vmem:[%s268 + $0x360] sm:$0xff]
      %v391 = vld [vmem:[%s268 + $0x368] sm:$0xff]
      %v392 = vld [vmem:[%s268 + $0x370] sm:$0xff]
      %v393 = vld [vmem:[%s268 + $0x378] sm:$0xff]
      %v394 = vld [vmem:[%s268 + $0x380] sm:$0xff]
      %v395 = vld [vmem:[%s268 + $0x388] sm:$0xff]
      %v396 = vld [vmem:[%s268 + $0x390] sm:$0xff]
      %v397 = vld [vmem:[%s268 + $0x398] sm:$0xff]
      %v398 = vld [vmem:[%s268 + $0x3a0] sm:$0xff]
      %v399 = vld [vmem:[%s268 + $0x3a8] sm:$0xff]
      %v400 = vld [vmem:[%s268 + $0x3b0] sm:$0xff]
      %v401 = vld [vmem:[%s268 + $0x3b8] sm:$0xff]
      %v402 = vld [vmem:[%s268 + $0x3c0] sm:$0xff]
      %v403 = vld [vmem:[%s268 + $0x3c8] sm:$0xff]
      %v404 = vld [vmem:[%s268 + $0x3d0] sm:$0xff]
      %v405 = vld [vmem:[%s268 + $0x3d8] sm:$0xff]
      %v406 = vld [vmem:[%s268 + $0x3e0] sm:$0xff]
      %v407 = vld [vmem:[%s268 + $0x3e8] sm:$0xff]
      %v408 = vld [vmem:[%s268 + $0x3f0] sm:$0xff]
      %v409 = vld [vmem:[%s268 + $0x3f8] sm:$0xff]
      %411 = vst [vmem:[#allocation1] ss:$9 sm:$0xff] %v281
      %v412 = vld [vmem:[#allocation1] sm:$0xff]
      %v413 = vld [vmem:[#allocation1 + $0x9] sm:$0xff]
      %v414 = vld [vmem:[#allocation1 + $0x12] sm:$0xff]
      %v415 = vld [vmem:[#allocation1 + $0x1b] sm:$0xff]
      %v548 = vunpack.c.l.b16 %v282
      %v549 = vunpack.c.h.b16 %v282
      %v550 = vunpack.c.l.b16 %v283
      %v551 = vunpack.c.h.b16 %v283
      %v552 = vunpack.c.l.b16 %v284
      %v553 = vunpack.c.h.b16 %v284
      %v554 = vunpack.c.l.b16 %v285
      %v555 = vunpack.c.h.b16 %v285
      %v556 = vunpack.c.l.b16 %v286
      %v557 = vunpack.c.h.b16 %v286
      %v558 = vunpack.c.l.b16 %v287
      %v559 = vunpack.c.h.b16 %v287
      %v560 = vunpack.c.l.b16 %v288
      %v561 = vunpack.c.h.b16 %v288
      %v562 = vunpack.c.l.b16 %v289
      %v563 = vunpack.c.h.b16 %v289
      %v564 = vunpack.c.l.b16 %v290
      %v565 = vunpack.c.h.b16 %v290
      %v566 = vunpack.c.l.b16 %v291
      %v567 = vunpack.c.h.b16 %v291
      %v568 = vunpack.c.l.b16 %v292
      %v569 = vunpack.c.h.b16 %v292
      %v570 = vunpack.c.l.b16 %v293
      %v571 = vunpack.c.h.b16 %v293
      %v572 = vunpack.c.l.b16 %v294
      %v573 = vunpack.c.h.b16 %v294
      %v574 = vunpack.c.l.b16 %v295
      %v575 = vunpack.c.h.b16 %v295
      %v576 = vunpack.c.l.b16 %v296
      %v577 = vunpack.c.h.b16 %v296
      %v578 = vunpack.c.l.b16 %v297
      %v579 = vunpack.c.h.b16 %v297
      %v580 = vunpack.c.l.b16 %v298
      %v581 = vunpack.c.h.b16 %v298
      %v582 = vunpack.c.l.b16 %v299
      %v583 = vunpack.c.h.b16 %v299
      %v584 = vunpack.c.l.b16 %v300
      %v585 = vunpack.c.h.b16 %v300
      %v586 = vunpack.c.l.b16 %v301
      %v587 = vunpack.c.h.b16 %v301
      %v588 = vunpack.c.l.b16 %v302
      %v589 = vunpack.c.h.b16 %v302
      %v590 = vunpack.c.l.b16 %v303
      %v591 = vunpack.c.h.b16 %v303
      %v592 = vunpack.c.l.b16 %v304
      %v593 = vunpack.c.h.b16 %v304
      %v594 = vunpack.c.l.b16 %v305
      %v595 = vunpack.c.h.b16 %v305
      %v596 = vunpack.c.l.b16 %v306
      %v597 = vunpack.c.h.b16 %v306
      %v598 = vunpack.c.l.b16 %v307
      %v599 = vunpack.c.h.b16 %v307
      %v600 = vunpack.c.l.b16 %v308
      %v601 = vunpack.c.h.b16 %v308
      %v602 = vunpack.c.l.b16 %v309
      %v603 = vunpack.c.h.b16 %v309
      %v604 = vunpack.c.l.b16 %v310
      %v605 = vunpack.c.h.b16 %v310
      %v606 = vunpack.c.l.b16 %v311
      %v607 = vunpack.c.h.b16 %v311
      %v608 = vunpack.c.l.b16 %v312
      %v609 = vunpack.c.h.b16 %v312
      %v610 = vunpack.c.l.b16 %v313
      %v611 = vunpack.c.h.b16 %v313
      %v612 = vunpack.c.l.b16 %v314
      %v613 = vunpack.c.h.b16 %v314
      %v614 = vunpack.c.l.b16 %v315
      %v615 = vunpack.c.h.b16 %v315
      %v616 = vunpack.c.l.b16 %v316
      %v617 = vunpack.c.h.b16 %v316
      %v618 = vunpack.c.l.b16 %v317
      %v619 = vunpack.c.h.b16 %v317
      %v620 = vunpack.c.l.b16 %v318
      %v621 = vunpack.c.h.b16 %v318
      %v622 = vunpack.c.l.b16 %v319
      %v623 = vunpack.c.h.b16 %v319
      %v624 = vunpack.c.l.b16 %v320
      %v625 = vunpack.c.h.b16 %v320
      %v626 = vunpack.c.l.b16 %v321
      %v627 = vunpack.c.h.b16 %v321
      %v628 = vunpack.c.l.b16 %v322
      %v629 = vunpack.c.h.b16 %v322
      %v630 = vunpack.c.l.b16 %v323
      %v631 = vunpack.c.h.b16 %v323
      %v632 = vunpack.c.l.b16 %v324
      %v633 = vunpack.c.h.b16 %v324
      %v634 = vunpack.c.l.b16 %v325
      %v635 = vunpack.c.h.b16 %v325
      %v636 = vunpack.c.l.b16 %v326
      %v637 = vunpack.c.h.b16 %v326
      %v638 = vunpack.c.l.b16 %v327
      %v639 = vunpack.c.h.b16 %v327
      %v640 = vunpack.c.l.b16 %v328
      %v641 = vunpack.c.h.b16 %v328
      %v642 = vunpack.c.l.b16 %v329
      %v643 = vunpack.c.h.b16 %v329
      %v644 = vunpack.c.l.b16 %v330
      %v645 = vunpack.c.h.b16 %v330
      %v646 = vunpack.c.l.b16 %v331
      %v647 = vunpack.c.h.b16 %v331
      %v648 = vunpack.c.l.b16 %v332
      %v649 = vunpack.c.h.b16 %v332
      %v650 = vunpack.c.l.b16 %v333
      %v651 = vunpack.c.h.b16 %v333
      %v652 = vunpack.c.l.b16 %v334
      %v653 = vunpack.c.h.b16 %v334
      %v654 = vunpack.c.l.b16 %v335
      %v655 = vunpack.c.h.b16 %v335
      %v656 = vunpack.c.l.b16 %v336
      %v657 = vunpack.c.h.b16 %v336
      %v658 = vunpack.c.l.b16 %v337
      %v659 = vunpack.c.h.b16 %v337
      %v660 = vunpack.c.l.b16 %v338
      %v661 = vunpack.c.h.b16 %v338
      %v662 = vunpack.c.l.b16 %v339
      %v663 = vunpack.c.h.b16 %v339
      %v664 = vunpack.c.l.b16 %v340
      %v665 = vunpack.c.h.b16 %v340
      %v666 = vunpack.c.l.b16 %v341
      %v667 = vunpack.c.h.b16 %v341
      %v668 = vunpack.c.l.b16 %v342
      %v669 = vunpack.c.h.b16 %v342
      %v670 = vunpack.c.l.b16 %v343
      %v671 = vunpack.c.h.b16 %v343
      %v672 = vunpack.c.l.b16 %v344
      %v673 = vunpack.c.h.b16 %v344
      %v674 = vunpack.c.l.b16 %v345
      %v675 = vunpack.c.h.b16 %v345
      %v676 = vunpack.c.l.b16 %v346
      %v677 = vunpack.c.h.b16 %v346
      %v678 = vunpack.c.l.b16 %v347
      %v679 = vunpack.c.h.b16 %v347
      %v680 = vunpack.c.l.b16 %v348
      %v681 = vunpack.c.h.b16 %v348
      %v682 = vunpack.c.l.b16 %v349
      %v683 = vunpack.c.h.b16 %v349
      %v684 = vunpack.c.l.b16 %v350
      %v685 = vunpack.c.h.b16 %v350
      %v686 = vunpack.c.l.b16 %v351
      %v687 = vunpack.c.h.b16 %v351
      %v688 = vunpack.c.l.b16 %v352
      %v689 = vunpack.c.h.b16 %v352
      %v690 = vunpack.c.l.b16 %v353
      %v691 = vunpack.c.h.b16 %v353
      %v692 = vunpack.c.l.b16 %v354
      %v693 = vunpack.c.h.b16 %v354
      %v694 = vunpack.c.l.b16 %v355
      %v695 = vunpack.c.h.b16 %v355
      %v696 = vunpack.c.l.b16 %v356
      %v697 = vunpack.c.h.b16 %v356
      %v698 = vunpack.c.l.b16 %v357
      %v699 = vunpack.c.h.b16 %v357
      %v700 = vunpack.c.l.b16 %v358
      %v701 = vunpack.c.h.b16 %v358
      %v702 = vunpack.c.l.b16 %v359
      %v703 = vunpack.c.h.b16 %v359
      %v704 = vunpack.c.l.b16 %v360
      %v705 = vunpack.c.h.b16 %v360
      %v706 = vunpack.c.l.b16 %v361
      %v707 = vunpack.c.h.b16 %v361
      %v708 = vunpack.c.l.b16 %v362
      %v709 = vunpack.c.h.b16 %v362
      %v710 = vunpack.c.l.b16 %v363
      %v711 = vunpack.c.h.b16 %v363
      %v712 = vunpack.c.l.b16 %v364
      %v713 = vunpack.c.h.b16 %v364
      %v714 = vunpack.c.l.b16 %v365
      %v715 = vunpack.c.h.b16 %v365
      %v716 = vunpack.c.l.b16 %v366
      %v717 = vunpack.c.h.b16 %v366
      %v718 = vunpack.c.l.b16 %v367
      %v719 = vunpack.c.h.b16 %v367
      %v720 = vunpack.c.l.b16 %v368
      %v721 = vunpack.c.h.b16 %v368
      %v722 = vunpack.c.l.b16 %v369
      %v723 = vunpack.c.h.b16 %v369
      %v724 = vunpack.c.l.b16 %v370
      %v725 = vunpack.c.h.b16 %v370
      %v726 = vunpack.c.l.b16 %v371
      %v727 = vunpack.c.h.b16 %v371
      %v728 = vunpack.c.l.b16 %v372
      %v729 = vunpack.c.h.b16 %v372
      %v730 = vunpack.c.l.b16 %v373
      %v731 = vunpack.c.h.b16 %v373
      %v732 = vunpack.c.l.b16 %v374
      %v733 = vunpack.c.h.b16 %v374
      %v734 = vunpack.c.l.b16 %v375
      %v735 = vunpack.c.h.b16 %v375
      %v736 = vunpack.c.l.b16 %v376
      %v737 = vunpack.c.h.b16 %v376
      %v738 = vunpack.c.l.b16 %v377
      %v739 = vunpack.c.h.b16 %v377
      %v740 = vunpack.c.l.b16 %v378
      %v741 = vunpack.c.h.b16 %v378
      %v742 = vunpack.c.l.b16 %v379
      %v743 = vunpack.c.h.b16 %v379
      %v744 = vunpack.c.l.b16 %v380
      %v745 = vunpack.c.h.b16 %v380
      %v746 = vunpack.c.l.b16 %v381
      %v747 = vunpack.c.h.b16 %v381
      %v748 = vunpack.c.l.b16 %v382
      %v749 = vunpack.c.h.b16 %v382
      %v750 = vunpack.c.l.b16 %v383
      %v751 = vunpack.c.h.b16 %v383
      %v752 = vunpack.c.l.b16 %v384
      %v753 = vunpack.c.h.b16 %v384
      %v754 = vunpack.c.l.b16 %v385
      %v755 = vunpack.c.h.b16 %v385
      %v756 = vunpack.c.l.b16 %v386
      %v757 = vunpack.c.h.b16 %v386
      %v758 = vunpack.c.l.b16 %v387
      %v759 = vunpack.c.h.b16 %v387
      %v760 = vunpack.c.l.b16 %v388
      %v761 = vunpack.c.h.b16 %v388
      %v762 = vunpack.c.l.b16 %v389
      %v763 = vunpack.c.h.b16 %v389
      %v764 = vunpack.c.l.b16 %v390
      %v765 = vunpack.c.h.b16 %v390
      %v766 = vunpack.c.l.b16 %v391
      %v767 = vunpack.c.h.b16 %v391
      %v768 = vunpack.c.l.b16 %v392
      %v769 = vunpack.c.h.b16 %v392
      %v770 = vunpack.c.l.b16 %v393
      %v771 = vunpack.c.h.b16 %v393
      %v772 = vunpack.c.l.b16 %v394
      %v773 = vunpack.c.h.b16 %v394
      %v774 = vunpack.c.l.b16 %v395
      %v775 = vunpack.c.h.b16 %v395
      %v776 = vunpack.c.l.b16 %v396
      %v777 = vunpack.c.h.b16 %v396
      %v778 = vunpack.c.l.b16 %v397
      %v779 = vunpack.c.h.b16 %v397
      %v780 = vunpack.c.l.b16 %v398
      %v781 = vunpack.c.h.b16 %v398
      %v782 = vunpack.c.l.b16 %v399
      %v783 = vunpack.c.h.b16 %v399
      %v784 = vunpack.c.l.b16 %v400
      %v785 = vunpack.c.h.b16 %v400
      %v786 = vunpack.c.l.b16 %v401
      %v787 = vunpack.c.h.b16 %v401
      %v788 = vunpack.c.l.b16 %v402
      %v789 = vunpack.c.h.b16 %v402
      %v790 = vunpack.c.l.b16 %v403
      %v791 = vunpack.c.h.b16 %v403
      %v792 = vunpack.c.l.b16 %v404
      %v793 = vunpack.c.h.b16 %v404
      %v794 = vunpack.c.l.b16 %v405
      %v795 = vunpack.c.h.b16 %v405
      %v796 = vunpack.c.l.b16 %v406
      %v797 = vunpack.c.h.b16 %v406
      %v798 = vunpack.c.l.b16 %v407
      %v799 = vunpack.c.h.b16 %v407
      %v800 = vunpack.c.l.b16 %v408
      %v801 = vunpack.c.h.b16 %v408
      %v802 = vunpack.c.l.b16 %v409
      %v803 = vunpack.c.h.b16 %v409
      %v804 = vpack.c.b16 %v552, %v548
      %v805 = vpack.c.b16 %v553, %v549
      %v806 = vpack.c.b16 %v554, %v550
      %v807 = vpack.c.b16 %v555, %v551
      %v808 = vpack.c.b16 %v560, %v556
      %v809 = vpack.c.b16 %v561, %v557
      %v810 = vpack.c.b16 %v562, %v558
      %v811 = vpack.c.b16 %v563, %v559
      %v812 = vpack.c.b16 %v568, %v564
      %v813 = vpack.c.b16 %v569, %v565
      %v814 = vpack.c.b16 %v570, %v566
      %v815 = vpack.c.b16 %v571, %v567
      %v816 = vpack.c.b16 %v576, %v572
      %v817 = vpack.c.b16 %v577, %v573
      %v818 = vpack.c.b16 %v578, %v574
      %v819 = vpack.c.b16 %v579, %v575
      %v820 = vpack.c.b16 %v584, %v580
      %v821 = vpack.c.b16 %v585, %v581
      %v822 = vpack.c.b16 %v586, %v582
      %v823 = vpack.c.b16 %v587, %v583
      %v824 = vpack.c.b16 %v592, %v588
      %v825 = vpack.c.b16 %v593, %v589
      %v826 = vpack.c.b16 %v594, %v590
      %v827 = vpack.c.b16 %v595, %v591
      %v828 = vpack.c.b16 %v600, %v596
      %v829 = vpack.c.b16 %v601, %v597
      %v830 = vpack.c.b16 %v602, %v598
      %v831 = vpack.c.b16 %v603, %v599
      %v832 = vpack.c.b16 %v608, %v604
      %v833 = vpack.c.b16 %v609, %v605
      %v834 = vpack.c.b16 %v610, %v606
      %v835 = vpack.c.b16 %v611, %v607
      %v836 = vpack.c.b16 %v616, %v612
      %v837 = vpack.c.b16 %v617, %v613
      %v838 = vpack.c.b16 %v618, %v614
      %v839 = vpack.c.b16 %v619, %v615
      %v840 = vpack.c.b16 %v624, %v620
      %v841 = vpack.c.b16 %v625, %v621
      %v842 = vpack.c.b16 %v626, %v622
      %v843 = vpack.c.b16 %v627, %v623
      %v844 = vpack.c.b16 %v632, %v628
      %v845 = vpack.c.b16 %v633, %v629
      %v846 = vpack.c.b16 %v634, %v630
      %v847 = vpack.c.b16 %v635, %v631
      %v848 = vpack.c.b16 %v640, %v636
      %v849 = vpack.c.b16 %v641, %v637
      %v850 = vpack.c.b16 %v642, %v638
      %v851 = vpack.c.b16 %v643, %v639
      %v852 = vpack.c.b16 %v648, %v644
      %v853 = vpack.c.b16 %v649, %v645
      %v854 = vpack.c.b16 %v650, %v646
      %v855 = vpack.c.b16 %v651, %v647
      %v856 = vpack.c.b16 %v656, %v652
      %v857 = vpack.c.b16 %v657, %v653
      %v858 = vpack.c.b16 %v658, %v654
      %v859 = vpack.c.b16 %v659, %v655
      %v860 = vpack.c.b16 %v664, %v660
      %v861 = vpack.c.b16 %v665, %v661
      %v862 = vpack.c.b16 %v666, %v662
      %v863 = vpack.c.b16 %v667, %v663
      %v864 = vpack.c.b16 %v672, %v668
      %v865 = vpack.c.b16 %v673, %v669
      %v866 = vpack.c.b16 %v674, %v670
      %v867 = vpack.c.b16 %v675, %v671
      %v868 = vpack.c.b16 %v680, %v676
      %v869 = vpack.c.b16 %v681, %v677
      %v870 = vpack.c.b16 %v682, %v678
      %v871 = vpack.c.b16 %v683, %v679
      %v872 = vpack.c.b16 %v688, %v684
      %v873 = vpack.c.b16 %v689, %v685
      %v874 = vpack.c.b16 %v690, %v686
      %v875 = vpack.c.b16 %v691, %v687
      %v876 = vpack.c.b16 %v696, %v692
      %v877 = vpack.c.b16 %v697, %v693
      %v878 = vpack.c.b16 %v698, %v694
      %v879 = vpack.c.b16 %v699, %v695
      %v880 = vpack.c.b16 %v704, %v700
      %v881 = vpack.c.b16 %v705, %v701
      %v882 = vpack.c.b16 %v706, %v702
      %v883 = vpack.c.b16 %v707, %v703
      %v884 = vpack.c.b16 %v712, %v708
      %v885 = vpack.c.b16 %v713, %v709
      %v886 = vpack.c.b16 %v714, %v710
      %v887 = vpack.c.b16 %v715, %v711
      %v888 = vpack.c.b16 %v720, %v716
      %v889 = vpack.c.b16 %v721, %v717
      %v890 = vpack.c.b16 %v722, %v718
      %v891 = vpack.c.b16 %v723, %v719
      %v892 = vpack.c.b16 %v728, %v724
      %v893 = vpack.c.b16 %v729, %v725
      %v894 = vpack.c.b16 %v730, %v726
      %v895 = vpack.c.b16 %v731, %v727
      %v896 = vpack.c.b16 %v736, %v732
      %v897 = vpack.c.b16 %v737, %v733
      %v898 = vpack.c.b16 %v738, %v734
      %v899 = vpack.c.b16 %v739, %v735
      %v900 = vpack.c.b16 %v744, %v740
      %v901 = vpack.c.b16 %v745, %v741
      %v902 = vpack.c.b16 %v746, %v742
      %v903 = vpack.c.b16 %v747, %v743
      %v904 = vpack.c.b16 %v752, %v748
      %v905 = vpack.c.b16 %v753, %v749
      %v906 = vpack.c.b16 %v754, %v750
      %v907 = vpack.c.b16 %v755, %v751
      %v908 = vpack.c.b16 %v760, %v756
      %v909 = vpack.c.b16 %v761, %v757
      %v910 = vpack.c.b16 %v762, %v758
      %v911 = vpack.c.b16 %v763, %v759
      %v912 = vpack.c.b16 %v768, %v764
      %v913 = vpack.c.b16 %v769, %v765
      %v914 = vpack.c.b16 %v770, %v766
      %v915 = vpack.c.b16 %v771, %v767
      %v916 = vpack.c.b16 %v776, %v772
      %v917 = vpack.c.b16 %v777, %v773
      %v918 = vpack.c.b16 %v778, %v774
      %v919 = vpack.c.b16 %v779, %v775
      %v920 = vpack.c.b16 %v784, %v780
      %v921 = vpack.c.b16 %v785, %v781
      %v922 = vpack.c.b16 %v786, %v782
      %v923 = vpack.c.b16 %v787, %v783
      %v924 = vpack.c.b16 %v792, %v788
      %v925 = vpack.c.b16 %v793, %v789
      %v926 = vpack.c.b16 %v794, %v790
      %v927 = vpack.c.b16 %v795, %v791
      %v928 = vpack.c.b16 %v800, %v796
      %v929 = vpack.c.b16 %v801, %v797
      %v930 = vpack.c.b16 %v802, %v798
      %v931 = vpack.c.b16 %v803, %v799
      %1060 = vmatpush.bf16.msra.mxu0 %v832
      %1061 = vmatpush.bf16.msra.mxu0 %v828
      %1062 = vmatpush.bf16.msra.mxu0 %v824
      %1063 = vmatpush.bf16.msra.mxu0 %v820
      %1064 = vmatpush.bf16.msra.mxu0 %v816
      %1065 = vmatpush.bf16.msra.mxu0 %v812
      %1066 = vmatpush.bf16.msra.mxu0 %v808
      %1067 = vmatpush.bf16.msra.mxu0 %v804
      %1068 = vmatmul.bf16.gmra.mxu0 %v412
      %v1069 = vpop.f32.mrf.mxu0
      %v1070 = vadd.f32 0.0, %v1069
      %v1071 = vpop.f32.mrf.mxu0
      %1072 = vdwg.mxu0
      %1073 = vmatpush.bf16.msra.mxu0 %v864
      %1074 = vmatpush.bf16.msra.mxu0 %v860
      %1075 = vmatpush.bf16.msra.mxu0 %v856
      %1076 = vmatpush.bf16.msra.mxu0 %v852
      %1077 = vmatpush.bf16.msra.mxu0 %v848
      %1078 = vmatpush.bf16.msra.mxu0 %v844
      %1079 = vmatpush.bf16.msra.mxu0 %v840
      %1080 = vmatpush.bf16.msra.mxu0 %v836
      %1081 = vmatmul.bf16.gmra.mxu0 %v413
      %v1082 = vpop.f32.mrf.mxu0
      %v1083 = vadd.f32 %v1070, %v1082
      %v1084 = vpop.f32.mrf.mxu0
      %1085 = vdwg.mxu0
      %1086 = vmatpush.bf16.msra.mxu0 %v896
      %1087 = vmatpush.bf16.msra.mxu0 %v892
      %1088 = vmatpush.bf16.msra.mxu0 %v888
      %1089 = vmatpush.bf16.msra.mxu0 %v884
      %1090 = vmatpush.bf16.msra.mxu0 %v880
      %1091 = vmatpush.bf16.msra.mxu0 %v876
      %1092 = vmatpush.bf16.msra.mxu0 %v872
      %1093 = vmatpush.bf16.msra.mxu0 %v868
      %1094 = vmatmul.bf16.gmra.mxu0 %v414
      %v1095 = vpop.f32.mrf.mxu0
      %v1096 = vadd.f32 %v1083, %v1095
      %v1097 = vpop.f32.mrf.mxu0
      %1098 = vdwg.mxu0
      %1099 = vmatpush.bf16.msra.mxu0 %v928
      %1100 = vmatpush.bf16.msra.mxu0 %v924
      %1101 = vmatpush.bf16.msra.mxu0 %v920
      %1102 = vmatpush.bf16.msra.mxu0 %v916
      %1103 = vmatpush.bf16.msra.mxu0 %v912
      %1104 = vmatpush.bf16.msra.mxu0 %v908
      %1105 = vmatpush.bf16.msra.mxu0 %v904
      %1106 = vmatpush.bf16.msra.mxu0 %v900
      %1107 = vmatmul.bf16.gmra.mxu0 %v415
      %v1108 = vpop.f32.mrf.mxu0
      %v1109 = vadd.f32 %v1096, %v1108
      %v1110 = vpop.f32.mrf.mxu0
      %1111 = vdwg.mxu0
      %1112 = vmatpush.bf16.msra.mxu0 %v833
      %1113 = vmatpush.bf16.msra.mxu0 %v829
      %1114 = vmatpush.bf16.msra.mxu0 %v825
      %1115 = vmatpush.bf16.msra.mxu0 %v821
      %1116 = vmatpush.bf16.msra.mxu0 %v817
      %1117 = vmatpush.bf16.msra.mxu0 %v813
      %1118 = vmatpush.bf16.msra.mxu0 %v809
      %1119 = vmatpush.bf16.msra.mxu0 %v805
      %1120 = vmatmul.bf16.gmra.mxu0 %v412
      %v1121 = vpop.f32.mrf.mxu0
      %v1122 = vadd.f32 0.0, %v1121
      %v1123 = vpop.f32.mrf.mxu0
      %1124 = vdwg.mxu0
      %1125 = vmatpush.bf16.msra.mxu0 %v865
      %1126 = vmatpush.bf16.msra.mxu0 %v861
      %1127 = vmatpush.bf16.msra.mxu0 %v857
      %1128 = vmatpush.bf16.msra.mxu0 %v853
      %1129 = vmatpush.bf16.msra.mxu0 %v849
      %1130 = vmatpush.bf16.msra.mxu0 %v845
      %1131 = vmatpush.bf16.msra.mxu0 %v841
      %1132 = vmatpush.bf16.msra.mxu0 %v837
      %1133 = vmatmul.bf16.gmra.mxu0 %v413
      %v1134 = vpop.f32.mrf.mxu0
      %v1135 = vadd.f32 %v1122, %v1134
      %v1136 = vpop.f32.mrf.mxu0
      %1137 = vdwg.mxu0
      %1138 = vmatpush.bf16.msra.mxu0 %v897
      %1139 = vmatpush.bf16.msra.mxu0 %v893
      %1140 = vmatpush.bf16.msra.mxu0 %v889
      %1141 = vmatpush.bf16.msra.mxu0 %v885
      %1142 = vmatpush.bf16.msra.mxu0 %v881
      %1143 = vmatpush.bf16.msra.mxu0 %v877
      %1144 = vmatpush.bf16.msra.mxu0 %v873
      %1145 = vmatpush.bf16.msra.mxu0 %v869
      %1146 = vmatmul.bf16.gmra.mxu0 %v414
      %v1147 = vpop.f32.mrf.mxu0
      %v1148 = vadd.f32 %v1135, %v1147
      %v1149 = vpop.f32.mrf.mxu0
      %1150 = vdwg.mxu0
      %1151 = vmatpush.bf16.msra.mxu0 %v929
      %1152 = vmatpush.bf16.msra.mxu0 %v925
      %1153 = vmatpush.bf16.msra.mxu0 %v921
      %1154 = vmatpush.bf16.msra.mxu0 %v917
      %1155 = vmatpush.bf16.msra.mxu0 %v913
      %1156 = vmatpush.bf16.msra.mxu0 %v909
      %1157 = vmatpush.bf16.msra.mxu0 %v905
      %1158 = vmatpush.bf16.msra.mxu0 %v901
      %1159 = vmatmul.bf16.gmra.mxu0 %v415
      %v1160 = vpop.f32.mrf.mxu0
      %v1161 = vadd.f32 %v1148, %v1160
      %v1162 = vpop.f32.mrf.mxu0
      %1163 = vdwg.mxu0
      %1164 = vmatpush.bf16.msra.mxu0 %v834
      %1165 = vmatpush.bf16.msra.mxu0 %v830
      %1166 = vmatpush.bf16.msra.mxu0 %v826
      %1167 = vmatpush.bf16.msra.mxu0 %v822
      %1168 = vmatpush.bf16.msra.mxu0 %v818
      %1169 = vmatpush.bf16.msra.mxu0 %v814
      %1170 = vmatpush.bf16.msra.mxu0 %v810
      %1171 = vmatpush.bf16.msra.mxu0 %v806
      %1172 = vmatmul.bf16.gmra.mxu0 %v412
      %v1173 = vpop.f32.mrf.mxu0
      %v1174 = vadd.f32 0.0, %v1173
      %v1175 = vpop.f32.mrf.mxu0
      %1176 = vdwg.mxu0
      %1177 = vmatpush.bf16.msra.mxu0 %v866
      %1178 = vmatpush.bf16.msra.mxu0 %v862
      %1179 = vmatpush.bf16.msra.mxu0 %v858
      %1180 = vmatpush.bf16.msra.mxu0 %v854
      %1181 = vmatpush.bf16.msra.mxu0 %v850
      %1182 = vmatpush.bf16.msra.mxu0 %v846
      %1183 = vmatpush.bf16.msra.mxu0 %v842
      %1184 = vmatpush.bf16.msra.mxu0 %v838
      %1185 = vmatmul.bf16.gmra.mxu0 %v413
      %v1186 = vpop.f32.mrf.mxu0
      %v1187 = vadd.f32 %v1174, %v1186
      %v1188 = vpop.f32.mrf.mxu0
      %1189 = vdwg.mxu0
      %1190 = vmatpush.bf16.msra.mxu0 %v898
      %1191 = vmatpush.bf16.msra.mxu0 %v894
      %1192 = vmatpush.bf16.msra.mxu0 %v890
      %1193 = vmatpush.bf16.msra.mxu0 %v886
      %1194 = vmatpush.bf16.msra.mxu0 %v882
      %1195 = vmatpush.bf16.msra.mxu0 %v878
      %1196 = vmatpush.bf16.msra.mxu0 %v874
      %1197 = vmatpush.bf16.msra.mxu0 %v870
      %1198 = vmatmul.bf16.gmra.mxu0 %v414
      %v1199 = vpop.f32.mrf.mxu0
      %v1200 = vadd.f32 %v1187, %v1199
      %v1201 = vpop.f32.mrf.mxu0
      %1202 = vdwg.mxu0
      %1203 = vmatpush.bf16.msra.mxu0 %v930
      %1204 = vmatpush.bf16.msra.mxu0 %v926
      %1205 = vmatpush.bf16.msra.mxu0 %v922
      %1206 = vmatpush.bf16.msra.mxu0 %v918
      %1207 = vmatpush.bf16.msra.mxu0 %v914
      %1208 = vmatpush.bf16.msra.mxu0 %v910
      %1209 = vmatpush.bf16.msra.mxu0 %v906
      %1210 = vmatpush.bf16.msra.mxu0 %v902
      %1211 = vmatmul.bf16.gmra.mxu0 %v415
      %v1212 = vpop.f32.mrf.mxu0
      %v1213 = vadd.f32 %v1200, %v1212
      %v1214 = vpop.f32.mrf.mxu0
      %1215 = vdwg.mxu0
      %1216 = vmatpush.bf16.msra.mxu0 %v835
      %1217 = vmatpush.bf16.msra.mxu0 %v831
      %1218 = vmatpush.bf16.msra.mxu0 %v827
      %1219 = vmatpush.bf16.msra.mxu0 %v823
      %1220 = vmatpush.bf16.msra.mxu0 %v819
      %1221 = vmatpush.bf16.msra.mxu0 %v815
      %1222 = vmatpush.bf16.msra.mxu0 %v811
      %1223 = vmatpush.bf16.msra.mxu0 %v807
      %1224 = vmatmul.bf16.gmra.mxu0 %v412
      %v1225 = vpop.f32.mrf.mxu0
      %v1226 = vadd.f32 0.0, %v1225
      %v1227 = vpop.f32.mrf.mxu0
      %1228 = vdwg.mxu0
      %1229 = vmatpush.bf16.msra.mxu0 %v867
      %1230 = vmatpush.bf16.msra.mxu0 %v863
      %1231 = vmatpush.bf16.msra.mxu0 %v859
      %1232 = vmatpush.bf16.msra.mxu0 %v855
      %1233 = vmatpush.bf16.msra.mxu0 %v851
      %1234 = vmatpush.bf16.msra.mxu0 %v847
      %1235 = vmatpush.bf16.msra.mxu0 %v843
      %1236 = vmatpush.bf16.msra.mxu0 %v839
      %1237 = vmatmul.bf16.gmra.mxu0 %v413
      %v1238 = vpop.f32.mrf.mxu0
      %v1239 = vadd.f32 %v1226, %v1238
      %v1240 = vpop.f32.mrf.mxu0
      %1241 = vdwg.mxu0
      %1242 = vmatpush.bf16.msra.mxu0 %v899
      %1243 = vmatpush.bf16.msra.mxu0 %v895
      %1244 = vmatpush.bf16.msra.mxu0 %v891
      %1245 = vmatpush.bf16.msra.mxu0 %v887
      %1246 = vmatpush.bf16.msra.mxu0 %v883
      %1247 = vmatpush.bf16.msra.mxu0 %v879
      %1248 = vmatpush.bf16.msra.mxu0 %v875
      %1249 = vmatpush.bf16.msra.mxu0 %v871
      %1250 = vmatmul.bf16.gmra.mxu0 %v414
      %v1251 = vpop.f32.mrf.mxu0
      %v1252 = vadd.f32 %v1239, %v1251
      %v1253 = vpop.f32.mrf.mxu0
      %1254 = vdwg.mxu0
      %1255 = vmatpush.bf16.msra.mxu0 %v931
      %1256 = vmatpush.bf16.msra.mxu0 %v927
      %1257 = vmatpush.bf16.msra.mxu0 %v923
      %1258 = vmatpush.bf16.msra.mxu0 %v919
      %1259 = vmatpush.bf16.msra.mxu0 %v915
      %1260 = vmatpush.bf16.msra.mxu0 %v911
      %1261 = vmatpush.bf16.msra.mxu0 %v907
      %1262 = vmatpush.bf16.msra.mxu0 %v903
      %1263 = vmatmul.bf16.gmra.mxu0 %v415
      %v1264 = vpop.f32.mrf.mxu0
      %v1265 = vadd.f32 %v1252, %v1264
      %v1266 = vpop.f32.mrf.mxu0
      %1267 = vdwg.mxu0
      %v1272 = vrot.slane %v1161, 6
      %v1273 = vrot.slane %v1213, 4
      %v1274 = vrot.slane %v1265, 2
      %vm1275 = vcmask 1041408
      %v1276 = vsel %vm1275, %v1109, %v1272
      %vm1277 = vcmask 1045508
      %v1278 = vsel %vm1277, %v1273, %v1274
      %vm1279 = vcmask 1043456
      %v1280 = vsel %vm1279, %v1276, %v1278
      %v1282 = vadd.f32 %v280, %v1280
      %1283 = vst [vmem:[#allocation2] sm:$0xff] %v1282
      %p1284 = scmp.eq.s32.totalorder %s21, 1
      // Predicated region
      $region45: #{_lambda_.13} parent=39 // pred_check
        %p1285 = pneg %p1284
      $region46: #{_lambda_.13} parent=39 // pred_check_branch
        %1287 = sbr.rel (%p1285) target = $region48
      $region47: #{_lambda_.13} parent=39 // pred_region
        %v1288 = vld [vmem:[#allocation2] sm:$0xff]
        %v1289 = vld [vmem:[%s2] sm:$0xf]
        %v1291 = vperm.slane %v1289, 0
        %v1292 = vperm.slane %v1289, 1
        %v1293 = vperm.slane %v1289, 2
        %v1294 = vperm.slane %v1289, 3
        %v1295 = vrot.slane %v1292, 6
        %v1296 = vrot.slane %v1293, 4
        %v1297 = vrot.slane %v1294, 2
        %v1298 = vsel %vm1275, %v1291, %v1295
        %v1299 = vsel %vm1277, %v1296, %v1297
        %v1300 = vsel %vm1279, %v1298, %v1299
        %v1302 = vadd.f32 %v1288, %v1300
        %v1303 = vmax.f32 %v1302, 0.0
        %1305 = vst [vmem:[#allocation1] ss:$4 sm:$0xff] %v1303
        %v1306 = vld.sshfl [vmem:[#allocation1] sm:$0xff pattern:$0x73625140]
        %v1307 = vld.sshfl [vmem:[#allocation1 + $0x8] sm:$0xff pattern:$0x73625140]
        %v1308 = vld.sshfl [vmem:[#allocation1 + $0x10] sm:$0xff pattern:$0x73625140]
        %v1309 = vld.sshfl [vmem:[#allocation1 + $0x18] sm:$0xff pattern:$0x73625140]
        %v1314 = vpack.c.bf16 %v1306, %v1306
        %v1315 = vpack.c.bf16 %v1307, %v1307
        %v1316 = vpack.c.bf16 %v1308, %v1308
        %v1317 = vpack.c.bf16 %v1309, %v1309
        %v1318 = vld [vmem:[%s3] sm:$0xff]
        %v1319 = vld [vmem:[%s3 + $0x8] sm:$0xff]
        %v1320 = vld [vmem:[%s3 + $0x10] sm:$0xf]
        %v1321 = vld [vmem:[%s3 + $0x14] sm:$0xff]
        %v1322 = vld [vmem:[%s3 + $0x1c] sm:$0xff]
        %v1323 = vld [vmem:[%s3 + $0x24] sm:$0xf]
        %v1324 = vld [vmem:[%s3 + $0x28] sm:$0xff]
        %v1325 = vld [vmem:[%s3 + $0x30] sm:$0xff]
        %v1326 = vld [vmem:[%s3 + $0x38] sm:$0xf]
        %v1327 = vld [vmem:[%s3 + $0x3c] sm:$0xff]
        %v1328 = vld [vmem:[%s3 + $0x44] sm:$0xff]
        %v1329 = vld [vmem:[%s3 + $0x4c] sm:$0xf]
        %v1330 = vld [vmem:[%s3 + $0x50] sm:$0xff]
        %v1331 = vld [vmem:[%s3 + $0x58] sm:$0xff]
        %v1332 = vld [vmem:[%s3 + $0x60] sm:$0xf]
        %v1333 = vld [vmem:[%s3 + $0x64] sm:$0xff]
        %v1334 = vld [vmem:[%s3 + $0x6c] sm:$0xff]
        %v1335 = vld [vmem:[%s3 + $0x74] sm:$0xf]
        %v1336 = vld [vmem:[%s3 + $0x78] sm:$0xff]
        %v1337 = vld [vmem:[%s3 + $0x80] sm:$0xff]
        %v1338 = vld [vmem:[%s3 + $0x88] sm:$0xf]
        %v1339 = vld [vmem:[%s3 + $0x8c] sm:$0xff]
        %v1340 = vld [vmem:[%s3 + $0x94] sm:$0xff]
        %v1341 = vld [vmem:[%s3 + $0x9c] sm:$0xf]
        %v1342 = vld [vmem:[%s3 + $0xa0] sm:$0xff]
        %v1343 = vld [vmem:[%s3 + $0xa8] sm:$0xff]
        %v1344 = vld [vmem:[%s3 + $0xb0] sm:$0xf]
        %v1345 = vld [vmem:[%s3 + $0xb4] sm:$0xff]
        %v1346 = vld [vmem:[%s3 + $0xbc] sm:$0xff]
        %v1347 = vld [vmem:[%s3 + $0xc4] sm:$0xf]
        %v1348 = vld [vmem:[%s3 + $0xc8] sm:$0xff]
        %v1349 = vld [vmem:[%s3 + $0xd0] sm:$0xff]
        %v1350 = vld [vmem:[%s3 + $0xd8] sm:$0xf]
        %v1351 = vld [vmem:[%s3 + $0xdc] sm:$0xff]
        %v1352 = vld [vmem:[%s3 + $0xe4] sm:$0xff]
        %v1353 = vld [vmem:[%s3 + $0xec] sm:$0xf]
        %v1354 = vld [vmem:[%s3 + $0xf0] sm:$0xff]
        %v1355 = vld [vmem:[%s3 + $0xf8] sm:$0xff]
        %v1356 = vld [vmem:[%s3 + $0x100] sm:$0xf]
        %v1357 = vld [vmem:[%s3 + $0x104] sm:$0xff]
        %v1358 = vld [vmem:[%s3 + $0x10c] sm:$0xff]
        %v1359 = vld [vmem:[%s3 + $0x114] sm:$0xf]
        %v1360 = vld [vmem:[%s3 + $0x118] sm:$0xff]
        %v1361 = vld [vmem:[%s3 + $0x120] sm:$0xff]
        %v1362 = vld [vmem:[%s3 + $0x128] sm:$0xf]
        %v1363 = vld [vmem:[%s3 + $0x12c] sm:$0xff]
        %v1364 = vld [vmem:[%s3 + $0x134] sm:$0xff]
        %v1365 = vld [vmem:[%s3 + $0x13c] sm:$0xf]
        %v1366 = vld [vmem:[%s3 + $0x140] sm:$0xff]
        %v1367 = vld [vmem:[%s3 + $0x148] sm:$0xff]
        %v1368 = vld [vmem:[%s3 + $0x150] sm:$0xf]
        %v1369 = vld [vmem:[%s3 + $0x154] sm:$0xff]
        %v1370 = vld [vmem:[%s3 + $0x15c] sm:$0xff]
        %v1371 = vld [vmem:[%s3 + $0x164] sm:$0xf]
        %v1372 = vld [vmem:[%s3 + $0x168] sm:$0xff]
        %v1373 = vld [vmem:[%s3 + $0x170] sm:$0xff]
        %v1374 = vld [vmem:[%s3 + $0x178] sm:$0xf]
        %v1375 = vld [vmem:[%s3 + $0x17c] sm:$0xff]
        %v1376 = vld [vmem:[%s3 + $0x184] sm:$0xff]
        %v1377 = vld [vmem:[%s3 + $0x18c] sm:$0xf]
        %v1378 = vld [vmem:[%s3 + $0x190] sm:$0xff]
        %v1379 = vld [vmem:[%s3 + $0x198] sm:$0xff]
        %v1380 = vld [vmem:[%s3 + $0x1a0] sm:$0xf]
        %v1381 = vld [vmem:[%s3 + $0x1a4] sm:$0xff]
        %v1382 = vld [vmem:[%s3 + $0x1ac] sm:$0xff]
        %v1383 = vld [vmem:[%s3 + $0x1b4] sm:$0xf]
        %v1384 = vld [vmem:[%s3 + $0x1b8] sm:$0xff]
        %v1385 = vld [vmem:[%s3 + $0x1c0] sm:$0xff]
        %v1386 = vld [vmem:[%s3 + $0x1c8] sm:$0xf]
        %v1387 = vld [vmem:[%s3 + $0x1cc] sm:$0xff]
        %v1388 = vld [vmem:[%s3 + $0x1d4] sm:$0xff]
        %v1389 = vld [vmem:[%s3 + $0x1dc] sm:$0xf]
        %v1390 = vld [vmem:[%s3 + $0x1e0] sm:$0xff]
        %v1391 = vld [vmem:[%s3 + $0x1e8] sm:$0xff]
        %v1392 = vld [vmem:[%s3 + $0x1f0] sm:$0xf]
        %v1393 = vld [vmem:[%s3 + $0x1f4] sm:$0xff]
        %v1394 = vld [vmem:[%s3 + $0x1fc] sm:$0xff]
        %v1395 = vld [vmem:[%s3 + $0x204] sm:$0xf]
        %v1396 = vld [vmem:[%s3 + $0x208] sm:$0xff]
        %v1397 = vld [vmem:[%s3 + $0x210] sm:$0xff]
        %v1398 = vld [vmem:[%s3 + $0x218] sm:$0xf]
        %v1399 = vld [vmem:[%s3 + $0x21c] sm:$0xff]
        %v1400 = vld [vmem:[%s3 + $0x224] sm:$0xff]
        %v1401 = vld [vmem:[%s3 + $0x22c] sm:$0xf]
        %v1402 = vld [vmem:[%s3 + $0x230] sm:$0xff]
        %v1403 = vld [vmem:[%s3 + $0x238] sm:$0xff]
        %v1404 = vld [vmem:[%s3 + $0x240] sm:$0xf]
        %v1405 = vld [vmem:[%s3 + $0x244] sm:$0xff]
        %v1406 = vld [vmem:[%s3 + $0x24c] sm:$0xff]
        %v1407 = vld [vmem:[%s3 + $0x254] sm:$0xf]
        %v1408 = vld [vmem:[%s3 + $0x258] sm:$0xff]
        %v1409 = vld [vmem:[%s3 + $0x260] sm:$0xff]
        %v1410 = vld [vmem:[%s3 + $0x268] sm:$0xf]
        %v1411 = vld [vmem:[%s3 + $0x26c] sm:$0xff]
        %v1412 = vld [vmem:[%s3 + $0x274] sm:$0xff]
        %v1413 = vld [vmem:[%s3 + $0x27c] sm:$0xf]
        %v1414 = vld [vmem:[%s3 + $0x280] sm:$0xff]
        %v1415 = vld [vmem:[%s3 + $0x288] sm:$0xff]
        %v1416 = vld [vmem:[%s3 + $0x290] sm:$0xf]
        %v1417 = vld [vmem:[%s3 + $0x294] sm:$0xff]
        %v1418 = vld [vmem:[%s3 + $0x29c] sm:$0xff]
        %v1419 = vld [vmem:[%s3 + $0x2a4] sm:$0xf]
        %v1420 = vld [vmem:[%s3 + $0x2a8] sm:$0xff]
        %v1421 = vld [vmem:[%s3 + $0x2b0] sm:$0xff]
        %v1422 = vld [vmem:[%s3 + $0x2b8] sm:$0xf]
        %v1423 = vld [vmem:[%s3 + $0x2bc] sm:$0xff]
        %v1424 = vld [vmem:[%s3 + $0x2c4] sm:$0xff]
        %v1425 = vld [vmem:[%s3 + $0x2cc] sm:$0xf]
        %v1426 = vld [vmem:[%s3 + $0x2d0] sm:$0xff]
        %v1427 = vld [vmem:[%s3 + $0x2d8] sm:$0xff]
        %v1428 = vld [vmem:[%s3 + $0x2e0] sm:$0xf]
        %v1429 = vld [vmem:[%s3 + $0x2e4] sm:$0xff]
        %v1430 = vld [vmem:[%s3 + $0x2ec] sm:$0xff]
        %v1431 = vld [vmem:[%s3 + $0x2f4] sm:$0xf]
        %v1432 = vld [vmem:[%s3 + $0x2f8] sm:$0xff]
        %v1433 = vld [vmem:[%s3 + $0x300] sm:$0xff]
        %v1434 = vld [vmem:[%s3 + $0x308] sm:$0xf]
        %v1435 = vld [vmem:[%s3 + $0x30c] sm:$0xff]
        %v1436 = vld [vmem:[%s3 + $0x314] sm:$0xff]
        %v1437 = vld [vmem:[%s3 + $0x31c] sm:$0xf]
        %v1438 = vld [vmem:[%s3 + $0x320] sm:$0xff]
        %v1439 = vld [vmem:[%s3 + $0x328] sm:$0xff]
        %v1440 = vld [vmem:[%s3 + $0x330] sm:$0xf]
        %v1441 = vld [vmem:[%s3 + $0x334] sm:$0xff]
        %v1442 = vld [vmem:[%s3 + $0x33c] sm:$0xff]
        %v1443 = vld [vmem:[%s3 + $0x344] sm:$0xf]
        %v1444 = vld [vmem:[%s3 + $0x348] sm:$0xff]
        %v1445 = vld [vmem:[%s3 + $0x350] sm:$0xff]
        %v1446 = vld [vmem:[%s3 + $0x358] sm:$0xf]
        %v1447 = vld [vmem:[%s3 + $0x35c] sm:$0xff]
        %v1448 = vld [vmem:[%s3 + $0x364] sm:$0xff]
        %v1449 = vld [vmem:[%s3 + $0x36c] sm:$0xf]
        %v1450 = vld [vmem:[%s3 + $0x370] sm:$0xff]
        %v1451 = vld [vmem:[%s3 + $0x378] sm:$0xff]
        %v1452 = vld [vmem:[%s3 + $0x380] sm:$0xf]
        %v1453 = vld [vmem:[%s3 + $0x384] sm:$0xff]
        %v1454 = vld [vmem:[%s3 + $0x38c] sm:$0xff]
        %v1455 = vld [vmem:[%s3 + $0x394] sm:$0xf]
        %v1456 = vld [vmem:[%s3 + $0x398] sm:$0xff]
        %v1457 = vld [vmem:[%s3 + $0x3a0] sm:$0xff]
        %v1458 = vld [vmem:[%s3 + $0x3a8] sm:$0xf]
        %v1459 = vld [vmem:[%s3 + $0x3ac] sm:$0xff]
        %v1460 = vld [vmem:[%s3 + $0x3b4] sm:$0xff]
        %v1461 = vld [vmem:[%s3 + $0x3bc] sm:$0xf]
        %v1462 = vld [vmem:[%s3 + $0x3c0] sm:$0xff]
        %v1463 = vld [vmem:[%s3 + $0x3c8] sm:$0xff]
        %v1464 = vld [vmem:[%s3 + $0x3d0] sm:$0xf]
        %v1465 = vld [vmem:[%s3 + $0x3d4] sm:$0xff]
        %v1466 = vld [vmem:[%s3 + $0x3dc] sm:$0xff]
        %v1467 = vld [vmem:[%s3 + $0x3e4] sm:$0xf]
        %v1468 = vld [vmem:[%s3 + $0x3e8] sm:$0xff]
        %v1469 = vld [vmem:[%s3 + $0x3f0] sm:$0xff]
        %v1470 = vld [vmem:[%s3 + $0x3f8] sm:$0xf]
        %v1471 = vld [vmem:[%s3 + $0x3fc] sm:$0xff]
        %v1472 = vld [vmem:[%s3 + $0x404] sm:$0xff]
        %v1473 = vld [vmem:[%s3 + $0x40c] sm:$0xf]
        %v1474 = vld [vmem:[%s3 + $0x410] sm:$0xff]
        %v1475 = vld [vmem:[%s3 + $0x418] sm:$0xff]
        %v1476 = vld [vmem:[%s3 + $0x420] sm:$0xf]
        %v1477 = vld [vmem:[%s3 + $0x424] sm:$0xff]
        %v1478 = vld [vmem:[%s3 + $0x42c] sm:$0xff]
        %v1479 = vld [vmem:[%s3 + $0x434] sm:$0xf]
        %v1480 = vld [vmem:[%s3 + $0x438] sm:$0xff]
        %v1481 = vld [vmem:[%s3 + $0x440] sm:$0xff]
        %v1482 = vld [vmem:[%s3 + $0x448] sm:$0xf]
        %v1483 = vld [vmem:[%s3 + $0x44c] sm:$0xff]
        %v1484 = vld [vmem:[%s3 + $0x454] sm:$0xff]
        %v1485 = vld [vmem:[%s3 + $0x45c] sm:$0xf]
        %v1486 = vld [vmem:[%s3 + $0x460] sm:$0xff]
        %v1487 = vld [vmem:[%s3 + $0x468] sm:$0xff]
        %v1488 = vld [vmem:[%s3 + $0x470] sm:$0xf]
        %v1489 = vld [vmem:[%s3 + $0x474] sm:$0xff]
        %v1490 = vld [vmem:[%s3 + $0x47c] sm:$0xff]
        %v1491 = vld [vmem:[%s3 + $0x484] sm:$0xf]
        %v1492 = vld [vmem:[%s3 + $0x488] sm:$0xff]
        %v1493 = vld [vmem:[%s3 + $0x490] sm:$0xff]
        %v1494 = vld [vmem:[%s3 + $0x498] sm:$0xf]
        %v1495 = vld [vmem:[%s3 + $0x49c] sm:$0xff]
        %v1496 = vld [vmem:[%s3 + $0x4a4] sm:$0xff]
        %v1497 = vld [vmem:[%s3 + $0x4ac] sm:$0xf]
        %v1498 = vld [vmem:[%s3 + $0x4b0] sm:$0xff]
        %v1499 = vld [vmem:[%s3 + $0x4b8] sm:$0xff]
        %v1500 = vld [vmem:[%s3 + $0x4c0] sm:$0xf]
        %v1501 = vld [vmem:[%s3 + $0x4c4] sm:$0xff]
        %v1502 = vld [vmem:[%s3 + $0x4cc] sm:$0xff]
        %v1503 = vld [vmem:[%s3 + $0x4d4] sm:$0xf]
        %v1504 = vld [vmem:[%s3 + $0x4d8] sm:$0xff]
        %v1505 = vld [vmem:[%s3 + $0x4e0] sm:$0xff]
        %v1506 = vld [vmem:[%s3 + $0x4e8] sm:$0xf]
        %v1507 = vld [vmem:[%s3 + $0x4ec] sm:$0xff]
        %v1508 = vld [vmem:[%s3 + $0x4f4] sm:$0xff]
        %v1509 = vld [vmem:[%s3 + $0x4fc] sm:$0xf]
        %v1510 = vld [vmem:[%s4] sm:$0x1f]
        %v1512 = vperm.slane %v1510, 0
        %v1513 = vperm.slane %v1510, 1
        %v1514 = vperm.slane %v1510, 2
        %v1515 = vperm.slane %v1510, 3
        %v1516 = vperm.slane %v1510, 4
        %v1714 = vunpack.c.l.b16 %v1318
        %v1715 = vunpack.c.h.b16 %v1318
        %v1716 = vunpack.c.l.b16 %v1319
        %v1717 = vunpack.c.h.b16 %v1319
        %v1718 = vunpack.c.l.b16 %v1320
        %v1719 = vunpack.c.l.b16 %v1321
        %v1720 = vunpack.c.h.b16 %v1321
        %v1721 = vunpack.c.l.b16 %v1322
        %v1722 = vunpack.c.h.b16 %v1322
        %v1723 = vunpack.c.l.b16 %v1323
        %v1724 = vunpack.c.l.b16 %v1324
        %v1725 = vunpack.c.h.b16 %v1324
        %v1726 = vunpack.c.l.b16 %v1325
        %v1727 = vunpack.c.h.b16 %v1325
        %v1728 = vunpack.c.l.b16 %v1326
        %v1729 = vunpack.c.l.b16 %v1327
        %v1730 = vunpack.c.h.b16 %v1327
        %v1731 = vunpack.c.l.b16 %v1328
        %v1732 = vunpack.c.h.b16 %v1328
        %v1733 = vunpack.c.l.b16 %v1329
        %v1734 = vunpack.c.l.b16 %v1330
        %v1735 = vunpack.c.h.b16 %v1330
        %v1736 = vunpack.c.l.b16 %v1331
        %v1737 = vunpack.c.h.b16 %v1331
        %v1738 = vunpack.c.l.b16 %v1332
        %v1739 = vunpack.c.l.b16 %v1333
        %v1740 = vunpack.c.h.b16 %v1333
        %v1741 = vunpack.c.l.b16 %v1334
        %v1742 = vunpack.c.h.b16 %v1334
        %v1743 = vunpack.c.l.b16 %v1335
        %v1744 = vunpack.c.l.b16 %v1336
        %v1745 = vunpack.c.h.b16 %v1336
        %v1746 = vunpack.c.l.b16 %v1337
        %v1747 = vunpack.c.h.b16 %v1337
        %v1748 = vunpack.c.l.b16 %v1338
        %v1749 = vunpack.c.l.b16 %v1339
        %v1750 = vunpack.c.h.b16 %v1339
        %v1751 = vunpack.c.l.b16 %v1340
        %v1752 = vunpack.c.h.b16 %v1340
        %v1753 = vunpack.c.l.b16 %v1341
        %v1754 = vunpack.c.l.b16 %v1342
        %v1755 = vunpack.c.h.b16 %v1342
        %v1756 = vunpack.c.l.b16 %v1343
        %v1757 = vunpack.c.h.b16 %v1343
        %v1758 = vunpack.c.l.b16 %v1344
        %v1759 = vunpack.c.l.b16 %v1345
        %v1760 = vunpack.c.h.b16 %v1345
        %v1761 = vunpack.c.l.b16 %v1346
        %v1762 = vunpack.c.h.b16 %v1346
        %v1763 = vunpack.c.l.b16 %v1347
        %v1764 = vunpack.c.l.b16 %v1348
        %v1765 = vunpack.c.h.b16 %v1348
        %v1766 = vunpack.c.l.b16 %v1349
        %v1767 = vunpack.c.h.b16 %v1349
        %v1768 = vunpack.c.l.b16 %v1350
        %v1769 = vunpack.c.l.b16 %v1351
        %v1770 = vunpack.c.h.b16 %v1351
        %v1771 = vunpack.c.l.b16 %v1352
        %v1772 = vunpack.c.h.b16 %v1352
        %v1773 = vunpack.c.l.b16 %v1353
        %v1774 = vunpack.c.l.b16 %v1354
        %v1775 = vunpack.c.h.b16 %v1354
        %v1776 = vunpack.c.l.b16 %v1355
        %v1777 = vunpack.c.h.b16 %v1355
        %v1778 = vunpack.c.l.b16 %v1356
        %v1779 = vunpack.c.l.b16 %v1357
        %v1780 = vunpack.c.h.b16 %v1357
        %v1781 = vunpack.c.l.b16 %v1358
        %v1782 = vunpack.c.h.b16 %v1358
        %v1783 = vunpack.c.l.b16 %v1359
        %v1784 = vunpack.c.l.b16 %v1360
        %v1785 = vunpack.c.h.b16 %v1360
        %v1786 = vunpack.c.l.b16 %v1361
        %v1787 = vunpack.c.h.b16 %v1361
        %v1788 = vunpack.c.l.b16 %v1362
        %v1789 = vunpack.c.l.b16 %v1363
        %v1790 = vunpack.c.h.b16 %v1363
        %v1791 = vunpack.c.l.b16 %v1364
        %v1792 = vunpack.c.h.b16 %v1364
        %v1793 = vunpack.c.l.b16 %v1365
        %v1794 = vunpack.c.l.b16 %v1366
        %v1795 = vunpack.c.h.b16 %v1366
        %v1796 = vunpack.c.l.b16 %v1367
        %v1797 = vunpack.c.h.b16 %v1367
        %v1798 = vunpack.c.l.b16 %v1368
        %v1799 = vunpack.c.l.b16 %v1369
        %v1800 = vunpack.c.h.b16 %v1369
        %v1801 = vunpack.c.l.b16 %v1370
        %v1802 = vunpack.c.h.b16 %v1370
        %v1803 = vunpack.c.l.b16 %v1371
        %v1804 = vunpack.c.l.b16 %v1372
        %v1805 = vunpack.c.h.b16 %v1372
        %v1806 = vunpack.c.l.b16 %v1373
        %v1807 = vunpack.c.h.b16 %v1373
        %v1808 = vunpack.c.l.b16 %v1374
        %v1809 = vunpack.c.l.b16 %v1375
        %v1810 = vunpack.c.h.b16 %v1375
        %v1811 = vunpack.c.l.b16 %v1376
        %v1812 = vunpack.c.h.b16 %v1376
        %v1813 = vunpack.c.l.b16 %v1377
        %v1814 = vunpack.c.l.b16 %v1378
        %v1815 = vunpack.c.h.b16 %v1378
        %v1816 = vunpack.c.l.b16 %v1379
        %v1817 = vunpack.c.h.b16 %v1379
        %v1818 = vunpack.c.l.b16 %v1380
        %v1819 = vunpack.c.l.b16 %v1381
        %v1820 = vunpack.c.h.b16 %v1381
        %v1821 = vunpack.c.l.b16 %v1382
        %v1822 = vunpack.c.h.b16 %v1382
        %v1823 = vunpack.c.l.b16 %v1383
        %v1824 = vunpack.c.l.b16 %v1384
        %v1825 = vunpack.c.h.b16 %v1384
        %v1826 = vunpack.c.l.b16 %v1385
        %v1827 = vunpack.c.h.b16 %v1385
        %v1828 = vunpack.c.l.b16 %v1386
        %v1829 = vunpack.c.l.b16 %v1387
        %v1830 = vunpack.c.h.b16 %v1387
        %v1831 = vunpack.c.l.b16 %v1388
        %v1832 = vunpack.c.h.b16 %v1388
        %v1833 = vunpack.c.l.b16 %v1389
        %v1834 = vunpack.c.l.b16 %v1390
        %v1835 = vunpack.c.h.b16 %v1390
        %v1836 = vunpack.c.l.b16 %v1391
        %v1837 = vunpack.c.h.b16 %v1391
        %v1838 = vunpack.c.l.b16 %v1392
        %v1839 = vunpack.c.l.b16 %v1393
        %v1840 = vunpack.c.h.b16 %v1393
        %v1841 = vunpack.c.l.b16 %v1394
        %v1842 = vunpack.c.h.b16 %v1394
        %v1843 = vunpack.c.l.b16 %v1395
        %v1844 = vunpack.c.l.b16 %v1396
        %v1845 = vunpack.c.h.b16 %v1396
        %v1846 = vunpack.c.l.b16 %v1397
        %v1847 = vunpack.c.h.b16 %v1397
        %v1848 = vunpack.c.l.b16 %v1398
        %v1849 = vunpack.c.l.b16 %v1399
        %v1850 = vunpack.c.h.b16 %v1399
        %v1851 = vunpack.c.l.b16 %v1400
        %v1852 = vunpack.c.h.b16 %v1400
        %v1853 = vunpack.c.l.b16 %v1401
        %v1854 = vunpack.c.l.b16 %v1402
        %v1855 = vunpack.c.h.b16 %v1402
        %v1856 = vunpack.c.l.b16 %v1403
        %v1857 = vunpack.c.h.b16 %v1403
        %v1858 = vunpack.c.l.b16 %v1404
        %v1859 = vunpack.c.l.b16 %v1405
        %v1860 = vunpack.c.h.b16 %v1405
        %v1861 = vunpack.c.l.b16 %v1406
        %v1862 = vunpack.c.h.b16 %v1406
        %v1863 = vunpack.c.l.b16 %v1407
        %v1864 = vunpack.c.l.b16 %v1408
        %v1865 = vunpack.c.h.b16 %v1408
        %v1866 = vunpack.c.l.b16 %v1409
        %v1867 = vunpack.c.h.b16 %v1409
        %v1868 = vunpack.c.l.b16 %v1410
        %v1869 = vunpack.c.l.b16 %v1411
        %v1870 = vunpack.c.h.b16 %v1411
        %v1871 = vunpack.c.l.b16 %v1412
        %v1872 = vunpack.c.h.b16 %v1412
        %v1873 = vunpack.c.l.b16 %v1413
        %v1874 = vunpack.c.l.b16 %v1414
        %v1875 = vunpack.c.h.b16 %v1414
        %v1876 = vunpack.c.l.b16 %v1415
        %v1877 = vunpack.c.h.b16 %v1415
        %v1878 = vunpack.c.l.b16 %v1416
        %v1879 = vunpack.c.l.b16 %v1417
        %v1880 = vunpack.c.h.b16 %v1417
        %v1881 = vunpack.c.l.b16 %v1418
        %v1882 = vunpack.c.h.b16 %v1418
        %v1883 = vunpack.c.l.b16 %v1419
        %v1884 = vunpack.c.l.b16 %v1420
        %v1885 = vunpack.c.h.b16 %v1420
        %v1886 = vunpack.c.l.b16 %v1421
        %v1887 = vunpack.c.h.b16 %v1421
        %v1888 = vunpack.c.l.b16 %v1422
        %v1889 = vunpack.c.l.b16 %v1423
        %v1890 = vunpack.c.h.b16 %v1423
        %v1891 = vunpack.c.l.b16 %v1424
        %v1892 = vunpack.c.h.b16 %v1424
        %v1893 = vunpack.c.l.b16 %v1425
        %v1894 = vunpack.c.l.b16 %v1426
        %v1895 = vunpack.c.h.b16 %v1426
        %v1896 = vunpack.c.l.b16 %v1427
        %v1897 = vunpack.c.h.b16 %v1427
        %v1898 = vunpack.c.l.b16 %v1428
        %v1899 = vunpack.c.l.b16 %v1429
        %v1900 = vunpack.c.h.b16 %v1429
        %v1901 = vunpack.c.l.b16 %v1430
        %v1902 = vunpack.c.h.b16 %v1430
        %v1903 = vunpack.c.l.b16 %v1431
        %v1904 = vunpack.c.l.b16 %v1432
        %v1905 = vunpack.c.h.b16 %v1432
        %v1906 = vunpack.c.l.b16 %v1433
        %v1907 = vunpack.c.h.b16 %v1433
        %v1908 = vunpack.c.l.b16 %v1434
        %v1909 = vunpack.c.l.b16 %v1435
        %v1910 = vunpack.c.h.b16 %v1435
        %v1911 = vunpack.c.l.b16 %v1436
        %v1912 = vunpack.c.h.b16 %v1436
        %v1913 = vunpack.c.l.b16 %v1437
        %v1914 = vunpack.c.l.b16 %v1438
        %v1915 = vunpack.c.h.b16 %v1438
        %v1916 = vunpack.c.l.b16 %v1439
        %v1917 = vunpack.c.h.b16 %v1439
        %v1918 = vunpack.c.l.b16 %v1440
        %v1919 = vunpack.c.l.b16 %v1441
        %v1920 = vunpack.c.h.b16 %v1441
        %v1921 = vunpack.c.l.b16 %v1442
        %v1922 = vunpack.c.h.b16 %v1442
        %v1923 = vunpack.c.l.b16 %v1443
        %v1924 = vunpack.c.l.b16 %v1444
        %v1925 = vunpack.c.h.b16 %v1444
        %v1926 = vunpack.c.l.b16 %v1445
        %v1927 = vunpack.c.h.b16 %v1445
        %v1928 = vunpack.c.l.b16 %v1446
        %v1929 = vunpack.c.l.b16 %v1447
        %v1930 = vunpack.c.h.b16 %v1447
        %v1931 = vunpack.c.l.b16 %v1448
        %v1932 = vunpack.c.h.b16 %v1448
        %v1933 = vunpack.c.l.b16 %v1449
        %v1934 = vunpack.c.l.b16 %v1450
        %v1935 = vunpack.c.h.b16 %v1450
        %v1936 = vunpack.c.l.b16 %v1451
        %v1937 = vunpack.c.h.b16 %v1451
        %v1938 = vunpack.c.l.b16 %v1452
        %v1939 = vunpack.c.l.b16 %v1453
        %v1940 = vunpack.c.h.b16 %v1453
        %v1941 = vunpack.c.l.b16 %v1454
        %v1942 = vunpack.c.h.b16 %v1454
        %v1943 = vunpack.c.l.b16 %v1455
        %v1944 = vunpack.c.l.b16 %v1456
        %v1945 = vunpack.c.h.b16 %v1456
        %v1946 = vunpack.c.l.b16 %v1457
        %v1947 = vunpack.c.h.b16 %v1457
        %v1948 = vunpack.c.l.b16 %v1458
        %v1949 = vunpack.c.l.b16 %v1459
        %v1950 = vunpack.c.h.b16 %v1459
        %v1951 = vunpack.c.l.b16 %v1460
        %v1952 = vunpack.c.h.b16 %v1460
        %v1953 = vunpack.c.l.b16 %v1461
        %v1954 = vunpack.c.l.b16 %v1462
        %v1955 = vunpack.c.h.b16 %v1462
        %v1956 = vunpack.c.l.b16 %v1463
        %v1957 = vunpack.c.h.b16 %v1463
        %v1958 = vunpack.c.l.b16 %v1464
        %v1959 = vunpack.c.l.b16 %v1465
        %v1960 = vunpack.c.h.b16 %v1465
        %v1961 = vunpack.c.l.b16 %v1466
        %v1962 = vunpack.c.h.b16 %v1466
        %v1963 = vunpack.c.l.b16 %v1467
        %v1964 = vunpack.c.l.b16 %v1468
        %v1965 = vunpack.c.h.b16 %v1468
        %v1966 = vunpack.c.l.b16 %v1469
        %v1967 = vunpack.c.h.b16 %v1469
        %v1968 = vunpack.c.l.b16 %v1470
        %v1969 = vunpack.c.l.b16 %v1471
        %v1970 = vunpack.c.h.b16 %v1471
        %v1971 = vunpack.c.l.b16 %v1472
        %v1972 = vunpack.c.h.b16 %v1472
        %v1973 = vunpack.c.l.b16 %v1473
        %v1974 = vunpack.c.l.b16 %v1474
        %v1975 = vunpack.c.h.b16 %v1474
        %v1976 = vunpack.c.l.b16 %v1475
        %v1977 = vunpack.c.h.b16 %v1475
        %v1978 = vunpack.c.l.b16 %v1476
        %v1979 = vunpack.c.l.b16 %v1477
        %v1980 = vunpack.c.h.b16 %v1477
        %v1981 = vunpack.c.l.b16 %v1478
        %v1982 = vunpack.c.h.b16 %v1478
        %v1983 = vunpack.c.l.b16 %v1479
        %v1984 = vunpack.c.l.b16 %v1480
        %v1985 = vunpack.c.h.b16 %v1480
        %v1986 = vunpack.c.l.b16 %v1481
        %v1987 = vunpack.c.h.b16 %v1481
        %v1988 = vunpack.c.l.b16 %v1482
        %v1989 = vunpack.c.l.b16 %v1483
        %v1990 = vunpack.c.h.b16 %v1483
        %v1991 = vunpack.c.l.b16 %v1484
        %v1992 = vunpack.c.h.b16 %v1484
        %v1993 = vunpack.c.l.b16 %v1485
        %v1994 = vunpack.c.l.b16 %v1486
        %v1995 = vunpack.c.h.b16 %v1486
        %v1996 = vunpack.c.l.b16 %v1487
        %v1997 = vunpack.c.h.b16 %v1487
        %v1998 = vunpack.c.l.b16 %v1488
        %v1999 = vunpack.c.l.b16 %v1489
        %v2000 = vunpack.c.h.b16 %v1489
        %v2001 = vunpack.c.l.b16 %v1490
        %v2002 = vunpack.c.h.b16 %v1490
        %v2003 = vunpack.c.l.b16 %v1491
        %v2004 = vunpack.c.l.b16 %v1492
        %v2005 = vunpack.c.h.b16 %v1492
        %v2006 = vunpack.c.l.b16 %v1493
        %v2007 = vunpack.c.h.b16 %v1493
        %v2008 = vunpack.c.l.b16 %v1494
        %v2009 = vunpack.c.l.b16 %v1495
        %v2010 = vunpack.c.h.b16 %v1495
        %v2011 = vunpack.c.l.b16 %v1496
        %v2012 = vunpack.c.h.b16 %v1496
        %v2013 = vunpack.c.l.b16 %v1497
        %v2014 = vunpack.c.l.b16 %v1498
        %v2015 = vunpack.c.h.b16 %v1498
        %v2016 = vunpack.c.l.b16 %v1499
        %v2017 = vunpack.c.h.b16 %v1499
        %v2018 = vunpack.c.l.b16 %v1500
        %v2019 = vunpack.c.l.b16 %v1501
        %v2020 = vunpack.c.h.b16 %v1501
        %v2021 = vunpack.c.l.b16 %v1502
        %v2022 = vunpack.c.h.b16 %v1502
        %v2023 = vunpack.c.l.b16 %v1503
        %v2024 = vunpack.c.l.b16 %v1504
        %v2025 = vunpack.c.h.b16 %v1504
        %v2026 = vunpack.c.l.b16 %v1505
        %v2027 = vunpack.c.h.b16 %v1505
        %v2028 = vunpack.c.l.b16 %v1506
        %v2029 = vunpack.c.l.b16 %v1507
        %v2030 = vunpack.c.h.b16 %v1507
        %v2031 = vunpack.c.l.b16 %v1508
        %v2032 = vunpack.c.h.b16 %v1508
        %v2033 = vunpack.c.l.b16 %v1509
        %v2034 = vpack.c.b16 %v1719, %v1714
        %v2035 = vpack.c.b16 %v1720, %v1715
        %v2036 = vpack.c.b16 %v1721, %v1716
        %v2037 = vpack.c.b16 %v1722, %v1717
        %v2038 = vpack.c.b16 %v1723, %v1718
        %v2039 = vpack.c.b16 %v1729, %v1724
        %v2040 = vpack.c.b16 %v1730, %v1725
        %v2041 = vpack.c.b16 %v1731, %v1726
        %v2042 = vpack.c.b16 %v1732, %v1727
        %v2043 = vpack.c.b16 %v1733, %v1728
        %v2044 = vpack.c.b16 %v1739, %v1734
        %v2045 = vpack.c.b16 %v1740, %v1735
        %v2046 = vpack.c.b16 %v1741, %v1736
        %v2047 = vpack.c.b16 %v1742, %v1737
        %v2048 = vpack.c.b16 %v1743, %v1738
        %v2049 = vpack.c.b16 %v1749, %v1744
        %v2050 = vpack.c.b16 %v1750, %v1745
        %v2051 = vpack.c.b16 %v1751, %v1746
        %v2052 = vpack.c.b16 %v1752, %v1747
        %v2053 = vpack.c.b16 %v1753, %v1748
        %v2054 = vpack.c.b16 %v1759, %v1754
        %v2055 = vpack.c.b16 %v1760, %v1755
        %v2056 = vpack.c.b16 %v1761, %v1756
        %v2057 = vpack.c.b16 %v1762, %v1757
        %v2058 = vpack.c.b16 %v1763, %v1758
        %v2059 = vpack.c.b16 %v1769, %v1764
        %v2060 = vpack.c.b16 %v1770, %v1765
        %v2061 = vpack.c.b16 %v1771, %v1766
        %v2062 = vpack.c.b16 %v1772, %v1767
        %v2063 = vpack.c.b16 %v1773, %v1768
        %v2064 = vpack.c.b16 %v1779, %v1774
        %v2065 = vpack.c.b16 %v1780, %v1775
        %v2066 = vpack.c.b16 %v1781, %v1776
        %v2067 = vpack.c.b16 %v1782, %v1777
        %v2068 = vpack.c.b16 %v1783, %v1778
        %v2069 = vpack.c.b16 %v1789, %v1784
        %v2070 = vpack.c.b16 %v1790, %v1785
        %v2071 = vpack.c.b16 %v1791, %v1786
        %v2072 = vpack.c.b16 %v1792, %v1787
        %v2073 = vpack.c.b16 %v1793, %v1788
        %v2074 = vpack.c.b16 %v1799, %v1794
        %v2075 = vpack.c.b16 %v1800, %v1795
        %v2076 = vpack.c.b16 %v1801, %v1796
        %v2077 = vpack.c.b16 %v1802, %v1797
        %v2078 = vpack.c.b16 %v1803, %v1798
        %v2079 = vpack.c.b16 %v1809, %v1804
        %v2080 = vpack.c.b16 %v1810, %v1805
        %v2081 = vpack.c.b16 %v1811, %v1806
        %v2082 = vpack.c.b16 %v1812, %v1807
        %v2083 = vpack.c.b16 %v1813, %v1808
        %v2084 = vpack.c.b16 %v1819, %v1814
        %v2085 = vpack.c.b16 %v1820, %v1815
        %v2086 = vpack.c.b16 %v1821, %v1816
        %v2087 = vpack.c.b16 %v1822, %v1817
        %v2088 = vpack.c.b16 %v1823, %v1818
        %v2089 = vpack.c.b16 %v1829, %v1824
        %v2090 = vpack.c.b16 %v1830, %v1825
        %v2091 = vpack.c.b16 %v1831, %v1826
        %v2092 = vpack.c.b16 %v1832, %v1827
        %v2093 = vpack.c.b16 %v1833, %v1828
        %v2094 = vpack.c.b16 %v1839, %v1834
        %v2095 = vpack.c.b16 %v1840, %v1835
        %v2096 = vpack.c.b16 %v1841, %v1836
        %v2097 = vpack.c.b16 %v1842, %v1837
        %v2098 = vpack.c.b16 %v1843, %v1838
        %v2099 = vpack.c.b16 %v1849, %v1844
        %v2100 = vpack.c.b16 %v1850, %v1845
        %v2101 = vpack.c.b16 %v1851, %v1846
        %v2102 = vpack.c.b16 %v1852, %v1847
        %v2103 = vpack.c.b16 %v1853, %v1848
        %v2104 = vpack.c.b16 %v1859, %v1854
        %v2105 = vpack.c.b16 %v1860, %v1855
        %v2106 = vpack.c.b16 %v1861, %v1856
        %v2107 = vpack.c.b16 %v1862, %v1857
        %v2108 = vpack.c.b16 %v1863, %v1858
        %v2109 = vpack.c.b16 %v1869, %v1864
        %v2110 = vpack.c.b16 %v1870, %v1865
        %v2111 = vpack.c.b16 %v1871, %v1866
        %v2112 = vpack.c.b16 %v1872, %v1867
        %v2113 = vpack.c.b16 %v1873, %v1868
        %v2114 = vpack.c.b16 %v1879, %v1874
        %v2115 = vpack.c.b16 %v1880, %v1875
        %v2116 = vpack.c.b16 %v1881, %v1876
        %v2117 = vpack.c.b16 %v1882, %v1877
        %v2118 = vpack.c.b16 %v1883, %v1878
        %v2119 = vpack.c.b16 %v1889, %v1884
        %v2120 = vpack.c.b16 %v1890, %v1885
        %v2121 = vpack.c.b16 %v1891, %v1886
        %v2122 = vpack.c.b16 %v1892, %v1887
        %v2123 = vpack.c.b16 %v1893, %v1888
        %v2124 = vpack.c.b16 %v1899, %v1894
        %v2125 = vpack.c.b16 %v1900, %v1895
        %v2126 = vpack.c.b16 %v1901, %v1896
        %v2127 = vpack.c.b16 %v1902, %v1897
        %v2128 = vpack.c.b16 %v1903, %v1898
        %v2129 = vpack.c.b16 %v1909, %v1904
        %v2130 = vpack.c.b16 %v1910, %v1905
        %v2131 = vpack.c.b16 %v1911, %v1906
        %v2132 = vpack.c.b16 %v1912, %v1907
        %v2133 = vpack.c.b16 %v1913, %v1908
        %v2134 = vpack.c.b16 %v1919, %v1914
        %v2135 = vpack.c.b16 %v1920, %v1915
        %v2136 = vpack.c.b16 %v1921, %v1916
        %v2137 = vpack.c.b16 %v1922, %v1917
        %v2138 = vpack.c.b16 %v1923, %v1918
        %v2139 = vpack.c.b16 %v1929, %v1924
        %v2140 = vpack.c.b16 %v1930, %v1925
        %v2141 = vpack.c.b16 %v1931, %v1926
        %v2142 = vpack.c.b16 %v1932, %v1927
        %v2143 = vpack.c.b16 %v1933, %v1928
        %v2144 = vpack.c.b16 %v1939, %v1934
        %v2145 = vpack.c.b16 %v1940, %v1935
        %v2146 = vpack.c.b16 %v1941, %v1936
        %v2147 = vpack.c.b16 %v1942, %v1937
        %v2148 = vpack.c.b16 %v1943, %v1938
        %v2149 = vpack.c.b16 %v1949, %v1944
        %v2150 = vpack.c.b16 %v1950, %v1945
        %v2151 = vpack.c.b16 %v1951, %v1946
        %v2152 = vpack.c.b16 %v1952, %v1947
        %v2153 = vpack.c.b16 %v1953, %v1948
        %v2154 = vpack.c.b16 %v1959, %v1954
        %v2155 = vpack.c.b16 %v1960, %v1955
        %v2156 = vpack.c.b16 %v1961, %v1956
        %v2157 = vpack.c.b16 %v1962, %v1957
        %v2158 = vpack.c.b16 %v1963, %v1958
        %v2159 = vpack.c.b16 %v1969, %v1964
        %v2160 = vpack.c.b16 %v1970, %v1965
        %v2161 = vpack.c.b16 %v1971, %v1966
        %v2162 = vpack.c.b16 %v1972, %v1967
        %v2163 = vpack.c.b16 %v1973, %v1968
        %v2164 = vpack.c.b16 %v1979, %v1974
        %v2165 = vpack.c.b16 %v1980, %v1975
        %v2166 = vpack.c.b16 %v1981, %v1976
        %v2167 = vpack.c.b16 %v1982, %v1977
        %v2168 = vpack.c.b16 %v1983, %v1978
        %v2169 = vpack.c.b16 %v1989, %v1984
        %v2170 = vpack.c.b16 %v1990, %v1985
        %v2171 = vpack.c.b16 %v1991, %v1986
        %v2172 = vpack.c.b16 %v1992, %v1987
        %v2173 = vpack.c.b16 %v1993, %v1988
        %v2174 = vpack.c.b16 %v1999, %v1994
        %v2175 = vpack.c.b16 %v2000, %v1995
        %v2176 = vpack.c.b16 %v2001, %v1996
        %v2177 = vpack.c.b16 %v2002, %v1997
        %v2178 = vpack.c.b16 %v2003, %v1998
        %v2179 = vpack.c.b16 %v2009, %v2004
        %v2180 = vpack.c.b16 %v2010, %v2005
        %v2181 = vpack.c.b16 %v2011, %v2006
        %v2182 = vpack.c.b16 %v2012, %v2007
        %v2183 = vpack.c.b16 %v2013, %v2008
        %v2184 = vpack.c.b16 %v2019, %v2014
        %v2185 = vpack.c.b16 %v2020, %v2015
        %v2186 = vpack.c.b16 %v2021, %v2016
        %v2187 = vpack.c.b16 %v2022, %v2017
        %v2188 = vpack.c.b16 %v2023, %v2018
        %v2189 = vpack.c.b16 %v2029, %v2024
        %v2190 = vpack.c.b16 %v2030, %v2025
        %v2191 = vpack.c.b16 %v2031, %v2026
        %v2192 = vpack.c.b16 %v2032, %v2027
        %v2193 = vpack.c.b16 %v2033, %v2028
        %2354 = vmatpush.bf16.msra.mxu0 %v2069
        %2355 = vmatpush.bf16.msra.mxu0 %v2064
        %2356 = vmatpush.bf16.msra.mxu0 %v2059
        %2357 = vmatpush.bf16.msra.mxu0 %v2054
        %2358 = vmatpush.bf16.msra.mxu0 %v2049
        %2359 = vmatpush.bf16.msra.mxu0 %v2044
        %2360 = vmatpush.bf16.msra.mxu0 %v2039
        %2361 = vmatpush.bf16.msra.mxu0 %v2034
        %2362 = vmatmul.bf16.gmra.mxu0 %v1314
        %v2363 = vpop.f32.mrf.mxu0
        %v2364 = vadd.f32 %v1512, %v2363
        %v2365 = vpop.f32.mrf.mxu0
        %2366 = vdwg.mxu0
        %2367 = vmatpush.bf16.msra.mxu0 %v2109
        %2368 = vmatpush.bf16.msra.mxu0 %v2104
        %2369 = vmatpush.bf16.msra.mxu0 %v2099
        %2370 = vmatpush.bf16.msra.mxu0 %v2094
        %2371 = vmatpush.bf16.msra.mxu0 %v2089
        %2372 = vmatpush.bf16.msra.mxu0 %v2084
        %2373 = vmatpush.bf16.msra.mxu0 %v2079
        %2374 = vmatpush.bf16.msra.mxu0 %v2074
        %2375 = vmatmul.bf16.gmra.mxu0 %v1315
        %v2376 = vpop.f32.mrf.mxu0
        %v2377 = vadd.f32 %v2364, %v2376
        %v2378 = vpop.f32.mrf.mxu0
        %2379 = vdwg.mxu0
        %2380 = vmatpush.bf16.msra.mxu0 %v2149
        %2381 = vmatpush.bf16.msra.mxu0 %v2144
        %2382 = vmatpush.bf16.msra.mxu0 %v2139
        %2383 = vmatpush.bf16.msra.mxu0 %v2134
        %2384 = vmatpush.bf16.msra.mxu0 %v2129
        %2385 = vmatpush.bf16.msra.mxu0 %v2124
        %2386 = vmatpush.bf16.msra.mxu0 %v2119
        %2387 = vmatpush.bf16.msra.mxu0 %v2114
        %2388 = vmatmul.bf16.gmra.mxu0 %v1316
        %v2389 = vpop.f32.mrf.mxu0
        %v2390 = vadd.f32 %v2377, %v2389
        %v2391 = vpop.f32.mrf.mxu0
        %2392 = vdwg.mxu0
        %2393 = vmatpush.bf16.msra.mxu0 %v2189
        %2394 = vmatpush.bf16.msra.mxu0 %v2184
        %2395 = vmatpush.bf16.msra.mxu0 %v2179
        %2396 = vmatpush.bf16.msra.mxu0 %v2174
        %2397 = vmatpush.bf16.msra.mxu0 %v2169
        %2398 = vmatpush.bf16.msra.mxu0 %v2164
        %2399 = vmatpush.bf16.msra.mxu0 %v2159
        %2400 = vmatpush.bf16.msra.mxu0 %v2154
        %2401 = vmatmul.bf16.gmra.mxu0 %v1317
        %v2402 = vpop.f32.mrf.mxu0
        %v2403 = vadd.f32 %v2390, %v2402
        %v2404 = vpop.f32.mrf.mxu0
        %2405 = vdwg.mxu0
        %2406 = vmatpush.bf16.msra.mxu0 %v2070
        %2407 = vmatpush.bf16.msra.mxu0 %v2065
        %2408 = vmatpush.bf16.msra.mxu0 %v2060
        %2409 = vmatpush.bf16.msra.mxu0 %v2055
        %2410 = vmatpush.bf16.msra.mxu0 %v2050
        %2411 = vmatpush.bf16.msra.mxu0 %v2045
        %2412 = vmatpush.bf16.msra.mxu0 %v2040
        %2413 = vmatpush.bf16.msra.mxu0 %v2035
        %2414 = vmatmul.bf16.gmra.mxu0 %v1314
        %v2415 = vpop.f32.mrf.mxu0
        %v2416 = vadd.f32 %v1513, %v2415
        %v2417 = vpop.f32.mrf.mxu0
        %2418 = vdwg.mxu0
        %2419 = vmatpush.bf16.msra.mxu0 %v2110
        %2420 = vmatpush.bf16.msra.mxu0 %v2105
        %2421 = vmatpush.bf16.msra.mxu0 %v2100
        %2422 = vmatpush.bf16.msra.mxu0 %v2095
        %2423 = vmatpush.bf16.msra.mxu0 %v2090
        %2424 = vmatpush.bf16.msra.mxu0 %v2085
        %2425 = vmatpush.bf16.msra.mxu0 %v2080
        %2426 = vmatpush.bf16.msra.mxu0 %v2075
        %2427 = vmatmul.bf16.gmra.mxu0 %v1315
        %v2428 = vpop.f32.mrf.mxu0
        %v2429 = vadd.f32 %v2416, %v2428
        %v2430 = vpop.f32.mrf.mxu0
        %2431 = vdwg.mxu0
        %2432 = vmatpush.bf16.msra.mxu0 %v2150
        %2433 = vmatpush.bf16.msra.mxu0 %v2145
        %2434 = vmatpush.bf16.msra.mxu0 %v2140
        %2435 = vmatpush.bf16.msra.mxu0 %v2135
        %2436 = vmatpush.bf16.msra.mxu0 %v2130
        %2437 = vmatpush.bf16.msra.mxu0 %v2125
        %2438 = vmatpush.bf16.msra.mxu0 %v2120
        %2439 = vmatpush.bf16.msra.mxu0 %v2115
        %2440 = vmatmul.bf16.gmra.mxu0 %v1316
        %v2441 = vpop.f32.mrf.mxu0
        %v2442 = vadd.f32 %v2429, %v2441
        %v2443 = vpop.f32.mrf.mxu0
        %2444 = vdwg.mxu0
        %2445 = vmatpush.bf16.msra.mxu0 %v2190
        %2446 = vmatpush.bf16.msra.mxu0 %v2185
        %2447 = vmatpush.bf16.msra.mxu0 %v2180
        %2448 = vmatpush.bf16.msra.mxu0 %v2175
        %2449 = vmatpush.bf16.msra.mxu0 %v2170
        %2450 = vmatpush.bf16.msra.mxu0 %v2165
        %2451 = vmatpush.bf16.msra.mxu0 %v2160
        %2452 = vmatpush.bf16.msra.mxu0 %v2155
        %2453 = vmatmul.bf16.gmra.mxu0 %v1317
        %v2454 = vpop.f32.mrf.mxu0
        %v2455 = vadd.f32 %v2442, %v2454
        %v2456 = vpop.f32.mrf.mxu0
        %2457 = vdwg.mxu0
        %2458 = vmatpush.bf16.msra.mxu0 %v2071
        %2459 = vmatpush.bf16.msra.mxu0 %v2066
        %2460 = vmatpush.bf16.msra.mxu0 %v2061
        %2461 = vmatpush.bf16.msra.mxu0 %v2056
        %2462 = vmatpush.bf16.msra.mxu0 %v2051
        %2463 = vmatpush.bf16.msra.mxu0 %v2046
        %2464 = vmatpush.bf16.msra.mxu0 %v2041
        %2465 = vmatpush.bf16.msra.mxu0 %v2036
        %2466 = vmatmul.bf16.gmra.mxu0 %v1314
        %v2467 = vpop.f32.mrf.mxu0
        %v2468 = vadd.f32 %v1514, %v2467
        %v2469 = vpop.f32.mrf.mxu0
        %2470 = vdwg.mxu0
        %2471 = vmatpush.bf16.msra.mxu0 %v2111
        %2472 = vmatpush.bf16.msra.mxu0 %v2106
        %2473 = vmatpush.bf16.msra.mxu0 %v2101
        %2474 = vmatpush.bf16.msra.mxu0 %v2096
        %2475 = vmatpush.bf16.msra.mxu0 %v2091
        %2476 = vmatpush.bf16.msra.mxu0 %v2086
        %2477 = vmatpush.bf16.msra.mxu0 %v2081
        %2478 = vmatpush.bf16.msra.mxu0 %v2076
        %2479 = vmatmul.bf16.gmra.mxu0 %v1315
        %v2480 = vpop.f32.mrf.mxu0
        %v2481 = vadd.f32 %v2468, %v2480
        %v2482 = vpop.f32.mrf.mxu0
        %2483 = vdwg.mxu0
        %2484 = vmatpush.bf16.msra.mxu0 %v2151
        %2485 = vmatpush.bf16.msra.mxu0 %v2146
        %2486 = vmatpush.bf16.msra.mxu0 %v2141
        %2487 = vmatpush.bf16.msra.mxu0 %v2136
        %2488 = vmatpush.bf16.msra.mxu0 %v2131
        %2489 = vmatpush.bf16.msra.mxu0 %v2126
        %2490 = vmatpush.bf16.msra.mxu0 %v2121
        %2491 = vmatpush.bf16.msra.mxu0 %v2116
        %2492 = vmatmul.bf16.gmra.mxu0 %v1316
        %v2493 = vpop.f32.mrf.mxu0
        %v2494 = vadd.f32 %v2481, %v2493
        %v2495 = vpop.f32.mrf.mxu0
        %2496 = vdwg.mxu0
        %2497 = vmatpush.bf16.msra.mxu0 %v2191
        %2498 = vmatpush.bf16.msra.mxu0 %v2186
        %2499 = vmatpush.bf16.msra.mxu0 %v2181
        %2500 = vmatpush.bf16.msra.mxu0 %v2176
        %2501 = vmatpush.bf16.msra.mxu0 %v2171
        %2502 = vmatpush.bf16.msra.mxu0 %v2166
        %2503 = vmatpush.bf16.msra.mxu0 %v2161
        %2504 = vmatpush.bf16.msra.mxu0 %v2156
        %2505 = vmatmul.bf16.gmra.mxu0 %v1317
        %v2506 = vpop.f32.mrf.mxu0
        %v2507 = vadd.f32 %v2494, %v2506
        %v2508 = vpop.f32.mrf.mxu0
        %2509 = vdwg.mxu0
        %2510 = vmatpush.bf16.msra.mxu0 %v2072
        %2511 = vmatpush.bf16.msra.mxu0 %v2067
        %2512 = vmatpush.bf16.msra.mxu0 %v2062
        %2513 = vmatpush.bf16.msra.mxu0 %v2057
        %2514 = vmatpush.bf16.msra.mxu0 %v2052
        %2515 = vmatpush.bf16.msra.mxu0 %v2047
        %2516 = vmatpush.bf16.msra.mxu0 %v2042
        %2517 = vmatpush.bf16.msra.mxu0 %v2037
        %2518 = vmatmul.bf16.gmra.mxu0 %v1314
        %v2519 = vpop.f32.mrf.mxu0
        %v2520 = vadd.f32 %v1515, %v2519
        %v2521 = vpop.f32.mrf.mxu0
        %2522 = vdwg.mxu0
        %2523 = vmatpush.bf16.msra.mxu0 %v2112
        %2524 = vmatpush.bf16.msra.mxu0 %v2107
        %2525 = vmatpush.bf16.msra.mxu0 %v2102
        %2526 = vmatpush.bf16.msra.mxu0 %v2097
        %2527 = vmatpush.bf16.msra.mxu0 %v2092
        %2528 = vmatpush.bf16.msra.mxu0 %v2087
        %2529 = vmatpush.bf16.msra.mxu0 %v2082
        %2530 = vmatpush.bf16.msra.mxu0 %v2077
        %2531 = vmatmul.bf16.gmra.mxu0 %v1315
        %v2532 = vpop.f32.mrf.mxu0
        %v2533 = vadd.f32 %v2520, %v2532
        %v2534 = vpop.f32.mrf.mxu0
        %2535 = vdwg.mxu0
        %2536 = vmatpush.bf16.msra.mxu0 %v2152
        %2537 = vmatpush.bf16.msra.mxu0 %v2147
        %2538 = vmatpush.bf16.msra.mxu0 %v2142
        %2539 = vmatpush.bf16.msra.mxu0 %v2137
        %2540 = vmatpush.bf16.msra.mxu0 %v2132
        %2541 = vmatpush.bf16.msra.mxu0 %v2127
        %2542 = vmatpush.bf16.msra.mxu0 %v2122
        %2543 = vmatpush.bf16.msra.mxu0 %v2117
        %2544 = vmatmul.bf16.gmra.mxu0 %v1316
        %v2545 = vpop.f32.mrf.mxu0
        %v2546 = vadd.f32 %v2533, %v2545
        %v2547 = vpop.f32.mrf.mxu0
        %2548 = vdwg.mxu0
        %2549 = vmatpush.bf16.msra.mxu0 %v2192
        %2550 = vmatpush.bf16.msra.mxu0 %v2187
        %2551 = vmatpush.bf16.msra.mxu0 %v2182
        %2552 = vmatpush.bf16.msra.mxu0 %v2177
        %2553 = vmatpush.bf16.msra.mxu0 %v2172
        %2554 = vmatpush.bf16.msra.mxu0 %v2167
        %2555 = vmatpush.bf16.msra.mxu0 %v2162
        %2556 = vmatpush.bf16.msra.mxu0 %v2157
        %2557 = vmatmul.bf16.gmra.mxu0 %v1317
        %v2558 = vpop.f32.mrf.mxu0
        %v2559 = vadd.f32 %v2546, %v2558
        %v2560 = vpop.f32.mrf.mxu0
        %2561 = vdwg.mxu0
        %2562 = vmatpush.bf16.msra.mxu0 %v2073
        %2563 = vmatpush.bf16.msra.mxu0 %v2068
        %2564 = vmatpush.bf16.msra.mxu0 %v2063
        %2565 = vmatpush.bf16.msra.mxu0 %v2058
        %2566 = vmatpush.bf16.msra.mxu0 %v2053
        %2567 = vmatpush.bf16.msra.mxu0 %v2048
        %2568 = vmatpush.bf16.msra.mxu0 %v2043
        %2569 = vmatpush.bf16.msra.mxu0 %v2038
        %2570 = vmatmul.bf16.gmra.mxu0 %v1314
        %v2571 = vpop.f32.mrf.mxu0
        %v2572 = vadd.f32 %v1516, %v2571
        %v2573 = vpop.f32.mrf.mxu0
        %2574 = vdwg.mxu0
        %2575 = vmatpush.bf16.msra.mxu0 %v2113
        %2576 = vmatpush.bf16.msra.mxu0 %v2108
        %2577 = vmatpush.bf16.msra.mxu0 %v2103
        %2578 = vmatpush.bf16.msra.mxu0 %v2098
        %2579 = vmatpush.bf16.msra.mxu0 %v2093
        %2580 = vmatpush.bf16.msra.mxu0 %v2088
        %2581 = vmatpush.bf16.msra.mxu0 %v2083
        %2582 = vmatpush.bf16.msra.mxu0 %v2078
        %2583 = vmatmul.bf16.gmra.mxu0 %v1315
        %v2584 = vpop.f32.mrf.mxu0
        %v2585 = vadd.f32 %v2572, %v2584
        %v2586 = vpop.f32.mrf.mxu0
        %2587 = vdwg.mxu0
        %2588 = vmatpush.bf16.msra.mxu0 %v2153
        %2589 = vmatpush.bf16.msra.mxu0 %v2148
        %2590 = vmatpush.bf16.msra.mxu0 %v2143
        %2591 = vmatpush.bf16.msra.mxu0 %v2138
        %2592 = vmatpush.bf16.msra.mxu0 %v2133
        %2593 = vmatpush.bf16.msra.mxu0 %v2128
        %2594 = vmatpush.bf16.msra.mxu0 %v2123
        %2595 = vmatpush.bf16.msra.mxu0 %v2118
        %2596 = vmatmul.bf16.gmra.mxu0 %v1316
        %v2597 = vpop.f32.mrf.mxu0
        %v2598 = vadd.f32 %v2585, %v2597
        %v2599 = vpop.f32.mrf.mxu0
        %2600 = vdwg.mxu0
        %2601 = vmatpush.bf16.msra.mxu0 %v2193
        %2602 = vmatpush.bf16.msra.mxu0 %v2188
        %2603 = vmatpush.bf16.msra.mxu0 %v2183
        %2604 = vmatpush.bf16.msra.mxu0 %v2178
        %2605 = vmatpush.bf16.msra.mxu0 %v2173
        %2606 = vmatpush.bf16.msra.mxu0 %v2168
        %2607 = vmatpush.bf16.msra.mxu0 %v2163
        %2608 = vmatpush.bf16.msra.mxu0 %v2158
        %2609 = vmatmul.bf16.gmra.mxu0 %v1317
        %v2610 = vpop.f32.mrf.mxu0
        %v2611 = vadd.f32 %v2598, %v2610
        %v2612 = vpop.f32.mrf.mxu0
        %2613 = vdwg.mxu0
        %v2618 = vrot.slane %v2455, 6
        %v2619 = vrot.slane %v2507, 4
        %v2620 = vrot.slane %v2559, 2
        %v2621 = vsel %vm1275, %v2403, %v2618
        %v2622 = vsel %vm1277, %v2619, %v2620
        %v2623 = vsel %vm1279, %v2621, %v2622
        %2625 = vst [vmem:[%s274] sm:$0xff] %v2623
        %2626 = vst [vmem:[%s274 + $0x8] sm:$0x3] %v2611
      $region48: #{_lambda_.13} parent=39 // pred_fallthru
        _
      %p2627 = scmp.lt.s32.totalorder %s20, 0
      %s2628 = scalar_select %p2627, %s20, 0
      %s2629 = smul.addr %s2628, 5
      %s2630 = smul.addr %s2629, 2
      %s2631 = scalar_lea.vmem %s5, %s2630
      // Predicated region
      $region49: #{_lambda_.13} parent=39 // pred_check
        %p2632 = pneg %p163
      $region50: #{_lambda_.13} parent=39 // pred_check_branch
        %2634 = sbr.rel (%p2632) target = $region52
      $region51: #{_lambda_.13} parent=39 // pred_region
        _
      $region52: #{_lambda_.13} parent=39 // pred_fallthru
        _
      // Predicated region
      $region53: #{_lambda_.13} parent=39 // pred_check
        %p2635 = pneg %p163
      $region54: #{_lambda_.13} parent=39 // pred_check_branch
        %2637 = sbr.rel (%p2635) target = $region56
      $region55: #{_lambda_.13} parent=39 // pred_region
        %p2638 = scmp.lt.s32.totalorder %s20, 0
        %s2639 = scalar_select %p2638, %s20, 0
        %s2640 = smul.addr %s2639, 5
        %s2641 = smul.addr %s2640, 2
        %s2642 = scalar_lea.vmem %s5, %s2641
      $region56: #{_lambda_.13} parent=39 // pred_fallthru
        _
    $region40: #{_lambda_.13} parent=5 // pred_fallthru
      _
    %p2643 = scmp.le.s32.totalorder 2, %s11
    // Predicated region
    $region57: #{_lambda_.13} parent=5 // pred_check
      %p2644 = pneg %p2643
    $region58: #{_lambda_.13} parent=5 // pred_check_branch
      %2646 = sbr.rel (%p2644) target = $region60
    $region59: #{_lambda_.13} parent=5 // pred_region
      %s2647 = ssub.s32 %s11, 2
    $region60: #{_lambda_.13} parent=5 // pred_fallthru
      _
  $region6: #{_lambda_.13} parent=0 // loop_footer
    %s15 = sadd.s32 1, %s11
  $region7: #{_lambda_.13} parent=0 // loop_footer_branch
    %10 = sbr.rel target = $region3
  $region8: #{_lambda_.13} parent=0 // loop_exit
    _

</llo_original>
